<compile_context>
chip_gen: v7x
topology: tpu7x:2x2x1
jax: 0.10.0
libtpu: 0.0.40
codegen_flags: <defaults>
</compile_context>

<pallas_src>
import functools

import jax
import jax.numpy as jnp
from jax.experimental import pallas as pl
from jax.experimental.pallas import tpu as pltpu

# ---- constants from model.py ----
NUM_BOND_TYPE = 6
NUM_BOND_DIRECTION = 3
NUM_ATOM_TYPE = 120
NUM_CHIRALITY_TAG = 3
NUM_ATOM_CLASSES = 121      # gnn.linear_pred_atoms output width (used by the forward pass)

BN_EPS = 1e-5


def _rup(x, m):
    return ((x + m - 1) // m) * m


# ----------------------------------------------------------------------------
# Fused Pallas kernel: all GIN layers + virtual-node updates + pool + prediction
# ----------------------------------------------------------------------------
def _fused_gnn_kernel(
        # resident (constant index_map, single-buffered) inputs
        a_ref, h0_ref, bsum_ref, cinv_ref, nmask_ref, gmask_ref,
        gvn_ref, pvn_ref, wp_ref, bp_ref,
        # per-layer (stacked, leading dim squeezed, indexed by grid step) inputs
        eagg_ref, w1_ref, b1_ref, w2_ref, b2_ref, gam_ref, bet_ref,
        vw1_ref, vb1_ref, vg1_ref, vbt1_ref, vw2_ref, vb2_ref, vg2_ref, vbt2_ref,
        # output
        out_ref,
        # scratch (persists across grid steps)
        h_st, vn_st,
        *, n_nodes, n_graphs, num_layer):
    l = pl.program_id(0)
    last = num_layer - 1

    nmask = nmask_ref[...]          # (N_pad, 1) 1.0 for real nodes
    gmask = gmask_ref[...]          # (G_pad, 1) 1.0 for real graphs
    bsum = bsum_ref[...]            # (G_pad, N_pad) bf16 0/1 graph<-node incidence

    @pl.when(l == 0)
    def _init():
        h_st[...] = h0_ref[...]
        # GNN_Virtualnode.virtualnode_embedding (constant-initialized to 0 in the module)
        vn_st[...] = jnp.broadcast_to(gvn_ref[...], vn_st.shape) * gmask

    vn = vn_st[...]

    # ---- layer input: h + virtualnode_embedding[batch]; broadcast = Bsum^T @ vn ----
    bcast = jax.lax.dot_general(
        bsum, vn.astype(jnp.bfloat16),
        dimension_numbers=(((0,), (0,)), ((), ())),
        preferred_element_type=jnp.float32)
    h_in = h_st[...] + bcast
    h_in_b = h_in.astype(jnp.bfloat16)

    # graph add-pool of h_in used by the virtual-node update (computed up front so h_in's
    # live range ends after the two matmuls below)
    vn_pool = jnp.dot(bsum, h_in_b, preferred_element_type=jnp.float32)

    # ---- GINConv 'add' aggregation: A @ h_in (bf16 MXU, f32 acc) + edge-embedding sums ----
    aggr = (jnp.dot(a_ref[...], h_in_b, preferred_element_type=jnp.float32)
            + eagg_ref[...].astype(jnp.float32))

    # ---- GIN MLP: ReLU(aggr @ W1 + b1) @ W2 + b2 (bf16 operands, f32 accumulation) ----
    hid = jnp.maximum(
        jnp.dot(aggr.astype(jnp.bfloat16), w1_ref[...],
                preferred_element_type=jnp.float32) + b1_ref[...], 0.0)
    z = (jnp.dot(hid.astype(jnp.bfloat16), w2_ref[...],
                 preferred_element_type=jnp.float32) + b2_ref[...])

    # ---- BatchNorm1d (train-mode biased stats over the real N nodes; two-pass variance) ----
    inv_n = 1.0 / n_nodes
    mean = jnp.sum(z * nmask, axis=0, keepdims=True) * inv_n
    zc = (z - mean) * nmask
    var = jnp.sum(zc * zc, axis=0, keepdims=True) * inv_n
    y = gam_ref[...] * (zc * jax.lax.rsqrt(var + BN_EPS)) + bet_ref[...]

    # ---- ReLU + commit node state on all but the last layer (dropout p=0 is identity) ----
    @pl.when(l < last)
    def _commit_h():
        h_st[...] = jnp.maximum(y, 0.0) * nmask

    # ---- virtual-node update for layers 0..L-2:
    #      vn <- MLP_vn( global_add_pool(h_in, batch) + vn )
    #      MLP_vn = Lin(D,2D) -> BN(2D) -> ReLU -> Lin(2D,D) -> BN(D) -> ReLU ----
    @pl.when(l < last)
    def _vn_update():
        inv_g = 1.0 / n_graphs
        vtmp = vn_pool + vn
        a1 = (jnp.dot(vtmp.astype(jnp.bfloat16), vw1_ref[...],
                      preferred_element_type=jnp.float32) + vb1_ref[...])
        m1 = jnp.sum(a1 * gmask, axis=0, keepdims=True) * inv_g
        c1 = (a1 - m1) * gmask
        v1 = jnp.sum(c1 * c1, axis=0, keepdims=True) * inv_g
        a1 = jnp.maximum(
            vg1_ref[...] * (c1 * jax.lax.rsqrt(v1 + BN_EPS)) + vbt1_ref[...], 0.0)
        a2 = (jnp.dot(a1.astype(jnp.bfloat16), vw2_ref[...],
                      preferred_element_type=jnp.float32) + vb2_ref[...])
        m2 = jnp.sum(a2 * gmask, axis=0, keepdims=True) * inv_g
        c2 = (a2 - m2) * gmask
        v2 = jnp.sum(c2 * c2, axis=0, keepdims=True) * inv_g
        a2 = jnp.maximum(
            vg2_ref[...] * (c2 * jax.lax.rsqrt(v2 + BN_EPS)) + vbt2_ref[...], 0.0)
        vn_st[...] = a2 * gmask

    # ---- last layer: mean-pool (+ graphpred virtualnode emb) + linear_pred_atoms ----
    @pl.when(l == last)
    def _predict():
        h_last = (y * nmask).astype(jnp.bfloat16)      # JK='last': BN output of final layer
        pooled = (jnp.dot(bsum, h_last, preferred_element_type=jnp.float32)
                  * cinv_ref[...] + pvn_ref[...])
        out_ref[...] = (jnp.dot(pooled.astype(jnp.bfloat16), wp_ref[...],
                                preferred_element_type=jnp.float32) + bp_ref[...])


# ----------------------------------------------------------------------------
# Parameter init (deterministic, xavier-uniform-like)
# ----------------------------------------------------------------------------
def _xavier(key, shape):
    fan_in, fan_out = shape[0], shape[1]
    a = jnp.sqrt(6.0 / (fan_in + fan_out))
    return jax.random.uniform(key, shape, jnp.float32, -a, a)


def init_params(key, num_layer, emb_dim):
    keys = iter(jax.random.split(key, 3 + 6 * num_layer + 4 * max(num_layer - 1, 1)))
    p = {
        "emb_dim": emb_dim,
        "x_emb1": _xavier(next(keys), (NUM_ATOM_TYPE, emb_dim)),
        "x_emb2": _xavier(next(keys), (NUM_CHIRALITY_TAG, emb_dim)),
        # gnn.linear_pred_atoms (the head used by GNN_graphpred_Virtualnode.forward)
        "W_pred_atoms": _xavier(next(keys), (emb_dim, NUM_ATOM_CLASSES)),
        "b_pred_atoms": jnp.zeros((1, NUM_ATOM_CLASSES), jnp.float32),
        # both virtual-node embedding tables are constant-initialized to 0 in the module
        "gnn_vn_emb": jnp.zeros((1, emb_dim), jnp.float32),
        "pred_vn_emb": jnp.zeros((1, emb_dim), jnp.float32),
        "layers": [],
        "vn_mlps": [],
    }
    for _ in range(num_layer):
        p["layers"].append({
            "edge_emb1": _xavier(next(keys), (NUM_BOND_TYPE, emb_dim)),
            "edge_emb2": _xavier(next(keys), (NUM_BOND_DIRECTION, emb_dim)),
            "W1": _xavier(next(keys), (emb_dim, 2 * emb_dim)),
            "b1": 0.01 * jax.random.normal(next(keys), (1, 2 * emb_dim), jnp.float32),
            "W2": _xavier(next(keys), (2 * emb_dim, emb_dim)),
            "b2": 0.01 * jax.random.normal(next(keys), (1, emb_dim), jnp.float32),
            "gamma": jnp.ones((1, emb_dim), jnp.float32),
            "beta": jnp.zeros((1, emb_dim), jnp.float32),
        })
    for _ in range(num_layer - 1):
        p["vn_mlps"].append({
            "W1": _xavier(next(keys), (emb_dim, 2 * emb_dim)),
            "b1": 0.01 * jax.random.normal(next(keys), (1, 2 * emb_dim), jnp.float32),
            "gamma1": jnp.ones((1, 2 * emb_dim), jnp.float32),
            "beta1": jnp.zeros((1, 2 * emb_dim), jnp.float32),
            "W2": _xavier(next(keys), (2 * emb_dim, emb_dim)),
            "b2": 0.01 * jax.random.normal(next(keys), (1, emb_dim), jnp.float32),
            "gamma2": jnp.ones((1, emb_dim), jnp.float32),
            "beta2": jnp.zeros((1, emb_dim), jnp.float32),
        })
    return p


# ----------------------------------------------------------------------------
# Forward wrapper
# ----------------------------------------------------------------------------
def gnn_graphpred_virtualnode_forward(params, x, edge_index, edge_attr, batch, num_graphs):
    """x: (N,2) int atom features; edge_index: (2,E) int; edge_attr: (E,2) int;
    batch: (N,) int graph id per node.  Returns (num_graphs, 121) predictions."""
    N = x.shape[0]
    D = params["emb_dim"]
    H = 2 * D
    L = len(params["layers"])

    D_pad = _rup(D, 128)
    H_pad = _rup(H, 128)
    T_pad = _rup(NUM_ATOM_CLASSES, 128)
    N_pad = _rup(N, 128)            # lane-dense contraction dim for A@h and pooling matmuls
    G_pad = _rup(num_graphs, 16)    # bf16-friendly sublane alignment for Bsum / pooled

    # --- add self loops (GINConv.forward): attr = [4, 0] ---
    loop_idx = jnp.arange(N, dtype=edge_index.dtype)
    edge_index_sl = jnp.concatenate(
        [edge_index, jnp.stack([loop_idx, loop_idx], axis=0)], axis=1)
    self_loop_attr = jnp.concatenate(
        [jnp.full((N, 1), 4, edge_attr.dtype), jnp.zeros((N, 1), edge_attr.dtype)], axis=1)
    edge_attr_sl = jnp.concatenate([edge_attr, self_loop_attr], axis=0)
    src, tgt = edge_index_sl[0], edge_index_sl[1]
    E_sl = edge_attr_sl.shape[0]

    # --- one-time dense adjacency (bf16: small exact integer counts) ---
    A = jnp.zeros((N_pad, N_pad), jnp.float32).at[tgt, src].add(1.0).astype(jnp.bfloat16)

    # --- one-time incidence matrix; per-layer edge-emb aggregation as ONE batched matmul ---
    M = jnp.zeros((N_pad, E_sl), jnp.float32).at[tgt, jnp.arange(E_sl)].add(1.0)
    ee1 = jnp.stack([lp["edge_emb1"] for lp in params["layers"]])        # (L, 6, D)
    ee2 = jnp.stack([lp["edge_emb2"] for lp in params["layers"]])        # (L, 3, D)
    eemb = (jnp.take(ee1, edge_attr_sl[:, 0], axis=1)
            + jnp.take(ee2, edge_attr_sl[:, 1], axis=1))                 # (L, E_sl, D)
    edge_agg = jnp.einsum("ne,led->lnd", M, eemb.astype(jnp.float32))    # (L, N_pad, D)
    edge_agg = jnp.pad(edge_agg, ((0, 0), (0, 0), (0, D_pad - D))).astype(jnp.bfloat16)

    # --- input atom embedding (lane-dense zero-padded) ---
    h0 = (jnp.take(params["x_emb1"], x[:, 0], axis=0)
          + jnp.take(params["x_emb2"], x[:, 1], axis=0))
    h0 = jnp.pad(h0.astype(jnp.float32), ((0, N_pad - N), (0, D_pad - D)))

    # --- pooling / broadcast incidence, mean-pool scale & masks ---
    onehot = (batch[None, :] == jnp.arange(num_graphs)[:, None]).astype(jnp.float32)
    Bsum = jnp.pad(onehot, ((0, G_pad - num_graphs), (0, N_pad - N))).astype(jnp.bfloat16)
    counts = jnp.maximum(jnp.sum(onehot, axis=1, keepdims=True), 1.0)
    cinv = jnp.pad(1.0 / counts, ((0, G_pad - num_graphs), (0, 0)))      # (G_pad, 1) f32
    nmask = (jnp.arange(N_pad) < N).astype(jnp.float32)[:, None]
    gmask = (jnp.arange(G_pad) < num_graphs).astype(jnp.float32)[:, None]

    # --- lane-dense (zero padded) parameters; matmul weights in bf16, affine terms in f32 ---
    def pad2(w, r, c, dtype=jnp.float32):
        w = w.astype(jnp.float32)
        return jnp.pad(w, ((0, r - w.shape[0]), (0, c - w.shape[1]))).astype(dtype)

    bf = jnp.bfloat16
    W1s = jnp.stack([pad2(lp["W1"], D_pad, H_pad, bf) for lp in params["layers"]])
    b1s = jnp.stack([pad2(lp["b1"], 1, H_pad) for lp in params["layers"]])
    W2s = jnp.stack([pad2(lp["W2"], H_pad, D_pad, bf) for lp in params["layers"]])
    b2s = jnp.stack([pad2(lp["b2"], 1, D_pad) for lp in params["layers"]])
    gammas = jnp.stack([pad2(lp["gamma"], 1, D_pad) for lp in params["layers"]])
    betas = jnp.stack([pad2(lp["beta"], 1, D_pad) for lp in params["layers"]])

    def stack_vn(name, r, c, dtype=jnp.float32):
        mats = [pad2(vp[name], r, c, dtype) for vp in params["vn_mlps"]]
        mats.append(jnp.zeros((r, c), dtype))     # dummy slot for the last layer
        return jnp.stack(mats)

    Vw1 = stack_vn("W1", D_pad, H_pad, bf);  Vb1 = stack_vn("b1", 1, H_pad)
    Vg1 = stack_vn("gamma1", 1, H_pad);      Vbt1 = stack_vn("beta1", 1, H_pad)
    Vw2 = stack_vn("W2", H_pad, D_pad, bf);  Vb2 = stack_vn("b2", 1, D_pad)
    Vg2 = stack_vn("gamma2", 1, D_pad);      Vbt2 = stack_vn("beta2", 1, D_pad)

    Wp = pad2(params["W_pred_atoms"], D_pad, T_pad, bf)
    bp = pad2(params["b_pred_atoms"], 1, T_pad)
    gvn = pad2(params["gnn_vn_emb"], 1, D_pad)
    pvn = pad2(params["pred_vn_emb"], 1, D_pad)

    resident_arrays = (A, h0, Bsum, cinv, nmask, gmask, gvn, pvn, Wp, bp)
    layer_arrays = (edge_agg, W1s, b1s, W2s, b2s, gammas, betas,
                    Vw1, Vb1, Vg1, Vbt1, Vw2, Vb2, Vg2, Vbt2)

    kern = functools.partial(_fused_gnn_kernel,
                             n_nodes=N, n_graphs=num_graphs, num_layer=L)

    # --- per-generation VMEM budget: ~3/4 of physical (96 MiB on v5e/v6e, 48 MiB on v7x) ---
    try:
        vmem_cap = int(pltpu.get_tpu_info().vmem_capacity_bytes)
    except Exception:
        vmem_cap = 64 * 1024 * 1024
    vmem_limit = max(32 * 1024 * 1024, min((vmem_cap * 3) // 4, 110 * 1024 * 1024))

    flops = int(2 * L * (N_pad * N_pad * D_pad
                         + 2 * N_pad * D_pad * H_pad
                         + 2 * G_pad * N_pad * D_pad
                         + 2 * G_pad * D_pad * H_pad)
                + 2 * (G_pad * N_pad * D_pad + G_pad * D_pad * T_pad))
    bytes_accessed = int(sum(int(a.size) * a.dtype.itemsize
                             for a in resident_arrays + layer_arrays) + G_pad * T_pad * 4)
    cost = pl.CostEstimate(flops=flops,
                           transcendentals=int(L * 2 * (D_pad + H_pad)),
                           bytes_accessed=bytes_accessed)

    def _run(single_buffer_residents):
        if single_buffer_residents:
            res_specs = [pl.BlockSpec(a.shape, lambda l, n=a.ndim: (0,) * n,
                                      pipeline_mode=pl.Buffered(1))
                         for a in resident_arrays]
        else:
            res_specs = [pl.BlockSpec(a.shape, lambda l, n=a.ndim: (0,) * n)
                         for a in resident_arrays]
        lay_specs = [pl.BlockSpec((pl.Squeezed(),) + a.shape[1:], lambda l: (l, 0, 0))
                     for a in layer_arrays]
        return pl.pallas_call(
            kern,
            out_shape=jax.ShapeDtypeStruct((G_pad, T_pad), jnp.float32),
            grid_spec=pltpu.PrefetchScalarGridSpec(
                num_scalar_prefetch=0,
                grid=(L,),
                in_specs=res_specs + lay_specs,
                out_specs=pl.BlockSpec((G_pad, T_pad), lambda l: (0, 0)),
                scratch_shapes=[pltpu.VMEM((N_pad, D_pad), jnp.float32),   # node state h
                                pltpu.VMEM((G_pad, D_pad), jnp.float32)],  # virtual-node state
            ),
            compiler_params=pltpu.CompilerParams(
                dimension_semantics=("arbitrary",),          # layer axis carries state
                vmem_limit_bytes=vmem_limit),
            cost_estimate=cost,
        )(*(resident_arrays + layer_arrays))

    try:
        out = _run(single_buffer_residents=True)
    except Exception:
        # pl.Buffered(1) not accepted on this JAX build; fall back to default double buffering.
        out = _run(single_buffer_residents=False)

    return out[:num_graphs, :NUM_ATOM_CLASSES]


# ----------------------------------------------------------------------------
# main
# ----------------------------------------------------------------------------
if __name__ == "__main__":
    num_layer = 2
    emb_dim = 32
    nodes_per_graph = 8
    num_graphs = 2
    N = nodes_per_graph * num_graphs  # 16 nodes

    key = jax.random.PRNGKey(0)
    k_params, k_x0, k_x1, k_ea0, k_ea1 = jax.random.split(key, 5)
    params = init_params(k_params, num_layer, emb_dim)

    # node features: (N, 2) ints [atom_type, chirality_tag]
    x = jnp.stack([
        jax.random.randint(k_x0, (N,), 0, NUM_ATOM_TYPE),
        jax.random.randint(k_x1, (N,), 0, NUM_CHIRALITY_TAG),
    ], axis=1).astype(jnp.int32)

    # edges: bidirectional ring inside each graph -> (2, E) with E = 32
    srcs, tgts = [], []
    for g in range(num_graphs):
        base = g * nodes_per_graph
        for i in range(nodes_per_graph):
            a = base + i
            b = base + (i + 1) % nodes_per_graph
            srcs += [a, b]
            tgts += [b, a]
    edge_index = jnp.array([srcs, tgts], dtype=jnp.int32)
    E = edge_index.shape[1]

    # edge attrs: (E, 2) ints [bond_type, bond_direction]
    edge_attr = jnp.stack([
        jax.random.randint(k_ea0, (E,), 0, NUM_BOND_TYPE),
        jax.random.randint(k_ea1, (E,), 0, NUM_BOND_DIRECTION),
    ], axis=1).astype(jnp.int32)

    # batch assignment per node
    batch = jnp.repeat(jnp.arange(num_graphs, dtype=jnp.int32), nodes_per_graph)

    out = gnn_graphpred_virtualnode_forward(params, x, edge_index, edge_attr, batch,
                                            num_graphs)
    out = jax.block_until_ready(out)
    assert out.shape == (num_graphs, NUM_ATOM_CLASSES), out.shape
    assert bool(jnp.all(jnp.isfinite(out)))
    print("KERNEL_OK")
</pallas_src>

<mosaic_0001>
module attributes {stable_mosaic.version = 11 : i64} {
  func.func @_fused_gnn_kernel(%arg0: i32, %arg1: memref<128x128xbf16, #tpu.memory_space<vmem>>, %arg2: memref<128x128xf32, #tpu.memory_space<vmem>>, %arg3: memref<16x128xbf16, #tpu.memory_space<vmem>>, %arg4: memref<16x1xf32, #tpu.memory_space<vmem>>, %arg5: memref<128x1xf32, #tpu.memory_space<vmem>>, %arg6: memref<16x1xf32, #tpu.memory_space<vmem>>, %arg7: memref<1x128xf32, #tpu.memory_space<vmem>>, %arg8: memref<1x128xf32, #tpu.memory_space<vmem>>, %arg9: memref<128x128xbf16, #tpu.memory_space<vmem>>, %arg10: memref<1x128xf32, #tpu.memory_space<vmem>>, %arg11: memref<1x128x128xbf16, #tpu.memory_space<vmem>>, %arg12: memref<1x128x128xbf16, #tpu.memory_space<vmem>>, %arg13: memref<1x1x128xf32, #tpu.memory_space<vmem>>, %arg14: memref<1x128x128xbf16, #tpu.memory_space<vmem>>, %arg15: memref<1x1x128xf32, #tpu.memory_space<vmem>>, %arg16: memref<1x1x128xf32, #tpu.memory_space<vmem>>, %arg17: memref<1x1x128xf32, #tpu.memory_space<vmem>>, %arg18: memref<1x128x128xbf16, #tpu.memory_space<vmem>>, %arg19: memref<1x1x128xf32, #tpu.memory_space<vmem>>, %arg20: memref<1x1x128xf32, #tpu.memory_space<vmem>>, %arg21: memref<1x1x128xf32, #tpu.memory_space<vmem>>, %arg22: memref<1x128x128xbf16, #tpu.memory_space<vmem>>, %arg23: memref<1x1x128xf32, #tpu.memory_space<vmem>>, %arg24: memref<1x1x128xf32, #tpu.memory_space<vmem>>, %arg25: memref<1x1x128xf32, #tpu.memory_space<vmem>>, %arg26: memref<16x128xf32, #tpu.memory_space<vmem>>, %arg27: memref<128x128xf32, #tpu.memory_space<vmem>>, %arg28: memref<16x128xf32, #tpu.memory_space<vmem>>) attributes {dimension_semantics = [#tpu.dimension_semantics<arbitrary>], iteration_bounds = array<i64: 2>, scalar_prefetch = 0 : i64, scratch_operands = 2 : i64, tpu.core_type = #tpu.core_type<tc>, window_params = [{pipeline_mode = #tpu.pipeline_mode<synchronous>, transform_indices = @transform_0, window_bounds = array<i64: 128, 128>}, {pipeline_mode = #tpu.pipeline_mode<synchronous>, transform_indices = @transform_1, window_bounds = array<i64: 128, 128>}, {pipeline_mode = #tpu.pipeline_mode<synchronous>, transform_indices = @transform_2, window_bounds = array<i64: 16, 128>}, {pipeline_mode = #tpu.pipeline_mode<synchronous>, transform_indices = @transform_3, window_bounds = array<i64: 16, 1>}, {pipeline_mode = #tpu.pipeline_mode<synchronous>, transform_indices = @transform_4, window_bounds = array<i64: 128, 1>}, {pipeline_mode = #tpu.pipeline_mode<synchronous>, transform_indices = @transform_5, window_bounds = array<i64: 16, 1>}, {pipeline_mode = #tpu.pipeline_mode<synchronous>, transform_indices = @transform_6, window_bounds = array<i64: 1, 128>}, {pipeline_mode = #tpu.pipeline_mode<synchronous>, transform_indices = @transform_7, window_bounds = array<i64: 1, 128>}, {pipeline_mode = #tpu.pipeline_mode<synchronous>, transform_indices = @transform_8, window_bounds = array<i64: 128, 128>}, {pipeline_mode = #tpu.pipeline_mode<synchronous>, transform_indices = @transform_9, window_bounds = array<i64: 1, 128>}, {transform_indices = @transform_10, window_bounds = array<i64: 1, 128, 128>}, {transform_indices = @transform_11, window_bounds = array<i64: 1, 128, 128>}, {transform_indices = @transform_12, window_bounds = array<i64: 1, 1, 128>}, {transform_indices = @transform_13, window_bounds = array<i64: 1, 128, 128>}, {transform_indices = @transform_14, window_bounds = array<i64: 1, 1, 128>}, {transform_indices = @transform_15, window_bounds = array<i64: 1, 1, 128>}, {transform_indices = @transform_16, window_bounds = array<i64: 1, 1, 128>}, {transform_indices = @transform_17, window_bounds = array<i64: 1, 128, 128>}, {transform_indices = @transform_18, window_bounds = array<i64: 1, 1, 128>}, {transform_indices = @transform_19, window_bounds = array<i64: 1, 1, 128>}, {transform_indices = @transform_20, window_bounds = array<i64: 1, 1, 128>}, {transform_indices = @transform_21, window_bounds = array<i64: 1, 128, 128>}, {transform_indices = @transform_22, window_bounds = array<i64: 1, 1, 128>}, {transform_indices = @transform_23, window_bounds = array<i64: 1, 1, 128>}, {transform_indices = @transform_24, window_bounds = array<i64: 1, 1, 128>}, {pipeline_mode = #tpu.pipeline_mode<synchronous>, transform_indices = @transform_25, window_bounds = array<i64: 16, 128>}]} {
    %c0 = arith.constant 0 : index
    %c0_0 = arith.constant 0 : index
    %0 = vector.load %arg5[%c0, %c0_0] : memref<128x1xf32, #tpu.memory_space<vmem>>, vector<128x1xf32>
    %c0_1 = arith.constant 0 : index
    %c0_2 = arith.constant 0 : index
    %1 = vector.load %arg6[%c0_1, %c0_2] : memref<16x1xf32, #tpu.memory_space<vmem>>, vector<16x1xf32>
    %c0_3 = arith.constant 0 : index
    %c0_4 = arith.constant 0 : index
    %2 = vector.load %arg3[%c0_3, %c0_4] : memref<16x128xbf16, #tpu.memory_space<vmem>>, vector<16x128xbf16>
    %c0_i32 = arith.constant 0 : i32
    %3 = arith.cmpi eq, %arg0, %c0_i32 : i32
    %4 = arith.extui %3 : i1 to i32
    %c0_i32_5 = arith.constant 0 : i32
    %5 = arith.cmpi ne, %4, %c0_i32_5 : i32
    scf.if %5 {
      %c0_48 = arith.constant 0 : index
      %c0_49 = arith.constant 0 : index
      %74 = vector.load %arg2[%c0_48, %c0_49] : memref<128x128xf32, #tpu.memory_space<vmem>>, vector<128x128xf32>
      %c0_50 = arith.constant 0 : index
      %c0_51 = arith.constant 0 : index
      %75 = vector.load %arg27[%c0_50, %c0_51] : memref<128x128xf32, #tpu.memory_space<vmem>>, vector<128x128xf32>
      tpu.vector_store %arg27[%c0_50, %c0_51], %74 {strides = array<i32>} : memref<128x128xf32, #tpu.memory_space<vmem>>, vector<128x128xf32>,
      %c0_52 = arith.constant 0 : index
      %c0_53 = arith.constant 0 : index
      %76 = vector.load %arg7[%c0_52, %c0_53] : memref<1x128xf32, #tpu.memory_space<vmem>>, vector<1x128xf32>
      %77 = vector.shape_cast %76 : vector<1x128xf32> to vector<1x128xf32>
      %78 = vector.broadcast %77 : vector<1x128xf32> to vector<16x128xf32>
      %79 = vector.broadcast %1 : vector<16x1xf32> to vector<16x128xf32>
      %80 = arith.mulf %78, %79 : vector<16x128xf32>
      %c0_54 = arith.constant 0 : index
      %c0_55 = arith.constant 0 : index
      %81 = vector.load %arg28[%c0_54, %c0_55] : memref<16x128xf32, #tpu.memory_space<vmem>>, vector<16x128xf32>
      tpu.vector_store %arg28[%c0_54, %c0_55], %80 {strides = array<i32>} : memref<16x128xf32, #tpu.memory_space<vmem>>, vector<16x128xf32>,
    } else {
    }
    %c0_6 = arith.constant 0 : index
    %c0_7 = arith.constant 0 : index
    %6 = vector.load %arg28[%c0_6, %c0_7] : memref<16x128xf32, #tpu.memory_space<vmem>>, vector<16x128xf32>
    %7 = arith.truncf %6 : vector<16x128xf32> to vector<16x128xbf16>
    %cst = arith.constant dense<0.000000e+00> : vector<128x128xf32>
    %8 = tpu.matmul %2, %7, %cst {dimension_numbers = #tpu.dot_dimension_numbers<[0], [0], [1], [1], [0, 1, 1, 1], [], []>} : vector<16x128xbf16>, vector<16x128xbf16>, vector<128x128xf32> -> vector<128x128xf32>
    %c0_8 = arith.constant 0 : index
    %c0_9 = arith.constant 0 : index
    %9 = vector.load %arg27[%c0_8, %c0_9] : memref<128x128xf32, #tpu.memory_space<vmem>>, vector<128x128xf32>
    %10 = arith.addf %9, %8 : vector<128x128xf32>
    %11 = arith.truncf %10 : vector<128x128xf32> to vector<128x128xbf16>
    %cst_10 = arith.constant dense<0.000000e+00> : vector<16x128xf32>
    %12 = tpu.matmul %2, %11, %cst_10 {dimension_numbers = #tpu.dot_dimension_numbers<[1], [0], [0], [1], [0, 0, 1, 1], [], []>} : vector<16x128xbf16>, vector<128x128xbf16>, vector<16x128xf32> -> vector<16x128xf32>
    %c0_11 = arith.constant 0 : index
    %c0_12 = arith.constant 0 : index
    %13 = vector.load %arg1[%c0_11, %c0_12] : memref<128x128xbf16, #tpu.memory_space<vmem>>, vector<128x128xbf16>
    %cst_13 = arith.constant dense<0.000000e+00> : vector<128x128xf32>
    %14 = tpu.matmul %13, %11, %cst_13 {dimension_numbers = #tpu.dot_dimension_numbers<[1], [0], [0], [1], [0, 0, 1, 1], [], []>} : vector<128x128xbf16>, vector<128x128xbf16>, vector<128x128xf32> -> vector<128x128xf32>
    %c0_14 = arith.constant 0 : index
    %c0_15 = arith.constant 0 : index
    %c0_16 = arith.constant 0 : index
    %15 = vector.load %arg11[%c0_14, %c0_15, %c0_16] : memref<1x128x128xbf16, #tpu.memory_space<vmem>>, vector<1x128x128xbf16>
    %16 = vector.shape_cast %15 : vector<1x128x128xbf16> to vector<128x128xbf16>
    %17 = arith.extf %16 : vector<128x128xbf16> to vector<128x128xf32>
    %18 = arith.addf %14, %17 : vector<128x128xf32>
    %19 = arith.truncf %18 : vector<128x128xf32> to vector<128x128xbf16>
    %c0_17 = arith.constant 0 : index
    %c0_18 = arith.constant 0 : index
    %c0_19 = arith.constant 0 : index
    %20 = vector.load %arg12[%c0_17, %c0_18, %c0_19] : memref<1x128x128xbf16, #tpu.memory_space<vmem>>, vector<1x128x128xbf16>
    %21 = vector.shape_cast %20 : vector<1x128x128xbf16> to vector<128x128xbf16>
    %cst_20 = arith.constant dense<0.000000e+00> : vector<128x128xf32>
    %22 = tpu.matmul %19, %21, %cst_20 {dimension_numbers = #tpu.dot_dimension_numbers<[1], [0], [0], [1], [0, 0, 1, 1], [], []>} : vector<128x128xbf16>, vector<128x128xbf16>, vector<128x128xf32> -> vector<128x128xf32>
    %c0_21 = arith.constant 0 : index
    %c0_22 = arith.constant 0 : index
    %c0_23 = arith.constant 0 : index
    %23 = vector.load %arg13[%c0_21, %c0_22, %c0_23] : memref<1x1x128xf32, #tpu.memory_space<vmem>>, vector<1x1x128xf32>
    %24 = vector.shape_cast %23 : vector<1x1x128xf32> to vector<1x128xf32>
    %25 = vector.broadcast %24 : vector<1x128xf32> to vector<128x128xf32>
    %26 = arith.addf %22, %25 : vector<128x128xf32>
    %cst_24 = arith.constant 0.000000e+00 : f32
    %27 = vector.broadcast %cst_24 : f32 to vector<128x128xf32>
    %28 = arith.maximumf %26, %27 : vector<128x128xf32>
    %29 = arith.truncf %28 : vector<128x128xf32> to vector<128x128xbf16>
    %c0_25 = arith.constant 0 : index
    %c0_26 = arith.constant 0 : index
    %c0_27 = arith.constant 0 : index
    %30 = vector.load %arg14[%c0_25, %c0_26, %c0_27] : memref<1x128x128xbf16, #tpu.memory_space<vmem>>, vector<1x128x128xbf16>
    %31 = vector.shape_cast %30 : vector<1x128x128xbf16> to vector<128x128xbf16>
    %cst_28 = arith.constant dense<0.000000e+00> : vector<128x128xf32>
    %32 = tpu.matmul %29, %31, %cst_28 {dimension_numbers = #tpu.dot_dimension_numbers<[1], [0], [0], [1], [0, 0, 1, 1], [], []>} : vector<128x128xbf16>, vector<128x128xbf16>, vector<128x128xf32> -> vector<128x128xf32>
    %c0_29 = arith.constant 0 : index
    %c0_30 = arith.constant 0 : index
    %c0_31 = arith.constant 0 : index
    %33 = vector.load %arg15[%c0_29, %c0_30, %c0_31] : memref<1x1x128xf32, #tpu.memory_space<vmem>>, vector<1x1x128xf32>
    %34 = vector.shape_cast %33 : vector<1x1x128xf32> to vector<1x128xf32>
    %35 = vector.broadcast %34 : vector<1x128xf32> to vector<128x128xf32>
    %36 = arith.addf %32, %35 : vector<128x128xf32>
    %37 = vector.broadcast %0 : vector<128x1xf32> to vector<128x128xf32>
    %38 = arith.mulf %36, %37 : vector<128x128xf32>
    %cst_32 = arith.constant dense<0.000000e+00> : vector<128xf32>
    %39 = vector.multi_reduction <add>, %38, %cst_32 [0] : vector<128x128xf32> to vector<128xf32>
    %40 = vector.shape_cast %39 : vector<128xf32> to vector<1x128xf32>
    %cst_33 = arith.constant 6.250000e-02 : f32
    %41 = vector.broadcast %cst_33 : f32 to vector<1x128xf32>
    %42 = arith.mulf %40, %41 : vector<1x128xf32>
    %43 = vector.broadcast %42 : vector<1x128xf32> to vector<128x128xf32>
    %44 = arith.subf %36, %43 : vector<128x128xf32>
    %45 = vector.broadcast %0 : vector<128x1xf32> to vector<128x128xf32>
    %46 = arith.mulf %44, %45 : vector<128x128xf32>
    %47 = arith.mulf %46, %46 : vector<128x128xf32>
    %cst_34 = arith.constant dense<0.000000e+00> : vector<128xf32>
    %48 = vector.multi_reduction <add>, %47, %cst_34 [0] : vector<128x128xf32> to vector<128xf32>
    %49 = vector.shape_cast %48 : vector<128xf32> to vector<1x128xf32>
    %cst_35 = arith.constant 6.250000e-02 : f32
    %50 = vector.broadcast %cst_35 : f32 to vector<1x128xf32>
    %51 = arith.mulf %49, %50 : vector<1x128xf32>
    %c0_36 = arith.constant 0 : index
    %c0_37 = arith.constant 0 : index
    %c0_38 = arith.constant 0 : index
    %52 = vector.load %arg16[%c0_36, %c0_37, %c0_38] : memref<1x1x128xf32, #tpu.memory_space<vmem>>, vector<1x1x128xf32>
    %53 = vector.shape_cast %52 : vector<1x1x128xf32> to vector<1x128xf32>
    %cst_39 = arith.constant 9.99999974E-6 : f32
    %54 = vector.broadcast %cst_39 : f32 to vector<1x128xf32>
    %55 = arith.addf %51, %54 : vector<1x128xf32>
    %56 = math.rsqrt %55 : vector<1x128xf32>
    %57 = vector.broadcast %56 : vector<1x128xf32> to vector<128x128xf32>
    %58 = arith.mulf %46, %57 : vector<128x128xf32>
    %59 = vector.broadcast %53 : vector<1x128xf32> to vector<128x128xf32>
    %60 = arith.mulf %59, %58 : vector<128x128xf32>
    %c0_40 = arith.constant 0 : index
    %c0_41 = arith.constant 0 : index
    %c0_42 = arith.constant 0 : index
    %61 = vector.load %arg17[%c0_40, %c0_41, %c0_42] : memref<1x1x128xf32, #tpu.memory_space<vmem>>, vector<1x1x128xf32>
    %62 = vector.shape_cast %61 : vector<1x1x128xf32> to vector<1x128xf32>
    %63 = vector.broadcast %62 : vector<1x128xf32> to vector<128x128xf32>
    %64 = arith.addf %60, %63 : vector<128x128xf32>
    %c1_i32 = arith.constant 1 : i32
    %65 = arith.cmpi slt, %arg0, %c1_i32 : i32
    %66 = arith.extui %65 : i1 to i32
    %c0_i32_43 = arith.constant 0 : i32
    %67 = arith.cmpi ne, %66, %c0_i32_43 : i32
    scf.if %67 {
      %cst_48 = arith.constant 0.000000e+00 : f32
      %74 = vector.broadcast %cst_48 : f32 to vector<128x128xf32>
      %75 = arith.maximumf %64, %74 : vector<128x128xf32>
      %76 = vector.broadcast %0 : vector<128x1xf32> to vector<128x128xf32>
      %77 = arith.mulf %75, %76 : vector<128x128xf32>
      %c0_49 = arith.constant 0 : index
      %c0_50 = arith.constant 0 : index
      %78 = vector.load %arg27[%c0_49, %c0_50] : memref<128x128xf32, #tpu.memory_space<vmem>>, vector<128x128xf32>
      tpu.vector_store %arg27[%c0_49, %c0_50], %77 {strides = array<i32>} : memref<128x128xf32, #tpu.memory_space<vmem>>, vector<128x128xf32>,
    } else {
    }
    %c1_i32_44 = arith.constant 1 : i32
    %68 = arith.cmpi slt, %arg0, %c1_i32_44 : i32
    %69 = arith.extui %68 : i1 to i32
    %c0_i32_45 = arith.constant 0 : i32
    %70 = arith.cmpi ne, %69, %c0_i32_45 : i32
    scf.if %70 {
      %74 = arith.addf %12, %6 : vector<16x128xf32>
      %75 = arith.truncf %74 : vector<16x128xf32> to vector<16x128xbf16>
      %c0_48 = arith.constant 0 : index
      %c0_49 = arith.constant 0 : index
      %c0_50 = arith.constant 0 : index
      %76 = vector.load %arg18[%c0_48, %c0_49, %c0_50] : memref<1x128x128xbf16, #tpu.memory_space<vmem>>, vector<1x128x128xbf16>
      %77 = vector.shape_cast %76 : vector<1x128x128xbf16> to vector<128x128xbf16>
      %cst_51 = arith.constant dense<0.000000e+00> : vector<16x128xf32>
      %78 = tpu.matmul %75, %77, %cst_51 {dimension_numbers = #tpu.dot_dimension_numbers<[1], [0], [0], [1], [0, 0, 1, 1], [], []>} : vector<16x128xbf16>, vector<128x128xbf16>, vector<16x128xf32> -> vector<16x128xf32>
      %c0_52 = arith.constant 0 : index
      %c0_53 = arith.constant 0 : index
      %c0_54 = arith.constant 0 : index
      %79 = vector.load %arg19[%c0_52, %c0_53, %c0_54] : memref<1x1x128xf32, #tpu.memory_space<vmem>>, vector<1x1x128xf32>
      %80 = vector.shape_cast %79 : vector<1x1x128xf32> to vector<1x128xf32>
      %81 = vector.broadcast %80 : vector<1x128xf32> to vector<16x128xf32>
      %82 = arith.addf %78, %81 : vector<16x128xf32>
      %83 = vector.broadcast %1 : vector<16x1xf32> to vector<16x128xf32>
      %84 = arith.mulf %82, %83 : vector<16x128xf32>
      %cst_55 = arith.constant dense<0.000000e+00> : vector<128xf32>
      %85 = vector.multi_reduction <add>, %84, %cst_55 [0] : vector<16x128xf32> to vector<128xf32>
      %86 = vector.shape_cast %85 : vector<128xf32> to vector<1x128xf32>
      %cst_56 = arith.constant 5.000000e-01 : f32
      %87 = vector.broadcast %cst_56 : f32 to vector<1x128xf32>
      %88 = arith.mulf %86, %87 : vector<1x128xf32>
      %89 = vector.broadcast %88 : vector<1x128xf32> to vector<16x128xf32>
      %90 = arith.subf %82, %89 : vector<16x128xf32>
      %91 = vector.broadcast %1 : vector<16x1xf32> to vector<16x128xf32>
      %92 = arith.mulf %90, %91 : vector<16x128xf32>
      %93 = arith.mulf %92, %92 : vector<16x128xf32>
      %cst_57 = arith.constant dense<0.000000e+00> : vector<128xf32>
      %94 = vector.multi_reduction <add>, %93, %cst_57 [0] : vector<16x128xf32> to vector<128xf32>
      %95 = vector.shape_cast %94 : vector<128xf32> to vector<1x128xf32>
      %cst_58 = arith.constant 5.000000e-01 : f32
      %96 = vector.broadcast %cst_58 : f32 to vector<1x128xf32>
      %97 = arith.mulf %95, %96 : vector<1x128xf32>
      %c0_59 = arith.constant 0 : index
      %c0_60 = arith.constant 0 : index
      %c0_61 = arith.constant 0 : index
      %98 = vector.load %arg20[%c0_59, %c0_60, %c0_61] : memref<1x1x128xf32, #tpu.memory_space<vmem>>, vector<1x1x128xf32>
      %99 = vector.shape_cast %98 : vector<1x1x128xf32> to vector<1x128xf32>
      %cst_62 = arith.constant 9.99999974E-6 : f32
      %100 = vector.broadcast %cst_62 : f32 to vector<1x128xf32>
      %101 = arith.addf %97, %100 : vector<1x128xf32>
      %102 = math.rsqrt %101 : vector<1x128xf32>
      %103 = vector.broadcast %102 : vector<1x128xf32> to vector<16x128xf32>
      %104 = arith.mulf %92, %103 : vector<16x128xf32>
      %105 = vector.broadcast %99 : vector<1x128xf32> to vector<16x128xf32>
      %106 = arith.mulf %105, %104 : vector<16x128xf32>
      %c0_63 = arith.constant 0 : index
      %c0_64 = arith.constant 0 : index
      %c0_65 = arith.constant 0 : index
      %107 = vector.load %arg21[%c0_63, %c0_64, %c0_65] : memref<1x1x128xf32, #tpu.memory_space<vmem>>, vector<1x1x128xf32>
      %108 = vector.shape_cast %107 : vector<1x1x128xf32> to vector<1x128xf32>
      %109 = vector.broadcast %108 : vector<1x128xf32> to vector<16x128xf32>
      %110 = arith.addf %106, %109 : vector<16x128xf32>
      %cst_66 = arith.constant 0.000000e+00 : f32
      %111 = vector.broadcast %cst_66 : f32 to vector<16x128xf32>
      %112 = arith.maximumf %110, %111 : vector<16x128xf32>
      %113 = arith.truncf %112 : vector<16x128xf32> to vector<16x128xbf16>
      %c0_67 = arith.constant 0 : index
      %c0_68 = arith.constant 0 : index
      %c0_69 = arith.constant 0 : index
      %114 = vector.load %arg22[%c0_67, %c0_68, %c0_69] : memref<1x128x128xbf16, #tpu.memory_space<vmem>>, vector<1x128x128xbf16>
      %115 = vector.shape_cast %114 : vector<1x128x128xbf16> to vector<128x128xbf16>
      %cst_70 = arith.constant dense<0.000000e+00> : vector<16x128xf32>
      %116 = tpu.matmul %113, %115, %cst_70 {dimension_numbers = #tpu.dot_dimension_numbers<[1], [0], [0], [1], [0, 0, 1, 1], [], []>} : vector<16x128xbf16>, vector<128x128xbf16>, vector<16x128xf32> -> vector<16x128xf32>
      %c0_71 = arith.constant 0 : index
      %c0_72 = arith.constant 0 : index
      %c0_73 = arith.constant 0 : index
      %117 = vector.load %arg23[%c0_71, %c0_72, %c0_73] : memref<1x1x128xf32, #tpu.memory_space<vmem>>, vector<1x1x128xf32>
      %118 = vector.shape_cast %117 : vector<1x1x128xf32> to vector<1x128xf32>
      %119 = vector.broadcast %118 : vector<1x128xf32> to vector<16x128xf32>
      %120 = arith.addf %116, %119 : vector<16x128xf32>
      %121 = vector.broadcast %1 : vector<16x1xf32> to vector<16x128xf32>
      %122 = arith.mulf %120, %121 : vector<16x128xf32>
      %cst_74 = arith.constant dense<0.000000e+00> : vector<128xf32>
      %123 = vector.multi_reduction <add>, %122, %cst_74 [0] : vector<16x128xf32> to vector<128xf32>
      %124 = vector.shape_cast %123 : vector<128xf32> to vector<1x128xf32>
      %cst_75 = arith.constant 5.000000e-01 : f32
      %125 = vector.broadcast %cst_75 : f32 to vector<1x128xf32>
      %126 = arith.mulf %124, %125 : vector<1x128xf32>
      %127 = vector.broadcast %126 : vector<1x128xf32> to vector<16x128xf32>
      %128 = arith.subf %120, %127 : vector<16x128xf32>
      %129 = vector.broadcast %1 : vector<16x1xf32> to vector<16x128xf32>
      %130 = arith.mulf %128, %129 : vector<16x128xf32>
      %131 = arith.mulf %130, %130 : vector<16x128xf32>
      %cst_76 = arith.constant dense<0.000000e+00> : vector<128xf32>
      %132 = vector.multi_reduction <add>, %131, %cst_76 [0] : vector<16x128xf32> to vector<128xf32>
      %133 = vector.shape_cast %132 : vector<128xf32> to vector<1x128xf32>
      %cst_77 = arith.constant 5.000000e-01 : f32
      %134 = vector.broadcast %cst_77 : f32 to vector<1x128xf32>
      %135 = arith.mulf %133, %134 : vector<1x128xf32>
      %c0_78 = arith.constant 0 : index
      %c0_79 = arith.constant 0 : index
      %c0_80 = arith.constant 0 : index
      %136 = vector.load %arg24[%c0_78, %c0_79, %c0_80] : memref<1x1x128xf32, #tpu.memory_space<vmem>>, vector<1x1x128xf32>
      %137 = vector.shape_cast %136 : vector<1x1x128xf32> to vector<1x128xf32>
      %cst_81 = arith.constant 9.99999974E-6 : f32
      %138 = vector.broadcast %cst_81 : f32 to vector<1x128xf32>
      %139 = arith.addf %135, %138 : vector<1x128xf32>
      %140 = math.rsqrt %139 : vector<1x128xf32>
      %141 = vector.broadcast %140 : vector<1x128xf32> to vector<16x128xf32>
      %142 = arith.mulf %130, %141 : vector<16x128xf32>
      %143 = vector.broadcast %137 : vector<1x128xf32> to vector<16x128xf32>
      %144 = arith.mulf %143, %142 : vector<16x128xf32>
      %c0_82 = arith.constant 0 : index
      %c0_83 = arith.constant 0 : index
      %c0_84 = arith.constant 0 : index
      %145 = vector.load %arg25[%c0_82, %c0_83, %c0_84] : memref<1x1x128xf32, #tpu.memory_space<vmem>>, vector<1x1x128xf32>
      %146 = vector.shape_cast %145 : vector<1x1x128xf32> to vector<1x128xf32>
      %147 = vector.broadcast %146 : vector<1x128xf32> to vector<16x128xf32>
      %148 = arith.addf %144, %147 : vector<16x128xf32>
      %cst_85 = arith.constant 0.000000e+00 : f32
      %149 = vector.broadcast %cst_85 : f32 to vector<16x128xf32>
      %150 = arith.maximumf %148, %149 : vector<16x128xf32>
      %151 = vector.broadcast %1 : vector<16x1xf32> to vector<16x128xf32>
      %152 = arith.mulf %150, %151 : vector<16x128xf32>
      %c0_86 = arith.constant 0 : index
      %c0_87 = arith.constant 0 : index
      %153 = vector.load %arg28[%c0_86, %c0_87] : memref<16x128xf32, #tpu.memory_space<vmem>>, vector<16x128xf32>
      tpu.vector_store %arg28[%c0_86, %c0_87], %152 {strides = array<i32>} : memref<16x128xf32, #tpu.memory_space<vmem>>, vector<16x128xf32>,
    } else {
    }
    %c1_i32_46 = arith.constant 1 : i32
    %71 = arith.cmpi eq, %arg0, %c1_i32_46 : i32
    %72 = arith.extui %71 : i1 to i32
    %c0_i32_47 = arith.constant 0 : i32
    %73 = arith.cmpi ne, %72, %c0_i32_47 : i32
    scf.if %73 {
      %74 = vector.broadcast %0 : vector<128x1xf32> to vector<128x128xf32>
      %75 = arith.mulf %64, %74 : vector<128x128xf32>
      %76 = arith.truncf %75 : vector<128x128xf32> to vector<128x128xbf16>
      %cst_48 = arith.constant dense<0.000000e+00> : vector<16x128xf32>
      %77 = tpu.matmul %2, %76, %cst_48 {dimension_numbers = #tpu.dot_dimension_numbers<[1], [0], [0], [1], [0, 0, 1, 1], [], []>} : vector<16x128xbf16>, vector<128x128xbf16>, vector<16x128xf32> -> vector<16x128xf32>
      %c0_49 = arith.constant 0 : index
      %c0_50 = arith.constant 0 : index
      %78 = vector.load %arg4[%c0_49, %c0_50] : memref<16x1xf32, #tpu.memory_space<vmem>>, vector<16x1xf32>
      %79 = vector.broadcast %78 : vector<16x1xf32> to vector<16x128xf32>
      %80 = arith.mulf %77, %79 : vector<16x128xf32>
      %c0_51 = arith.constant 0 : index
      %c0_52 = arith.constant 0 : index
      %81 = vector.load %arg8[%c0_51, %c0_52] : memref<1x128xf32, #tpu.memory_space<vmem>>, vector<1x128xf32>
      %82 = vector.broadcast %81 : vector<1x128xf32> to vector<16x128xf32>
      %83 = arith.addf %80, %82 : vector<16x128xf32>
      %84 = arith.truncf %83 : vector<16x128xf32> to vector<16x128xbf16>
      %c0_53 = arith.constant 0 : index
      %c0_54 = arith.constant 0 : index
      %85 = vector.load %arg9[%c0_53, %c0_54] : memref<128x128xbf16, #tpu.memory_space<vmem>>, vector<128x128xbf16>
      %cst_55 = arith.constant dense<0.000000e+00> : vector<16x128xf32>
      %86 = tpu.matmul %84, %85, %cst_55 {dimension_numbers = #tpu.dot_dimension_numbers<[1], [0], [0], [1], [0, 0, 1, 1], [], []>} : vector<16x128xbf16>, vector<128x128xbf16>, vector<16x128xf32> -> vector<16x128xf32>
      %c0_56 = arith.constant 0 : index
      %c0_57 = arith.constant 0 : index
      %87 = vector.load %arg10[%c0_56, %c0_57] : memref<1x128xf32, #tpu.memory_space<vmem>>, vector<1x128xf32>
      %88 = vector.broadcast %87 : vector<1x128xf32> to vector<16x128xf32>
      %89 = arith.addf %86, %88 : vector<16x128xf32>
      %c0_58 = arith.constant 0 : index
      %c0_59 = arith.constant 0 : index
      %90 = vector.load %arg26[%c0_58, %c0_59] : memref<16x128xf32, #tpu.memory_space<vmem>>, vector<16x128xf32>
      tpu.vector_store %arg26[%c0_58, %c0_59], %89 {strides = array<i32>} : memref<16x128xf32, #tpu.memory_space<vmem>>, vector<16x128xf32>,
    } else {
    }
    return
  }
  func.func @transform_0(%arg0: i32) -> (i32, i32) {
    %c0_i32 = arith.constant 0 : i32
    %c0_i32_0 = arith.constant 0 : i32
    %c0_i32_1 = arith.constant 0 : i32
    return %c0_i32, %c0_i32_0 : i32, i32
  }
  func.func @transform_1(%arg0: i32) -> (i32, i32) {
    %c0_i32 = arith.constant 0 : i32
    %c0_i32_0 = arith.constant 0 : i32
    %c0_i32_1 = arith.constant 0 : i32
    return %c0_i32, %c0_i32_0 : i32, i32
  }
  func.func @transform_2(%arg0: i32) -> (i32, i32) {
    %c0_i32 = arith.constant 0 : i32
    %c0_i32_0 = arith.constant 0 : i32
    %c0_i32_1 = arith.constant 0 : i32
    return %c0_i32, %c0_i32_0 : i32, i32
  }
  func.func @transform_3(%arg0: i32) -> (i32, i32) {
    %c0_i32 = arith.constant 0 : i32
    %c0_i32_0 = arith.constant 0 : i32
    %c0_i32_1 = arith.constant 0 : i32
    return %c0_i32, %c0_i32_0 : i32, i32
  }
  func.func @transform_4(%arg0: i32) -> (i32, i32) {
    %c0_i32 = arith.constant 0 : i32
    %c0_i32_0 = arith.constant 0 : i32
    %c0_i32_1 = arith.constant 0 : i32
    return %c0_i32, %c0_i32_0 : i32, i32
  }
  func.func @transform_5(%arg0: i32) -> (i32, i32) {
    %c0_i32 = arith.constant 0 : i32
    %c0_i32_0 = arith.constant 0 : i32
    %c0_i32_1 = arith.constant 0 : i32
    return %c0_i32, %c0_i32_0 : i32, i32
  }
  func.func @transform_6(%arg0: i32) -> (i32, i32) {
    %c0_i32 = arith.constant 0 : i32
    %c0_i32_0 = arith.constant 0 : i32
    %c0_i32_1 = arith.constant 0 : i32
    return %c0_i32, %c0_i32_0 : i32, i32
  }
  func.func @transform_7(%arg0: i32) -> (i32, i32) {
    %c0_i32 = arith.constant 0 : i32
    %c0_i32_0 = arith.constant 0 : i32
    %c0_i32_1 = arith.constant 0 : i32
    return %c0_i32, %c0_i32_0 : i32, i32
  }
  func.func @transform_8(%arg0: i32) -> (i32, i32) {
    %c0_i32 = arith.constant 0 : i32
    %c0_i32_0 = arith.constant 0 : i32
    %c0_i32_1 = arith.constant 0 : i32
    return %c0_i32, %c0_i32_0 : i32, i32
  }
  func.func @transform_9(%arg0: i32) -> (i32, i32) {
    %c0_i32 = arith.constant 0 : i32
    %c0_i32_0 = arith.constant 0 : i32
    %c0_i32_1 = arith.constant 0 : i32
    return %c0_i32, %c0_i32_0 : i32, i32
  }
  func.func @transform_10(%arg0: i32) -> (i32, i32, i32) {
    %c0_i32 = arith.constant 0 : i32
    %c0_i32_0 = arith.constant 0 : i32
    %c0_i32_1 = arith.constant 0 : i32
    return %arg0, %c0_i32, %c0_i32_0 : i32, i32, i32
  }
  func.func @transform_11(%arg0: i32) -> (i32, i32, i32) {
    %c0_i32 = arith.constant 0 : i32
    %c0_i32_0 = arith.constant 0 : i32
    %c0_i32_1 = arith.constant 0 : i32
    return %arg0, %c0_i32, %c0_i32_0 : i32, i32, i32
  }
  func.func @transform_12(%arg0: i32) -> (i32, i32, i32) {
    %c0_i32 = arith.constant 0 : i32
    %c0_i32_0 = arith.constant 0 : i32
    %c0_i32_1 = arith.constant 0 : i32
    return %arg0, %c0_i32, %c0_i32_0 : i32, i32, i32
  }
  func.func @transform_13(%arg0: i32) -> (i32, i32, i32) {
    %c0_i32 = arith.constant 0 : i32
    %c0_i32_0 = arith.constant 0 : i32
    %c0_i32_1 = arith.constant 0 : i32
    return %arg0, %c0_i32, %c0_i32_0 : i32, i32, i32
  }
  func.func @transform_14(%arg0: i32) -> (i32, i32, i32) {
    %c0_i32 = arith.constant 0 : i32
    %c0_i32_0 = arith.constant 0 : i32
    %c0_i32_1 = arith.constant 0 : i32
    return %arg0, %c0_i32, %c0_i32_0 : i32, i32, i32
  }
  func.func @transform_15(%arg0: i32) -> (i32, i32, i32) {
    %c0_i32 = arith.constant 0 : i32
    %c0_i32_0 = arith.constant 0 : i32
    %c0_i32_1 = arith.constant 0 : i32
    return %arg0, %c0_i32, %c0_i32_0 : i32, i32, i32
  }
  func.func @transform_16(%arg0: i32) -> (i32, i32, i32) {
    %c0_i32 = arith.constant 0 : i32
    %c0_i32_0 = arith.constant 0 : i32
    %c0_i32_1 = arith.constant 0 : i32
    return %arg0, %c0_i32, %c0_i32_0 : i32, i32, i32
  }
  func.func @transform_17(%arg0: i32) -> (i32, i32, i32) {
    %c0_i32 = arith.constant 0 : i32
    %c0_i32_0 = arith.constant 0 : i32
    %c0_i32_1 = arith.constant 0 : i32
    return %arg0, %c0_i32, %c0_i32_0 : i32, i32, i32
  }
  func.func @transform_18(%arg0: i32) -> (i32, i32, i32) {
    %c0_i32 = arith.constant 0 : i32
    %c0_i32_0 = arith.constant 0 : i32
    %c0_i32_1 = arith.constant 0 : i32
    return %arg0, %c0_i32, %c0_i32_0 : i32, i32, i32
  }
  func.func @transform_19(%arg0: i32) -> (i32, i32, i32) {
    %c0_i32 = arith.constant 0 : i32
    %c0_i32_0 = arith.constant 0 : i32
    %c0_i32_1 = arith.constant 0 : i32
    return %arg0, %c0_i32, %c0_i32_0 : i32, i32, i32
  }
  func.func @transform_20(%arg0: i32) -> (i32, i32, i32) {
    %c0_i32 = arith.constant 0 : i32
    %c0_i32_0 = arith.constant 0 : i32
    %c0_i32_1 = arith.constant 0 : i32
    return %arg0, %c0_i32, %c0_i32_0 : i32, i32, i32
  }
  func.func @transform_21(%arg0: i32) -> (i32, i32, i32) {
    %c0_i32 = arith.constant 0 : i32
    %c0_i32_0 = arith.constant 0 : i32
    %c0_i32_1 = arith.constant 0 : i32
    return %arg0, %c0_i32, %c0_i32_0 : i32, i32, i32
  }
  func.func @transform_22(%arg0: i32) -> (i32, i32, i32) {
    %c0_i32 = arith.constant 0 : i32
    %c0_i32_0 = arith.constant 0 : i32
    %c0_i32_1 = arith.constant 0 : i32
    return %arg0, %c0_i32, %c0_i32_0 : i32, i32, i32
  }
  func.func @transform_23(%arg0: i32) -> (i32, i32, i32) {
    %c0_i32 = arith.constant 0 : i32
    %c0_i32_0 = arith.constant 0 : i32
    %c0_i32_1 = arith.constant 0 : i32
    return %arg0, %c0_i32, %c0_i32_0 : i32, i32, i32
  }
  func.func @transform_24(%arg0: i32) -> (i32, i32, i32) {
    %c0_i32 = arith.constant 0 : i32
    %c0_i32_0 = arith.constant 0 : i32
    %c0_i32_1 = arith.constant 0 : i32
    return %arg0, %c0_i32, %c0_i32_0 : i32, i32, i32
  }
  func.func @transform_25(%arg0: i32) -> (i32, i32) {
    %c0_i32 = arith.constant 0 : i32
    %c0_i32_0 = arith.constant 0 : i32
    %c0_i32_1 = arith.constant 0 : i32
    return %c0_i32, %c0_i32_0 : i32, i32
  }
}

module attributes {stable_mosaic.version = 11 : i64} {
  func.func @_fused_gnn_kernel(%arg0: i32, %arg1: memref<128x128xbf16, #tpu.memory_space<vmem>>, %arg2: memref<128x128xf32, #tpu.memory_space<vmem>>, %arg3: memref<16x128xbf16, #tpu.memory_space<vmem>>, %arg4: memref<16x1xf32, #tpu.memory_space<vmem>>, %arg5: memref<128x1xf32, #tpu.memory_space<vmem>>, %arg6: memref<16x1xf32, #tpu.memory_space<vmem>>, %arg7: memref<1x128xf32, #tpu.memory_space<vmem>>, %arg8: memref<1x128xf32, #tpu.memory_space<vmem>>, %arg9: memref<128x128xbf16, #tpu.memory_space<vmem>>, %arg10: memref<1x128xf32, #tpu.memory_space<vmem>>, %arg11: memref<1x128x128xbf16, #tpu.memory_space<vmem>>, %arg12: memref<1x128x128xbf16, #tpu.memory_space<vmem>>, %arg13: memref<1x1x128xf32, #tpu.memory_space<vmem>>, %arg14: memref<1x128x128xbf16, #tpu.memory_space<vmem>>, %arg15: memref<1x1x128xf32, #tpu.memory_space<vmem>>, %arg16: memref<1x1x128xf32, #tpu.memory_space<vmem>>, %arg17: memref<1x1x128xf32, #tpu.memory_space<vmem>>, %arg18: memref<1x128x128xbf16, #tpu.memory_space<vmem>>, %arg19: memref<1x1x128xf32, #tpu.memory_space<vmem>>, %arg20: memref<1x1x128xf32, #tpu.memory_space<vmem>>, %arg21: memref<1x1x128xf32, #tpu.memory_space<vmem>>, %arg22: memref<1x128x128xbf16, #tpu.memory_space<vmem>>, %arg23: memref<1x1x128xf32, #tpu.memory_space<vmem>>, %arg24: memref<1x1x128xf32, #tpu.memory_space<vmem>>, %arg25: memref<1x1x128xf32, #tpu.memory_space<vmem>>, %arg26: memref<16x128xf32, #tpu.memory_space<vmem>>, %arg27: memref<128x128xf32, #tpu.memory_space<vmem>>, %arg28: memref<16x128xf32, #tpu.memory_space<vmem>>) attributes {dimension_semantics = [#tpu.dimension_semantics<arbitrary>], iteration_bounds = array<i64: 2>, scalar_prefetch = 0 : i64, scratch_operands = 2 : i64, tpu.core_type = #tpu.core_type<tc>, window_params = [{pipeline_mode = #tpu.pipeline_mode<synchronous>, transform_indices = @transform_0, window_bounds = array<i64: 128, 128>}, {pipeline_mode = #tpu.pipeline_mode<synchronous>, transform_indices = @transform_1, window_bounds = array<i64: 128, 128>}, {pipeline_mode = #tpu.pipeline_mode<synchronous>, transform_indices = @transform_2, window_bounds = array<i64: 16, 128>}, {pipeline_mode = #tpu.pipeline_mode<synchronous>, transform_indices = @transform_3, window_bounds = array<i64: 16, 1>}, {pipeline_mode = #tpu.pipeline_mode<synchronous>, transform_indices = @transform_4, window_bounds = array<i64: 128, 1>}, {pipeline_mode = #tpu.pipeline_mode<synchronous>, transform_indices = @transform_5, window_bounds = array<i64: 16, 1>}, {pipeline_mode = #tpu.pipeline_mode<synchronous>, transform_indices = @transform_6, window_bounds = array<i64: 1, 128>}, {pipeline_mode = #tpu.pipeline_mode<synchronous>, transform_indices = @transform_7, window_bounds = array<i64: 1, 128>}, {pipeline_mode = #tpu.pipeline_mode<synchronous>, transform_indices = @transform_8, window_bounds = array<i64: 128, 128>}, {pipeline_mode = #tpu.pipeline_mode<synchronous>, transform_indices = @transform_9, window_bounds = array<i64: 1, 128>}, {transform_indices = @transform_10, window_bounds = array<i64: 1, 128, 128>}, {transform_indices = @transform_11, window_bounds = array<i64: 1, 128, 128>}, {transform_indices = @transform_12, window_bounds = array<i64: 1, 1, 128>}, {transform_indices = @transform_13, window_bounds = array<i64: 1, 128, 128>}, {transform_indices = @transform_14, window_bounds = array<i64: 1, 1, 128>}, {transform_indices = @transform_15, window_bounds = array<i64: 1, 1, 128>}, {transform_indices = @transform_16, window_bounds = array<i64: 1, 1, 128>}, {transform_indices = @transform_17, window_bounds = array<i64: 1, 128, 128>}, {transform_indices = @transform_18, window_bounds = array<i64: 1, 1, 128>}, {transform_indices = @transform_19, window_bounds = array<i64: 1, 1, 128>}, {transform_indices = @transform_20, window_bounds = array<i64: 1, 1, 128>}, {transform_indices = @transform_21, window_bounds = array<i64: 1, 128, 128>}, {transform_indices = @transform_22, window_bounds = array<i64: 1, 1, 128>}, {transform_indices = @transform_23, window_bounds = array<i64: 1, 1, 128>}, {transform_indices = @transform_24, window_bounds = array<i64: 1, 1, 128>}, {pipeline_mode = #tpu.pipeline_mode<synchronous>, transform_indices = @transform_25, window_bounds = array<i64: 16, 128>}]} {
    %c0 = arith.constant 0 : index
    %c0_0 = arith.constant 0 : index
    %0 = vector.load %arg5[%c0, %c0_0] : memref<128x1xf32, #tpu.memory_space<vmem>>, vector<128x1xf32>
    %c0_1 = arith.constant 0 : index
    %c0_2 = arith.constant 0 : index
    %1 = vector.load %arg6[%c0_1, %c0_2] : memref<16x1xf32, #tpu.memory_space<vmem>>, vector<16x1xf32>
    %c0_3 = arith.constant 0 : index
    %c0_4 = arith.constant 0 : index
    %2 = vector.load %arg3[%c0_3, %c0_4] : memref<16x128xbf16, #tpu.memory_space<vmem>>, vector<16x128xbf16>
    %c0_i32 = arith.constant 0 : i32
    %3 = arith.cmpi eq, %arg0, %c0_i32 : i32
    %4 = arith.extui %3 : i1 to i32
    %c0_i32_5 = arith.constant 0 : i32
    %5 = arith.cmpi ne, %4, %c0_i32_5 : i32
    scf.if %5 {
      %c0_48 = arith.constant 0 : index
      %c0_49 = arith.constant 0 : index
      %74 = vector.load %arg2[%c0_48, %c0_49] : memref<128x128xf32, #tpu.memory_space<vmem>>, vector<128x128xf32>
      %c0_50 = arith.constant 0 : index
      %c0_51 = arith.constant 0 : index
      %75 = vector.load %arg27[%c0_50, %c0_51] : memref<128x128xf32, #tpu.memory_space<vmem>>, vector<128x128xf32>
      tpu.vector_store %arg27[%c0_50, %c0_51], %74 {strides = array<i32>} : memref<128x128xf32, #tpu.memory_space<vmem>>, vector<128x128xf32>,
      %c0_52 = arith.constant 0 : index
      %c0_53 = arith.constant 0 : index
      %76 = vector.load %arg7[%c0_52, %c0_53] : memref<1x128xf32, #tpu.memory_space<vmem>>, vector<1x128xf32>
      %77 = vector.shape_cast %76 : vector<1x128xf32> to vector<1x128xf32>
      %78 = vector.broadcast %77 : vector<1x128xf32> to vector<16x128xf32>
      %79 = vector.broadcast %1 : vector<16x1xf32> to vector<16x128xf32>
      %80 = arith.mulf %78, %79 : vector<16x128xf32>
      %c0_54 = arith.constant 0 : index
      %c0_55 = arith.constant 0 : index
      %81 = vector.load %arg28[%c0_54, %c0_55] : memref<16x128xf32, #tpu.memory_space<vmem>>, vector<16x128xf32>
      tpu.vector_store %arg28[%c0_54, %c0_55], %80 {strides = array<i32>} : memref<16x128xf32, #tpu.memory_space<vmem>>, vector<16x128xf32>,
    } else {
    }
    %c0_6 = arith.constant 0 : index
    %c0_7 = arith.constant 0 : index
    %6 = vector.load %arg28[%c0_6, %c0_7] : memref<16x128xf32, #tpu.memory_space<vmem>>, vector<16x128xf32>
    %7 = arith.truncf %6 : vector<16x128xf32> to vector<16x128xbf16>
    %cst = arith.constant dense<0.000000e+00> : vector<128x128xf32>
    %8 = tpu.matmul %2, %7, %cst {dimension_numbers = #tpu.dot_dimension_numbers<[0], [0], [1], [1], [0, 1, 1, 1], [], []>} : vector<16x128xbf16>, vector<16x128xbf16>, vector<128x128xf32> -> vector<128x128xf32>
    %c0_8 = arith.constant 0 : index
    %c0_9 = arith.constant 0 : index
    %9 = vector.load %arg27[%c0_8, %c0_9] : memref<128x128xf32, #tpu.memory_space<vmem>>, vector<128x128xf32>
    %10 = arith.addf %9, %8 : vector<128x128xf32>
    %11 = arith.truncf %10 : vector<128x128xf32> to vector<128x128xbf16>
    %cst_10 = arith.constant dense<0.000000e+00> : vector<16x128xf32>
    %12 = tpu.matmul %2, %11, %cst_10 {dimension_numbers = #tpu.dot_dimension_numbers<[1], [0], [0], [1], [0, 0, 1, 1], [], []>} : vector<16x128xbf16>, vector<128x128xbf16>, vector<16x128xf32> -> vector<16x128xf32>
    %c0_11 = arith.constant 0 : index
    %c0_12 = arith.constant 0 : index
    %13 = vector.load %arg1[%c0_11, %c0_12] : memref<128x128xbf16, #tpu.memory_space<vmem>>, vector<128x128xbf16>
    %cst_13 = arith.constant dense<0.000000e+00> : vector<128x128xf32>
    %14 = tpu.matmul %13, %11, %cst_13 {dimension_numbers = #tpu.dot_dimension_numbers<[1], [0], [0], [1], [0, 0, 1, 1], [], []>} : vector<128x128xbf16>, vector<128x128xbf16>, vector<128x128xf32> -> vector<128x128xf32>
    %c0_14 = arith.constant 0 : index
    %c0_15 = arith.constant 0 : index
    %c0_16 = arith.constant 0 : index
    %15 = vector.load %arg11[%c0_14, %c0_15, %c0_16] : memref<1x128x128xbf16, #tpu.memory_space<vmem>>, vector<1x128x128xbf16>
    %16 = vector.shape_cast %15 : vector<1x128x128xbf16> to vector<128x128xbf16>
    %17 = arith.extf %16 : vector<128x128xbf16> to vector<128x128xf32>
    %18 = arith.addf %14, %17 : vector<128x128xf32>
    %19 = arith.truncf %18 : vector<128x128xf32> to vector<128x128xbf16>
    %c0_17 = arith.constant 0 : index
    %c0_18 = arith.constant 0 : index
    %c0_19 = arith.constant 0 : index
    %20 = vector.load %arg12[%c0_17, %c0_18, %c0_19] : memref<1x128x128xbf16, #tpu.memory_space<vmem>>, vector<1x128x128xbf16>
    %21 = vector.shape_cast %20 : vector<1x128x128xbf16> to vector<128x128xbf16>
    %cst_20 = arith.constant dense<0.000000e+00> : vector<128x128xf32>
    %22 = tpu.matmul %19, %21, %cst_20 {dimension_numbers = #tpu.dot_dimension_numbers<[1], [0], [0], [1], [0, 0, 1, 1], [], []>} : vector<128x128xbf16>, vector<128x128xbf16>, vector<128x128xf32> -> vector<128x128xf32>
    %c0_21 = arith.constant 0 : index
    %c0_22 = arith.constant 0 : index
    %c0_23 = arith.constant 0 : index
    %23 = vector.load %arg13[%c0_21, %c0_22, %c0_23] : memref<1x1x128xf32, #tpu.memory_space<vmem>>, vector<1x1x128xf32>
    %24 = vector.shape_cast %23 : vector<1x1x128xf32> to vector<1x128xf32>
    %25 = vector.broadcast %24 : vector<1x128xf32> to vector<128x128xf32>
    %26 = arith.addf %22, %25 : vector<128x128xf32>
    %cst_24 = arith.constant 0.000000e+00 : f32
    %27 = vector.broadcast %cst_24 : f32 to vector<128x128xf32>
    %28 = arith.maximumf %26, %27 : vector<128x128xf32>
    %29 = arith.truncf %28 : vector<128x128xf32> to vector<128x128xbf16>
    %c0_25 = arith.constant 0 : index
    %c0_26 = arith.constant 0 : index
    %c0_27 = arith.constant 0 : index
    %30 = vector.load %arg14[%c0_25, %c0_26, %c0_27] : memref<1x128x128xbf16, #tpu.memory_space<vmem>>, vector<1x128x128xbf16>
    %31 = vector.shape_cast %30 : vector<1x128x128xbf16> to vector<128x128xbf16>
    %cst_28 = arith.constant dense<0.000000e+00> : vector<128x128xf32>
    %32 = tpu.matmul %29, %31, %cst_28 {dimension_numbers = #tpu.dot_dimension_numbers<[1], [0], [0], [1], [0, 0, 1, 1], [], []>} : vector<128x128xbf16>, vector<128x128xbf16>, vector<128x128xf32> -> vector<128x128xf32>
    %c0_29 = arith.constant 0 : index
    %c0_30 = arith.constant 0 : index
    %c0_31 = arith.constant 0 : index
    %33 = vector.load %arg15[%c0_29, %c0_30, %c0_31] : memref<1x1x128xf32, #tpu.memory_space<vmem>>, vector<1x1x128xf32>
    %34 = vector.shape_cast %33 : vector<1x1x128xf32> to vector<1x128xf32>
    %35 = vector.broadcast %34 : vector<1x128xf32> to vector<128x128xf32>
    %36 = arith.addf %32, %35 : vector<128x128xf32>
    %37 = vector.broadcast %0 : vector<128x1xf32> to vector<128x128xf32>
    %38 = arith.mulf %36, %37 : vector<128x128xf32>
    %cst_32 = arith.constant dense<0.000000e+00> : vector<128xf32>
    %39 = vector.multi_reduction <add>, %38, %cst_32 [0] : vector<128x128xf32> to vector<128xf32>
    %40 = vector.shape_cast %39 : vector<128xf32> to vector<1x128xf32>
    %cst_33 = arith.constant 6.250000e-02 : f32
    %41 = vector.broadcast %cst_33 : f32 to vector<1x128xf32>
    %42 = arith.mulf %40, %41 : vector<1x128xf32>
    %43 = vector.broadcast %42 : vector<1x128xf32> to vector<128x128xf32>
    %44 = arith.subf %36, %43 : vector<128x128xf32>
    %45 = vector.broadcast %0 : vector<128x1xf32> to vector<128x128xf32>
    %46 = arith.mulf %44, %45 : vector<128x128xf32>
    %47 = arith.mulf %46, %46 : vector<128x128xf32>
    %cst_34 = arith.constant dense<0.000000e+00> : vector<128xf32>
    %48 = vector.multi_reduction <add>, %47, %cst_34 [0] : vector<128x128xf32> to vector<128xf32>
    %49 = vector.shape_cast %48 : vector<128xf32> to vector<1x128xf32>
    %cst_35 = arith.constant 6.250000e-02 : f32
    %50 = vector.broadcast %cst_35 : f32 to vector<1x128xf32>
    %51 = arith.mulf %49, %50 : vector<1x128xf32>
    %c0_36 = arith.constant 0 : index
    %c0_37 = arith.constant 0 : index
    %c0_38 = arith.constant 0 : index
    %52 = vector.load %arg16[%c0_36, %c0_37, %c0_38] : memref<1x1x128xf32, #tpu.memory_space<vmem>>, vector<1x1x128xf32>
    %53 = vector.shape_cast %52 : vector<1x1x128xf32> to vector<1x128xf32>
    %cst_39 = arith.constant 9.99999974E-6 : f32
    %54 = vector.broadcast %cst_39 : f32 to vector<1x128xf32>
    %55 = arith.addf %51, %54 : vector<1x128xf32>
    %56 = math.rsqrt %55 : vector<1x128xf32>
    %57 = vector.broadcast %56 : vector<1x128xf32> to vector<128x128xf32>
    %58 = arith.mulf %46, %57 : vector<128x128xf32>
    %59 = vector.broadcast %53 : vector<1x128xf32> to vector<128x128xf32>
    %60 = arith.mulf %59, %58 : vector<128x128xf32>
    %c0_40 = arith.constant 0 : index
    %c0_41 = arith.constant 0 : index
    %c0_42 = arith.constant 0 : index
    %61 = vector.load %arg17[%c0_40, %c0_41, %c0_42] : memref<1x1x128xf32, #tpu.memory_space<vmem>>, vector<1x1x128xf32>
    %62 = vector.shape_cast %61 : vector<1x1x128xf32> to vector<1x128xf32>
    %63 = vector.broadcast %62 : vector<1x128xf32> to vector<128x128xf32>
    %64 = arith.addf %60, %63 : vector<128x128xf32>
    %c1_i32 = arith.constant 1 : i32
    %65 = arith.cmpi slt, %arg0, %c1_i32 : i32
    %66 = arith.extui %65 : i1 to i32
    %c0_i32_43 = arith.constant 0 : i32
    %67 = arith.cmpi ne, %66, %c0_i32_43 : i32
    scf.if %67 {
      %cst_48 = arith.constant 0.000000e+00 : f32
      %74 = vector.broadcast %cst_48 : f32 to vector<128x128xf32>
      %75 = arith.maximumf %64, %74 : vector<128x128xf32>
      %76 = vector.broadcast %0 : vector<128x1xf32> to vector<128x128xf32>
      %77 = arith.mulf %75, %76 : vector<128x128xf32>
      %c0_49 = arith.constant 0 : index
      %c0_50 = arith.constant 0 : index
      %78 = vector.load %arg27[%c0_49, %c0_50] : memref<128x128xf32, #tpu.memory_space<vmem>>, vector<128x128xf32>
      tpu.vector_store %arg27[%c0_49, %c0_50], %77 {strides = array<i32>} : memref<128x128xf32, #tpu.memory_space<vmem>>, vector<128x128xf32>,
    } else {
    }
    %c1_i32_44 = arith.constant 1 : i32
    %68 = arith.cmpi slt, %arg0, %c1_i32_44 : i32
    %69 = arith.extui %68 : i1 to i32
    %c0_i32_45 = arith.constant 0 : i32
    %70 = arith.cmpi ne, %69, %c0_i32_45 : i32
    scf.if %70 {
      %74 = arith.addf %12, %6 : vector<16x128xf32>
      %75 = arith.truncf %74 : vector<16x128xf32> to vector<16x128xbf16>
      %c0_48 = arith.constant 0 : index
      %c0_49 = arith.constant 0 : index
      %c0_50 = arith.constant 0 : index
      %76 = vector.load %arg18[%c0_48, %c0_49, %c0_50] : memref<1x128x128xbf16, #tpu.memory_space<vmem>>, vector<1x128x128xbf16>
      %77 = vector.shape_cast %76 : vector<1x128x128xbf16> to vector<128x128xbf16>
      %cst_51 = arith.constant dense<0.000000e+00> : vector<16x128xf32>
      %78 = tpu.matmul %75, %77, %cst_51 {dimension_numbers = #tpu.dot_dimension_numbers<[1], [0], [0], [1], [0, 0, 1, 1], [], []>} : vector<16x128xbf16>, vector<128x128xbf16>, vector<16x128xf32> -> vector<16x128xf32>
      %c0_52 = arith.constant 0 : index
      %c0_53 = arith.constant 0 : index
      %c0_54 = arith.constant 0 : index
      %79 = vector.load %arg19[%c0_52, %c0_53, %c0_54] : memref<1x1x128xf32, #tpu.memory_space<vmem>>, vector<1x1x128xf32>
      %80 = vector.shape_cast %79 : vector<1x1x128xf32> to vector<1x128xf32>
      %81 = vector.broadcast %80 : vector<1x128xf32> to vector<16x128xf32>
      %82 = arith.addf %78, %81 : vector<16x128xf32>
      %83 = vector.broadcast %1 : vector<16x1xf32> to vector<16x128xf32>
      %84 = arith.mulf %82, %83 : vector<16x128xf32>
      %cst_55 = arith.constant dense<0.000000e+00> : vector<128xf32>
      %85 = vector.multi_reduction <add>, %84, %cst_55 [0] : vector<16x128xf32> to vector<128xf32>
      %86 = vector.shape_cast %85 : vector<128xf32> to vector<1x128xf32>
      %cst_56 = arith.constant 5.000000e-01 : f32
      %87 = vector.broadcast %cst_56 : f32 to vector<1x128xf32>
      %88 = arith.mulf %86, %87 : vector<1x128xf32>
      %89 = vector.broadcast %88 : vector<1x128xf32> to vector<16x128xf32>
      %90 = arith.subf %82, %89 : vector<16x128xf32>
      %91 = vector.broadcast %1 : vector<16x1xf32> to vector<16x128xf32>
      %92 = arith.mulf %90, %91 : vector<16x128xf32>
      %93 = arith.mulf %92, %92 : vector<16x128xf32>
      %cst_57 = arith.constant dense<0.000000e+00> : vector<128xf32>
      %94 = vector.multi_reduction <add>, %93, %cst_57 [0] : vector<16x128xf32> to vector<128xf32>
      %95 = vector.shape_cast %94 : vector<128xf32> to vector<1x128xf32>
      %cst_58 = arith.constant 5.000000e-01 : f32
      %96 = vector.broadcast %cst_58 : f32 to vector<1x128xf32>
      %97 = arith.mulf %95, %96 : vector<1x128xf32>
      %c0_59 = arith.constant 0 : index
      %c0_60 = arith.constant 0 : index
      %c0_61 = arith.constant 0 : index
      %98 = vector.load %arg20[%c0_59, %c0_60, %c0_61] : memref<1x1x128xf32, #tpu.memory_space<vmem>>, vector<1x1x128xf32>
      %99 = vector.shape_cast %98 : vector<1x1x128xf32> to vector<1x128xf32>
      %cst_62 = arith.constant 9.99999974E-6 : f32
      %100 = vector.broadcast %cst_62 : f32 to vector<1x128xf32>
      %101 = arith.addf %97, %100 : vector<1x128xf32>
      %102 = math.rsqrt %101 : vector<1x128xf32>
      %103 = vector.broadcast %102 : vector<1x128xf32> to vector<16x128xf32>
      %104 = arith.mulf %92, %103 : vector<16x128xf32>
      %105 = vector.broadcast %99 : vector<1x128xf32> to vector<16x128xf32>
      %106 = arith.mulf %105, %104 : vector<16x128xf32>
      %c0_63 = arith.constant 0 : index
      %c0_64 = arith.constant 0 : index
      %c0_65 = arith.constant 0 : index
      %107 = vector.load %arg21[%c0_63, %c0_64, %c0_65] : memref<1x1x128xf32, #tpu.memory_space<vmem>>, vector<1x1x128xf32>
      %108 = vector.shape_cast %107 : vector<1x1x128xf32> to vector<1x128xf32>
      %109 = vector.broadcast %108 : vector<1x128xf32> to vector<16x128xf32>
      %110 = arith.addf %106, %109 : vector<16x128xf32>
      %cst_66 = arith.constant 0.000000e+00 : f32
      %111 = vector.broadcast %cst_66 : f32 to vector<16x128xf32>
      %112 = arith.maximumf %110, %111 : vector<16x128xf32>
      %113 = arith.truncf %112 : vector<16x128xf32> to vector<16x128xbf16>
      %c0_67 = arith.constant 0 : index
      %c0_68 = arith.constant 0 : index
      %c0_69 = arith.constant 0 : index
      %114 = vector.load %arg22[%c0_67, %c0_68, %c0_69] : memref<1x128x128xbf16, #tpu.memory_space<vmem>>, vector<1x128x128xbf16>
      %115 = vector.shape_cast %114 : vector<1x128x128xbf16> to vector<128x128xbf16>
      %cst_70 = arith.constant dense<0.000000e+00> : vector<16x128xf32>
      %116 = tpu.matmul %113, %115, %cst_70 {dimension_numbers = #tpu.dot_dimension_numbers<[1], [0], [0], [1], [0, 0, 1, 1], [], []>} : vector<16x128xbf16>, vector<128x128xbf16>, vector<16x128xf32> -> vector<16x128xf32>
      %c0_71 = arith.constant 0 : index
      %c0_72 = arith.constant 0 : index
      %c0_73 = arith.constant 0 : index
      %117 = vector.load %arg23[%c0_71, %c0_72, %c0_73] : memref<1x1x128xf32, #tpu.memory_space<vmem>>, vector<1x1x128xf32>
      %118 = vector.shape_cast %117 : vector<1x1x128xf32> to vector<1x128xf32>
      %119 = vector.broadcast %118 : vector<1x128xf32> to vector<16x128xf32>
      %120 = arith.addf %116, %119 : vector<16x128xf32>
      %121 = vector.broadcast %1 : vector<16x1xf32> to vector<16x128xf32>
      %122 = arith.mulf %120, %121 : vector<16x128xf32>
      %cst_74 = arith.constant dense<0.000000e+00> : vector<128xf32>
      %123 = vector.multi_reduction <add>, %122, %cst_74 [0] : vector<16x128xf32> to vector<128xf32>
      %124 = vector.shape_cast %123 : vector<128xf32> to vector<1x128xf32>
      %cst_75 = arith.constant 5.000000e-01 : f32
      %125 = vector.broadcast %cst_75 : f32 to vector<1x128xf32>
      %126 = arith.mulf %124, %125 : vector<1x128xf32>
      %127 = vector.broadcast %126 : vector<1x128xf32> to vector<16x128xf32>
      %128 = arith.subf %120, %127 : vector<16x128xf32>
      %129 = vector.broadcast %1 : vector<16x1xf32> to vector<16x128xf32>
      %130 = arith.mulf %128, %129 : vector<16x128xf32>
      %131 = arith.mulf %130, %130 : vector<16x128xf32>
      %cst_76 = arith.constant dense<0.000000e+00> : vector<128xf32>
      %132 = vector.multi_reduction <add>, %131, %cst_76 [0] : vector<16x128xf32> to vector<128xf32>
      %133 = vector.shape_cast %132 : vector<128xf32> to vector<1x128xf32>
      %cst_77 = arith.constant 5.000000e-01 : f32
      %134 = vector.broadcast %cst_77 : f32 to vector<1x128xf32>
      %135 = arith.mulf %133, %134 : vector<1x128xf32>
      %c0_78 = arith.constant 0 : index
      %c0_79 = arith.constant 0 : index
      %c0_80 = arith.constant 0 : index
      %136 = vector.load %arg24[%c0_78, %c0_79, %c0_80] : memref<1x1x128xf32, #tpu.memory_space<vmem>>, vector<1x1x128xf32>
      %137 = vector.shape_cast %136 : vector<1x1x128xf32> to vector<1x128xf32>
      %cst_81 = arith.constant 9.99999974E-6 : f32
      %138 = vector.broadcast %cst_81 : f32 to vector<1x128xf32>
      %139 = arith.addf %135, %138 : vector<1x128xf32>
      %140 = math.rsqrt %139 : vector<1x128xf32>
      %141 = vector.broadcast %140 : vector<1x128xf32> to vector<16x128xf32>
      %142 = arith.mulf %130, %141 : vector<16x128xf32>
      %143 = vector.broadcast %137 : vector<1x128xf32> to vector<16x128xf32>
      %144 = arith.mulf %143, %142 : vector<16x128xf32>
      %c0_82 = arith.constant 0 : index
      %c0_83 = arith.constant 0 : index
      %c0_84 = arith.constant 0 : index
      %145 = vector.load %arg25[%c0_82, %c0_83, %c0_84] : memref<1x1x128xf32, #tpu.memory_space<vmem>>, vector<1x1x128xf32>
      %146 = vector.shape_cast %145 : vector<1x1x128xf32> to vector<1x128xf32>
      %147 = vector.broadcast %146 : vector<1x128xf32> to vector<16x128xf32>
      %148 = arith.addf %144, %147 : vector<16x128xf32>
      %cst_85 = arith.constant 0.000000e+00 : f32
      %149 = vector.broadcast %cst_85 : f32 to vector<16x128xf32>
      %150 = arith.maximumf %148, %149 : vector<16x128xf32>
      %151 = vector.broadcast %1 : vector<16x1xf32> to vector<16x128xf32>
      %152 = arith.mulf %150, %151 : vector<16x128xf32>
      %c0_86 = arith.constant 0 : index
      %c0_87 = arith.constant 0 : index
      %153 = vector.load %arg28[%c0_86, %c0_87] : memref<16x128xf32, #tpu.memory_space<vmem>>, vector<16x128xf32>
      tpu.vector_store %arg28[%c0_86, %c0_87], %152 {strides = array<i32>} : memref<16x128xf32, #tpu.memory_space<vmem>>, vector<16x128xf32>,
    } else {
    }
    %c1_i32_46 = arith.constant 1 : i32
    %71 = arith.cmpi eq, %arg0, %c1_i32_46 : i32
    %72 = arith.extui %71 : i1 to i32
    %c0_i32_47 = arith.constant 0 : i32
    %73 = arith.cmpi ne, %72, %c0_i32_47 : i32
    scf.if %73 {
      %74 = vector.broadcast %0 : vector<128x1xf32> to vector<128x128xf32>
      %75 = arith.mulf %64, %74 : vector<128x128xf32>
      %76 = arith.truncf %75 : vector<128x128xf32> to vector<128x128xbf16>
      %cst_48 = arith.constant dense<0.000000e+00> : vector<16x128xf32>
      %77 = tpu.matmul %2, %76, %cst_48 {dimension_numbers = #tpu.dot_dimension_numbers<[1], [0], [0], [1], [0, 0, 1, 1], [], []>} : vector<16x128xbf16>, vector<128x128xbf16>, vector<16x128xf32> -> vector<16x128xf32>
      %c0_49 = arith.constant 0 : index
      %c0_50 = arith.constant 0 : index
      %78 = vector.load %arg4[%c0_49, %c0_50] : memref<16x1xf32, #tpu.memory_space<vmem>>, vector<16x1xf32>
      %79 = vector.broadcast %78 : vector<16x1xf32> to vector<16x128xf32>
      %80 = arith.mulf %77, %79 : vector<16x128xf32>
      %c0_51 = arith.constant 0 : index
      %c0_52 = arith.constant 0 : index
      %81 = vector.load %arg8[%c0_51, %c0_52] : memref<1x128xf32, #tpu.memory_space<vmem>>, vector<1x128xf32>
      %82 = vector.broadcast %81 : vector<1x128xf32> to vector<16x128xf32>
      %83 = arith.addf %80, %82 : vector<16x128xf32>
      %84 = arith.truncf %83 : vector<16x128xf32> to vector<16x128xbf16>
      %c0_53 = arith.constant 0 : index
      %c0_54 = arith.constant 0 : index
      %85 = vector.load %arg9[%c0_53, %c0_54] : memref<128x128xbf16, #tpu.memory_space<vmem>>, vector<128x128xbf16>
      %cst_55 = arith.constant dense<0.000000e+00> : vector<16x128xf32>
      %86 = tpu.matmul %84, %85, %cst_55 {dimension_numbers = #tpu.dot_dimension_numbers<[1], [0], [0], [1], [0, 0, 1, 1], [], []>} : vector<16x128xbf16>, vector<128x128xbf16>, vector<16x128xf32> -> vector<16x128xf32>
      %c0_56 = arith.constant 0 : index
      %c0_57 = arith.constant 0 : index
      %87 = vector.load %arg10[%c0_56, %c0_57] : memref<1x128xf32, #tpu.memory_space<vmem>>, vector<1x128xf32>
      %88 = vector.broadcast %87 : vector<1x128xf32> to vector<16x128xf32>
      %89 = arith.addf %86, %88 : vector<16x128xf32>
      %c0_58 = arith.constant 0 : index
      %c0_59 = arith.constant 0 : index
      %90 = vector.load %arg26[%c0_58, %c0_59] : memref<16x128xf32, #tpu.memory_space<vmem>>, vector<16x128xf32>
      tpu.vector_store %arg26[%c0_58, %c0_59], %89 {strides = array<i32>} : memref<16x128xf32, #tpu.memory_space<vmem>>, vector<16x128xf32>,
    } else {
    }
    return
  }
  func.func @transform_0(%arg0: i32) -> (i32, i32) {
    %c0_i32 = arith.constant 0 : i32
    %c0_i32_0 = arith.constant 0 : i32
    %c0_i32_1 = arith.constant 0 : i32
    return %c0_i32, %c0_i32_0 : i32, i32
  }
  func.func @transform_1(%arg0: i32) -> (i32, i32) {
    %c0_i32 = arith.constant 0 : i32
    %c0_i32_0 = arith.constant 0 : i32
    %c0_i32_1 = arith.constant 0 : i32
    return %c0_i32, %c0_i32_0 : i32, i32
  }
  func.func @transform_2(%arg0: i32) -> (i32, i32) {
    %c0_i32 = arith.constant 0 : i32
    %c0_i32_0 = arith.constant 0 : i32
    %c0_i32_1 = arith.constant 0 : i32
    return %c0_i32, %c0_i32_0 : i32, i32
  }
  func.func @transform_3(%arg0: i32) -> (i32, i32) {
    %c0_i32 = arith.constant 0 : i32
    %c0_i32_0 = arith.constant 0 : i32
    %c0_i32_1 = arith.constant 0 : i32
    return %c0_i32, %c0_i32_0 : i32, i32
  }
  func.func @transform_4(%arg0: i32) -> (i32, i32) {
    %c0_i32 = arith.constant 0 : i32
    %c0_i32_0 = arith.constant 0 : i32
    %c0_i32_1 = arith.constant 0 : i32
    return %c0_i32, %c0_i32_0 : i32, i32
  }
  func.func @transform_5(%arg0: i32) -> (i32, i32) {
    %c0_i32 = arith.constant 0 : i32
    %c0_i32_0 = arith.constant 0 : i32
    %c0_i32_1 = arith.constant 0 : i32
    return %c0_i32, %c0_i32_0 : i32, i32
  }
  func.func @transform_6(%arg0: i32) -> (i32, i32) {
    %c0_i32 = arith.constant 0 : i32
    %c0_i32_0 = arith.constant 0 : i32
    %c0_i32_1 = arith.constant 0 : i32
    return %c0_i32, %c0_i32_0 : i32, i32
  }
  func.func @transform_7(%arg0: i32) -> (i32, i32) {
    %c0_i32 = arith.constant 0 : i32
    %c0_i32_0 = arith.constant 0 : i32
    %c0_i32_1 = arith.constant 0 : i32
    return %c0_i32, %c0_i32_0 : i32, i32
  }
  func.func @transform_8(%arg0: i32) -> (i32, i32) {
    %c0_i32 = arith.constant 0 : i32
    %c0_i32_0 = arith.constant 0 : i32
    %c0_i32_1 = arith.constant 0 : i32
    return %c0_i32, %c0_i32_0 : i32, i32
  }
  func.func @transform_9(%arg0: i32) -> (i32, i32) {
    %c0_i32 = arith.constant 0 : i32
    %c0_i32_0 = arith.constant 0 : i32
    %c0_i32_1 = arith.constant 0 : i32
    return %c0_i32, %c0_i32_0 : i32, i32
  }
  func.func @transform_10(%arg0: i32) -> (i32, i32, i32) {
    %c0_i32 = arith.constant 0 : i32
    %c0_i32_0 = arith.constant 0 : i32
    %c0_i32_1 = arith.constant 0 : i32
    return %arg0, %c0_i32, %c0_i32_0 : i32, i32, i32
  }
  func.func @transform_11(%arg0: i32) -> (i32, i32, i32) {
    %c0_i32 = arith.constant 0 : i32
    %c0_i32_0 = arith.constant 0 : i32
    %c0_i32_1 = arith.constant 0 : i32
    return %arg0, %c0_i32, %c0_i32_0 : i32, i32, i32
  }
  func.func @transform_12(%arg0: i32) -> (i32, i32, i32) {
    %c0_i32 = arith.constant 0 : i32
    %c0_i32_0 = arith.constant 0 : i32
    %c0_i32_1 = arith.constant 0 : i32
    return %arg0, %c0_i32, %c0_i32_0 : i32, i32, i32
  }
  func.func @transform_13(%arg0: i32) -> (i32, i32, i32) {
    %c0_i32 = arith.constant 0 : i32
    %c0_i32_0 = arith.constant 0 : i32
    %c0_i32_1 = arith.constant 0 : i32
    return %arg0, %c0_i32, %c0_i32_0 : i32, i32, i32
  }
  func.func @transform_14(%arg0: i32) -> (i32, i32, i32) {
    %c0_i32 = arith.constant 0 : i32
    %c0_i32_0 = arith.constant 0 : i32
    %c0_i32_1 = arith.constant 0 : i32
    return %arg0, %c0_i32, %c0_i32_0 : i32, i32, i32
  }
  func.func @transform_15(%arg0: i32) -> (i32, i32, i32) {
    %c0_i32 = arith.constant 0 : i32
    %c0_i32_0 = arith.constant 0 : i32
    %c0_i32_1 = arith.constant 0 : i32
    return %arg0, %c0_i32, %c0_i32_0 : i32, i32, i32
  }
  func.func @transform_16(%arg0: i32) -> (i32, i32, i32) {
    %c0_i32 = arith.constant 0 : i32
    %c0_i32_0 = arith.constant 0 : i32
    %c0_i32_1 = arith.constant 0 : i32
    return %arg0, %c0_i32, %c0_i32_0 : i32, i32, i32
  }
  func.func @transform_17(%arg0: i32) -> (i32, i32, i32) {
    %c0_i32 = arith.constant 0 : i32
    %c0_i32_0 = arith.constant 0 : i32
    %c0_i32_1 = arith.constant 0 : i32
    return %arg0, %c0_i32, %c0_i32_0 : i32, i32, i32
  }
  func.func @transform_18(%arg0: i32) -> (i32, i32, i32) {
    %c0_i32 = arith.constant 0 : i32
    %c0_i32_0 = arith.constant 0 : i32
    %c0_i32_1 = arith.constant 0 : i32
    return %arg0, %c0_i32, %c0_i32_0 : i32, i32, i32
  }
  func.func @transform_19(%arg0: i32) -> (i32, i32, i32) {
    %c0_i32 = arith.constant 0 : i32
    %c0_i32_0 = arith.constant 0 : i32
    %c0_i32_1 = arith.constant 0 : i32
    return %arg0, %c0_i32, %c0_i32_0 : i32, i32, i32
  }
  func.func @transform_20(%arg0: i32) -> (i32, i32, i32) {
    %c0_i32 = arith.constant 0 : i32
    %c0_i32_0 = arith.constant 0 : i32
    %c0_i32_1 = arith.constant 0 : i32
    return %arg0, %c0_i32, %c0_i32_0 : i32, i32, i32
  }
  func.func @transform_21(%arg0: i32) -> (i32, i32, i32) {
    %c0_i32 = arith.constant 0 : i32
    %c0_i32_0 = arith.constant 0 : i32
    %c0_i32_1 = arith.constant 0 : i32
    return %arg0, %c0_i32, %c0_i32_0 : i32, i32, i32
  }
  func.func @transform_22(%arg0: i32) -> (i32, i32, i32) {
    %c0_i32 = arith.constant 0 : i32
    %c0_i32_0 = arith.constant 0 : i32
    %c0_i32_1 = arith.constant 0 : i32
    return %arg0, %c0_i32, %c0_i32_0 : i32, i32, i32
  }
  func.func @transform_23(%arg0: i32) -> (i32, i32, i32) {
    %c0_i32 = arith.constant 0 : i32
    %c0_i32_0 = arith.constant 0 : i32
    %c0_i32_1 = arith.constant 0 : i32
    return %arg0, %c0_i32, %c0_i32_0 : i32, i32, i32
  }
  func.func @transform_24(%arg0: i32) -> (i32, i32, i32) {
    %c0_i32 = arith.constant 0 : i32
    %c0_i32_0 = arith.constant 0 : i32
    %c0_i32_1 = arith.constant 0 : i32
    return %arg0, %c0_i32, %c0_i32_0 : i32, i32, i32
  }
  func.func @transform_25(%arg0: i32) -> (i32, i32) {
    %c0_i32 = arith.constant 0 : i32
    %c0_i32_0 = arith.constant 0 : i32
    %c0_i32_1 = arith.constant 0 : i32
    return %c0_i32, %c0_i32_0 : i32, i32
  }
}

</mosaic_0001>

<llo_original>
// kernel: tpu_custom_call.1
$region0: #{tpu_custom_call.1}
  #allocation0 [shape = 'u32[]', space=smem, size = 0x4, offset = 0x4, fixed_abs, tag = 'smem constant byte address 0x4 - core index']
  #allocation1 [shape = 'u32[144,128]{1,0:T(1,128)}', space=vmem, size = 0x12000, scoped, tag = 'internal scratch']
  #allocation2 [shape = 'f32[128,128]{1,0:T(8,128)}', space=vmem, size = 0x10000, scoped, tag = 'scratch operand']
  #allocation3 [shape = 'f32[16,128]{1,0:T(8,128)}', space=vmem, size = 0x2000, scoped, tag = 'scratch operand']
  %s0 = inlined_call_operand.hbm [shape: bf16[128,128], index: 0, kind: input, shape index: {}]
  %s1 = inlined_call_operand.vmem [shape: f32[128,128], index: 1, kind: input, shape index: {}]
  %s2 = inlined_call_operand.hbm [shape: bf16[16,128], index: 2, kind: input, shape index: {}]
  %s3 = inlined_call_operand.vmem [shape: f32[16,1], index: 3, kind: input, shape index: {}]
  %s4 = inlined_call_operand.vmem [shape: f32[128,1], index: 4, kind: input, shape index: {}]
  %s5 = inlined_call_operand.vmem [shape: f32[16,1], index: 5, kind: input, shape index: {}]
  %s6 = inlined_call_operand.hbm [shape: f32[1,128], index: 6, kind: input, shape index: {}]
  %s7 = inlined_call_operand.hbm [shape: f32[1,128], index: 7, kind: input, shape index: {}]
  %s8 = inlined_call_operand.vmem [shape: bf16[128,128], index: 8, kind: input, shape index: {}]
  %s9 = inlined_call_operand.hbm [shape: f32[1,128], index: 9, kind: input, shape index: {}]
  %s10 = inlined_call_operand.hbm [shape: bf16[2,128,128], index: 10, kind: input, shape index: {}]
  %s11 = inlined_call_operand.hbm [shape: bf16[2,128,128], index: 11, kind: input, shape index: {}]
  %s12 = inlined_call_operand.vmem [shape: f32[2,1,128], index: 12, kind: input, shape index: {}]
  %s13 = inlined_call_operand.hbm [shape: bf16[2,128,128], index: 13, kind: input, shape index: {}]
  %s14 = inlined_call_operand.vmem [shape: f32[2,1,128], index: 14, kind: input, shape index: {}]
  %s15 = inlined_call_operand.vmem [shape: f32[2,1,128], index: 15, kind: input, shape index: {}]
  %s16 = inlined_call_operand.vmem [shape: f32[2,1,128], index: 16, kind: input, shape index: {}]
  %s17 = inlined_call_operand.hbm [shape: bf16[2,128,128], index: 17, kind: input, shape index: {}]
  %s18 = inlined_call_operand.vmem [shape: f32[2,1,128], index: 18, kind: input, shape index: {}]
  %s19 = inlined_call_operand.vmem [shape: f32[2,1,128], index: 19, kind: input, shape index: {}]
  %s20 = inlined_call_operand.vmem [shape: f32[2,1,128], index: 20, kind: input, shape index: {}]
  %s21 = inlined_call_operand.hbm [shape: bf16[2,128,128], index: 21, kind: input, shape index: {}]
  %s22 = inlined_call_operand.vmem [shape: f32[2,1,128], index: 22, kind: input, shape index: {}]
  %s23 = inlined_call_operand.vmem [shape: f32[2,1,128], index: 23, kind: input, shape index: {}]
  %s24 = inlined_call_operand.vmem [shape: f32[2,1,128], index: 24, kind: input, shape index: {}]
  %s25 = inlined_call_operand.hbm [shape: f32[16,128], index: 25, kind: output, shape index: {}]
  %s26 = sld [smem:[#allocation0]]
  $region185: #{tpu_custom_call.1} parent=0
    _
  %s28 = ssub.s32 1, %s26
  %s29 = scalar_select 0, %s28, %s26
  $region1: #{tpu_custom_call.1} parent=0
    #allocation4 [shape = 'u8[32768]{0}', space=vmem, size = 0x8000, scoped, tag = 'input window, operand 0, single buffered']
    #allocation5 [shape = 's32[2]{0}', space=sflag, size = 0x8, scoped, tag = 'scoped memory for tpu_custom_call.1']
    #allocation6 [shape = 's32[2]{0}', space=sflag, size = 0x8, scoped, tag = 'scoped memory for tpu_custom_call.1']
    #allocation7 [shape = 'u8[4096]{0}', space=vmem, size = 0x1000, scoped, tag = 'input window, operand 2, single buffered']
    #allocation8 [shape = 's32[1]{0}', space=sflag, size = 0x4, scoped, tag = 'scoped memory for tpu_custom_call.1']
    #allocation9 [shape = 'u8[512]{0}', space=vmem, size = 0x400, scoped, tag = 'input window, operand 6, single buffered']
    #allocation10 [shape = 'u8[512]{0}', space=vmem, size = 0x400, scoped, tag = 'input window, operand 7, single buffered']
    #allocation11 [shape = 's32[1]{0}', space=sflag, size = 0x4, scoped, tag = 'scoped memory for tpu_custom_call.1']
    #allocation12 [shape = 'u8[512]{0}', space=vmem, size = 0x400, scoped, tag = 'input window, operand 9, single buffered']
    #allocation13 [shape = 'u8[65536]{0}', space=vmem, size = 0x10000, scoped, tag = 'input window, operand 10']
    #allocation14 [shape = 's32[2]{0}', space=sflag, size = 0x8, scoped, tag = 'scoped memory for tpu_custom_call.1']
    #allocation15 [shape = 'u8[65536]{0}', space=vmem, size = 0x10000, scoped, tag = 'input window, operand 11']
    #allocation16 [shape = 'u8[65536]{0}', space=vmem, size = 0x10000, scoped, tag = 'input window, operand 13']
    #allocation17 [shape = 's32[2]{0}', space=sflag, size = 0x8, scoped, tag = 'scoped memory for tpu_custom_call.1']
    #allocation18 [shape = 'u8[65536]{0}', space=vmem, size = 0x10000, scoped, tag = 'input window, operand 17']
    #allocation19 [shape = 'u8[65536]{0}', space=vmem, size = 0x10000, scoped, tag = 'input window, operand 21']
    #allocation20 [shape = 's32[2]{0}', space=sflag, size = 0x8, scoped, tag = 'scoped memory for tpu_custom_call.1']
    #allocation21 [shape = 'u8[8192]{0}', space=vmem, size = 0x2000, scoped, tag = 'output window, operand 0, single buffered']
    %30 = vsyncpa [#allocation5], 0
    %31 = vsyncpa [#allocation8], 0
    %32 = vsyncpa [#allocation11], 0
    %33 = vsyncpa [#allocation14], 0
    %s34 = scalar_lea.sflag [#allocation14], 1
    %35 = vsyncpa %s34, 0
    %36 = vsyncpa [#allocation17], 0
    %s37 = scalar_lea.sflag [#allocation17], 1
    %38 = vsyncpa %s37, 0
    %39 = vsyncpa [#allocation20], 0
    %s40 = scalar_lea.sflag [#allocation20], 1
    %41 = vsyncpa %s40, 0
    %42 = vsyncpa [#allocation6], 0
    loop: start=0, step=1, limit=4
    $region2: #{tpu_custom_call.1} parent=1 // loop_pre_header
      _
    $region3: #{tpu_custom_call.1} parent=1 // loop_header
      %s44 = sphi 0, %s48
      %p45 = scmp.ge.s32.totalorder %s44, 4
      %s52 = sphi 0, %s52
      %s54 = sphi 0, %s52
      %s55 = sphi 0, %s54
      %s69 = sphi 0, %s55
      %s73 = sphi 0, %s73
      %s75 = sphi 0, %s73
      %s76 = sphi 0, %s75
      %s90 = sphi 0, %s76
      %s94 = sphi 0, %s94
      %s96 = sphi 0, %s94
      %s97 = sphi 0, %s96
      %s111 = sphi 0, %s97
      %s115 = sphi 0, %s115
      %s117 = sphi 0, %s115
      %s118 = sphi 0, %s117
      %s132 = sphi 0, %s118
      %s136 = sphi 0, %s136
      %s138 = sphi 0, %s136
      %s139 = sphi 0, %s138
      %s153 = sphi 0, %s139
      %s157 = sphi 0, %s157
      %s159 = sphi 0, %s157
      %s160 = sphi 0, %s159
      %s174 = sphi 0, %s160
      %s178 = sphi 0, %s178
      %s180 = sphi 0, %s178
      %s181 = sphi 0, %s180
      %s195 = sphi 0, %s181
      %s199 = sphi 0, %s199
      %s201 = sphi 0, %s199
      %s202 = sphi 0, %s201
      %s216 = sphi 0, %s202
      %s220 = sphi 0, %s220
      %s222 = sphi 0, %s220
      %s223 = sphi 0, %s222
      %s237 = sphi 0, %s223
      %s241 = sphi 0, %s241
      %s243 = sphi 0, %s241
      %s244 = sphi 0, %s243
      %s258 = sphi 0, %s244
      %s264 = sphi 0, %s266
      %s267 = sphi 0, %s264
      %s268 = sphi 0, %s267
      %s284 = sphi 0, %s268
      %s290 = sphi 0, %s292
      %s293 = sphi 0, %s290
      %s294 = sphi 0, %s293
      %s310 = sphi 0, %s294
      %s316 = sphi 0, %s318
      %s319 = sphi 0, %s316
      %s320 = sphi 0, %s319
      %s336 = sphi 0, %s320
      %s342 = sphi 0, %s344
      %s345 = sphi 0, %s342
      %s346 = sphi 0, %s345
      %s362 = sphi 0, %s346
      %s368 = sphi 0, %s370
      %s371 = sphi 0, %s368
      %s372 = sphi 0, %s371
      %s388 = sphi 0, %s372
      %s394 = sphi 0, %s396
      %s397 = sphi 0, %s394
      %s398 = sphi 0, %s397
      %s414 = sphi 0, %s398
      %s420 = sphi 0, %s422
      %s423 = sphi 0, %s420
      %s424 = sphi 0, %s423
      %s440 = sphi 0, %s424
      %s446 = sphi 0, %s448
      %s449 = sphi 0, %s446
      %s450 = sphi 0, %s449
      %s466 = sphi 0, %s450
      %s472 = sphi 0, %s474
      %s475 = sphi 0, %s472
      %s476 = sphi 0, %s475
      %s492 = sphi 0, %s476
      %s498 = sphi 0, %s500
      %s501 = sphi 0, %s498
      %s502 = sphi 0, %s501
      %s518 = sphi 0, %s502
      %s524 = sphi 0, %s526
      %s527 = sphi 0, %s524
      %s528 = sphi 0, %s527
      %s544 = sphi 0, %s528
      %s550 = sphi 0, %s552
      %s553 = sphi 0, %s550
      %s554 = sphi 0, %s553
      %s570 = sphi 0, %s554
      %s576 = sphi 0, %s578
      %s579 = sphi 0, %s576
      %s580 = sphi 0, %s579
      %s596 = sphi 0, %s580
      %s602 = sphi 0, %s604
      %s605 = sphi 0, %s602
      %s606 = sphi 0, %s605
      %s622 = sphi 0, %s606
      %s628 = sphi 0, %s630
      %s631 = sphi 0, %s628
      %s632 = sphi 0, %s631
      %s648 = sphi 0, %s632
      %s652 = sphi 0, %s652
      %s654 = sphi 0, %s652
      %s655 = sphi 0, %s654
      %s669 = sphi 0, %s655
    $region4: #{tpu_custom_call.1} parent=1 // loop_header_branch
      %47 = sbr.rel (%p45) target = $region8
    $region5: #{tpu_custom_call.1} parent=1 // loop_body
      %s49 = ssub.s32 %s44, 1
      %s50 = ssub.s32 %s44, 2
      %s51 = sadd.s32 %s44, 1
      %s53 = sadd.s32 %s52, 1
      %p56 = scmp.eq.s32.totalorder %s44, 1
      %p57 = scmp.ne.s32.totalorder %s52, %s54
      %p58 = scmp.eq.s32.totalorder %s44, 0
      %p59 = por %p57, %p58
      %p60 = scmp.ne.s32.totalorder %s52, %s54
      %p61 = scmp.eq.s32.totalorder %s49, 1
      %p62 = por %p60, %p61
      %p63 = scmp.ne.s32.totalorder %s54, %s55
      %p64 = scmp.eq.s32.totalorder %s49, 0
      %p65 = por %p63, %p64
      %p66 = scmp.ne.s32.totalorder %s54, %s55
      %p67 = scmp.eq.s32.totalorder %s50, 1
      %p68 = por %p66, %p67
      %p70 = scmp.ne.s32.totalorder %s55, %s69
      %p71 = scmp.eq.s32.totalorder %s50, 0
      %p72 = por %p70, %p71
      %s74 = sadd.s32 %s73, 1
      %p77 = scmp.eq.s32.totalorder %s44, 1
      %p78 = scmp.ne.s32.totalorder %s73, %s75
      %p79 = scmp.eq.s32.totalorder %s44, 0
      %p80 = por %p78, %p79
      %p81 = scmp.ne.s32.totalorder %s73, %s75
      %p82 = scmp.eq.s32.totalorder %s49, 1
      %p83 = por %p81, %p82
      %p84 = scmp.ne.s32.totalorder %s75, %s76
      %p85 = scmp.eq.s32.totalorder %s49, 0
      %p86 = por %p84, %p85
      %p87 = scmp.ne.s32.totalorder %s75, %s76
      %p88 = scmp.eq.s32.totalorder %s50, 1
      %p89 = por %p87, %p88
      %p91 = scmp.ne.s32.totalorder %s76, %s90
      %p92 = scmp.eq.s32.totalorder %s50, 0
      %p93 = por %p91, %p92
      %s95 = sadd.s32 %s94, 1
      %p98 = scmp.eq.s32.totalorder %s44, 1
      %p99 = scmp.ne.s32.totalorder %s94, %s96
      %p100 = scmp.eq.s32.totalorder %s44, 0
      %p101 = por %p99, %p100
      %p102 = scmp.ne.s32.totalorder %s94, %s96
      %p103 = scmp.eq.s32.totalorder %s49, 1
      %p104 = por %p102, %p103
      %p105 = scmp.ne.s32.totalorder %s96, %s97
      %p106 = scmp.eq.s32.totalorder %s49, 0
      %p107 = por %p105, %p106
      %p108 = scmp.ne.s32.totalorder %s96, %s97
      %p109 = scmp.eq.s32.totalorder %s50, 1
      %p110 = por %p108, %p109
      %p112 = scmp.ne.s32.totalorder %s97, %s111
      %p113 = scmp.eq.s32.totalorder %s50, 0
      %p114 = por %p112, %p113
      %s116 = sadd.s32 %s115, 1
      %p119 = scmp.eq.s32.totalorder %s44, 1
      %p120 = scmp.ne.s32.totalorder %s115, %s117
      %p121 = scmp.eq.s32.totalorder %s44, 0
      %p122 = por %p120, %p121
      %p123 = scmp.ne.s32.totalorder %s115, %s117
      %p124 = scmp.eq.s32.totalorder %s49, 1
      %p125 = por %p123, %p124
      %p126 = scmp.ne.s32.totalorder %s117, %s118
      %p127 = scmp.eq.s32.totalorder %s49, 0
      %p128 = por %p126, %p127
      %p129 = scmp.ne.s32.totalorder %s117, %s118
      %p130 = scmp.eq.s32.totalorder %s50, 1
      %p131 = por %p129, %p130
      %p133 = scmp.ne.s32.totalorder %s118, %s132
      %p134 = scmp.eq.s32.totalorder %s50, 0
      %p135 = por %p133, %p134
      %s137 = sadd.s32 %s136, 1
      %p140 = scmp.eq.s32.totalorder %s44, 1
      %p141 = scmp.ne.s32.totalorder %s136, %s138
      %p142 = scmp.eq.s32.totalorder %s44, 0
      %p143 = por %p141, %p142
      %p144 = scmp.ne.s32.totalorder %s136, %s138
      %p145 = scmp.eq.s32.totalorder %s49, 1
      %p146 = por %p144, %p145
      %p147 = scmp.ne.s32.totalorder %s138, %s139
      %p148 = scmp.eq.s32.totalorder %s49, 0
      %p149 = por %p147, %p148
      %p150 = scmp.ne.s32.totalorder %s138, %s139
      %p151 = scmp.eq.s32.totalorder %s50, 1
      %p152 = por %p150, %p151
      %p154 = scmp.ne.s32.totalorder %s139, %s153
      %p155 = scmp.eq.s32.totalorder %s50, 0
      %p156 = por %p154, %p155
      %s158 = sadd.s32 %s157, 1
      %p161 = scmp.eq.s32.totalorder %s44, 1
      %p162 = scmp.ne.s32.totalorder %s157, %s159
      %p163 = scmp.eq.s32.totalorder %s44, 0
      %p164 = por %p162, %p163
      %p165 = scmp.ne.s32.totalorder %s157, %s159
      %p166 = scmp.eq.s32.totalorder %s49, 1
      %p167 = por %p165, %p166
      %p168 = scmp.ne.s32.totalorder %s159, %s160
      %p169 = scmp.eq.s32.totalorder %s49, 0
      %p170 = por %p168, %p169
      %p171 = scmp.ne.s32.totalorder %s159, %s160
      %p172 = scmp.eq.s32.totalorder %s50, 1
      %p173 = por %p171, %p172
      %p175 = scmp.ne.s32.totalorder %s160, %s174
      %p176 = scmp.eq.s32.totalorder %s50, 0
      %p177 = por %p175, %p176
      %s179 = sadd.s32 %s178, 1
      %p182 = scmp.eq.s32.totalorder %s44, 1
      %p183 = scmp.ne.s32.totalorder %s178, %s180
      %p184 = scmp.eq.s32.totalorder %s44, 0
      %p185 = por %p183, %p184
      %p186 = scmp.ne.s32.totalorder %s178, %s180
      %p187 = scmp.eq.s32.totalorder %s49, 1
      %p188 = por %p186, %p187
      %p189 = scmp.ne.s32.totalorder %s180, %s181
      %p190 = scmp.eq.s32.totalorder %s49, 0
      %p191 = por %p189, %p190
      %p192 = scmp.ne.s32.totalorder %s180, %s181
      %p193 = scmp.eq.s32.totalorder %s50, 1
      %p194 = por %p192, %p193
      %p196 = scmp.ne.s32.totalorder %s181, %s195
      %p197 = scmp.eq.s32.totalorder %s50, 0
      %p198 = por %p196, %p197
      %s200 = sadd.s32 %s199, 1
      %p203 = scmp.eq.s32.totalorder %s44, 1
      %p204 = scmp.ne.s32.totalorder %s199, %s201
      %p205 = scmp.eq.s32.totalorder %s44, 0
      %p206 = por %p204, %p205
      %p207 = scmp.ne.s32.totalorder %s199, %s201
      %p208 = scmp.eq.s32.totalorder %s49, 1
      %p209 = por %p207, %p208
      %p210 = scmp.ne.s32.totalorder %s201, %s202
      %p211 = scmp.eq.s32.totalorder %s49, 0
      %p212 = por %p210, %p211
      %p213 = scmp.ne.s32.totalorder %s201, %s202
      %p214 = scmp.eq.s32.totalorder %s50, 1
      %p215 = por %p213, %p214
      %p217 = scmp.ne.s32.totalorder %s202, %s216
      %p218 = scmp.eq.s32.totalorder %s50, 0
      %p219 = por %p217, %p218
      %s221 = sadd.s32 %s220, 1
      %p224 = scmp.eq.s32.totalorder %s44, 1
      %p225 = scmp.ne.s32.totalorder %s220, %s222
      %p226 = scmp.eq.s32.totalorder %s44, 0
      %p227 = por %p225, %p226
      %p228 = scmp.ne.s32.totalorder %s220, %s222
      %p229 = scmp.eq.s32.totalorder %s49, 1
      %p230 = por %p228, %p229
      %p231 = scmp.ne.s32.totalorder %s222, %s223
      %p232 = scmp.eq.s32.totalorder %s49, 0
      %p233 = por %p231, %p232
      %p234 = scmp.ne.s32.totalorder %s222, %s223
      %p235 = scmp.eq.s32.totalorder %s50, 1
      %p236 = por %p234, %p235
      %p238 = scmp.ne.s32.totalorder %s223, %s237
      %p239 = scmp.eq.s32.totalorder %s50, 0
      %p240 = por %p238, %p239
      %s242 = sadd.s32 %s241, 1
      %p245 = scmp.eq.s32.totalorder %s44, 1
      %p246 = scmp.ne.s32.totalorder %s241, %s243
      %p247 = scmp.eq.s32.totalorder %s44, 0
      %p248 = por %p246, %p247
      %p249 = scmp.ne.s32.totalorder %s241, %s243
      %p250 = scmp.eq.s32.totalorder %s49, 1
      %p251 = por %p249, %p250
      %p252 = scmp.ne.s32.totalorder %s243, %s244
      %p253 = scmp.eq.s32.totalorder %s49, 0
      %p254 = por %p252, %p253
      %p255 = scmp.ne.s32.totalorder %s243, %s244
      %p256 = scmp.eq.s32.totalorder %s50, 1
      %p257 = por %p255, %p256
      %p259 = scmp.ne.s32.totalorder %s244, %s258
      %p260 = scmp.eq.s32.totalorder %s50, 0
      %p261 = por %p259, %p260
      %s262 = ssub.s32 %s44, %s51
      %p263 = scmp.eq.s32.totalorder %s262, 0
      %s265 = sadd.s32 %s264, 1
      %s266 = scalar_select %p263, %s264, %s265
      %p269 = pneg %p263
      %p270 = scmp.eq.s32.totalorder %s44, 1
      %p271 = por %p269, %p270
      %p272 = scmp.ne.s32.totalorder %s264, %s267
      %p273 = scmp.eq.s32.totalorder %s44, 0
      %p274 = por %p272, %p273
      %p275 = scmp.ne.s32.totalorder %s264, %s267
      %p276 = scmp.eq.s32.totalorder %s49, 1
      %p277 = por %p275, %p276
      %p278 = scmp.ne.s32.totalorder %s267, %s268
      %p279 = scmp.eq.s32.totalorder %s49, 0
      %p280 = por %p278, %p279
      %p281 = scmp.ne.s32.totalorder %s267, %s268
      %p282 = scmp.eq.s32.totalorder %s50, 1
      %p283 = por %p281, %p282
      %p285 = scmp.ne.s32.totalorder %s268, %s284
      %p286 = scmp.eq.s32.totalorder %s50, 0
      %p287 = por %p285, %p286
      %s288 = ssub.s32 %s44, %s51
      %p289 = scmp.eq.s32.totalorder %s288, 0
      %s291 = sadd.s32 %s290, 1
      %s292 = scalar_select %p289, %s290, %s291
      %p295 = pneg %p289
      %p296 = scmp.eq.s32.totalorder %s44, 1
      %p297 = por %p295, %p296
      %p298 = scmp.ne.s32.totalorder %s290, %s293
      %p299 = scmp.eq.s32.totalorder %s44, 0
      %p300 = por %p298, %p299
      %p301 = scmp.ne.s32.totalorder %s290, %s293
      %p302 = scmp.eq.s32.totalorder %s49, 1
      %p303 = por %p301, %p302
      %p304 = scmp.ne.s32.totalorder %s293, %s294
      %p305 = scmp.eq.s32.totalorder %s49, 0
      %p306 = por %p304, %p305
      %p307 = scmp.ne.s32.totalorder %s293, %s294
      %p308 = scmp.eq.s32.totalorder %s50, 1
      %p309 = por %p307, %p308
      %p311 = scmp.ne.s32.totalorder %s294, %s310
      %p312 = scmp.eq.s32.totalorder %s50, 0
      %p313 = por %p311, %p312
      %s314 = ssub.s32 %s44, %s51
      %p315 = scmp.eq.s32.totalorder %s314, 0
      %s317 = sadd.s32 %s316, 1
      %s318 = scalar_select %p315, %s316, %s317
      %p321 = pneg %p315
      %p322 = scmp.eq.s32.totalorder %s44, 1
      %p323 = por %p321, %p322
      %p324 = scmp.ne.s32.totalorder %s316, %s319
      %p325 = scmp.eq.s32.totalorder %s44, 0
      %p326 = por %p324, %p325
      %p327 = scmp.ne.s32.totalorder %s316, %s319
      %p328 = scmp.eq.s32.totalorder %s49, 1
      %p329 = por %p327, %p328
      %p330 = scmp.ne.s32.totalorder %s319, %s320
      %p331 = scmp.eq.s32.totalorder %s49, 0
      %p332 = por %p330, %p331
      %p333 = scmp.ne.s32.totalorder %s319, %s320
      %p334 = scmp.eq.s32.totalorder %s50, 1
      %p335 = por %p333, %p334
      %p337 = scmp.ne.s32.totalorder %s320, %s336
      %p338 = scmp.eq.s32.totalorder %s50, 0
      %p339 = por %p337, %p338
      %s340 = ssub.s32 %s44, %s51
      %p341 = scmp.eq.s32.totalorder %s340, 0
      %s343 = sadd.s32 %s342, 1
      %s344 = scalar_select %p341, %s342, %s343
      %p347 = pneg %p341
      %p348 = scmp.eq.s32.totalorder %s44, 1
      %p349 = por %p347, %p348
      %p350 = scmp.ne.s32.totalorder %s342, %s345
      %p351 = scmp.eq.s32.totalorder %s44, 0
      %p352 = por %p350, %p351
      %p353 = scmp.ne.s32.totalorder %s342, %s345
      %p354 = scmp.eq.s32.totalorder %s49, 1
      %p355 = por %p353, %p354
      %p356 = scmp.ne.s32.totalorder %s345, %s346
      %p357 = scmp.eq.s32.totalorder %s49, 0
      %p358 = por %p356, %p357
      %p359 = scmp.ne.s32.totalorder %s345, %s346
      %p360 = scmp.eq.s32.totalorder %s50, 1
      %p361 = por %p359, %p360
      %p363 = scmp.ne.s32.totalorder %s346, %s362
      %p364 = scmp.eq.s32.totalorder %s50, 0
      %p365 = por %p363, %p364
      %s366 = ssub.s32 %s44, %s51
      %p367 = scmp.eq.s32.totalorder %s366, 0
      %s369 = sadd.s32 %s368, 1
      %s370 = scalar_select %p367, %s368, %s369
      %p373 = pneg %p367
      %p374 = scmp.eq.s32.totalorder %s44, 1
      %p375 = por %p373, %p374
      %p376 = scmp.ne.s32.totalorder %s368, %s371
      %p377 = scmp.eq.s32.totalorder %s44, 0
      %p378 = por %p376, %p377
      %p379 = scmp.ne.s32.totalorder %s368, %s371
      %p380 = scmp.eq.s32.totalorder %s49, 1
      %p381 = por %p379, %p380
      %p382 = scmp.ne.s32.totalorder %s371, %s372
      %p383 = scmp.eq.s32.totalorder %s49, 0
      %p384 = por %p382, %p383
      %p385 = scmp.ne.s32.totalorder %s371, %s372
      %p386 = scmp.eq.s32.totalorder %s50, 1
      %p387 = por %p385, %p386
      %p389 = scmp.ne.s32.totalorder %s372, %s388
      %p390 = scmp.eq.s32.totalorder %s50, 0
      %p391 = por %p389, %p390
      %s392 = ssub.s32 %s44, %s51
      %p393 = scmp.eq.s32.totalorder %s392, 0
      %s395 = sadd.s32 %s394, 1
      %s396 = scalar_select %p393, %s394, %s395
      %p399 = pneg %p393
      %p400 = scmp.eq.s32.totalorder %s44, 1
      %p401 = por %p399, %p400
      %p402 = scmp.ne.s32.totalorder %s394, %s397
      %p403 = scmp.eq.s32.totalorder %s44, 0
      %p404 = por %p402, %p403
      %p405 = scmp.ne.s32.totalorder %s394, %s397
      %p406 = scmp.eq.s32.totalorder %s49, 1
      %p407 = por %p405, %p406
      %p408 = scmp.ne.s32.totalorder %s397, %s398
      %p409 = scmp.eq.s32.totalorder %s49, 0
      %p410 = por %p408, %p409
      %p411 = scmp.ne.s32.totalorder %s397, %s398
      %p412 = scmp.eq.s32.totalorder %s50, 1
      %p413 = por %p411, %p412
      %p415 = scmp.ne.s32.totalorder %s398, %s414
      %p416 = scmp.eq.s32.totalorder %s50, 0
      %p417 = por %p415, %p416
      %s418 = ssub.s32 %s44, %s51
      %p419 = scmp.eq.s32.totalorder %s418, 0
      %s421 = sadd.s32 %s420, 1
      %s422 = scalar_select %p419, %s420, %s421
      %p425 = pneg %p419
      %p426 = scmp.eq.s32.totalorder %s44, 1
      %p427 = por %p425, %p426
      %p428 = scmp.ne.s32.totalorder %s420, %s423
      %p429 = scmp.eq.s32.totalorder %s44, 0
      %p430 = por %p428, %p429
      %p431 = scmp.ne.s32.totalorder %s420, %s423
      %p432 = scmp.eq.s32.totalorder %s49, 1
      %p433 = por %p431, %p432
      %p434 = scmp.ne.s32.totalorder %s423, %s424
      %p435 = scmp.eq.s32.totalorder %s49, 0
      %p436 = por %p434, %p435
      %p437 = scmp.ne.s32.totalorder %s423, %s424
      %p438 = scmp.eq.s32.totalorder %s50, 1
      %p439 = por %p437, %p438
      %p441 = scmp.ne.s32.totalorder %s424, %s440
      %p442 = scmp.eq.s32.totalorder %s50, 0
      %p443 = por %p441, %p442
      %s444 = ssub.s32 %s44, %s51
      %p445 = scmp.eq.s32.totalorder %s444, 0
      %s447 = sadd.s32 %s446, 1
      %s448 = scalar_select %p445, %s446, %s447
      %p451 = pneg %p445
      %p452 = scmp.eq.s32.totalorder %s44, 1
      %p453 = por %p451, %p452
      %p454 = scmp.ne.s32.totalorder %s446, %s449
      %p455 = scmp.eq.s32.totalorder %s44, 0
      %p456 = por %p454, %p455
      %p457 = scmp.ne.s32.totalorder %s446, %s449
      %p458 = scmp.eq.s32.totalorder %s49, 1
      %p459 = por %p457, %p458
      %p460 = scmp.ne.s32.totalorder %s449, %s450
      %p461 = scmp.eq.s32.totalorder %s49, 0
      %p462 = por %p460, %p461
      %p463 = scmp.ne.s32.totalorder %s449, %s450
      %p464 = scmp.eq.s32.totalorder %s50, 1
      %p465 = por %p463, %p464
      %p467 = scmp.ne.s32.totalorder %s450, %s466
      %p468 = scmp.eq.s32.totalorder %s50, 0
      %p469 = por %p467, %p468
      %s470 = ssub.s32 %s44, %s51
      %p471 = scmp.eq.s32.totalorder %s470, 0
      %s473 = sadd.s32 %s472, 1
      %s474 = scalar_select %p471, %s472, %s473
      %p477 = pneg %p471
      %p478 = scmp.eq.s32.totalorder %s44, 1
      %p479 = por %p477, %p478
      %p480 = scmp.ne.s32.totalorder %s472, %s475
      %p481 = scmp.eq.s32.totalorder %s44, 0
      %p482 = por %p480, %p481
      %p483 = scmp.ne.s32.totalorder %s472, %s475
      %p484 = scmp.eq.s32.totalorder %s49, 1
      %p485 = por %p483, %p484
      %p486 = scmp.ne.s32.totalorder %s475, %s476
      %p487 = scmp.eq.s32.totalorder %s49, 0
      %p488 = por %p486, %p487
      %p489 = scmp.ne.s32.totalorder %s475, %s476
      %p490 = scmp.eq.s32.totalorder %s50, 1
      %p491 = por %p489, %p490
      %p493 = scmp.ne.s32.totalorder %s476, %s492
      %p494 = scmp.eq.s32.totalorder %s50, 0
      %p495 = por %p493, %p494
      %s496 = ssub.s32 %s44, %s51
      %p497 = scmp.eq.s32.totalorder %s496, 0
      %s499 = sadd.s32 %s498, 1
      %s500 = scalar_select %p497, %s498, %s499
      %p503 = pneg %p497
      %p504 = scmp.eq.s32.totalorder %s44, 1
      %p505 = por %p503, %p504
      %p506 = scmp.ne.s32.totalorder %s498, %s501
      %p507 = scmp.eq.s32.totalorder %s44, 0
      %p508 = por %p506, %p507
      %p509 = scmp.ne.s32.totalorder %s498, %s501
      %p510 = scmp.eq.s32.totalorder %s49, 1
      %p511 = por %p509, %p510
      %p512 = scmp.ne.s32.totalorder %s501, %s502
      %p513 = scmp.eq.s32.totalorder %s49, 0
      %p514 = por %p512, %p513
      %p515 = scmp.ne.s32.totalorder %s501, %s502
      %p516 = scmp.eq.s32.totalorder %s50, 1
      %p517 = por %p515, %p516
      %p519 = scmp.ne.s32.totalorder %s502, %s518
      %p520 = scmp.eq.s32.totalorder %s50, 0
      %p521 = por %p519, %p520
      %s522 = ssub.s32 %s44, %s51
      %p523 = scmp.eq.s32.totalorder %s522, 0
      %s525 = sadd.s32 %s524, 1
      %s526 = scalar_select %p523, %s524, %s525
      %p529 = pneg %p523
      %p530 = scmp.eq.s32.totalorder %s44, 1
      %p531 = por %p529, %p530
      %p532 = scmp.ne.s32.totalorder %s524, %s527
      %p533 = scmp.eq.s32.totalorder %s44, 0
      %p534 = por %p532, %p533
      %p535 = scmp.ne.s32.totalorder %s524, %s527
      %p536 = scmp.eq.s32.totalorder %s49, 1
      %p537 = por %p535, %p536
      %p538 = scmp.ne.s32.totalorder %s527, %s528
      %p539 = scmp.eq.s32.totalorder %s49, 0
      %p540 = por %p538, %p539
      %p541 = scmp.ne.s32.totalorder %s527, %s528
      %p542 = scmp.eq.s32.totalorder %s50, 1
      %p543 = por %p541, %p542
      %p545 = scmp.ne.s32.totalorder %s528, %s544
      %p546 = scmp.eq.s32.totalorder %s50, 0
      %p547 = por %p545, %p546
      %s548 = ssub.s32 %s44, %s51
      %p549 = scmp.eq.s32.totalorder %s548, 0
      %s551 = sadd.s32 %s550, 1
      %s552 = scalar_select %p549, %s550, %s551
      %p555 = pneg %p549
      %p556 = scmp.eq.s32.totalorder %s44, 1
      %p557 = por %p555, %p556
      %p558 = scmp.ne.s32.totalorder %s550, %s553
      %p559 = scmp.eq.s32.totalorder %s44, 0
      %p560 = por %p558, %p559
      %p561 = scmp.ne.s32.totalorder %s550, %s553
      %p562 = scmp.eq.s32.totalorder %s49, 1
      %p563 = por %p561, %p562
      %p564 = scmp.ne.s32.totalorder %s553, %s554
      %p565 = scmp.eq.s32.totalorder %s49, 0
      %p566 = por %p564, %p565
      %p567 = scmp.ne.s32.totalorder %s553, %s554
      %p568 = scmp.eq.s32.totalorder %s50, 1
      %p569 = por %p567, %p568
      %p571 = scmp.ne.s32.totalorder %s554, %s570
      %p572 = scmp.eq.s32.totalorder %s50, 0
      %p573 = por %p571, %p572
      %s574 = ssub.s32 %s44, %s51
      %p575 = scmp.eq.s32.totalorder %s574, 0
      %s577 = sadd.s32 %s576, 1
      %s578 = scalar_select %p575, %s576, %s577
      %p581 = pneg %p575
      %p582 = scmp.eq.s32.totalorder %s44, 1
      %p583 = por %p581, %p582
      %p584 = scmp.ne.s32.totalorder %s576, %s579
      %p585 = scmp.eq.s32.totalorder %s44, 0
      %p586 = por %p584, %p585
      %p587 = scmp.ne.s32.totalorder %s576, %s579
      %p588 = scmp.eq.s32.totalorder %s49, 1
      %p589 = por %p587, %p588
      %p590 = scmp.ne.s32.totalorder %s579, %s580
      %p591 = scmp.eq.s32.totalorder %s49, 0
      %p592 = por %p590, %p591
      %p593 = scmp.ne.s32.totalorder %s579, %s580
      %p594 = scmp.eq.s32.totalorder %s50, 1
      %p595 = por %p593, %p594
      %p597 = scmp.ne.s32.totalorder %s580, %s596
      %p598 = scmp.eq.s32.totalorder %s50, 0
      %p599 = por %p597, %p598
      %s600 = ssub.s32 %s44, %s51
      %p601 = scmp.eq.s32.totalorder %s600, 0
      %s603 = sadd.s32 %s602, 1
      %s604 = scalar_select %p601, %s602, %s603
      %p607 = pneg %p601
      %p608 = scmp.eq.s32.totalorder %s44, 1
      %p609 = por %p607, %p608
      %p610 = scmp.ne.s32.totalorder %s602, %s605
      %p611 = scmp.eq.s32.totalorder %s44, 0
      %p612 = por %p610, %p611
      %p613 = scmp.ne.s32.totalorder %s602, %s605
      %p614 = scmp.eq.s32.totalorder %s49, 1
      %p615 = por %p613, %p614
      %p616 = scmp.ne.s32.totalorder %s605, %s606
      %p617 = scmp.eq.s32.totalorder %s49, 0
      %p618 = por %p616, %p617
      %p619 = scmp.ne.s32.totalorder %s605, %s606
      %p620 = scmp.eq.s32.totalorder %s50, 1
      %p621 = por %p619, %p620
      %p623 = scmp.ne.s32.totalorder %s606, %s622
      %p624 = scmp.eq.s32.totalorder %s50, 0
      %p625 = por %p623, %p624
      %s626 = ssub.s32 %s44, %s51
      %p627 = scmp.eq.s32.totalorder %s626, 0
      %s629 = sadd.s32 %s628, 1
      %s630 = scalar_select %p627, %s628, %s629
      %p633 = pneg %p627
      %p634 = scmp.eq.s32.totalorder %s44, 1
      %p635 = por %p633, %p634
      %p636 = scmp.ne.s32.totalorder %s628, %s631
      %p637 = scmp.eq.s32.totalorder %s44, 0
      %p638 = por %p636, %p637
      %p639 = scmp.ne.s32.totalorder %s628, %s631
      %p640 = scmp.eq.s32.totalorder %s49, 1
      %p641 = por %p639, %p640
      %p642 = scmp.ne.s32.totalorder %s631, %s632
      %p643 = scmp.eq.s32.totalorder %s49, 0
      %p644 = por %p642, %p643
      %p645 = scmp.ne.s32.totalorder %s631, %s632
      %p646 = scmp.eq.s32.totalorder %s50, 1
      %p647 = por %p645, %p646
      %p649 = scmp.ne.s32.totalorder %s632, %s648
      %p650 = scmp.eq.s32.totalorder %s50, 0
      %p651 = por %p649, %p650
      %s653 = sadd.s32 %s652, 1
      %p656 = scmp.eq.s32.totalorder %s44, 1
      %p657 = scmp.ne.s32.totalorder %s652, %s654
      %p658 = scmp.eq.s32.totalorder %s44, 0
      %p659 = por %p657, %p658
      %p660 = scmp.ne.s32.totalorder %s652, %s654
      %p661 = scmp.eq.s32.totalorder %s49, 1
      %p662 = por %p660, %p661
      %p663 = scmp.ne.s32.totalorder %s654, %s655
      %p664 = scmp.eq.s32.totalorder %s49, 0
      %p665 = por %p663, %p664
      %p666 = scmp.ne.s32.totalorder %s654, %s655
      %p667 = scmp.eq.s32.totalorder %s50, 1
      %p668 = por %p666, %p667
      %p670 = scmp.ne.s32.totalorder %s655, %s669
      %p671 = scmp.eq.s32.totalorder %s50, 0
      %p672 = por %p670, %p671
      %p673 = scmp.le.s32.totalorder 1, %s44
      %p674 = scmp.lt.s32.totalorder %s44, 3
      %p675 = pnand %p673, %p674
      %p676 = pneg %p675
      // Predicated region
      $region9: #{tpu_custom_call.1} parent=5 // pred_check
        _
      $region10: #{tpu_custom_call.1} parent=5 // pred_check_branch
        %678 = sbr.rel (%p675) target = $region12
      $region11: #{tpu_custom_call.1} parent=5 // pred_region
        %s679 = ssub.s32 %s44, 1
        // Predicated region
        $region13: #{tpu_custom_call.1} parent=11 // pred_check
          %p680 = pneg %p65
        $region14: #{tpu_custom_call.1} parent=11 // pred_check_branch
          %682 = sbr.rel (%p680) target = $region16
        $region15: #{tpu_custom_call.1} parent=11 // pred_region
          %s684 = ssub.s32 1024, 1024
          %685 = vsyncadd [#allocation5], %s684
          %s686 = sshll.u32 [#allocation4], 4
          %s687 = int_to_ptr.vmem [resolvable:$true] %s686
          %692 = dma.hbm_to_vmem [thread:$0]  %s0, 1024, %s687, [#allocation5], 64, 64, 4
        $region16: #{tpu_custom_call.1} parent=11 // pred_fallthru
          _
        // Predicated region
        $region17: #{tpu_custom_call.1} parent=11 // pred_check
          %p693 = pneg %p86
        $region18: #{tpu_custom_call.1} parent=11 // pred_check_branch
          %695 = sbr.rel (%p693) target = $region20
        $region19: #{tpu_custom_call.1} parent=11 // pred_region
          _
        $region20: #{tpu_custom_call.1} parent=11 // pred_fallthru
          _
        // Predicated region
        $region21: #{tpu_custom_call.1} parent=11 // pred_check
          %p696 = pneg %p107
        $region22: #{tpu_custom_call.1} parent=11 // pred_check_branch
          %698 = sbr.rel (%p696) target = $region24
        $region23: #{tpu_custom_call.1} parent=11 // pred_region
          %s700 = ssub.s32 128, 128
          %701 = vsyncadd [#allocation8], %s700
          %s702 = sshll.u32 [#allocation7], 4
          %s703 = int_to_ptr.vmem [resolvable:$true] %s702
          %708 = dma.hbm_to_vmem [thread:$0]  %s2, 128, %s703, [#allocation8], 64, 64, 4
        $region24: #{tpu_custom_call.1} parent=11 // pred_fallthru
          _
        // Predicated region
        $region25: #{tpu_custom_call.1} parent=11 // pred_check
          %p709 = pneg %p128
        $region26: #{tpu_custom_call.1} parent=11 // pred_check_branch
          %711 = sbr.rel (%p709) target = $region28
        $region27: #{tpu_custom_call.1} parent=11 // pred_region
          _
        $region28: #{tpu_custom_call.1} parent=11 // pred_fallthru
          _
        // Predicated region
        $region29: #{tpu_custom_call.1} parent=11 // pred_check
          %p712 = pneg %p149
        $region30: #{tpu_custom_call.1} parent=11 // pred_check_branch
          %714 = sbr.rel (%p712) target = $region32
        $region31: #{tpu_custom_call.1} parent=11 // pred_region
          _
        $region32: #{tpu_custom_call.1} parent=11 // pred_fallthru
          _
        // Predicated region
        $region33: #{tpu_custom_call.1} parent=11 // pred_check
          %p715 = pneg %p170
        $region34: #{tpu_custom_call.1} parent=11 // pred_check_branch
          %717 = sbr.rel (%p715) target = $region36
        $region35: #{tpu_custom_call.1} parent=11 // pred_region
          _
        $region36: #{tpu_custom_call.1} parent=11 // pred_fallthru
          _
        // Predicated region
        $region37: #{tpu_custom_call.1} parent=11 // pred_check
          %p718 = pneg %p191
        $region38: #{tpu_custom_call.1} parent=11 // pred_check_branch
          %720 = sbr.rel (%p718) target = $region40
        $region39: #{tpu_custom_call.1} parent=11 // pred_region
          %s722 = ssub.s32 16, 16
          %723 = vsyncadd [#allocation8], %s722
          %s725 = sshll.u32 [#allocation9], 4
          %s726 = int_to_ptr.vmem [resolvable:$true] %s725
          %728 = dma.hbm_to_vmem [thread:$0]  %s6, 16, %s726, [#allocation8]
        $region40: #{tpu_custom_call.1} parent=11 // pred_fallthru
          _
        // Predicated region
        $region41: #{tpu_custom_call.1} parent=11 // pred_check
          %p729 = pneg %p212
        $region42: #{tpu_custom_call.1} parent=11 // pred_check_branch
          %731 = sbr.rel (%p729) target = $region44
        $region43: #{tpu_custom_call.1} parent=11 // pred_region
          %s733 = ssub.s32 16, 16
          %734 = vsyncadd [#allocation11], %s733
          %s736 = sshll.u32 [#allocation10], 4
          %s737 = int_to_ptr.vmem [resolvable:$true] %s736
          %739 = dma.hbm_to_vmem [thread:$0]  %s7, 16, %s737, [#allocation11]
        $region44: #{tpu_custom_call.1} parent=11 // pred_fallthru
          _
        // Predicated region
        $region45: #{tpu_custom_call.1} parent=11 // pred_check
          %p740 = pneg %p233
        $region46: #{tpu_custom_call.1} parent=11 // pred_check_branch
          %742 = sbr.rel (%p740) target = $region48
        $region47: #{tpu_custom_call.1} parent=11 // pred_region
          _
        $region48: #{tpu_custom_call.1} parent=11 // pred_fallthru
          _
        // Predicated region
        $region49: #{tpu_custom_call.1} parent=11 // pred_check
          %p743 = pneg %p254
        $region50: #{tpu_custom_call.1} parent=11 // pred_check_branch
          %745 = sbr.rel (%p743) target = $region52
        $region51: #{tpu_custom_call.1} parent=11 // pred_region
          %s747 = ssub.s32 16, 16
          %748 = vsyncadd [#allocation11], %s747
          %s750 = sshll.u32 [#allocation12], 4
          %s751 = int_to_ptr.vmem [resolvable:$true] %s750
          %753 = dma.hbm_to_vmem [thread:$0]  %s9, 16, %s751, [#allocation11]
        $region52: #{tpu_custom_call.1} parent=11 // pred_fallthru
          _
      $region12: #{tpu_custom_call.1} parent=5 // pred_fallthru
        _
      %p754 = scmp.lt.s32.totalorder %s44, 2
      // Predicated region
      $region53: #{tpu_custom_call.1} parent=5 // pred_check
        %p755 = pneg %p754
      $region54: #{tpu_custom_call.1} parent=5 // pred_check_branch
        %757 = sbr.rel (%p755) target = $region56
      $region55: #{tpu_custom_call.1} parent=5 // pred_region
        // Predicated region
        $region57: #{tpu_custom_call.1} parent=55 // pred_check
          %p758 = pneg %p274
        $region58: #{tpu_custom_call.1} parent=55 // pred_check_branch
          %760 = sbr.rel (%p758) target = $region60
        $region59: #{tpu_custom_call.1} parent=55 // pred_region
          %s761 = sand.u32 %s44, 1
          %s762 = scalar_lea.sflag [#allocation14], %s761
          %s763 = sand.u32 %s264, 1
          %s764 = smul.addr %s763, 64
          %s765 = scalar_lea.vmem [#allocation13], %s764
          %s767 = ssub.s32 1024, 1024
          %768 = vsyncadd %s762, %s767
          %s769 = smul.addr %s44, 16
          %s770 = smul.addr %s769, 64
          %s771 = scalar_lea.hbm %s10, %s770
          %s772 = sshll.u32 %s765, 4
          %s773 = int_to_ptr.vmem [resolvable:$true] %s772
          %778 = dma.hbm_to_vmem [thread:$0]  %s771, 1024, %s773, %s762, 64, 64, 4
        $region60: #{tpu_custom_call.1} parent=55 // pred_fallthru
          _
        // Predicated region
        $region61: #{tpu_custom_call.1} parent=55 // pred_check
          %p779 = pneg %p300
        $region62: #{tpu_custom_call.1} parent=55 // pred_check_branch
          %781 = sbr.rel (%p779) target = $region64
        $region63: #{tpu_custom_call.1} parent=55 // pred_region
          %s782 = sand.u32 %s44, 1
          %s783 = scalar_lea.sflag [#allocation14], %s782
          %s784 = sand.u32 %s290, 1
          %s785 = smul.addr %s784, 64
          %s786 = scalar_lea.vmem [#allocation15], %s785
          %s788 = ssub.s32 1024, 1024
          %789 = vsyncadd %s783, %s788
          %s790 = smul.addr %s44, 16
          %s791 = smul.addr %s790, 64
          %s792 = scalar_lea.hbm %s11, %s791
          %s793 = sshll.u32 %s786, 4
          %s794 = int_to_ptr.vmem [resolvable:$true] %s793
          %799 = dma.hbm_to_vmem [thread:$0]  %s792, 1024, %s794, %s783, 64, 64, 4
        $region64: #{tpu_custom_call.1} parent=55 // pred_fallthru
          _
        // Predicated region
        $region65: #{tpu_custom_call.1} parent=55 // pred_check
          %p800 = pneg %p326
        $region66: #{tpu_custom_call.1} parent=55 // pred_check_branch
          %802 = sbr.rel (%p800) target = $region68
        $region67: #{tpu_custom_call.1} parent=55 // pred_region
          %p803 = scmp.lt.s32.totalorder %s44, 1
          %s804 = scalar_select %p803, %s44, 1
          %s805 = scalar_lea.vmem %s12, %s804
        $region68: #{tpu_custom_call.1} parent=55 // pred_fallthru
          _
        // Predicated region
        $region69: #{tpu_custom_call.1} parent=55 // pred_check
          %p806 = pneg %p352
        $region70: #{tpu_custom_call.1} parent=55 // pred_check_branch
          %808 = sbr.rel (%p806) target = $region72
        $region71: #{tpu_custom_call.1} parent=55 // pred_region
          %s809 = sand.u32 %s44, 1
          %s810 = scalar_lea.sflag [#allocation17], %s809
          %s811 = sand.u32 %s342, 1
          %s812 = smul.addr %s811, 64
          %s813 = scalar_lea.vmem [#allocation16], %s812
          %s815 = ssub.s32 1024, 1024
          %816 = vsyncadd %s810, %s815
          %s817 = smul.addr %s44, 16
          %s818 = smul.addr %s817, 64
          %s819 = scalar_lea.hbm %s13, %s818
          %s820 = sshll.u32 %s813, 4
          %s821 = int_to_ptr.vmem [resolvable:$true] %s820
          %826 = dma.hbm_to_vmem [thread:$0]  %s819, 1024, %s821, %s810, 64, 64, 4
        $region72: #{tpu_custom_call.1} parent=55 // pred_fallthru
          _
        // Predicated region
        $region73: #{tpu_custom_call.1} parent=55 // pred_check
          %p827 = pneg %p378
        $region74: #{tpu_custom_call.1} parent=55 // pred_check_branch
          %829 = sbr.rel (%p827) target = $region76
        $region75: #{tpu_custom_call.1} parent=55 // pred_region
          %p830 = scmp.lt.s32.totalorder %s44, 1
          %s831 = scalar_select %p830, %s44, 1
          %s832 = scalar_lea.vmem %s14, %s831
        $region76: #{tpu_custom_call.1} parent=55 // pred_fallthru
          _
        // Predicated region
        $region77: #{tpu_custom_call.1} parent=55 // pred_check
          %p833 = pneg %p404
        $region78: #{tpu_custom_call.1} parent=55 // pred_check_branch
          %835 = sbr.rel (%p833) target = $region80
        $region79: #{tpu_custom_call.1} parent=55 // pred_region
          %p836 = scmp.lt.s32.totalorder %s44, 1
          %s837 = scalar_select %p836, %s44, 1
          %s838 = scalar_lea.vmem %s15, %s837
        $region80: #{tpu_custom_call.1} parent=55 // pred_fallthru
          _
        // Predicated region
        $region81: #{tpu_custom_call.1} parent=55 // pred_check
          %p839 = pneg %p430
        $region82: #{tpu_custom_call.1} parent=55 // pred_check_branch
          %841 = sbr.rel (%p839) target = $region84
        $region83: #{tpu_custom_call.1} parent=55 // pred_region
          %p842 = scmp.lt.s32.totalorder %s44, 1
          %s843 = scalar_select %p842, %s44, 1
          %s844 = scalar_lea.vmem %s16, %s843
        $region84: #{tpu_custom_call.1} parent=55 // pred_fallthru
          _
        // Predicated region
        $region85: #{tpu_custom_call.1} parent=55 // pred_check
          %p845 = pneg %p456
        $region86: #{tpu_custom_call.1} parent=55 // pred_check_branch
          %847 = sbr.rel (%p845) target = $region88
        $region87: #{tpu_custom_call.1} parent=55 // pred_region
          %s848 = sand.u32 %s44, 1
          %s849 = scalar_lea.sflag [#allocation17], %s848
          %s850 = sand.u32 %s446, 1
          %s851 = smul.addr %s850, 64
          %s852 = scalar_lea.vmem [#allocation18], %s851
          %s854 = ssub.s32 1024, 1024
          %855 = vsyncadd %s849, %s854
          %s856 = smul.addr %s44, 16
          %s857 = smul.addr %s856, 64
          %s858 = scalar_lea.hbm %s17, %s857
          %s859 = sshll.u32 %s852, 4
          %s860 = int_to_ptr.vmem [resolvable:$true] %s859
          %865 = dma.hbm_to_vmem [thread:$0]  %s858, 1024, %s860, %s849, 64, 64, 4
        $region88: #{tpu_custom_call.1} parent=55 // pred_fallthru
          _
        // Predicated region
        $region89: #{tpu_custom_call.1} parent=55 // pred_check
          %p866 = pneg %p482
        $region90: #{tpu_custom_call.1} parent=55 // pred_check_branch
          %868 = sbr.rel (%p866) target = $region92
        $region91: #{tpu_custom_call.1} parent=55 // pred_region
          %p869 = scmp.lt.s32.totalorder %s44, 1
          %s870 = scalar_select %p869, %s44, 1
          %s871 = scalar_lea.vmem %s18, %s870
        $region92: #{tpu_custom_call.1} parent=55 // pred_fallthru
          _
        // Predicated region
        $region93: #{tpu_custom_call.1} parent=55 // pred_check
          %p872 = pneg %p508
        $region94: #{tpu_custom_call.1} parent=55 // pred_check_branch
          %874 = sbr.rel (%p872) target = $region96
        $region95: #{tpu_custom_call.1} parent=55 // pred_region
          %p875 = scmp.lt.s32.totalorder %s44, 1
          %s876 = scalar_select %p875, %s44, 1
          %s877 = scalar_lea.vmem %s19, %s876
        $region96: #{tpu_custom_call.1} parent=55 // pred_fallthru
          _
        // Predicated region
        $region97: #{tpu_custom_call.1} parent=55 // pred_check
          %p878 = pneg %p534
        $region98: #{tpu_custom_call.1} parent=55 // pred_check_branch
          %880 = sbr.rel (%p878) target = $region100
        $region99: #{tpu_custom_call.1} parent=55 // pred_region
          %p881 = scmp.lt.s32.totalorder %s44, 1
          %s882 = scalar_select %p881, %s44, 1
          %s883 = scalar_lea.vmem %s20, %s882
        $region100: #{tpu_custom_call.1} parent=55 // pred_fallthru
          _
        // Predicated region
        $region101: #{tpu_custom_call.1} parent=55 // pred_check
          %p884 = pneg %p560
        $region102: #{tpu_custom_call.1} parent=55 // pred_check_branch
          %886 = sbr.rel (%p884) target = $region104
        $region103: #{tpu_custom_call.1} parent=55 // pred_region
          %s887 = sand.u32 %s550, 1
          %s888 = scalar_lea.sflag [#allocation20], %s887
          %s889 = sand.u32 %s550, 1
          %s890 = smul.addr %s889, 64
          %s891 = scalar_lea.vmem [#allocation19], %s890
          %s893 = ssub.s32 1024, 1024
          %894 = vsyncadd %s888, %s893
          %s895 = smul.addr %s44, 16
          %s896 = smul.addr %s895, 64
          %s897 = scalar_lea.hbm %s21, %s896
          %s898 = sshll.u32 %s891, 4
          %s899 = int_to_ptr.vmem [resolvable:$true] %s898
          %904 = dma.hbm_to_vmem [thread:$0]  %s897, 1024, %s899, %s888, 64, 64, 4
        $region104: #{tpu_custom_call.1} parent=55 // pred_fallthru
          _
        // Predicated region
        $region105: #{tpu_custom_call.1} parent=55 // pred_check
          %p905 = pneg %p586
        $region106: #{tpu_custom_call.1} parent=55 // pred_check_branch
          %907 = sbr.rel (%p905) target = $region108
        $region107: #{tpu_custom_call.1} parent=55 // pred_region
          %p908 = scmp.lt.s32.totalorder %s44, 1
          %s909 = scalar_select %p908, %s44, 1
          %s910 = scalar_lea.vmem %s22, %s909
        $region108: #{tpu_custom_call.1} parent=55 // pred_fallthru
          _
        // Predicated region
        $region109: #{tpu_custom_call.1} parent=55 // pred_check
          %p911 = pneg %p612
        $region110: #{tpu_custom_call.1} parent=55 // pred_check_branch
          %913 = sbr.rel (%p911) target = $region112
        $region111: #{tpu_custom_call.1} parent=55 // pred_region
          %p914 = scmp.lt.s32.totalorder %s44, 1
          %s915 = scalar_select %p914, %s44, 1
          %s916 = scalar_lea.vmem %s23, %s915
        $region112: #{tpu_custom_call.1} parent=55 // pred_fallthru
          _
        // Predicated region
        $region113: #{tpu_custom_call.1} parent=55 // pred_check
          %p917 = pneg %p638
        $region114: #{tpu_custom_call.1} parent=55 // pred_check_branch
          %919 = sbr.rel (%p917) target = $region116
        $region115: #{tpu_custom_call.1} parent=55 // pred_region
          %p920 = scmp.lt.s32.totalorder %s44, 1
          %s921 = scalar_select %p920, %s44, 1
          %s922 = scalar_lea.vmem %s24, %s921
        $region116: #{tpu_custom_call.1} parent=55 // pred_fallthru
          _
      $region56: #{tpu_custom_call.1} parent=5 // pred_fallthru
        _
      %p923 = scmp.le.s32.totalorder 1, %s44
      %p924 = scmp.lt.s32.totalorder %s44, 3
      %p925 = pnand %p923, %p924
      %p926 = pneg %p925
      // Predicated region
      $region117: #{tpu_custom_call.1} parent=5 // pred_check
        _
      $region118: #{tpu_custom_call.1} parent=5 // pred_check_branch
        %928 = sbr.rel (%p925) target = $region120
      $region119: #{tpu_custom_call.1} parent=5 // pred_region
        %s929 = ssub.s32 %s44, 1
        // Predicated region
        $region121: #{tpu_custom_call.1} parent=119 // pred_check
          %p930 = pneg %p65
        $region122: #{tpu_custom_call.1} parent=119 // pred_check_branch
          %932 = sbr.rel (%p930) target = $region124
        $region123: #{tpu_custom_call.1} parent=119 // pred_region
          %933 = dma.done [#allocation5], 1024
        $region124: #{tpu_custom_call.1} parent=119 // pred_fallthru
          _
        // Predicated region
        $region125: #{tpu_custom_call.1} parent=119 // pred_check
          %p934 = pneg %p107
        $region126: #{tpu_custom_call.1} parent=119 // pred_check_branch
          %936 = sbr.rel (%p934) target = $region128
        $region127: #{tpu_custom_call.1} parent=119 // pred_region
          %937 = dma.done [#allocation8], 128
        $region128: #{tpu_custom_call.1} parent=119 // pred_fallthru
          _
        // Predicated region
        $region129: #{tpu_custom_call.1} parent=119 // pred_check
          %p938 = pneg %p191
        $region130: #{tpu_custom_call.1} parent=119 // pred_check_branch
          %940 = sbr.rel (%p938) target = $region132
        $region131: #{tpu_custom_call.1} parent=119 // pred_region
          %941 = dma.done [#allocation8], 16
        $region132: #{tpu_custom_call.1} parent=119 // pred_fallthru
          _
        // Predicated region
        $region133: #{tpu_custom_call.1} parent=119 // pred_check
          %p942 = pneg %p212
        $region134: #{tpu_custom_call.1} parent=119 // pred_check_branch
          %944 = sbr.rel (%p942) target = $region136
        $region135: #{tpu_custom_call.1} parent=119 // pred_region
          %945 = dma.done [#allocation11], 16
        $region136: #{tpu_custom_call.1} parent=119 // pred_fallthru
          _
        // Predicated region
        $region137: #{tpu_custom_call.1} parent=119 // pred_check
          %p946 = pneg %p254
        $region138: #{tpu_custom_call.1} parent=119 // pred_check_branch
          %948 = sbr.rel (%p946) target = $region140
        $region139: #{tpu_custom_call.1} parent=119 // pred_region
          %949 = dma.done [#allocation11], 16
        $region140: #{tpu_custom_call.1} parent=119 // pred_fallthru
          _
        %s950 = sand.u32 %s49, 1
        %s951 = scalar_lea.sflag [#allocation14], %s950
        %s952 = sand.u32 %s267, 1
        %s953 = smul.addr %s952, 64
        %s954 = scalar_lea.vmem [#allocation13], %s953
        // Predicated region
        $region141: #{tpu_custom_call.1} parent=119 // pred_check
          %p955 = pneg %p280
        $region142: #{tpu_custom_call.1} parent=119 // pred_check_branch
          %957 = sbr.rel (%p955) target = $region144
        $region143: #{tpu_custom_call.1} parent=119 // pred_region
          %958 = dma.done %s951, 1024
        $region144: #{tpu_custom_call.1} parent=119 // pred_fallthru
          _
        %s959 = sand.u32 %s49, 1
        %s960 = scalar_lea.sflag [#allocation14], %s959
        %s961 = sand.u32 %s293, 1
        %s962 = smul.addr %s961, 64
        %s963 = scalar_lea.vmem [#allocation15], %s962
        // Predicated region
        $region145: #{tpu_custom_call.1} parent=119 // pred_check
          %p964 = pneg %p306
        $region146: #{tpu_custom_call.1} parent=119 // pred_check_branch
          %966 = sbr.rel (%p964) target = $region148
        $region147: #{tpu_custom_call.1} parent=119 // pred_region
          %967 = dma.done %s960, 1024
        $region148: #{tpu_custom_call.1} parent=119 // pred_fallthru
          _
        %s968 = sand.u32 %s49, 1
        %s969 = scalar_lea.sflag [#allocation17], %s968
        %s970 = sand.u32 %s345, 1
        %s971 = smul.addr %s970, 64
        %s972 = scalar_lea.vmem [#allocation16], %s971
        // Predicated region
        $region149: #{tpu_custom_call.1} parent=119 // pred_check
          %p973 = pneg %p358
        $region150: #{tpu_custom_call.1} parent=119 // pred_check_branch
          %975 = sbr.rel (%p973) target = $region152
        $region151: #{tpu_custom_call.1} parent=119 // pred_region
          %976 = dma.done %s969, 1024
        $region152: #{tpu_custom_call.1} parent=119 // pred_fallthru
          _
        %s977 = sand.u32 %s49, 1
        %s978 = scalar_lea.sflag [#allocation17], %s977
        %s979 = sand.u32 %s449, 1
        %s980 = smul.addr %s979, 64
        %s981 = scalar_lea.vmem [#allocation18], %s980
        // Predicated region
        $region153: #{tpu_custom_call.1} parent=119 // pred_check
          %p982 = pneg %p462
        $region154: #{tpu_custom_call.1} parent=119 // pred_check_branch
          %984 = sbr.rel (%p982) target = $region156
        $region155: #{tpu_custom_call.1} parent=119 // pred_region
          %985 = dma.done %s978, 1024
        $region156: #{tpu_custom_call.1} parent=119 // pred_fallthru
          _
        %s986 = sand.u32 %s553, 1
        %s987 = scalar_lea.sflag [#allocation20], %s986
        %s988 = sand.u32 %s553, 1
        %s989 = smul.addr %s988, 64
        %s990 = scalar_lea.vmem [#allocation19], %s989
        // Predicated region
        $region157: #{tpu_custom_call.1} parent=119 // pred_check
          %p991 = pneg %p566
        $region158: #{tpu_custom_call.1} parent=119 // pred_check_branch
          %993 = sbr.rel (%p991) target = $region160
        $region159: #{tpu_custom_call.1} parent=119 // pred_region
          %994 = dma.done %s987, 1024
        $region160: #{tpu_custom_call.1} parent=119 // pred_fallthru
          _
        %p995 = pneg %p65
        %p996 = pneg %p62
        %p997 = pneg %p86
        %p998 = pneg %p83
        %p999 = pneg %p107
        %p1000 = pneg %p104
        %p1001 = pneg %p128
        %p1002 = pneg %p125
        %p1003 = pneg %p149
        %p1004 = pneg %p146
        %p1005 = pneg %p170
        %p1006 = pneg %p167
        %p1007 = pneg %p191
        %p1008 = pneg %p188
        %p1009 = pneg %p212
        %p1010 = pneg %p209
        %p1011 = pneg %p233
        %p1012 = pneg %p230
        %p1013 = pneg %p254
        %p1014 = pneg %p251
        %s1015 = sand.u32 %s49, 1
        %s1016 = scalar_lea.sflag [#allocation14], %s1015
        %s1017 = sand.u32 %s267, 1
        %s1018 = smul.addr %s1017, 64
        %s1019 = scalar_lea.vmem [#allocation13], %s1018
        %p1020 = pneg %p280
        %p1021 = pneg %p277
        %s1022 = sand.u32 %s49, 1
        %s1023 = scalar_lea.sflag [#allocation14], %s1022
        %s1024 = sand.u32 %s293, 1
        %s1025 = smul.addr %s1024, 64
        %s1026 = scalar_lea.vmem [#allocation15], %s1025
        %p1027 = pneg %p306
        %p1028 = pneg %p303
        %p1029 = scmp.lt.s32.totalorder %s49, 1
        %s1030 = scalar_select %p1029, %s49, 1
        %s1031 = scalar_lea.vmem %s12, %s1030
        %p1032 = pneg %p332
        %p1033 = pneg %p329
        %s1034 = sand.u32 %s49, 1
        %s1035 = scalar_lea.sflag [#allocation17], %s1034
        %s1036 = sand.u32 %s345, 1
        %s1037 = smul.addr %s1036, 64
        %s1038 = scalar_lea.vmem [#allocation16], %s1037
        %p1039 = pneg %p358
        %p1040 = pneg %p355
        %p1041 = scmp.lt.s32.totalorder %s49, 1
        %s1042 = scalar_select %p1041, %s49, 1
        %s1043 = scalar_lea.vmem %s14, %s1042
        %p1044 = pneg %p384
        %p1045 = pneg %p381
        %p1046 = scmp.lt.s32.totalorder %s49, 1
        %s1047 = scalar_select %p1046, %s49, 1
        %s1048 = scalar_lea.vmem %s15, %s1047
        %p1049 = pneg %p410
        %p1050 = pneg %p407
        %p1051 = scmp.lt.s32.totalorder %s49, 1
        %s1052 = scalar_select %p1051, %s49, 1
        %s1053 = scalar_lea.vmem %s16, %s1052
        %p1054 = pneg %p436
        %p1055 = pneg %p433
        %s1056 = sand.u32 %s49, 1
        %s1057 = scalar_lea.sflag [#allocation17], %s1056
        %s1058 = sand.u32 %s449, 1
        %s1059 = smul.addr %s1058, 64
        %s1060 = scalar_lea.vmem [#allocation18], %s1059
        %p1061 = pneg %p462
        %p1062 = pneg %p459
        %p1063 = scmp.lt.s32.totalorder %s49, 1
        %s1064 = scalar_select %p1063, %s49, 1
        %s1065 = scalar_lea.vmem %s18, %s1064
        %p1066 = pneg %p488
        %p1067 = pneg %p485
        %p1068 = scmp.lt.s32.totalorder %s49, 1
        %s1069 = scalar_select %p1068, %s49, 1
        %s1070 = scalar_lea.vmem %s19, %s1069
        %p1071 = pneg %p514
        %p1072 = pneg %p511
        %p1073 = scmp.lt.s32.totalorder %s49, 1
        %s1074 = scalar_select %p1073, %s49, 1
        %s1075 = scalar_lea.vmem %s20, %s1074
        %p1076 = pneg %p540
        %p1077 = pneg %p537
        %s1078 = sand.u32 %s553, 1
        %s1079 = scalar_lea.sflag [#allocation20], %s1078
        %s1080 = sand.u32 %s553, 1
        %s1081 = smul.addr %s1080, 64
        %s1082 = scalar_lea.vmem [#allocation19], %s1081
        %p1083 = pneg %p566
        %p1084 = pneg %p563
        %p1085 = scmp.lt.s32.totalorder %s49, 1
        %s1086 = scalar_select %p1085, %s49, 1
        %s1087 = scalar_lea.vmem %s22, %s1086
        %p1088 = pneg %p592
        %p1089 = pneg %p589
        %p1090 = scmp.lt.s32.totalorder %s49, 1
        %s1091 = scalar_select %p1090, %s49, 1
        %s1092 = scalar_lea.vmem %s23, %s1091
        %p1093 = pneg %p618
        %p1094 = pneg %p615
        %p1095 = scmp.lt.s32.totalorder %s49, 1
        %s1096 = scalar_select %p1095, %s49, 1
        %s1097 = scalar_lea.vmem %s24, %s1096
        %p1098 = pneg %p644
        %p1099 = pneg %p641
        %p1100 = pneg %p665
        %p1101 = pneg %p662
        %p1102 = scmp.lt.s32.totalorder %s49, 1
        %s1103 = scalar_select %p1102, %s49, 1
        %s1104 = scalar_lea.vmem %s12, %s1103
        %p1105 = scmp.lt.s32.totalorder %s49, 1
        %s1106 = scalar_select %p1105, %s49, 1
        %s1107 = scalar_lea.vmem %s14, %s1106
        %p1108 = scmp.lt.s32.totalorder %s49, 1
        %s1109 = scalar_select %p1108, %s49, 1
        %s1110 = scalar_lea.vmem %s15, %s1109
        %p1111 = scmp.lt.s32.totalorder %s49, 1
        %s1112 = scalar_select %p1111, %s49, 1
        %s1113 = scalar_lea.vmem %s16, %s1112
        %p1114 = scmp.lt.s32.totalorder %s49, 1
        %s1115 = scalar_select %p1114, %s49, 1
        %s1116 = scalar_lea.vmem %s18, %s1115
        %p1117 = scmp.lt.s32.totalorder %s49, 1
        %s1118 = scalar_select %p1117, %s49, 1
        %s1119 = scalar_lea.vmem %s19, %s1118
        %p1120 = scmp.lt.s32.totalorder %s49, 1
        %s1121 = scalar_select %p1120, %s49, 1
        %s1122 = scalar_lea.vmem %s20, %s1121
        %p1123 = scmp.lt.s32.totalorder %s49, 1
        %s1124 = scalar_select %p1123, %s49, 1
        %s1125 = scalar_lea.vmem %s22, %s1124
        %p1126 = scmp.lt.s32.totalorder %s49, 1
        %s1127 = scalar_select %p1126, %s49, 1
        %s1128 = scalar_lea.vmem %s23, %s1127
        %p1129 = scmp.lt.s32.totalorder %s49, 1
        %s1130 = scalar_select %p1129, %s49, 1
        %s1131 = scalar_lea.vmem %s24, %s1130
        %v1133 = vld [vmem:[%s4] sm:$0xff]
        %v1134 = vld [vmem:[%s4 + $0x8] sm:$0xff]
        %v1135 = vld [vmem:[%s4 + $0x10] sm:$0xff]
        %v1136 = vld [vmem:[%s4 + $0x18] sm:$0xff]
        %v1137 = vld [vmem:[%s4 + $0x20] sm:$0xff]
        %v1138 = vld [vmem:[%s4 + $0x28] sm:$0xff]
        %v1139 = vld [vmem:[%s4 + $0x30] sm:$0xff]
        %v1140 = vld [vmem:[%s4 + $0x38] sm:$0xff]
        %v1141 = vld [vmem:[%s4 + $0x40] sm:$0xff]
        %v1142 = vld [vmem:[%s4 + $0x48] sm:$0xff]
        %v1143 = vld [vmem:[%s4 + $0x50] sm:$0xff]
        %v1144 = vld [vmem:[%s4 + $0x58] sm:$0xff]
        %v1145 = vld [vmem:[%s4 + $0x60] sm:$0xff]
        %v1146 = vld [vmem:[%s4 + $0x68] sm:$0xff]
        %v1147 = vld [vmem:[%s4 + $0x70] sm:$0xff]
        %v1148 = vld [vmem:[%s4 + $0x78] sm:$0xff]
        %v1149 = vld [vmem:[%s5] sm:$0xff]
        %v1150 = vld [vmem:[%s5 + $0x8] sm:$0xff]
        %v1151 = vld [vmem:[#allocation7] sm:$0xf]
        %v1152 = vld [vmem:[#allocation7 + $0x4] sm:$0xf]
        %p1153 = scmp.eq.s32.totalorder %s49, 0
        // Predicated region
        $region161: #{tpu_custom_call.1} parent=119 // pred_check
          %p1154 = pneg %p1153
        $region162: #{tpu_custom_call.1} parent=119 // pred_check_branch
          %1156 = sbr.rel (%p1154) target = $region164
        $region163: #{tpu_custom_call.1} parent=119 // pred_region
          %v1157 = vld [vmem:[%s1] sm:$0xff]
          %v1158 = vld [vmem:[%s1 + $0x8] sm:$0xff]
          %v1159 = vld [vmem:[%s1 + $0x10] sm:$0xff]
          %v1160 = vld [vmem:[%s1 + $0x18] sm:$0xff]
          %v1161 = vld [vmem:[%s1 + $0x20] sm:$0xff]
          %v1162 = vld [vmem:[%s1 + $0x28] sm:$0xff]
          %v1163 = vld [vmem:[%s1 + $0x30] sm:$0xff]
          %v1164 = vld [vmem:[%s1 + $0x38] sm:$0xff]
          %v1165 = vld [vmem:[%s1 + $0x40] sm:$0xff]
          %v1166 = vld [vmem:[%s1 + $0x48] sm:$0xff]
          %v1167 = vld [vmem:[%s1 + $0x50] sm:$0xff]
          %v1168 = vld [vmem:[%s1 + $0x58] sm:$0xff]
          %v1169 = vld [vmem:[%s1 + $0x60] sm:$0xff]
          %v1170 = vld [vmem:[%s1 + $0x68] sm:$0xff]
          %v1171 = vld [vmem:[%s1 + $0x70] sm:$0xff]
          %v1172 = vld [vmem:[%s1 + $0x78] sm:$0xff]
          %1173 = vst [vmem:[#allocation2] sm:$0xff] %v1157
          %1174 = vst [vmem:[#allocation2 + $0x8] sm:$0xff] %v1158
          %1175 = vst [vmem:[#allocation2 + $0x10] sm:$0xff] %v1159
          %1176 = vst [vmem:[#allocation2 + $0x18] sm:$0xff] %v1160
          %1177 = vst [vmem:[#allocation2 + $0x20] sm:$0xff] %v1161
          %1178 = vst [vmem:[#allocation2 + $0x28] sm:$0xff] %v1162
          %1179 = vst [vmem:[#allocation2 + $0x30] sm:$0xff] %v1163
          %1180 = vst [vmem:[#allocation2 + $0x38] sm:$0xff] %v1164
          %1181 = vst [vmem:[#allocation2 + $0x40] sm:$0xff] %v1165
          %1182 = vst [vmem:[#allocation2 + $0x48] sm:$0xff] %v1166
          %1183 = vst [vmem:[#allocation2 + $0x50] sm:$0xff] %v1167
          %1184 = vst [vmem:[#allocation2 + $0x58] sm:$0xff] %v1168
          %1185 = vst [vmem:[#allocation2 + $0x60] sm:$0xff] %v1169
          %1186 = vst [vmem:[#allocation2 + $0x68] sm:$0xff] %v1170
          %1187 = vst [vmem:[#allocation2 + $0x70] sm:$0xff] %v1171
          %1188 = vst [vmem:[#allocation2 + $0x78] sm:$0xff] %v1172
          %v1189 = vld [vmem:[#allocation9] sm:$0x1]
          %v1191 = vlaneseq
          %v1192 = vshrl.u32 %v1191, 7
          %v1193 = vsub.s32 0, %v1192
          %v1194 = vrot.slane %v1189, %v1193
          %1197 = vset.pattern.permute.xlu0 0
          %1198 = vperm.xlu0 %1197, %v1149
          %v1199 = vpop.permute.xlu0 %1198
          %1202 = vset.pattern.permute.xlu0 0
          %1203 = vperm.xlu0 %1202, %v1150
          %v1204 = vpop.permute.xlu0 %1203
          %v1206 = vmul.f32 %v1194, %v1199
          %v1207 = vmul.f32 %v1194, %v1204
          %1208 = vst [vmem:[#allocation3] sm:$0xff] %v1206
          %1209 = vst [vmem:[#allocation3 + $0x8] sm:$0xff] %v1207
        $region164: #{tpu_custom_call.1} parent=119 // pred_fallthru
          _
        %v1210 = vld [vmem:[#allocation3] sm:$0xff]
        %v1211 = vld [vmem:[#allocation3 + $0x8] sm:$0xff]
        %v1212 = vpack.c.bf16 %v1211, %v1210
        %v1215 = vunpack.c.l.b16 %v1151
        %v1216 = vunpack.c.l.b16 %v1152
        %v1217 = vpack.c.b16 %v1216, %v1215
        %1219 = vxpose.xlu0.c.b16.start [1/8] %v1217, 128
        %1220 = vxpose.xlu0.c.b16.cont [2/8] 0, 128
        %1221 = vxpose.xlu0.c.b16.cont [3/8] 0, 128
        %1222 = vxpose.xlu0.c.b16.cont [4/8] 0, 128
        %1223 = vxpose.xlu0.c.b16.cont [5/8] 0, 128
        %1224 = vxpose.xlu0.c.b16.cont [6/8] 0, 128
        %1225 = vxpose.xlu0.c.b16.cont [7/8] 0, 128
        %1226 = vxpose.xlu0.c.b16.end [8/8] 0, 128
        %v1227 = vpop.trf.xlu0
        %v1228 = vpop.trf.xlu0
        %v1229 = vpop.trf.xlu0
        %v1230 = vpop.trf.xlu0
        %v1231 = vpop.trf.xlu0
        %v1232 = vpop.trf.xlu0
        %v1233 = vpop.trf.xlu0
        %v1234 = vpop.trf.xlu0
        %vm1235 = vcmask 130048
        %v1237 = vsel %vm1235, %v1227, 0
        %v1240 = vsel %vm1235, %v1228, 0
        %v1243 = vsel %vm1235, %v1229, 0
        %v1246 = vsel %vm1235, %v1230, 0
        %v1249 = vsel %vm1235, %v1231, 0
        %v1252 = vsel %vm1235, %v1232, 0
        %v1255 = vsel %vm1235, %v1233, 0
        %v1258 = vsel %vm1235, %v1234, 0
        %1260 = vmatprep.subr.bf16.mxu0 0
        %1261 = vmatpush1.bf16.msra.mxu0 %v1212
        %1262 = vmatprep.subr.bf16.mxu0 0
        %1263 = vmatpush1.bf16.msra.mxu0 0
        %1264 = vmatprep.subr.bf16.mxu0 0
        %1265 = vmatpush1.bf16.msra.mxu0 0
        %1266 = vmatprep.subr.bf16.mxu0 0
        %1267 = vmatpush1.bf16.msra.mxu0 0
        %1268 = vmatprep.subr.bf16.mxu0 0
        %1269 = vmatpush1.bf16.msra.mxu0 0
        %1270 = vmatprep.subr.bf16.mxu0 0
        %1271 = vmatpush1.bf16.msra.mxu0 0
        %1272 = vmatprep.subr.bf16.mxu0 0
        %1273 = vmatpush1.bf16.msra.mxu0 0
        %1274 = vmatprep.subr.bf16.mxu0 0
        %1275 = vmatpush1.bf16.msra.mxu0 0
        %1276 = vmatprep.subr.bf16.mxu0 0
        %1277 = vmatpush1.bf16.msra.mxu0 0
        %1278 = vmatprep.subr.bf16.mxu0 0
        %1279 = vmatpush1.bf16.msra.mxu0 0
        %1280 = vmatprep.subr.bf16.mxu0 0
        %1281 = vmatpush1.bf16.msra.mxu0 0
        %1282 = vmatprep.subr.bf16.mxu0 0
        %1283 = vmatpush1.bf16.msra.mxu0 0
        %1284 = vmatprep.subr.bf16.mxu0 0
        %1285 = vmatpush1.bf16.msra.mxu0 0
        %1286 = vmatprep.subr.bf16.mxu0 0
        %1287 = vmatpush1.bf16.msra.mxu0 0
        %1288 = vmatprep.subr.bf16.mxu0 0
        %1289 = vmatpush1.bf16.msra.mxu0 0
        %1290 = vmatprep.subr.bf16.mxu0 0
        %1291 = vmatpush1.bf16.msra.mxu0 0
        %1292 = vmatprep.mubr.bf16.mxu0 0
        %1293 = vmatmul.mubr.bf16.gmra.mrb[0].mxu0 %v1237
        %v1294 = vpop.f32.mrb[0].mxu0
        %v1295 = vadd.f32 0.0, %v1294
        %v1296 = vpop.f32.mrb[0].mxu0
        %v1297 = vpop.f32.mrb[0].mxu0
        %v1298 = vadd.f32 0.0, %v1297
        %v1299 = vpop.f32.mrb[0].mxu0
        %1300 = vmatprep.mubr.bf16.mxu0 0
        %1301 = vmatmul.mubr.bf16.gmra.mrb[0].mxu0 %v1240
        %v1302 = vpop.f32.mrb[0].mxu0
        %v1303 = vadd.f32 0.0, %v1302
        %v1304 = vpop.f32.mrb[0].mxu0
        %v1305 = vpop.f32.mrb[0].mxu0
        %v1306 = vadd.f32 0.0, %v1305
        %v1307 = vpop.f32.mrb[0].mxu0
        %1308 = vmatprep.mubr.bf16.mxu0 0
        %1309 = vmatmul.mubr.bf16.gmra.mrb[0].mxu0 %v1243
        %v1310 = vpop.f32.mrb[0].mxu0
        %v1311 = vadd.f32 0.0, %v1310
        %v1312 = vpop.f32.mrb[0].mxu0
        %v1313 = vpop.f32.mrb[0].mxu0
        %v1314 = vadd.f32 0.0, %v1313
        %v1315 = vpop.f32.mrb[0].mxu0
        %1316 = vmatprep.mubr.bf16.mxu0 0
        %1317 = vmatmul.mubr.bf16.gmra.mrb[0].mxu0 %v1246
        %v1318 = vpop.f32.mrb[0].mxu0
        %v1319 = vadd.f32 0.0, %v1318
        %v1320 = vpop.f32.mrb[0].mxu0
        %v1321 = vpop.f32.mrb[0].mxu0
        %v1322 = vadd.f32 0.0, %v1321
        %v1323 = vpop.f32.mrb[0].mxu0
        %1324 = vmatprep.mubr.bf16.mxu0 0
        %1325 = vmatmul.mubr.bf16.gmra.mrb[0].mxu0 %v1249
        %v1326 = vpop.f32.mrb[0].mxu0
        %v1327 = vadd.f32 0.0, %v1326
        %v1328 = vpop.f32.mrb[0].mxu0
        %v1329 = vpop.f32.mrb[0].mxu0
        %v1330 = vadd.f32 0.0, %v1329
        %v1331 = vpop.f32.mrb[0].mxu0
        %1332 = vmatprep.mubr.bf16.mxu0 0
        %1333 = vmatmul.mubr.bf16.gmra.mrb[0].mxu0 %v1252
        %v1334 = vpop.f32.mrb[0].mxu0
        %v1335 = vadd.f32 0.0, %v1334
        %v1336 = vpop.f32.mrb[0].mxu0
        %v1337 = vpop.f32.mrb[0].mxu0
        %v1338 = vadd.f32 0.0, %v1337
        %v1339 = vpop.f32.mrb[0].mxu0
        %1340 = vmatprep.mubr.bf16.mxu0 0
        %1341 = vmatmul.mubr.bf16.gmra.mrb[0].mxu0 %v1255
        %v1342 = vpop.f32.mrb[0].mxu0
        %v1343 = vadd.f32 0.0, %v1342
        %v1344 = vpop.f32.mrb[0].mxu0
        %v1345 = vpop.f32.mrb[0].mxu0
        %v1346 = vadd.f32 0.0, %v1345
        %v1347 = vpop.f32.mrb[0].mxu0
        %1348 = vmatprep.mubr.bf16.mxu0 0
        %1349 = vmatmul.mubr.bf16.gmra.mrb[0].mxu0 %v1258
        %v1350 = vpop.f32.mrb[0].mxu0
        %v1351 = vadd.f32 0.0, %v1350
        %v1352 = vpop.f32.mrb[0].mxu0
        %v1353 = vpop.f32.mrb[0].mxu0
        %v1354 = vadd.f32 0.0, %v1353
        %v1355 = vpop.f32.mrb[0].mxu0
        %1356 = vdwg.mxu0
        %v1357 = vld [vmem:[#allocation2] sm:$0xff]
        %v1358 = vld [vmem:[#allocation2 + $0x8] sm:$0xff]
        %v1359 = vld [vmem:[#allocation2 + $0x10] sm:$0xff]
        %v1360 = vld [vmem:[#allocation2 + $0x18] sm:$0xff]
        %v1361 = vld [vmem:[#allocation2 + $0x20] sm:$0xff]
        %v1362 = vld [vmem:[#allocation2 + $0x28] sm:$0xff]
        %v1363 = vld [vmem:[#allocation2 + $0x30] sm:$0xff]
        %v1364 = vld [vmem:[#allocation2 + $0x38] sm:$0xff]
        %v1365 = vld [vmem:[#allocation2 + $0x40] sm:$0xff]
        %v1366 = vld [vmem:[#allocation2 + $0x48] sm:$0xff]
        %v1367 = vld [vmem:[#allocation2 + $0x50] sm:$0xff]
        %v1368 = vld [vmem:[#allocation2 + $0x58] sm:$0xff]
        %v1369 = vld [vmem:[#allocation2 + $0x60] sm:$0xff]
        %v1370 = vld [vmem:[#allocation2 + $0x68] sm:$0xff]
        %v1371 = vld [vmem:[#allocation2 + $0x70] sm:$0xff]
        %v1372 = vld [vmem:[#allocation2 + $0x78] sm:$0xff]
        %v1373 = vadd.f32 %v1357, %v1295
        %v1374 = vadd.f32 %v1358, %v1298
        %v1375 = vadd.f32 %v1359, %v1303
        %v1376 = vadd.f32 %v1360, %v1306
        %v1377 = vadd.f32 %v1361, %v1311
        %v1378 = vadd.f32 %v1362, %v1314
        %v1379 = vadd.f32 %v1363, %v1319
        %v1380 = vadd.f32 %v1364, %v1322
        %v1381 = vadd.f32 %v1365, %v1327
        %v1382 = vadd.f32 %v1366, %v1330
        %v1383 = vadd.f32 %v1367, %v1335
        %v1384 = vadd.f32 %v1368, %v1338
        %v1385 = vadd.f32 %v1369, %v1343
        %v1386 = vadd.f32 %v1370, %v1346
        %v1387 = vadd.f32 %v1371, %v1351
        %v1388 = vadd.f32 %v1372, %v1354
        %v1389 = vpack.c.bf16 %v1374, %v1373
        %v1390 = vpack.c.bf16 %v1376, %v1375
        %v1391 = vpack.c.bf16 %v1378, %v1377
        %v1392 = vpack.c.bf16 %v1380, %v1379
        %v1393 = vpack.c.bf16 %v1382, %v1381
        %v1394 = vpack.c.bf16 %v1384, %v1383
        %v1395 = vpack.c.bf16 %v1386, %v1385
        %v1396 = vpack.c.bf16 %v1388, %v1387
        %v1397 = vld [vmem:[#allocation4] sm:$0xf]
        %v1398 = vld [vmem:[#allocation4 + $0x4] sm:$0xf]
        %v1399 = vld [vmem:[#allocation4 + $0x8] sm:$0xf]
        %v1400 = vld [vmem:[#allocation4 + $0xc] sm:$0xf]
        %v1401 = vld [vmem:[#allocation4 + $0x10] sm:$0xf]
        %v1402 = vld [vmem:[#allocation4 + $0x14] sm:$0xf]
        %v1403 = vld [vmem:[#allocation4 + $0x18] sm:$0xf]
        %v1404 = vld [vmem:[#allocation4 + $0x1c] sm:$0xf]
        %v1405 = vld [vmem:[#allocation4 + $0x20] sm:$0xf]
        %v1406 = vld [vmem:[#allocation4 + $0x24] sm:$0xf]
        %v1407 = vld [vmem:[#allocation4 + $0x28] sm:$0xf]
        %v1408 = vld [vmem:[#allocation4 + $0x2c] sm:$0xf]
        %v1409 = vld [vmem:[#allocation4 + $0x30] sm:$0xf]
        %v1410 = vld [vmem:[#allocation4 + $0x34] sm:$0xf]
        %v1411 = vld [vmem:[#allocation4 + $0x38] sm:$0xf]
        %v1412 = vld [vmem:[#allocation4 + $0x3c] sm:$0xf]
        %v1413 = vld [vmem:[%s954] sm:$0xf]
        %v1414 = vld [vmem:[%s954 + $0x4] sm:$0xf]
        %v1415 = vld [vmem:[%s954 + $0x8] sm:$0xf]
        %v1416 = vld [vmem:[%s954 + $0xc] sm:$0xf]
        %v1417 = vld [vmem:[%s954 + $0x10] sm:$0xf]
        %v1418 = vld [vmem:[%s954 + $0x14] sm:$0xf]
        %v1419 = vld [vmem:[%s954 + $0x18] sm:$0xf]
        %v1420 = vld [vmem:[%s954 + $0x1c] sm:$0xf]
        %v1421 = vld [vmem:[%s954 + $0x20] sm:$0xf]
        %v1422 = vld [vmem:[%s954 + $0x24] sm:$0xf]
        %v1423 = vld [vmem:[%s954 + $0x28] sm:$0xf]
        %v1424 = vld [vmem:[%s954 + $0x2c] sm:$0xf]
        %v1425 = vld [vmem:[%s954 + $0x30] sm:$0xf]
        %v1426 = vld [vmem:[%s954 + $0x34] sm:$0xf]
        %v1427 = vld [vmem:[%s954 + $0x38] sm:$0xf]
        %v1428 = vld [vmem:[%s954 + $0x3c] sm:$0xf]
        %v1429 = vunpack.c.l.bf16 %v1413
        %v1430 = vunpack.c.l.bf16 %v1414
        %v1431 = vunpack.c.l.bf16 %v1415
        %v1432 = vunpack.c.l.bf16 %v1416
        %v1433 = vunpack.c.l.bf16 %v1417
        %v1434 = vunpack.c.l.bf16 %v1418
        %v1435 = vunpack.c.l.bf16 %v1419
        %v1436 = vunpack.c.l.bf16 %v1420
        %v1437 = vunpack.c.l.bf16 %v1421
        %v1438 = vunpack.c.l.bf16 %v1422
        %v1439 = vunpack.c.l.bf16 %v1423
        %v1440 = vunpack.c.l.bf16 %v1424
        %v1441 = vunpack.c.l.bf16 %v1425
        %v1442 = vunpack.c.l.bf16 %v1426
        %v1443 = vunpack.c.l.bf16 %v1427
        %v1444 = vunpack.c.l.bf16 %v1428
        %v1461 = vunpack.c.l.b16 %v1397
        %v1462 = vunpack.c.l.b16 %v1398
        %v1463 = vunpack.c.l.b16 %v1399
        %v1464 = vunpack.c.l.b16 %v1400
        %v1465 = vunpack.c.l.b16 %v1401
        %v1466 = vunpack.c.l.b16 %v1402
        %v1467 = vunpack.c.l.b16 %v1403
        %v1468 = vunpack.c.l.b16 %v1404
        %v1469 = vunpack.c.l.b16 %v1405
        %v1470 = vunpack.c.l.b16 %v1406
        %v1471 = vunpack.c.l.b16 %v1407
        %v1472 = vunpack.c.l.b16 %v1408
        %v1473 = vunpack.c.l.b16 %v1409
        %v1474 = vunpack.c.l.b16 %v1410
        %v1475 = vunpack.c.l.b16 %v1411
        %v1476 = vunpack.c.l.b16 %v1412
        %v1477 = vpack.c.b16 %v1462, %v1461
        %v1478 = vpack.c.b16 %v1464, %v1463
        %v1479 = vpack.c.b16 %v1466, %v1465
        %v1480 = vpack.c.b16 %v1468, %v1467
        %v1481 = vpack.c.b16 %v1470, %v1469
        %v1482 = vpack.c.b16 %v1472, %v1471
        %v1483 = vpack.c.b16 %v1474, %v1473
        %v1484 = vpack.c.b16 %v1476, %v1475
        %1493 = vmatprep.subr.bf16.mxu0 0
        %1494 = vmatpush1.bf16.msra.mxu0 %v1389
        %1495 = vmatprep.subr.bf16.mxu0 0
        %1496 = vmatpush1.bf16.msra.mxu0 %v1390
        %1497 = vmatprep.subr.bf16.mxu0 0
        %1498 = vmatpush1.bf16.msra.mxu0 %v1391
        %1499 = vmatprep.subr.bf16.mxu0 0
        %1500 = vmatpush1.bf16.msra.mxu0 %v1392
        %1501 = vmatprep.subr.bf16.mxu0 0
        %1502 = vmatpush1.bf16.msra.mxu0 %v1393
        %1503 = vmatprep.subr.bf16.mxu0 0
        %1504 = vmatpush1.bf16.msra.mxu0 %v1394
        %1505 = vmatprep.subr.bf16.mxu0 0
        %1506 = vmatpush1.bf16.msra.mxu0 %v1395
        %1507 = vmatprep.subr.bf16.mxu0 0
        %1508 = vmatpush1.bf16.msra.mxu0 %v1396
        %1509 = vmatprep.subr.bf16.mxu0 0
        %1510 = vmatpush1.bf16.msra.mxu0 0
        %1511 = vmatprep.subr.bf16.mxu0 0
        %1512 = vmatpush1.bf16.msra.mxu0 0
        %1513 = vmatprep.subr.bf16.mxu0 0
        %1514 = vmatpush1.bf16.msra.mxu0 0
        %1515 = vmatprep.subr.bf16.mxu0 0
        %1516 = vmatpush1.bf16.msra.mxu0 0
        %1517 = vmatprep.subr.bf16.mxu0 0
        %1518 = vmatpush1.bf16.msra.mxu0 0
        %1519 = vmatprep.subr.bf16.mxu0 0
        %1520 = vmatpush1.bf16.msra.mxu0 0
        %1521 = vmatprep.subr.bf16.mxu0 0
        %1522 = vmatpush1.bf16.msra.mxu0 0
        %1523 = vmatprep.subr.bf16.mxu0 0
        %1524 = vmatpush1.bf16.msra.mxu0 0
        %1525 = vmatprep.mubr.bf16.mxu0 0
        %1526 = vmatmul.mubr.bf16.gmra.mrb[0].mxu0 %v1477
        %v1527 = vpop.f32.mrb[0].mxu0
        %v1528 = vadd.f32 %v1429, %v1527
        %v1529 = vpop.f32.mrb[0].mxu0
        %v1530 = vpop.f32.mrb[0].mxu0
        %v1531 = vadd.f32 %v1430, %v1530
        %v1532 = vpop.f32.mrb[0].mxu0
        %1533 = vmatprep.mubr.bf16.mxu0 0
        %1534 = vmatmul.mubr.bf16.gmra.mrb[0].mxu0 %v1478
        %v1535 = vpop.f32.mrb[0].mxu0
        %v1536 = vadd.f32 %v1431, %v1535
        %v1537 = vpop.f32.mrb[0].mxu0
        %v1538 = vpop.f32.mrb[0].mxu0
        %v1539 = vadd.f32 %v1432, %v1538
        %v1540 = vpop.f32.mrb[0].mxu0
        %1541 = vmatprep.mubr.bf16.mxu0 0
        %1542 = vmatmul.mubr.bf16.gmra.mrb[0].mxu0 %v1479
        %v1543 = vpop.f32.mrb[0].mxu0
        %v1544 = vadd.f32 %v1433, %v1543
        %v1545 = vpop.f32.mrb[0].mxu0
        %v1546 = vpop.f32.mrb[0].mxu0
        %v1547 = vadd.f32 %v1434, %v1546
        %v1548 = vpop.f32.mrb[0].mxu0
        %1549 = vmatprep.mubr.bf16.mxu0 0
        %1550 = vmatmul.mubr.bf16.gmra.mrb[0].mxu0 %v1480
        %v1551 = vpop.f32.mrb[0].mxu0
        %v1552 = vadd.f32 %v1435, %v1551
        %v1553 = vpop.f32.mrb[0].mxu0
        %v1554 = vpop.f32.mrb[0].mxu0
        %v1555 = vadd.f32 %v1436, %v1554
        %v1556 = vpop.f32.mrb[0].mxu0
        %1557 = vmatprep.mubr.bf16.mxu0 0
        %1558 = vmatmul.mubr.bf16.gmra.mrb[0].mxu0 %v1481
        %v1559 = vpop.f32.mrb[0].mxu0
        %v1560 = vadd.f32 %v1437, %v1559
        %v1561 = vpop.f32.mrb[0].mxu0
        %v1562 = vpop.f32.mrb[0].mxu0
        %v1563 = vadd.f32 %v1438, %v1562
        %v1564 = vpop.f32.mrb[0].mxu0
        %1565 = vmatprep.mubr.bf16.mxu0 0
        %1566 = vmatmul.mubr.bf16.gmra.mrb[0].mxu0 %v1482
        %v1567 = vpop.f32.mrb[0].mxu0
        %v1568 = vadd.f32 %v1439, %v1567
        %v1569 = vpop.f32.mrb[0].mxu0
        %v1570 = vpop.f32.mrb[0].mxu0
        %v1571 = vadd.f32 %v1440, %v1570
        %v1572 = vpop.f32.mrb[0].mxu0
        %1573 = vmatprep.mubr.bf16.mxu0 0
        %1574 = vmatmul.mubr.bf16.gmra.mrb[0].mxu0 %v1483
        %v1575 = vpop.f32.mrb[0].mxu0
        %v1576 = vadd.f32 %v1441, %v1575
        %v1577 = vpop.f32.mrb[0].mxu0
        %v1578 = vpop.f32.mrb[0].mxu0
        %v1579 = vadd.f32 %v1442, %v1578
        %v1580 = vpop.f32.mrb[0].mxu0
        %1581 = vmatprep.mubr.bf16.mxu0 0
        %1582 = vmatmul.mubr.bf16.gmra.mrb[0].mxu0 %v1484
        %v1583 = vpop.f32.mrb[0].mxu0
        %v1584 = vadd.f32 %v1443, %v1583
        %v1585 = vpop.f32.mrb[0].mxu0
        %v1586 = vpop.f32.mrb[0].mxu0
        %v1587 = vadd.f32 %v1444, %v1586
        %v1588 = vpop.f32.mrb[0].mxu0
        %1589 = vdwg.mxu0
        %v1590 = vpack.c.bf16 %v1531, %v1528
        %v1591 = vpack.c.bf16 %v1539, %v1536
        %v1592 = vpack.c.bf16 %v1547, %v1544
        %v1593 = vpack.c.bf16 %v1555, %v1552
        %v1594 = vpack.c.bf16 %v1563, %v1560
        %v1595 = vpack.c.bf16 %v1571, %v1568
        %v1596 = vpack.c.bf16 %v1579, %v1576
        %v1597 = vpack.c.bf16 %v1587, %v1584
        %v1598 = vld [vmem:[%s963] sm:$0xf]
        %v1599 = vld [vmem:[%s963 + $0x4] sm:$0xf]
        %v1600 = vld [vmem:[%s963 + $0x8] sm:$0xf]
        %v1601 = vld [vmem:[%s963 + $0xc] sm:$0xf]
        %v1602 = vld [vmem:[%s963 + $0x10] sm:$0xf]
        %v1603 = vld [vmem:[%s963 + $0x14] sm:$0xf]
        %v1604 = vld [vmem:[%s963 + $0x18] sm:$0xf]
        %v1605 = vld [vmem:[%s963 + $0x1c] sm:$0xf]
        %v1606 = vld [vmem:[%s963 + $0x20] sm:$0xf]
        %v1607 = vld [vmem:[%s963 + $0x24] sm:$0xf]
        %v1608 = vld [vmem:[%s963 + $0x28] sm:$0xf]
        %v1609 = vld [vmem:[%s963 + $0x2c] sm:$0xf]
        %v1610 = vld [vmem:[%s963 + $0x30] sm:$0xf]
        %v1611 = vld [vmem:[%s963 + $0x34] sm:$0xf]
        %v1612 = vld [vmem:[%s963 + $0x38] sm:$0xf]
        %v1613 = vld [vmem:[%s963 + $0x3c] sm:$0xf]
        %v1614 = vld [vmem:[%s1104] sm:$0x1]
        %v1616 = vlaneseq
        %v1617 = vshrl.u32 %v1616, 7
        %v1618 = vsub.s32 0, %v1617
        %v1619 = vrot.slane %v1614, %v1618
        %v1637 = vunpack.c.l.b16 %v1598
        %v1638 = vunpack.c.l.b16 %v1599
        %v1639 = vunpack.c.l.b16 %v1600
        %v1640 = vunpack.c.l.b16 %v1601
        %v1641 = vunpack.c.l.b16 %v1602
        %v1642 = vunpack.c.l.b16 %v1603
        %v1643 = vunpack.c.l.b16 %v1604
        %v1644 = vunpack.c.l.b16 %v1605
        %v1645 = vunpack.c.l.b16 %v1606
        %v1646 = vunpack.c.l.b16 %v1607
        %v1647 = vunpack.c.l.b16 %v1608
        %v1648 = vunpack.c.l.b16 %v1609
        %v1649 = vunpack.c.l.b16 %v1610
        %v1650 = vunpack.c.l.b16 %v1611
        %v1651 = vunpack.c.l.b16 %v1612
        %v1652 = vunpack.c.l.b16 %v1613
        %v1653 = vpack.c.b16 %v1638, %v1637
        %v1654 = vpack.c.b16 %v1640, %v1639
        %v1655 = vpack.c.b16 %v1642, %v1641
        %v1656 = vpack.c.b16 %v1644, %v1643
        %v1657 = vpack.c.b16 %v1646, %v1645
        %v1658 = vpack.c.b16 %v1648, %v1647
        %v1659 = vpack.c.b16 %v1650, %v1649
        %v1660 = vpack.c.b16 %v1652, %v1651
        %1669 = vmatprep.subr.bf16.mxu0 0
        %1670 = vmatpush1.bf16.msra.mxu0 %v1653
        %1671 = vmatprep.subr.bf16.mxu0 0
        %1672 = vmatpush1.bf16.msra.mxu0 %v1654
        %1673 = vmatprep.subr.bf16.mxu0 0
        %1674 = vmatpush1.bf16.msra.mxu0 %v1655
        %1675 = vmatprep.subr.bf16.mxu0 0
        %1676 = vmatpush1.bf16.msra.mxu0 %v1656
        %1677 = vmatprep.subr.bf16.mxu0 0
        %1678 = vmatpush1.bf16.msra.mxu0 %v1657
        %1679 = vmatprep.subr.bf16.mxu0 0
        %1680 = vmatpush1.bf16.msra.mxu0 %v1658
        %1681 = vmatprep.subr.bf16.mxu0 0
        %1682 = vmatpush1.bf16.msra.mxu0 %v1659
        %1683 = vmatprep.subr.bf16.mxu0 0
        %1684 = vmatpush1.bf16.msra.mxu0 %v1660
        %1685 = vmatprep.subr.bf16.mxu0 0
        %1686 = vmatpush1.bf16.msra.mxu0 0
        %1687 = vmatprep.subr.bf16.mxu0 0
        %1688 = vmatpush1.bf16.msra.mxu0 0
        %1689 = vmatprep.subr.bf16.mxu0 0
        %1690 = vmatpush1.bf16.msra.mxu0 0
        %1691 = vmatprep.subr.bf16.mxu0 0
        %1692 = vmatpush1.bf16.msra.mxu0 0
        %1693 = vmatprep.subr.bf16.mxu0 0
        %1694 = vmatpush1.bf16.msra.mxu0 0
        %1695 = vmatprep.subr.bf16.mxu0 0
        %1696 = vmatpush1.bf16.msra.mxu0 0
        %1697 = vmatprep.subr.bf16.mxu0 0
        %1698 = vmatpush1.bf16.msra.mxu0 0
        %1699 = vmatprep.subr.bf16.mxu0 0
        %1700 = vmatpush1.bf16.msra.mxu0 0
        %1701 = vmatprep.mubr.bf16.mxu0 0
        %1702 = vmatmul.mubr.bf16.gmra.mrb[0].mxu0 %v1590
        %v1703 = vpop.f32.mrb[0].mxu0
        %v1704 = vadd.f32 %v1619, %v1703
        %v1705 = vpop.f32.mrb[0].mxu0
        %v1706 = vpop.f32.mrb[0].mxu0
        %v1707 = vadd.f32 %v1619, %v1706
        %v1708 = vpop.f32.mrb[0].mxu0
        %1709 = vmatprep.mubr.bf16.mxu0 0
        %1710 = vmatmul.mubr.bf16.gmra.mrb[0].mxu0 %v1591
        %v1711 = vpop.f32.mrb[0].mxu0
        %v1712 = vadd.f32 %v1619, %v1711
        %v1713 = vpop.f32.mrb[0].mxu0
        %v1714 = vpop.f32.mrb[0].mxu0
        %v1715 = vadd.f32 %v1619, %v1714
        %v1716 = vpop.f32.mrb[0].mxu0
        %1717 = vmatprep.mubr.bf16.mxu0 0
        %1718 = vmatmul.mubr.bf16.gmra.mrb[0].mxu0 %v1592
        %v1719 = vpop.f32.mrb[0].mxu0
        %v1720 = vadd.f32 %v1619, %v1719
        %v1721 = vpop.f32.mrb[0].mxu0
        %v1722 = vpop.f32.mrb[0].mxu0
        %v1723 = vadd.f32 %v1619, %v1722
        %v1724 = vpop.f32.mrb[0].mxu0
        %1725 = vmatprep.mubr.bf16.mxu0 0
        %1726 = vmatmul.mubr.bf16.gmra.mrb[0].mxu0 %v1593
        %v1727 = vpop.f32.mrb[0].mxu0
        %v1728 = vadd.f32 %v1619, %v1727
        %v1729 = vpop.f32.mrb[0].mxu0
        %v1730 = vpop.f32.mrb[0].mxu0
        %v1731 = vadd.f32 %v1619, %v1730
        %v1732 = vpop.f32.mrb[0].mxu0
        %1733 = vmatprep.mubr.bf16.mxu0 0
        %1734 = vmatmul.mubr.bf16.gmra.mrb[0].mxu0 %v1594
        %v1735 = vpop.f32.mrb[0].mxu0
        %v1736 = vadd.f32 %v1619, %v1735
        %v1737 = vpop.f32.mrb[0].mxu0
        %v1738 = vpop.f32.mrb[0].mxu0
        %v1739 = vadd.f32 %v1619, %v1738
        %v1740 = vpop.f32.mrb[0].mxu0
        %1741 = vmatprep.mubr.bf16.mxu0 0
        %1742 = vmatmul.mubr.bf16.gmra.mrb[0].mxu0 %v1595
        %v1743 = vpop.f32.mrb[0].mxu0
        %v1744 = vadd.f32 %v1619, %v1743
        %v1745 = vpop.f32.mrb[0].mxu0
        %v1746 = vpop.f32.mrb[0].mxu0
        %v1747 = vadd.f32 %v1619, %v1746
        %v1748 = vpop.f32.mrb[0].mxu0
        %1749 = vmatprep.mubr.bf16.mxu0 0
        %1750 = vmatmul.mubr.bf16.gmra.mrb[0].mxu0 %v1596
        %v1751 = vpop.f32.mrb[0].mxu0
        %v1752 = vadd.f32 %v1619, %v1751
        %v1753 = vpop.f32.mrb[0].mxu0
        %v1754 = vpop.f32.mrb[0].mxu0
        %v1755 = vadd.f32 %v1619, %v1754
        %v1756 = vpop.f32.mrb[0].mxu0
        %1757 = vmatprep.mubr.bf16.mxu0 0
        %1758 = vmatmul.mubr.bf16.gmra.mrb[0].mxu0 %v1597
        %v1759 = vpop.f32.mrb[0].mxu0
        %v1760 = vadd.f32 %v1619, %v1759
        %v1761 = vpop.f32.mrb[0].mxu0
        %v1762 = vpop.f32.mrb[0].mxu0
        %v1763 = vadd.f32 %v1619, %v1762
        %v1764 = vpop.f32.mrb[0].mxu0
        %1765 = vdwg.mxu0
        %v1766 = vmax.f32 %v1704, 0.0
        %v1767 = vmax.f32 %v1707, 0.0
        %v1768 = vmax.f32 %v1712, 0.0
        %v1769 = vmax.f32 %v1715, 0.0
        %v1770 = vmax.f32 %v1720, 0.0
        %v1771 = vmax.f32 %v1723, 0.0
        %v1772 = vmax.f32 %v1728, 0.0
        %v1773 = vmax.f32 %v1731, 0.0
        %v1774 = vmax.f32 %v1736, 0.0
        %v1775 = vmax.f32 %v1739, 0.0
        %v1776 = vmax.f32 %v1744, 0.0
        %v1777 = vmax.f32 %v1747, 0.0
        %v1778 = vmax.f32 %v1752, 0.0
        %v1779 = vmax.f32 %v1755, 0.0
        %v1780 = vmax.f32 %v1760, 0.0
        %v1781 = vmax.f32 %v1763, 0.0
        %v1782 = vpack.c.bf16 %v1767, %v1766
        %v1783 = vpack.c.bf16 %v1769, %v1768
        %v1784 = vpack.c.bf16 %v1771, %v1770
        %v1785 = vpack.c.bf16 %v1773, %v1772
        %v1786 = vpack.c.bf16 %v1775, %v1774
        %v1787 = vpack.c.bf16 %v1777, %v1776
        %v1788 = vpack.c.bf16 %v1779, %v1778
        %v1789 = vpack.c.bf16 %v1781, %v1780
        %v1790 = vld [vmem:[%s972] sm:$0xf]
        %v1791 = vld [vmem:[%s972 + $0x4] sm:$0xf]
        %v1792 = vld [vmem:[%s972 + $0x8] sm:$0xf]
        %v1793 = vld [vmem:[%s972 + $0xc] sm:$0xf]
        %v1794 = vld [vmem:[%s972 + $0x10] sm:$0xf]
        %v1795 = vld [vmem:[%s972 + $0x14] sm:$0xf]
        %v1796 = vld [vmem:[%s972 + $0x18] sm:$0xf]
        %v1797 = vld [vmem:[%s972 + $0x1c] sm:$0xf]
        %v1798 = vld [vmem:[%s972 + $0x20] sm:$0xf]
        %v1799 = vld [vmem:[%s972 + $0x24] sm:$0xf]
        %v1800 = vld [vmem:[%s972 + $0x28] sm:$0xf]
        %v1801 = vld [vmem:[%s972 + $0x2c] sm:$0xf]
        %v1802 = vld [vmem:[%s972 + $0x30] sm:$0xf]
        %v1803 = vld [vmem:[%s972 + $0x34] sm:$0xf]
        %v1804 = vld [vmem:[%s972 + $0x38] sm:$0xf]
        %v1805 = vld [vmem:[%s972 + $0x3c] sm:$0xf]
        %v1806 = vld [vmem:[%s1107] sm:$0x1]
        %v1808 = vlaneseq
        %v1809 = vshrl.u32 %v1808, 7
        %v1810 = vsub.s32 0, %v1809
        %v1811 = vrot.slane %v1806, %v1810
        %v1829 = vunpack.c.l.b16 %v1790
        %v1830 = vunpack.c.l.b16 %v1791
        %v1831 = vunpack.c.l.b16 %v1792
        %v1832 = vunpack.c.l.b16 %v1793
        %v1833 = vunpack.c.l.b16 %v1794
        %v1834 = vunpack.c.l.b16 %v1795
        %v1835 = vunpack.c.l.b16 %v1796
        %v1836 = vunpack.c.l.b16 %v1797
        %v1837 = vunpack.c.l.b16 %v1798
        %v1838 = vunpack.c.l.b16 %v1799
        %v1839 = vunpack.c.l.b16 %v1800
        %v1840 = vunpack.c.l.b16 %v1801
        %v1841 = vunpack.c.l.b16 %v1802
        %v1842 = vunpack.c.l.b16 %v1803
        %v1843 = vunpack.c.l.b16 %v1804
        %v1844 = vunpack.c.l.b16 %v1805
        %v1845 = vpack.c.b16 %v1830, %v1829
        %v1846 = vpack.c.b16 %v1832, %v1831
        %v1847 = vpack.c.b16 %v1834, %v1833
        %v1848 = vpack.c.b16 %v1836, %v1835
        %v1849 = vpack.c.b16 %v1838, %v1837
        %v1850 = vpack.c.b16 %v1840, %v1839
        %v1851 = vpack.c.b16 %v1842, %v1841
        %v1852 = vpack.c.b16 %v1844, %v1843
        %1861 = vmatprep.subr.bf16.mxu0 0
        %1862 = vmatpush1.bf16.msra.mxu0 %v1845
        %1863 = vmatprep.subr.bf16.mxu0 0
        %1864 = vmatpush1.bf16.msra.mxu0 %v1846
        %1865 = vmatprep.subr.bf16.mxu0 0
        %1866 = vmatpush1.bf16.msra.mxu0 %v1847
        %1867 = vmatprep.subr.bf16.mxu0 0
        %1868 = vmatpush1.bf16.msra.mxu0 %v1848
        %1869 = vmatprep.subr.bf16.mxu0 0
        %1870 = vmatpush1.bf16.msra.mxu0 %v1849
        %1871 = vmatprep.subr.bf16.mxu0 0
        %1872 = vmatpush1.bf16.msra.mxu0 %v1850
        %1873 = vmatprep.subr.bf16.mxu0 0
        %1874 = vmatpush1.bf16.msra.mxu0 %v1851
        %1875 = vmatprep.subr.bf16.mxu0 0
        %1876 = vmatpush1.bf16.msra.mxu0 %v1852
        %1877 = vmatprep.subr.bf16.mxu0 0
        %1878 = vmatpush1.bf16.msra.mxu0 0
        %1879 = vmatprep.subr.bf16.mxu0 0
        %1880 = vmatpush1.bf16.msra.mxu0 0
        %1881 = vmatprep.subr.bf16.mxu0 0
        %1882 = vmatpush1.bf16.msra.mxu0 0
        %1883 = vmatprep.subr.bf16.mxu0 0
        %1884 = vmatpush1.bf16.msra.mxu0 0
        %1885 = vmatprep.subr.bf16.mxu0 0
        %1886 = vmatpush1.bf16.msra.mxu0 0
        %1887 = vmatprep.subr.bf16.mxu0 0
        %1888 = vmatpush1.bf16.msra.mxu0 0
        %1889 = vmatprep.subr.bf16.mxu0 0
        %1890 = vmatpush1.bf16.msra.mxu0 0
        %1891 = vmatprep.subr.bf16.mxu0 0
        %1892 = vmatpush1.bf16.msra.mxu0 0
        %1893 = vmatprep.mubr.bf16.mxu0 0
        %1894 = vmatmul.mubr.bf16.gmra.mrb[0].mxu0 %v1782
        %v1895 = vpop.f32.mrb[0].mxu0
        %v1896 = vadd.f32 %v1811, %v1895
        %v1897 = vpop.f32.mrb[0].mxu0
        %v1898 = vpop.f32.mrb[0].mxu0
        %v1899 = vadd.f32 %v1811, %v1898
        %v1900 = vpop.f32.mrb[0].mxu0
        %1901 = vmatprep.mubr.bf16.mxu0 0
        %1902 = vmatmul.mubr.bf16.gmra.mrb[0].mxu0 %v1783
        %v1903 = vpop.f32.mrb[0].mxu0
        %v1904 = vadd.f32 %v1811, %v1903
        %v1905 = vpop.f32.mrb[0].mxu0
        %v1906 = vpop.f32.mrb[0].mxu0
        %v1907 = vadd.f32 %v1811, %v1906
        %v1908 = vpop.f32.mrb[0].mxu0
        %1909 = vmatprep.mubr.bf16.mxu0 0
        %1910 = vmatmul.mubr.bf16.gmra.mrb[0].mxu0 %v1784
        %v1911 = vpop.f32.mrb[0].mxu0
        %v1912 = vadd.f32 %v1811, %v1911
        %v1913 = vpop.f32.mrb[0].mxu0
        %v1914 = vpop.f32.mrb[0].mxu0
        %v1915 = vadd.f32 %v1811, %v1914
        %v1916 = vpop.f32.mrb[0].mxu0
        %1917 = vmatprep.mubr.bf16.mxu0 0
        %1918 = vmatmul.mubr.bf16.gmra.mrb[0].mxu0 %v1785
        %v1919 = vpop.f32.mrb[0].mxu0
        %v1920 = vadd.f32 %v1811, %v1919
        %v1921 = vpop.f32.mrb[0].mxu0
        %v1922 = vpop.f32.mrb[0].mxu0
        %v1923 = vadd.f32 %v1811, %v1922
        %v1924 = vpop.f32.mrb[0].mxu0
        %1925 = vmatprep.mubr.bf16.mxu0 0
        %1926 = vmatmul.mubr.bf16.gmra.mrb[0].mxu0 %v1786
        %v1927 = vpop.f32.mrb[0].mxu0
        %v1928 = vadd.f32 %v1811, %v1927
        %v1929 = vpop.f32.mrb[0].mxu0
        %v1930 = vpop.f32.mrb[0].mxu0
        %v1931 = vadd.f32 %v1811, %v1930
        %v1932 = vpop.f32.mrb[0].mxu0
        %1933 = vmatprep.mubr.bf16.mxu0 0
        %1934 = vmatmul.mubr.bf16.gmra.mrb[0].mxu0 %v1787
        %v1935 = vpop.f32.mrb[0].mxu0
        %v1936 = vadd.f32 %v1811, %v1935
        %v1937 = vpop.f32.mrb[0].mxu0
        %v1938 = vpop.f32.mrb[0].mxu0
        %v1939 = vadd.f32 %v1811, %v1938
        %v1940 = vpop.f32.mrb[0].mxu0
        %1941 = vmatprep.mubr.bf16.mxu0 0
        %1942 = vmatmul.mubr.bf16.gmra.mrb[0].mxu0 %v1788
        %v1943 = vpop.f32.mrb[0].mxu0
        %v1944 = vadd.f32 %v1811, %v1943
        %v1945 = vpop.f32.mrb[0].mxu0
        %v1946 = vpop.f32.mrb[0].mxu0
        %v1947 = vadd.f32 %v1811, %v1946
        %v1948 = vpop.f32.mrb[0].mxu0
        %1949 = vmatprep.mubr.bf16.mxu0 0
        %1950 = vmatmul.mubr.bf16.gmra.mrb[0].mxu0 %v1789
        %v1951 = vpop.f32.mrb[0].mxu0
        %v1952 = vadd.f32 %v1811, %v1951
        %v1953 = vpop.f32.mrb[0].mxu0
        %v1954 = vpop.f32.mrb[0].mxu0
        %v1955 = vadd.f32 %v1811, %v1954
        %v1956 = vpop.f32.mrb[0].mxu0
        %1957 = vdwg.mxu0
        %1959 = vset.pattern.permute.xlu0 0
        %1960 = vperm.xlu0 %1959, %v1133
        %v1961 = vpop.permute.xlu0 %1960
        %1964 = vset.pattern.permute.xlu0 0
        %1965 = vperm.xlu0 %1964, %v1134
        %v1966 = vpop.permute.xlu0 %1965
        %1969 = vset.pattern.permute.xlu0 0
        %1970 = vperm.xlu0 %1969, %v1135
        %v1971 = vpop.permute.xlu0 %1970
        %1974 = vset.pattern.permute.xlu0 0
        %1975 = vperm.xlu0 %1974, %v1136
        %v1976 = vpop.permute.xlu0 %1975
        %1979 = vset.pattern.permute.xlu0 0
        %1980 = vperm.xlu0 %1979, %v1137
        %v1981 = vpop.permute.xlu0 %1980
        %1984 = vset.pattern.permute.xlu0 0
        %1985 = vperm.xlu0 %1984, %v1138
        %v1986 = vpop.permute.xlu0 %1985
        %1989 = vset.pattern.permute.xlu0 0
        %1990 = vperm.xlu0 %1989, %v1139
        %v1991 = vpop.permute.xlu0 %1990
        %1994 = vset.pattern.permute.xlu0 0
        %1995 = vperm.xlu0 %1994, %v1140
        %v1996 = vpop.permute.xlu0 %1995
        %1999 = vset.pattern.permute.xlu0 0
        %2000 = vperm.xlu0 %1999, %v1141
        %v2001 = vpop.permute.xlu0 %2000
        %2004 = vset.pattern.permute.xlu0 0
        %2005 = vperm.xlu0 %2004, %v1142
        %v2006 = vpop.permute.xlu0 %2005
        %2009 = vset.pattern.permute.xlu0 0
        %2010 = vperm.xlu0 %2009, %v1143
        %v2011 = vpop.permute.xlu0 %2010
        %2014 = vset.pattern.permute.xlu0 0
        %2015 = vperm.xlu0 %2014, %v1144
        %v2016 = vpop.permute.xlu0 %2015
        %2019 = vset.pattern.permute.xlu0 0
        %2020 = vperm.xlu0 %2019, %v1145
        %v2021 = vpop.permute.xlu0 %2020
        %2024 = vset.pattern.permute.xlu0 0
        %2025 = vperm.xlu0 %2024, %v1146
        %v2026 = vpop.permute.xlu0 %2025
        %2029 = vset.pattern.permute.xlu0 0
        %2030 = vperm.xlu0 %2029, %v1147
        %v2031 = vpop.permute.xlu0 %2030
        %2034 = vset.pattern.permute.xlu0 0
        %2035 = vperm.xlu0 %2034, %v1148
        %v2036 = vpop.permute.xlu0 %2035
        %v2038 = vmul.f32 %v1896, %v1961
        %v2039 = vmul.f32 %v1899, %v1966
        %v2040 = vmul.f32 %v1904, %v1971
        %v2041 = vmul.f32 %v1907, %v1976
        %v2042 = vmul.f32 %v1912, %v1981
        %v2043 = vmul.f32 %v1915, %v1986
        %v2044 = vmul.f32 %v1920, %v1991
        %v2045 = vmul.f32 %v1923, %v1996
        %v2046 = vmul.f32 %v1928, %v2001
        %v2047 = vmul.f32 %v1931, %v2006
        %v2048 = vmul.f32 %v1936, %v2011
        %v2049 = vmul.f32 %v1939, %v2016
        %v2050 = vmul.f32 %v1944, %v2021
        %v2051 = vmul.f32 %v1947, %v2026
        %v2052 = vmul.f32 %v1952, %v2031
        %v2053 = vmul.f32 %v1955, %v2036
        %v2054 = vadd.f32 %v2038, %v2039
        %v2055 = vadd.f32 %v2054, %v2040
        %v2056 = vadd.f32 %v2055, %v2041
        %v2057 = vadd.f32 %v2056, %v2042
        %v2058 = vadd.f32 %v2057, %v2043
        %v2059 = vadd.f32 %v2058, %v2044
        %v2060 = vadd.f32 %v2059, %v2045
        %v2061 = vadd.f32 %v2060, %v2046
        %v2062 = vadd.f32 %v2061, %v2047
        %v2063 = vadd.f32 %v2062, %v2048
        %v2064 = vadd.f32 %v2063, %v2049
        %v2065 = vadd.f32 %v2064, %v2050
        %v2066 = vadd.f32 %v2065, %v2051
        %v2067 = vadd.f32 %v2066, %v2052
        %v2068 = vadd.f32 %v2067, %v2053
        %v2069 = vrot.slane %v2068, 4
        %v2070 = vadd.f32 %v2068, %v2069
        %v2071 = vrot.slane %v2070, 2
        %v2072 = vadd.f32 %v2070, %v2071
        %v2073 = vrot.slane %v2072, 1
        %v2074 = vadd.f32 %v2072, %v2073
        %v2075 = vmul.f32 %v2074, 0.0625
        %v2076 = vsub.f32 %v1896, %v2075
        %v2077 = vsub.f32 %v1899, %v2075
        %v2078 = vsub.f32 %v1904, %v2075
        %v2079 = vsub.f32 %v1907, %v2075
        %v2080 = vsub.f32 %v1912, %v2075
        %v2081 = vsub.f32 %v1915, %v2075
        %v2082 = vsub.f32 %v1920, %v2075
        %v2083 = vsub.f32 %v1923, %v2075
        %v2084 = vsub.f32 %v1928, %v2075
        %v2085 = vsub.f32 %v1931, %v2075
        %v2086 = vsub.f32 %v1936, %v2075
        %v2087 = vsub.f32 %v1939, %v2075
        %v2088 = vsub.f32 %v1944, %v2075
        %v2089 = vsub.f32 %v1947, %v2075
        %v2090 = vsub.f32 %v1952, %v2075
        %v2091 = vsub.f32 %v1955, %v2075
        %v2092 = vmul.f32 %v2076, %v1961
        %v2093 = vmul.f32 %v2077, %v1966
        %v2094 = vmul.f32 %v2078, %v1971
        %v2095 = vmul.f32 %v2079, %v1976
        %v2096 = vmul.f32 %v2080, %v1981
        %v2097 = vmul.f32 %v2081, %v1986
        %v2098 = vmul.f32 %v2082, %v1991
        %v2099 = vmul.f32 %v2083, %v1996
        %v2100 = vmul.f32 %v2084, %v2001
        %v2101 = vmul.f32 %v2085, %v2006
        %v2102 = vmul.f32 %v2086, %v2011
        %v2103 = vmul.f32 %v2087, %v2016
        %v2104 = vmul.f32 %v2088, %v2021
        %v2105 = vmul.f32 %v2089, %v2026
        %v2106 = vmul.f32 %v2090, %v2031
        %v2107 = vmul.f32 %v2091, %v2036
        %v2108 = vmul.f32 %v2092, %v2092
        %v2109 = vmul.f32 %v2093, %v2093
        %v2110 = vmul.f32 %v2094, %v2094
        %v2111 = vmul.f32 %v2095, %v2095
        %v2112 = vmul.f32 %v2096, %v2096
        %v2113 = vmul.f32 %v2097, %v2097
        %v2114 = vmul.f32 %v2098, %v2098
        %v2115 = vmul.f32 %v2099, %v2099
        %v2116 = vmul.f32 %v2100, %v2100
        %v2117 = vmul.f32 %v2101, %v2101
        %v2118 = vmul.f32 %v2102, %v2102
        %v2119 = vmul.f32 %v2103, %v2103
        %v2120 = vmul.f32 %v2104, %v2104
        %v2121 = vmul.f32 %v2105, %v2105
        %v2122 = vmul.f32 %v2106, %v2106
        %v2123 = vmul.f32 %v2107, %v2107
        %v2124 = vadd.f32 %v2108, %v2109
        %v2125 = vadd.f32 %v2124, %v2110
        %v2126 = vadd.f32 %v2125, %v2111
        %v2127 = vadd.f32 %v2126, %v2112
        %v2128 = vadd.f32 %v2127, %v2113
        %v2129 = vadd.f32 %v2128, %v2114
        %v2130 = vadd.f32 %v2129, %v2115
        %v2131 = vadd.f32 %v2130, %v2116
        %v2132 = vadd.f32 %v2131, %v2117
        %v2133 = vadd.f32 %v2132, %v2118
        %v2134 = vadd.f32 %v2133, %v2119
        %v2135 = vadd.f32 %v2134, %v2120
        %v2136 = vadd.f32 %v2135, %v2121
        %v2137 = vadd.f32 %v2136, %v2122
        %v2138 = vadd.f32 %v2137, %v2123
        %v2139 = vrot.slane %v2138, 4
        %v2140 = vadd.f32 %v2138, %v2139
        %v2141 = vrot.slane %v2140, 2
        %v2142 = vadd.f32 %v2140, %v2141
        %v2143 = vrot.slane %v2142, 1
        %v2144 = vadd.f32 %v2142, %v2143
        %v2145 = vmul.f32 %v2144, 0.0625
        %v2146 = vld [vmem:[%s1110] sm:$0x1]
        %v2147 = vadd.f32 %v2145, 1e-05
        %v2148 = vrsqrt.pop %v2147
        %v2149 = vmul.f32 %v2092, %v2148
        %v2150 = vmul.f32 %v2093, %v2148
        %v2151 = vmul.f32 %v2094, %v2148
        %v2152 = vmul.f32 %v2095, %v2148
        %v2153 = vmul.f32 %v2096, %v2148
        %v2154 = vmul.f32 %v2097, %v2148
        %v2155 = vmul.f32 %v2098, %v2148
        %v2156 = vmul.f32 %v2099, %v2148
        %v2157 = vmul.f32 %v2100, %v2148
        %v2158 = vmul.f32 %v2101, %v2148
        %v2159 = vmul.f32 %v2102, %v2148
        %v2160 = vmul.f32 %v2103, %v2148
        %v2161 = vmul.f32 %v2104, %v2148
        %v2162 = vmul.f32 %v2105, %v2148
        %v2163 = vmul.f32 %v2106, %v2148
        %v2164 = vmul.f32 %v2107, %v2148
        %v2166 = vlaneseq
        %v2167 = vshrl.u32 %v2166, 7
        %v2168 = vsub.s32 0, %v2167
        %v2169 = vrot.slane %v2146, %v2168
        %v2171 = vmul.f32 %v2169, %v2149
        %v2172 = vmul.f32 %v2169, %v2150
        %v2173 = vmul.f32 %v2169, %v2151
        %v2174 = vmul.f32 %v2169, %v2152
        %v2175 = vmul.f32 %v2169, %v2153
        %v2176 = vmul.f32 %v2169, %v2154
        %v2177 = vmul.f32 %v2169, %v2155
        %v2178 = vmul.f32 %v2169, %v2156
        %v2179 = vmul.f32 %v2169, %v2157
        %v2180 = vmul.f32 %v2169, %v2158
        %v2181 = vmul.f32 %v2169, %v2159
        %v2182 = vmul.f32 %v2169, %v2160
        %v2183 = vmul.f32 %v2169, %v2161
        %v2184 = vmul.f32 %v2169, %v2162
        %v2185 = vmul.f32 %v2169, %v2163
        %v2186 = vmul.f32 %v2169, %v2164
        %v2187 = vld [vmem:[%s1113] sm:$0x1]
        %v2189 = vlaneseq
        %v2190 = vshrl.u32 %v2189, 7
        %v2191 = vsub.s32 0, %v2190
        %v2192 = vrot.slane %v2187, %v2191
        %v2194 = vadd.f32 %v2171, %v2192
        %v2195 = vadd.f32 %v2172, %v2192
        %v2196 = vadd.f32 %v2173, %v2192
        %v2197 = vadd.f32 %v2174, %v2192
        %v2198 = vadd.f32 %v2175, %v2192
        %v2199 = vadd.f32 %v2176, %v2192
        %v2200 = vadd.f32 %v2177, %v2192
        %v2201 = vadd.f32 %v2178, %v2192
        %v2202 = vadd.f32 %v2179, %v2192
        %v2203 = vadd.f32 %v2180, %v2192
        %v2204 = vadd.f32 %v2181, %v2192
        %v2205 = vadd.f32 %v2182, %v2192
        %v2206 = vadd.f32 %v2183, %v2192
        %v2207 = vadd.f32 %v2184, %v2192
        %v2208 = vadd.f32 %v2185, %v2192
        %v2209 = vadd.f32 %v2186, %v2192
        %p2210 = scmp.lt.s32.totalorder %s49, 1
        // Predicated region
        $region165: #{tpu_custom_call.1} parent=119 // pred_check
          %p2211 = pneg %p2210
        $region166: #{tpu_custom_call.1} parent=119 // pred_check_branch
          %2213 = sbr.rel (%p2211) target = $region168
        $region167: #{tpu_custom_call.1} parent=119 // pred_region
          %v2214 = vmax.f32 %v2194, 0.0
          %v2215 = vmax.f32 %v2195, 0.0
          %v2216 = vmax.f32 %v2196, 0.0
          %v2217 = vmax.f32 %v2197, 0.0
          %v2218 = vmax.f32 %v2198, 0.0
          %v2219 = vmax.f32 %v2199, 0.0
          %v2220 = vmax.f32 %v2200, 0.0
          %v2221 = vmax.f32 %v2201, 0.0
          %v2222 = vmax.f32 %v2202, 0.0
          %v2223 = vmax.f32 %v2203, 0.0
          %v2224 = vmax.f32 %v2204, 0.0
          %v2225 = vmax.f32 %v2205, 0.0
          %v2226 = vmax.f32 %v2206, 0.0
          %v2227 = vmax.f32 %v2207, 0.0
          %v2228 = vmax.f32 %v2208, 0.0
          %v2229 = vmax.f32 %v2209, 0.0
          %v2230 = vmul.f32 %v2214, %v1961
          %v2231 = vmul.f32 %v2215, %v1966
          %v2232 = vmul.f32 %v2216, %v1971
          %v2233 = vmul.f32 %v2217, %v1976
          %v2234 = vmul.f32 %v2218, %v1981
          %v2235 = vmul.f32 %v2219, %v1986
          %v2236 = vmul.f32 %v2220, %v1991
          %v2237 = vmul.f32 %v2221, %v1996
          %v2238 = vmul.f32 %v2222, %v2001
          %v2239 = vmul.f32 %v2223, %v2006
          %v2240 = vmul.f32 %v2224, %v2011
          %v2241 = vmul.f32 %v2225, %v2016
          %v2242 = vmul.f32 %v2226, %v2021
          %v2243 = vmul.f32 %v2227, %v2026
          %v2244 = vmul.f32 %v2228, %v2031
          %v2245 = vmul.f32 %v2229, %v2036
          %2246 = vst [vmem:[#allocation2] sm:$0xff] %v2230
          %2247 = vst [vmem:[#allocation2 + $0x8] sm:$0xff] %v2231
          %2248 = vst [vmem:[#allocation2 + $0x10] sm:$0xff] %v2232
          %2249 = vst [vmem:[#allocation2 + $0x18] sm:$0xff] %v2233
          %2250 = vst [vmem:[#allocation2 + $0x20] sm:$0xff] %v2234
          %2251 = vst [vmem:[#allocation2 + $0x28] sm:$0xff] %v2235
          %2252 = vst [vmem:[#allocation2 + $0x30] sm:$0xff] %v2236
          %2253 = vst [vmem:[#allocation2 + $0x38] sm:$0xff] %v2237
          %2254 = vst [vmem:[#allocation2 + $0x40] sm:$0xff] %v2238
          %2255 = vst [vmem:[#allocation2 + $0x48] sm:$0xff] %v2239
          %2256 = vst [vmem:[#allocation2 + $0x50] sm:$0xff] %v2240
          %2257 = vst [vmem:[#allocation2 + $0x58] sm:$0xff] %v2241
          %2258 = vst [vmem:[#allocation2 + $0x60] sm:$0xff] %v2242
          %2259 = vst [vmem:[#allocation2 + $0x68] sm:$0xff] %v2243
          %2260 = vst [vmem:[#allocation2 + $0x70] sm:$0xff] %v2244
          %2261 = vst [vmem:[#allocation2 + $0x78] sm:$0xff] %v2245
          %2262 = vmatprep.subr.bf16.mxu0 0
          %2263 = vmatpush1.bf16.msra.mxu0 %v1389
          %2264 = vmatprep.subr.bf16.mxu0 0
          %2265 = vmatpush1.bf16.msra.mxu0 %v1390
          %2266 = vmatprep.subr.bf16.mxu0 0
          %2267 = vmatpush1.bf16.msra.mxu0 %v1391
          %2268 = vmatprep.subr.bf16.mxu0 0
          %2269 = vmatpush1.bf16.msra.mxu0 %v1392
          %2270 = vmatprep.subr.bf16.mxu0 0
          %2271 = vmatpush1.bf16.msra.mxu0 %v1393
          %2272 = vmatprep.subr.bf16.mxu0 0
          %2273 = vmatpush1.bf16.msra.mxu0 %v1394
          %2274 = vmatprep.subr.bf16.mxu0 0
          %2275 = vmatpush1.bf16.msra.mxu0 %v1395
          %2276 = vmatprep.subr.bf16.mxu0 0
          %2277 = vmatpush1.bf16.msra.mxu0 %v1396
          %2278 = vmatprep.subr.bf16.mxu0 0
          %2279 = vmatpush1.bf16.msra.mxu0 0
          %2280 = vmatprep.subr.bf16.mxu0 0
          %2281 = vmatpush1.bf16.msra.mxu0 0
          %2282 = vmatprep.subr.bf16.mxu0 0
          %2283 = vmatpush1.bf16.msra.mxu0 0
          %2284 = vmatprep.subr.bf16.mxu0 0
          %2285 = vmatpush1.bf16.msra.mxu0 0
          %2286 = vmatprep.subr.bf16.mxu0 0
          %2287 = vmatpush1.bf16.msra.mxu0 0
          %2288 = vmatprep.subr.bf16.mxu0 0
          %2289 = vmatpush1.bf16.msra.mxu0 0
          %2290 = vmatprep.subr.bf16.mxu0 0
          %2291 = vmatpush1.bf16.msra.mxu0 0
          %2292 = vmatprep.subr.bf16.mxu0 0
          %2293 = vmatpush1.bf16.msra.mxu0 0
          %2294 = vmatprep.mubr.bf16.mxu0 0
          %2295 = vmatmul.mubr.bf16.gmra.mrb[0].mxu0 %v1217
          %v2296 = vpop.f32.mrb[0].mxu0
          %v2297 = vadd.f32 %v1210, %v2296
          %v2298 = vpop.f32.mrb[0].mxu0
          %v2299 = vpop.f32.mrb[0].mxu0
          %v2300 = vadd.f32 %v1211, %v2299
          %v2301 = vpop.f32.mrb[0].mxu0
          %2302 = vdwg.mxu0
          %v2303 = vpack.c.bf16 %v2300, %v2297
          %v2304 = vld [vmem:[%s981] sm:$0xf]
          %v2305 = vld [vmem:[%s981 + $0x4] sm:$0xf]
          %v2306 = vld [vmem:[%s981 + $0x8] sm:$0xf]
          %v2307 = vld [vmem:[%s981 + $0xc] sm:$0xf]
          %v2308 = vld [vmem:[%s981 + $0x10] sm:$0xf]
          %v2309 = vld [vmem:[%s981 + $0x14] sm:$0xf]
          %v2310 = vld [vmem:[%s981 + $0x18] sm:$0xf]
          %v2311 = vld [vmem:[%s981 + $0x1c] sm:$0xf]
          %v2312 = vld [vmem:[%s981 + $0x20] sm:$0xf]
          %v2313 = vld [vmem:[%s981 + $0x24] sm:$0xf]
          %v2314 = vld [vmem:[%s981 + $0x28] sm:$0xf]
          %v2315 = vld [vmem:[%s981 + $0x2c] sm:$0xf]
          %v2316 = vld [vmem:[%s981 + $0x30] sm:$0xf]
          %v2317 = vld [vmem:[%s981 + $0x34] sm:$0xf]
          %v2318 = vld [vmem:[%s981 + $0x38] sm:$0xf]
          %v2319 = vld [vmem:[%s981 + $0x3c] sm:$0xf]
          %v2320 = vld [vmem:[%s1116] sm:$0x1]
          %v2322 = vlaneseq
          %v2323 = vshrl.u32 %v2322, 7
          %v2324 = vsub.s32 0, %v2323
          %v2325 = vrot.slane %v2320, %v2324
          %v2343 = vunpack.c.l.b16 %v2304
          %v2344 = vunpack.c.l.b16 %v2305
          %v2345 = vunpack.c.l.b16 %v2306
          %v2346 = vunpack.c.l.b16 %v2307
          %v2347 = vunpack.c.l.b16 %v2308
          %v2348 = vunpack.c.l.b16 %v2309
          %v2349 = vunpack.c.l.b16 %v2310
          %v2350 = vunpack.c.l.b16 %v2311
          %v2351 = vunpack.c.l.b16 %v2312
          %v2352 = vunpack.c.l.b16 %v2313
          %v2353 = vunpack.c.l.b16 %v2314
          %v2354 = vunpack.c.l.b16 %v2315
          %v2355 = vunpack.c.l.b16 %v2316
          %v2356 = vunpack.c.l.b16 %v2317
          %v2357 = vunpack.c.l.b16 %v2318
          %v2358 = vunpack.c.l.b16 %v2319
          %v2359 = vpack.c.b16 %v2344, %v2343
          %v2360 = vpack.c.b16 %v2346, %v2345
          %v2361 = vpack.c.b16 %v2348, %v2347
          %v2362 = vpack.c.b16 %v2350, %v2349
          %v2363 = vpack.c.b16 %v2352, %v2351
          %v2364 = vpack.c.b16 %v2354, %v2353
          %v2365 = vpack.c.b16 %v2356, %v2355
          %v2366 = vpack.c.b16 %v2358, %v2357
          %2375 = vmatprep.subr.bf16.mxu0 0
          %2376 = vmatpush1.bf16.msra.mxu0 %v2359
          %2377 = vmatprep.subr.bf16.mxu0 0
          %2378 = vmatpush1.bf16.msra.mxu0 %v2360
          %2379 = vmatprep.subr.bf16.mxu0 0
          %2380 = vmatpush1.bf16.msra.mxu0 %v2361
          %2381 = vmatprep.subr.bf16.mxu0 0
          %2382 = vmatpush1.bf16.msra.mxu0 %v2362
          %2383 = vmatprep.subr.bf16.mxu0 0
          %2384 = vmatpush1.bf16.msra.mxu0 %v2363
          %2385 = vmatprep.subr.bf16.mxu0 0
          %2386 = vmatpush1.bf16.msra.mxu0 %v2364
          %2387 = vmatprep.subr.bf16.mxu0 0
          %2388 = vmatpush1.bf16.msra.mxu0 %v2365
          %2389 = vmatprep.subr.bf16.mxu0 0
          %2390 = vmatpush1.bf16.msra.mxu0 %v2366
          %2391 = vmatprep.subr.bf16.mxu0 0
          %2392 = vmatpush1.bf16.msra.mxu0 0
          %2393 = vmatprep.subr.bf16.mxu0 0
          %2394 = vmatpush1.bf16.msra.mxu0 0
          %2395 = vmatprep.subr.bf16.mxu0 0
          %2396 = vmatpush1.bf16.msra.mxu0 0
          %2397 = vmatprep.subr.bf16.mxu0 0
          %2398 = vmatpush1.bf16.msra.mxu0 0
          %2399 = vmatprep.subr.bf16.mxu0 0
          %2400 = vmatpush1.bf16.msra.mxu0 0
          %2401 = vmatprep.subr.bf16.mxu0 0
          %2402 = vmatpush1.bf16.msra.mxu0 0
          %2403 = vmatprep.subr.bf16.mxu0 0
          %2404 = vmatpush1.bf16.msra.mxu0 0
          %2405 = vmatprep.subr.bf16.mxu0 0
          %2406 = vmatpush1.bf16.msra.mxu0 0
          %2407 = vmatprep.mubr.bf16.mxu0 0
          %2408 = vmatmul.mubr.bf16.gmra.mrb[0].mxu0 %v2303
          %v2409 = vpop.f32.mrb[0].mxu0
          %v2410 = vadd.f32 %v2325, %v2409
          %v2411 = vpop.f32.mrb[0].mxu0
          %v2412 = vpop.f32.mrb[0].mxu0
          %v2413 = vadd.f32 %v2325, %v2412
          %v2414 = vpop.f32.mrb[0].mxu0
          %2415 = vdwg.mxu0
          %2417 = vset.pattern.permute.xlu0 0
          %2418 = vperm.xlu0 %2417, %v1149
          %v2419 = vpop.permute.xlu0 %2418
          %2422 = vset.pattern.permute.xlu0 0
          %2423 = vperm.xlu0 %2422, %v1150
          %v2424 = vpop.permute.xlu0 %2423
          %v2426 = vmul.f32 %v2410, %v2419
          %v2427 = vmul.f32 %v2413, %v2424
          %v2428 = vadd.f32 %v2426, %v2427
          %v2429 = vrot.slane %v2428, 4
          %v2430 = vadd.f32 %v2428, %v2429
          %v2431 = vrot.slane %v2430, 2
          %v2432 = vadd.f32 %v2430, %v2431
          %v2433 = vrot.slane %v2432, 1
          %v2434 = vadd.f32 %v2432, %v2433
          %v2435 = vmul.f32 %v2434, 0.5
          %v2436 = vsub.f32 %v2410, %v2435
          %v2437 = vsub.f32 %v2413, %v2435
          %v2438 = vmul.f32 %v2436, %v2419
          %v2439 = vmul.f32 %v2437, %v2424
          %v2440 = vmul.f32 %v2438, %v2438
          %v2441 = vmul.f32 %v2439, %v2439
          %v2442 = vadd.f32 %v2440, %v2441
          %v2443 = vrot.slane %v2442, 4
          %v2444 = vadd.f32 %v2442, %v2443
          %v2445 = vrot.slane %v2444, 2
          %v2446 = vadd.f32 %v2444, %v2445
          %v2447 = vrot.slane %v2446, 1
          %v2448 = vadd.f32 %v2446, %v2447
          %v2449 = vmul.f32 %v2448, 0.5
          %v2450 = vld [vmem:[%s1119] sm:$0x1]
          %v2451 = vadd.f32 %v2449, 1e-05
          %v2452 = vrsqrt.pop %v2451
          %v2453 = vmul.f32 %v2438, %v2452
          %v2454 = vmul.f32 %v2439, %v2452
          %v2456 = vlaneseq
          %v2457 = vshrl.u32 %v2456, 7
          %v2458 = vsub.s32 0, %v2457
          %v2459 = vrot.slane %v2450, %v2458
          %v2461 = vmul.f32 %v2459, %v2453
          %v2462 = vmul.f32 %v2459, %v2454
          %v2463 = vld [vmem:[%s1122] sm:$0x1]
          %v2465 = vlaneseq
          %v2466 = vshrl.u32 %v2465, 7
          %v2467 = vsub.s32 0, %v2466
          %v2468 = vrot.slane %v2463, %v2467
          %v2470 = vadd.f32 %v2461, %v2468
          %v2471 = vadd.f32 %v2462, %v2468
          %v2472 = vmax.f32 %v2470, 0.0
          %v2473 = vmax.f32 %v2471, 0.0
          %v2474 = vpack.c.bf16 %v2473, %v2472
          %v2475 = vld [vmem:[%s990] sm:$0xf]
          %v2476 = vld [vmem:[%s990 + $0x4] sm:$0xf]
          %v2477 = vld [vmem:[%s990 + $0x8] sm:$0xf]
          %v2478 = vld [vmem:[%s990 + $0xc] sm:$0xf]
          %v2479 = vld [vmem:[%s990 + $0x10] sm:$0xf]
          %v2480 = vld [vmem:[%s990 + $0x14] sm:$0xf]
          %v2481 = vld [vmem:[%s990 + $0x18] sm:$0xf]
          %v2482 = vld [vmem:[%s990 + $0x1c] sm:$0xf]
          %v2483 = vld [vmem:[%s990 + $0x20] sm:$0xf]
          %v2484 = vld [vmem:[%s990 + $0x24] sm:$0xf]
          %v2485 = vld [vmem:[%s990 + $0x28] sm:$0xf]
          %v2486 = vld [vmem:[%s990 + $0x2c] sm:$0xf]
          %v2487 = vld [vmem:[%s990 + $0x30] sm:$0xf]
          %v2488 = vld [vmem:[%s990 + $0x34] sm:$0xf]
          %v2489 = vld [vmem:[%s990 + $0x38] sm:$0xf]
          %v2490 = vld [vmem:[%s990 + $0x3c] sm:$0xf]
          %v2491 = vld [vmem:[%s1125] sm:$0x1]
          %v2493 = vlaneseq
          %v2494 = vshrl.u32 %v2493, 7
          %v2495 = vsub.s32 0, %v2494
          %v2496 = vrot.slane %v2491, %v2495
          %v2514 = vunpack.c.l.b16 %v2475
          %v2515 = vunpack.c.l.b16 %v2476
          %v2516 = vunpack.c.l.b16 %v2477
          %v2517 = vunpack.c.l.b16 %v2478
          %v2518 = vunpack.c.l.b16 %v2479
          %v2519 = vunpack.c.l.b16 %v2480
          %v2520 = vunpack.c.l.b16 %v2481
          %v2521 = vunpack.c.l.b16 %v2482
          %v2522 = vunpack.c.l.b16 %v2483
          %v2523 = vunpack.c.l.b16 %v2484
          %v2524 = vunpack.c.l.b16 %v2485
          %v2525 = vunpack.c.l.b16 %v2486
          %v2526 = vunpack.c.l.b16 %v2487
          %v2527 = vunpack.c.l.b16 %v2488
          %v2528 = vunpack.c.l.b16 %v2489
          %v2529 = vunpack.c.l.b16 %v2490
          %v2530 = vpack.c.b16 %v2515, %v2514
          %v2531 = vpack.c.b16 %v2517, %v2516
          %v2532 = vpack.c.b16 %v2519, %v2518
          %v2533 = vpack.c.b16 %v2521, %v2520
          %v2534 = vpack.c.b16 %v2523, %v2522
          %v2535 = vpack.c.b16 %v2525, %v2524
          %v2536 = vpack.c.b16 %v2527, %v2526
          %v2537 = vpack.c.b16 %v2529, %v2528
          %2546 = vmatprep.subr.bf16.mxu0 0
          %2547 = vmatpush1.bf16.msra.mxu0 %v2530
          %2548 = vmatprep.subr.bf16.mxu0 0
          %2549 = vmatpush1.bf16.msra.mxu0 %v2531
          %2550 = vmatprep.subr.bf16.mxu0 0
          %2551 = vmatpush1.bf16.msra.mxu0 %v2532
          %2552 = vmatprep.subr.bf16.mxu0 0
          %2553 = vmatpush1.bf16.msra.mxu0 %v2533
          %2554 = vmatprep.subr.bf16.mxu0 0
          %2555 = vmatpush1.bf16.msra.mxu0 %v2534
          %2556 = vmatprep.subr.bf16.mxu0 0
          %2557 = vmatpush1.bf16.msra.mxu0 %v2535
          %2558 = vmatprep.subr.bf16.mxu0 0
          %2559 = vmatpush1.bf16.msra.mxu0 %v2536
          %2560 = vmatprep.subr.bf16.mxu0 0
          %2561 = vmatpush1.bf16.msra.mxu0 %v2537
          %2562 = vmatprep.subr.bf16.mxu0 0
          %2563 = vmatpush1.bf16.msra.mxu0 0
          %2564 = vmatprep.subr.bf16.mxu0 0
          %2565 = vmatpush1.bf16.msra.mxu0 0
          %2566 = vmatprep.subr.bf16.mxu0 0
          %2567 = vmatpush1.bf16.msra.mxu0 0
          %2568 = vmatprep.subr.bf16.mxu0 0
          %2569 = vmatpush1.bf16.msra.mxu0 0
          %2570 = vmatprep.subr.bf16.mxu0 0
          %2571 = vmatpush1.bf16.msra.mxu0 0
          %2572 = vmatprep.subr.bf16.mxu0 0
          %2573 = vmatpush1.bf16.msra.mxu0 0
          %2574 = vmatprep.subr.bf16.mxu0 0
          %2575 = vmatpush1.bf16.msra.mxu0 0
          %2576 = vmatprep.subr.bf16.mxu0 0
          %2577 = vmatpush1.bf16.msra.mxu0 0
          %2578 = vmatprep.mubr.bf16.mxu0 0
          %2579 = vmatmul.mubr.bf16.gmra.mrb[0].mxu0 %v2474
          %v2580 = vpop.f32.mrb[0].mxu0
          %v2581 = vadd.f32 %v2496, %v2580
          %v2582 = vpop.f32.mrb[0].mxu0
          %v2583 = vpop.f32.mrb[0].mxu0
          %v2584 = vadd.f32 %v2496, %v2583
          %v2585 = vpop.f32.mrb[0].mxu0
          %2586 = vdwg.mxu0
          %v2587 = vmul.f32 %v2581, %v2419
          %v2588 = vmul.f32 %v2584, %v2424
          %v2589 = vadd.f32 %v2587, %v2588
          %v2590 = vrot.slane %v2589, 4
          %v2591 = vadd.f32 %v2589, %v2590
          %v2592 = vrot.slane %v2591, 2
          %v2593 = vadd.f32 %v2591, %v2592
          %v2594 = vrot.slane %v2593, 1
          %v2595 = vadd.f32 %v2593, %v2594
          %v2596 = vmul.f32 %v2595, 0.5
          %v2597 = vsub.f32 %v2581, %v2596
          %v2598 = vsub.f32 %v2584, %v2596
          %v2599 = vmul.f32 %v2597, %v2419
          %v2600 = vmul.f32 %v2598, %v2424
          %v2601 = vmul.f32 %v2599, %v2599
          %v2602 = vmul.f32 %v2600, %v2600
          %v2603 = vadd.f32 %v2601, %v2602
          %v2604 = vrot.slane %v2603, 4
          %v2605 = vadd.f32 %v2603, %v2604
          %v2606 = vrot.slane %v2605, 2
          %v2607 = vadd.f32 %v2605, %v2606
          %v2608 = vrot.slane %v2607, 1
          %v2609 = vadd.f32 %v2607, %v2608
          %v2610 = vmul.f32 %v2609, 0.5
          %v2611 = vld [vmem:[%s1128] sm:$0x1]
          %v2612 = vadd.f32 %v2610, 1e-05
          %v2613 = vrsqrt.pop %v2612
          %v2614 = vmul.f32 %v2599, %v2613
          %v2615 = vmul.f32 %v2600, %v2613
          %v2617 = vlaneseq
          %v2618 = vshrl.u32 %v2617, 7
          %v2619 = vsub.s32 0, %v2618
          %v2620 = vrot.slane %v2611, %v2619
          %v2622 = vmul.f32 %v2620, %v2614
          %v2623 = vmul.f32 %v2620, %v2615
          %v2624 = vld [vmem:[%s1131] sm:$0x1]
          %v2626 = vlaneseq
          %v2627 = vshrl.u32 %v2626, 7
          %v2628 = vsub.s32 0, %v2627
          %v2629 = vrot.slane %v2624, %v2628
          %v2631 = vadd.f32 %v2622, %v2629
          %v2632 = vadd.f32 %v2623, %v2629
          %v2633 = vmax.f32 %v2631, 0.0
          %v2634 = vmax.f32 %v2632, 0.0
          %v2635 = vmul.f32 %v2633, %v2419
          %v2636 = vmul.f32 %v2634, %v2424
          %2637 = vst [vmem:[#allocation3] sm:$0xff] %v2635
          %2638 = vst [vmem:[#allocation3 + $0x8] sm:$0xff] %v2636
        $region168: #{tpu_custom_call.1} parent=119 // pred_fallthru
          _
        %p2639 = scmp.eq.s32.totalorder %s49, 1
        // Predicated region
        $region169: #{tpu_custom_call.1} parent=119 // pred_check
          %p2640 = pneg %p2639
        $region170: #{tpu_custom_call.1} parent=119 // pred_check_branch
          %2642 = sbr.rel (%p2640) target = $region172
        $region171: #{tpu_custom_call.1} parent=119 // pred_region
          %v2643 = vmul.f32 %v2194, %v1961
          %v2644 = vmul.f32 %v2195, %v1966
          %v2645 = vmul.f32 %v2196, %v1971
          %v2646 = vmul.f32 %v2197, %v1976
          %v2647 = vmul.f32 %v2198, %v1981
          %v2648 = vmul.f32 %v2199, %v1986
          %v2649 = vmul.f32 %v2200, %v1991
          %v2650 = vmul.f32 %v2201, %v1996
          %v2651 = vmul.f32 %v2202, %v2001
          %v2652 = vmul.f32 %v2203, %v2006
          %v2653 = vmul.f32 %v2204, %v2011
          %v2654 = vmul.f32 %v2205, %v2016
          %v2655 = vmul.f32 %v2206, %v2021
          %v2656 = vmul.f32 %v2207, %v2026
          %v2657 = vmul.f32 %v2208, %v2031
          %v2658 = vmul.f32 %v2209, %v2036
          %v2659 = vpack.c.bf16 %v2644, %v2643
          %v2660 = vpack.c.bf16 %v2646, %v2645
          %v2661 = vpack.c.bf16 %v2648, %v2647
          %v2662 = vpack.c.bf16 %v2650, %v2649
          %v2663 = vpack.c.bf16 %v2652, %v2651
          %v2664 = vpack.c.bf16 %v2654, %v2653
          %v2665 = vpack.c.bf16 %v2656, %v2655
          %v2666 = vpack.c.bf16 %v2658, %v2657
          %2667 = vmatprep.subr.bf16.mxu0 0
          %2668 = vmatpush1.bf16.msra.mxu0 %v2659
          %2669 = vmatprep.subr.bf16.mxu0 0
          %2670 = vmatpush1.bf16.msra.mxu0 %v2660
          %2671 = vmatprep.subr.bf16.mxu0 0
          %2672 = vmatpush1.bf16.msra.mxu0 %v2661
          %2673 = vmatprep.subr.bf16.mxu0 0
          %2674 = vmatpush1.bf16.msra.mxu0 %v2662
          %2675 = vmatprep.subr.bf16.mxu0 0
          %2676 = vmatpush1.bf16.msra.mxu0 %v2663
          %2677 = vmatprep.subr.bf16.mxu0 0
          %2678 = vmatpush1.bf16.msra.mxu0 %v2664
          %2679 = vmatprep.subr.bf16.mxu0 0
          %2680 = vmatpush1.bf16.msra.mxu0 %v2665
          %2681 = vmatprep.subr.bf16.mxu0 0
          %2682 = vmatpush1.bf16.msra.mxu0 %v2666
          %2683 = vmatprep.subr.bf16.mxu0 0
          %2684 = vmatpush1.bf16.msra.mxu0 0
          %2685 = vmatprep.subr.bf16.mxu0 0
          %2686 = vmatpush1.bf16.msra.mxu0 0
          %2687 = vmatprep.subr.bf16.mxu0 0
          %2688 = vmatpush1.bf16.msra.mxu0 0
          %2689 = vmatprep.subr.bf16.mxu0 0
          %2690 = vmatpush1.bf16.msra.mxu0 0
          %2691 = vmatprep.subr.bf16.mxu0 0
          %2692 = vmatpush1.bf16.msra.mxu0 0
          %2693 = vmatprep.subr.bf16.mxu0 0
          %2694 = vmatpush1.bf16.msra.mxu0 0
          %2695 = vmatprep.subr.bf16.mxu0 0
          %2696 = vmatpush1.bf16.msra.mxu0 0
          %2697 = vmatprep.subr.bf16.mxu0 0
          %2698 = vmatpush1.bf16.msra.mxu0 0
          %2699 = vmatprep.mubr.bf16.mxu0 0
          %2700 = vmatmul.mubr.bf16.gmra.mrb[0].mxu0 %v1217
          %v2701 = vpop.f32.mrb[0].mxu0
          %v2702 = vadd.f32 0.0, %v2701
          %v2703 = vpop.f32.mrb[0].mxu0
          %v2704 = vpop.f32.mrb[0].mxu0
          %v2705 = vadd.f32 0.0, %v2704
          %v2706 = vpop.f32.mrb[0].mxu0
          %2707 = vdwg.mxu0
          %v2708 = vld [vmem:[%s3] sm:$0xff]
          %v2709 = vld [vmem:[%s3 + $0x8] sm:$0xff]
          %2711 = vset.pattern.permute.xlu0 0
          %2712 = vperm.xlu0 %2711, %v2708
          %v2713 = vpop.permute.xlu0 %2712
          %2716 = vset.pattern.permute.xlu0 0
          %2717 = vperm.xlu0 %2716, %v2709
          %v2718 = vpop.permute.xlu0 %2717
          %v2720 = vmul.f32 %v2702, %v2713
          %v2721 = vmul.f32 %v2705, %v2718
          %v2722 = vld [vmem:[#allocation10] sm:$0x1]
          %v2724 = vlaneseq
          %v2725 = vshrl.u32 %v2724, 7
          %v2726 = vsub.s32 0, %v2725
          %v2727 = vrot.slane %v2722, %v2726
          %v2729 = vadd.f32 %v2720, %v2727
          %v2730 = vadd.f32 %v2721, %v2727
          %v2731 = vpack.c.bf16 %v2730, %v2729
          %v2732 = vld [vmem:[%s8] sm:$0xf]
          %v2733 = vld [vmem:[%s8 + $0x4] sm:$0xf]
          %v2734 = vld [vmem:[%s8 + $0x8] sm:$0xf]
          %v2735 = vld [vmem:[%s8 + $0xc] sm:$0xf]
          %v2736 = vld [vmem:[%s8 + $0x10] sm:$0xf]
          %v2737 = vld [vmem:[%s8 + $0x14] sm:$0xf]
          %v2738 = vld [vmem:[%s8 + $0x18] sm:$0xf]
          %v2739 = vld [vmem:[%s8 + $0x1c] sm:$0xf]
          %v2740 = vld [vmem:[%s8 + $0x20] sm:$0xf]
          %v2741 = vld [vmem:[%s8 + $0x24] sm:$0xf]
          %v2742 = vld [vmem:[%s8 + $0x28] sm:$0xf]
          %v2743 = vld [vmem:[%s8 + $0x2c] sm:$0xf]
          %v2744 = vld [vmem:[%s8 + $0x30] sm:$0xf]
          %v2745 = vld [vmem:[%s8 + $0x34] sm:$0xf]
          %v2746 = vld [vmem:[%s8 + $0x38] sm:$0xf]
          %v2747 = vld [vmem:[%s8 + $0x3c] sm:$0xf]
          %v2748 = vld [vmem:[#allocation12] sm:$0x1]
          %v2750 = vlaneseq
          %v2751 = vshrl.u32 %v2750, 7
          %v2752 = vsub.s32 0, %v2751
          %v2753 = vrot.slane %v2748, %v2752
          %v2771 = vunpack.c.l.b16 %v2732
          %v2772 = vunpack.c.l.b16 %v2733
          %v2773 = vunpack.c.l.b16 %v2734
          %v2774 = vunpack.c.l.b16 %v2735
          %v2775 = vunpack.c.l.b16 %v2736
          %v2776 = vunpack.c.l.b16 %v2737
          %v2777 = vunpack.c.l.b16 %v2738
          %v2778 = vunpack.c.l.b16 %v2739
          %v2779 = vunpack.c.l.b16 %v2740
          %v2780 = vunpack.c.l.b16 %v2741
          %v2781 = vunpack.c.l.b16 %v2742
          %v2782 = vunpack.c.l.b16 %v2743
          %v2783 = vunpack.c.l.b16 %v2744
          %v2784 = vunpack.c.l.b16 %v2745
          %v2785 = vunpack.c.l.b16 %v2746
          %v2786 = vunpack.c.l.b16 %v2747
          %v2787 = vpack.c.b16 %v2772, %v2771
          %v2788 = vpack.c.b16 %v2774, %v2773
          %v2789 = vpack.c.b16 %v2776, %v2775
          %v2790 = vpack.c.b16 %v2778, %v2777
          %v2791 = vpack.c.b16 %v2780, %v2779
          %v2792 = vpack.c.b16 %v2782, %v2781
          %v2793 = vpack.c.b16 %v2784, %v2783
          %v2794 = vpack.c.b16 %v2786, %v2785
          %2803 = vmatprep.subr.bf16.mxu0 0
          %2804 = vmatpush1.bf16.msra.mxu0 %v2787
          %2805 = vmatprep.subr.bf16.mxu0 0
          %2806 = vmatpush1.bf16.msra.mxu0 %v2788
          %2807 = vmatprep.subr.bf16.mxu0 0
          %2808 = vmatpush1.bf16.msra.mxu0 %v2789
          %2809 = vmatprep.subr.bf16.mxu0 0
          %2810 = vmatpush1.bf16.msra.mxu0 %v2790
          %2811 = vmatprep.subr.bf16.mxu0 0
          %2812 = vmatpush1.bf16.msra.mxu0 %v2791
          %2813 = vmatprep.subr.bf16.mxu0 0
          %2814 = vmatpush1.bf16.msra.mxu0 %v2792
          %2815 = vmatprep.subr.bf16.mxu0 0
          %2816 = vmatpush1.bf16.msra.mxu0 %v2793
          %2817 = vmatprep.subr.bf16.mxu0 0
          %2818 = vmatpush1.bf16.msra.mxu0 %v2794
          %2819 = vmatprep.subr.bf16.mxu0 0
          %2820 = vmatpush1.bf16.msra.mxu0 0
          %2821 = vmatprep.subr.bf16.mxu0 0
          %2822 = vmatpush1.bf16.msra.mxu0 0
          %2823 = vmatprep.subr.bf16.mxu0 0
          %2824 = vmatpush1.bf16.msra.mxu0 0
          %2825 = vmatprep.subr.bf16.mxu0 0
          %2826 = vmatpush1.bf16.msra.mxu0 0
          %2827 = vmatprep.subr.bf16.mxu0 0
          %2828 = vmatpush1.bf16.msra.mxu0 0
          %2829 = vmatprep.subr.bf16.mxu0 0
          %2830 = vmatpush1.bf16.msra.mxu0 0
          %2831 = vmatprep.subr.bf16.mxu0 0
          %2832 = vmatpush1.bf16.msra.mxu0 0
          %2833 = vmatprep.subr.bf16.mxu0 0
          %2834 = vmatpush1.bf16.msra.mxu0 0
          %2835 = vmatprep.mubr.bf16.mxu0 0
          %2836 = vmatmul.mubr.bf16.gmra.mrb[0].mxu0 %v2731
          %v2837 = vpop.f32.mrb[0].mxu0
          %v2838 = vadd.f32 %v2753, %v2837
          %v2839 = vpop.f32.mrb[0].mxu0
          %v2840 = vpop.f32.mrb[0].mxu0
          %v2841 = vadd.f32 %v2753, %v2840
          %v2842 = vpop.f32.mrb[0].mxu0
          %2843 = vdwg.mxu0
          %2844 = vst [vmem:[#allocation21] sm:$0xff] %v2838
          %2845 = vst [vmem:[#allocation21 + $0x8] sm:$0xff] %v2841
        $region172: #{tpu_custom_call.1} parent=119 // pred_fallthru
          _
        // Predicated region
        $region173: #{tpu_custom_call.1} parent=119 // pred_check
          %p2846 = pneg %p662
        $region174: #{tpu_custom_call.1} parent=119 // pred_check_branch
          %2848 = sbr.rel (%p2846) target = $region176
        $region175: #{tpu_custom_call.1} parent=119 // pred_region
          %s2850 = ssub.s32 256, 256
          %2851 = vsyncadd [#allocation6], %s2850
          %s2852 = sshll.u32 [#allocation21], 4
          %s2853 = int_to_ptr.vmem [resolvable:$true] %s2852
          %2858 = dma.vmem_to_hbm [thread:$0]  %s2853, 256, %s25, [#allocation6], 128, 128, 8
        $region176: #{tpu_custom_call.1} parent=119 // pred_fallthru
          _
        // Predicated region
        $region177: #{tpu_custom_call.1} parent=119 // pred_check
          %p2859 = pneg %p662
        $region178: #{tpu_custom_call.1} parent=119 // pred_check_branch
          %2861 = sbr.rel (%p2859) target = $region180
        $region179: #{tpu_custom_call.1} parent=119 // pred_region
          %2862 = dma.done [#allocation6], 256
        $region180: #{tpu_custom_call.1} parent=119 // pred_fallthru
          _
      $region120: #{tpu_custom_call.1} parent=5 // pred_fallthru
        _
      %p2863 = scmp.le.s32.totalorder 2, %s44
      // Predicated region
      $region181: #{tpu_custom_call.1} parent=5 // pred_check
        %p2864 = pneg %p2863
      $region182: #{tpu_custom_call.1} parent=5 // pred_check_branch
        %2866 = sbr.rel (%p2864) target = $region184
      $region183: #{tpu_custom_call.1} parent=5 // pred_region
        %s2867 = ssub.s32 %s44, 2
      $region184: #{tpu_custom_call.1} parent=5 // pred_fallthru
        _
    $region6: #{tpu_custom_call.1} parent=1 // loop_footer
      %s48 = sadd.s32 1, %s44
    $region7: #{tpu_custom_call.1} parent=1 // loop_footer_branch
      %43 = sbr.rel target = $region3
    $region8: #{tpu_custom_call.1} parent=1 // loop_exit
      _
    %2868 = vsyncpa [#allocation5], 1
    %s2869 = scalar_lea.sflag [#allocation5], 1
    %2870 = vsyncpa %s2869, 1
    %2871 = vsyncpa [#allocation8], 1
    %2872 = vsyncpa [#allocation11], 1
    %2873 = vsyncpa [#allocation14], 1
    %s2874 = scalar_lea.sflag [#allocation14], 1
    %2875 = vsyncpa %s2874, 1
    %2876 = vsyncpa [#allocation17], 1
    %s2877 = scalar_lea.sflag [#allocation17], 1
    %2878 = vsyncpa %s2877, 1
    %2879 = vsyncpa [#allocation20], 1
    %s2880 = scalar_lea.sflag [#allocation20], 1
    %2881 = vsyncpa %s2880, 1
    %2882 = vsyncpa [#allocation6], 1
    %s2883 = scalar_lea.sflag [#allocation6], 1
    %2884 = vsyncpa %s2883, 1

// kernel: tpu_custom_call.1
$region0: #{tpu_custom_call.1}
  #allocation0 [shape = 'u32[]', space=smem, size = 0x4, offset = 0x4, fixed_abs, tag = 'smem constant byte address 0x4 - core index']
  #allocation1 [shape = 'u32[144,128]{1,0:T(1,128)}', space=vmem, size = 0x12000, scoped, tag = 'internal scratch']
  #allocation2 [shape = 'f32[128,128]{1,0:T(8,128)}', space=vmem, size = 0x10000, scoped, tag = 'scratch operand']
  #allocation3 [shape = 'f32[16,128]{1,0:T(8,128)}', space=vmem, size = 0x2000, scoped, tag = 'scratch operand']
  %s0 = inlined_call_operand.hbm [shape: bf16[128,128], index: 0, kind: input, shape index: {}]
  %s1 = inlined_call_operand.vmem [shape: f32[128,128], index: 1, kind: input, shape index: {}]
  %s2 = inlined_call_operand.hbm [shape: bf16[16,128], index: 2, kind: input, shape index: {}]
  %s3 = inlined_call_operand.vmem [shape: f32[16,1], index: 3, kind: input, shape index: {}]
  %s4 = inlined_call_operand.vmem [shape: f32[128,1], index: 4, kind: input, shape index: {}]
  %s5 = inlined_call_operand.vmem [shape: f32[16,1], index: 5, kind: input, shape index: {}]
  %s6 = inlined_call_operand.hbm [shape: f32[1,128], index: 6, kind: input, shape index: {}]
  %s7 = inlined_call_operand.hbm [shape: f32[1,128], index: 7, kind: input, shape index: {}]
  %s8 = inlined_call_operand.vmem [shape: bf16[128,128], index: 8, kind: input, shape index: {}]
  %s9 = inlined_call_operand.hbm [shape: f32[1,128], index: 9, kind: input, shape index: {}]
  %s10 = inlined_call_operand.hbm [shape: bf16[2,128,128], index: 10, kind: input, shape index: {}]
  %s11 = inlined_call_operand.hbm [shape: bf16[2,128,128], index: 11, kind: input, shape index: {}]
  %s12 = inlined_call_operand.vmem [shape: f32[2,1,128], index: 12, kind: input, shape index: {}]
  %s13 = inlined_call_operand.hbm [shape: bf16[2,128,128], index: 13, kind: input, shape index: {}]
  %s14 = inlined_call_operand.vmem [shape: f32[2,1,128], index: 14, kind: input, shape index: {}]
  %s15 = inlined_call_operand.vmem [shape: f32[2,1,128], index: 15, kind: input, shape index: {}]
  %s16 = inlined_call_operand.vmem [shape: f32[2,1,128], index: 16, kind: input, shape index: {}]
  %s17 = inlined_call_operand.hbm [shape: bf16[2,128,128], index: 17, kind: input, shape index: {}]
  %s18 = inlined_call_operand.vmem [shape: f32[2,1,128], index: 18, kind: input, shape index: {}]
  %s19 = inlined_call_operand.vmem [shape: f32[2,1,128], index: 19, kind: input, shape index: {}]
  %s20 = inlined_call_operand.vmem [shape: f32[2,1,128], index: 20, kind: input, shape index: {}]
  %s21 = inlined_call_operand.hbm [shape: bf16[2,128,128], index: 21, kind: input, shape index: {}]
  %s22 = inlined_call_operand.vmem [shape: f32[2,1,128], index: 22, kind: input, shape index: {}]
  %s23 = inlined_call_operand.vmem [shape: f32[2,1,128], index: 23, kind: input, shape index: {}]
  %s24 = inlined_call_operand.vmem [shape: f32[2,1,128], index: 24, kind: input, shape index: {}]
  %s25 = inlined_call_operand.hbm [shape: f32[16,128], index: 25, kind: output, shape index: {}]
  %s26 = sld [smem:[#allocation0]]
  $region185: #{tpu_custom_call.1} parent=0
    _
  %s28 = ssub.s32 1, %s26
  %s29 = scalar_select 0, %s28, %s26
  $region1: #{tpu_custom_call.1} parent=0
    #allocation4 [shape = 'u8[32768]{0}', space=vmem, size = 0x8000, scoped, tag = 'input window, operand 0, single buffered']
    #allocation5 [shape = 's32[2]{0}', space=sflag, size = 0x8, scoped, tag = 'scoped memory for tpu_custom_call.1']
    #allocation6 [shape = 's32[2]{0}', space=sflag, size = 0x8, scoped, tag = 'scoped memory for tpu_custom_call.1']
    #allocation7 [shape = 'u8[4096]{0}', space=vmem, size = 0x1000, scoped, tag = 'input window, operand 2, single buffered']
    #allocation8 [shape = 's32[1]{0}', space=sflag, size = 0x4, scoped, tag = 'scoped memory for tpu_custom_call.1']
    #allocation9 [shape = 'u8[512]{0}', space=vmem, size = 0x400, scoped, tag = 'input window, operand 6, single buffered']
    #allocation10 [shape = 'u8[512]{0}', space=vmem, size = 0x400, scoped, tag = 'input window, operand 7, single buffered']
    #allocation11 [shape = 's32[1]{0}', space=sflag, size = 0x4, scoped, tag = 'scoped memory for tpu_custom_call.1']
    #allocation12 [shape = 'u8[512]{0}', space=vmem, size = 0x400, scoped, tag = 'input window, operand 9, single buffered']
    #allocation13 [shape = 'u8[65536]{0}', space=vmem, size = 0x10000, scoped, tag = 'input window, operand 10']
    #allocation14 [shape = 's32[2]{0}', space=sflag, size = 0x8, scoped, tag = 'scoped memory for tpu_custom_call.1']
    #allocation15 [shape = 'u8[65536]{0}', space=vmem, size = 0x10000, scoped, tag = 'input window, operand 11']
    #allocation16 [shape = 'u8[65536]{0}', space=vmem, size = 0x10000, scoped, tag = 'input window, operand 13']
    #allocation17 [shape = 's32[2]{0}', space=sflag, size = 0x8, scoped, tag = 'scoped memory for tpu_custom_call.1']
    #allocation18 [shape = 'u8[65536]{0}', space=vmem, size = 0x10000, scoped, tag = 'input window, operand 17']
    #allocation19 [shape = 'u8[65536]{0}', space=vmem, size = 0x10000, scoped, tag = 'input window, operand 21']
    #allocation20 [shape = 's32[2]{0}', space=sflag, size = 0x8, scoped, tag = 'scoped memory for tpu_custom_call.1']
    #allocation21 [shape = 'u8[8192]{0}', space=vmem, size = 0x2000, scoped, tag = 'output window, operand 0, single buffered']
    %30 = vsyncpa [#allocation5], 0
    %31 = vsyncpa [#allocation8], 0
    %32 = vsyncpa [#allocation11], 0
    %33 = vsyncpa [#allocation14], 0
    %s34 = scalar_lea.sflag [#allocation14], 1
    %35 = vsyncpa %s34, 0
    %36 = vsyncpa [#allocation17], 0
    %s37 = scalar_lea.sflag [#allocation17], 1
    %38 = vsyncpa %s37, 0
    %39 = vsyncpa [#allocation20], 0
    %s40 = scalar_lea.sflag [#allocation20], 1
    %41 = vsyncpa %s40, 0
    %42 = vsyncpa [#allocation6], 0
    loop: start=0, step=1, limit=4
    $region2: #{tpu_custom_call.1} parent=1 // loop_pre_header
      _
    $region3: #{tpu_custom_call.1} parent=1 // loop_header
      %s44 = sphi 0, %s48
      %p45 = scmp.ge.s32.totalorder %s44, 4
      %s52 = sphi 0, %s52
      %s54 = sphi 0, %s52
      %s55 = sphi 0, %s54
      %s69 = sphi 0, %s55
      %s73 = sphi 0, %s73
      %s75 = sphi 0, %s73
      %s76 = sphi 0, %s75
      %s90 = sphi 0, %s76
      %s94 = sphi 0, %s94
      %s96 = sphi 0, %s94
      %s97 = sphi 0, %s96
      %s111 = sphi 0, %s97
      %s115 = sphi 0, %s115
      %s117 = sphi 0, %s115
      %s118 = sphi 0, %s117
      %s132 = sphi 0, %s118
      %s136 = sphi 0, %s136
      %s138 = sphi 0, %s136
      %s139 = sphi 0, %s138
      %s153 = sphi 0, %s139
      %s157 = sphi 0, %s157
      %s159 = sphi 0, %s157
      %s160 = sphi 0, %s159
      %s174 = sphi 0, %s160
      %s178 = sphi 0, %s178
      %s180 = sphi 0, %s178
      %s181 = sphi 0, %s180
      %s195 = sphi 0, %s181
      %s199 = sphi 0, %s199
      %s201 = sphi 0, %s199
      %s202 = sphi 0, %s201
      %s216 = sphi 0, %s202
      %s220 = sphi 0, %s220
      %s222 = sphi 0, %s220
      %s223 = sphi 0, %s222
      %s237 = sphi 0, %s223
      %s241 = sphi 0, %s241
      %s243 = sphi 0, %s241
      %s244 = sphi 0, %s243
      %s258 = sphi 0, %s244
      %s264 = sphi 0, %s266
      %s267 = sphi 0, %s264
      %s268 = sphi 0, %s267
      %s284 = sphi 0, %s268
      %s290 = sphi 0, %s292
      %s293 = sphi 0, %s290
      %s294 = sphi 0, %s293
      %s310 = sphi 0, %s294
      %s316 = sphi 0, %s318
      %s319 = sphi 0, %s316
      %s320 = sphi 0, %s319
      %s336 = sphi 0, %s320
      %s342 = sphi 0, %s344
      %s345 = sphi 0, %s342
      %s346 = sphi 0, %s345
      %s362 = sphi 0, %s346
      %s368 = sphi 0, %s370
      %s371 = sphi 0, %s368
      %s372 = sphi 0, %s371
      %s388 = sphi 0, %s372
      %s394 = sphi 0, %s396
      %s397 = sphi 0, %s394
      %s398 = sphi 0, %s397
      %s414 = sphi 0, %s398
      %s420 = sphi 0, %s422
      %s423 = sphi 0, %s420
      %s424 = sphi 0, %s423
      %s440 = sphi 0, %s424
      %s446 = sphi 0, %s448
      %s449 = sphi 0, %s446
      %s450 = sphi 0, %s449
      %s466 = sphi 0, %s450
      %s472 = sphi 0, %s474
      %s475 = sphi 0, %s472
      %s476 = sphi 0, %s475
      %s492 = sphi 0, %s476
      %s498 = sphi 0, %s500
      %s501 = sphi 0, %s498
      %s502 = sphi 0, %s501
      %s518 = sphi 0, %s502
      %s524 = sphi 0, %s526
      %s527 = sphi 0, %s524
      %s528 = sphi 0, %s527
      %s544 = sphi 0, %s528
      %s550 = sphi 0, %s552
      %s553 = sphi 0, %s550
      %s554 = sphi 0, %s553
      %s570 = sphi 0, %s554
      %s576 = sphi 0, %s578
      %s579 = sphi 0, %s576
      %s580 = sphi 0, %s579
      %s596 = sphi 0, %s580
      %s602 = sphi 0, %s604
      %s605 = sphi 0, %s602
      %s606 = sphi 0, %s605
      %s622 = sphi 0, %s606
      %s628 = sphi 0, %s630
      %s631 = sphi 0, %s628
      %s632 = sphi 0, %s631
      %s648 = sphi 0, %s632
      %s652 = sphi 0, %s652
      %s654 = sphi 0, %s652
      %s655 = sphi 0, %s654
      %s669 = sphi 0, %s655
    $region4: #{tpu_custom_call.1} parent=1 // loop_header_branch
      %47 = sbr.rel (%p45) target = $region8
    $region5: #{tpu_custom_call.1} parent=1 // loop_body
      %s49 = ssub.s32 %s44, 1
      %s50 = ssub.s32 %s44, 2
      %s51 = sadd.s32 %s44, 1
      %s53 = sadd.s32 %s52, 1
      %p56 = scmp.eq.s32.totalorder %s44, 1
      %p57 = scmp.ne.s32.totalorder %s52, %s54
      %p58 = scmp.eq.s32.totalorder %s44, 0
      %p59 = por %p57, %p58
      %p60 = scmp.ne.s32.totalorder %s52, %s54
      %p61 = scmp.eq.s32.totalorder %s49, 1
      %p62 = por %p60, %p61
      %p63 = scmp.ne.s32.totalorder %s54, %s55
      %p64 = scmp.eq.s32.totalorder %s49, 0
      %p65 = por %p63, %p64
      %p66 = scmp.ne.s32.totalorder %s54, %s55
      %p67 = scmp.eq.s32.totalorder %s50, 1
      %p68 = por %p66, %p67
      %p70 = scmp.ne.s32.totalorder %s55, %s69
      %p71 = scmp.eq.s32.totalorder %s50, 0
      %p72 = por %p70, %p71
      %s74 = sadd.s32 %s73, 1
      %p77 = scmp.eq.s32.totalorder %s44, 1
      %p78 = scmp.ne.s32.totalorder %s73, %s75
      %p79 = scmp.eq.s32.totalorder %s44, 0
      %p80 = por %p78, %p79
      %p81 = scmp.ne.s32.totalorder %s73, %s75
      %p82 = scmp.eq.s32.totalorder %s49, 1
      %p83 = por %p81, %p82
      %p84 = scmp.ne.s32.totalorder %s75, %s76
      %p85 = scmp.eq.s32.totalorder %s49, 0
      %p86 = por %p84, %p85
      %p87 = scmp.ne.s32.totalorder %s75, %s76
      %p88 = scmp.eq.s32.totalorder %s50, 1
      %p89 = por %p87, %p88
      %p91 = scmp.ne.s32.totalorder %s76, %s90
      %p92 = scmp.eq.s32.totalorder %s50, 0
      %p93 = por %p91, %p92
      %s95 = sadd.s32 %s94, 1
      %p98 = scmp.eq.s32.totalorder %s44, 1
      %p99 = scmp.ne.s32.totalorder %s94, %s96
      %p100 = scmp.eq.s32.totalorder %s44, 0
      %p101 = por %p99, %p100
      %p102 = scmp.ne.s32.totalorder %s94, %s96
      %p103 = scmp.eq.s32.totalorder %s49, 1
      %p104 = por %p102, %p103
      %p105 = scmp.ne.s32.totalorder %s96, %s97
      %p106 = scmp.eq.s32.totalorder %s49, 0
      %p107 = por %p105, %p106
      %p108 = scmp.ne.s32.totalorder %s96, %s97
      %p109 = scmp.eq.s32.totalorder %s50, 1
      %p110 = por %p108, %p109
      %p112 = scmp.ne.s32.totalorder %s97, %s111
      %p113 = scmp.eq.s32.totalorder %s50, 0
      %p114 = por %p112, %p113
      %s116 = sadd.s32 %s115, 1
      %p119 = scmp.eq.s32.totalorder %s44, 1
      %p120 = scmp.ne.s32.totalorder %s115, %s117
      %p121 = scmp.eq.s32.totalorder %s44, 0
      %p122 = por %p120, %p121
      %p123 = scmp.ne.s32.totalorder %s115, %s117
      %p124 = scmp.eq.s32.totalorder %s49, 1
      %p125 = por %p123, %p124
      %p126 = scmp.ne.s32.totalorder %s117, %s118
      %p127 = scmp.eq.s32.totalorder %s49, 0
      %p128 = por %p126, %p127
      %p129 = scmp.ne.s32.totalorder %s117, %s118
      %p130 = scmp.eq.s32.totalorder %s50, 1
      %p131 = por %p129, %p130
      %p133 = scmp.ne.s32.totalorder %s118, %s132
      %p134 = scmp.eq.s32.totalorder %s50, 0
      %p135 = por %p133, %p134
      %s137 = sadd.s32 %s136, 1
      %p140 = scmp.eq.s32.totalorder %s44, 1
      %p141 = scmp.ne.s32.totalorder %s136, %s138
      %p142 = scmp.eq.s32.totalorder %s44, 0
      %p143 = por %p141, %p142
      %p144 = scmp.ne.s32.totalorder %s136, %s138
      %p145 = scmp.eq.s32.totalorder %s49, 1
      %p146 = por %p144, %p145
      %p147 = scmp.ne.s32.totalorder %s138, %s139
      %p148 = scmp.eq.s32.totalorder %s49, 0
      %p149 = por %p147, %p148
      %p150 = scmp.ne.s32.totalorder %s138, %s139
      %p151 = scmp.eq.s32.totalorder %s50, 1
      %p152 = por %p150, %p151
      %p154 = scmp.ne.s32.totalorder %s139, %s153
      %p155 = scmp.eq.s32.totalorder %s50, 0
      %p156 = por %p154, %p155
      %s158 = sadd.s32 %s157, 1
      %p161 = scmp.eq.s32.totalorder %s44, 1
      %p162 = scmp.ne.s32.totalorder %s157, %s159
      %p163 = scmp.eq.s32.totalorder %s44, 0
      %p164 = por %p162, %p163
      %p165 = scmp.ne.s32.totalorder %s157, %s159
      %p166 = scmp.eq.s32.totalorder %s49, 1
      %p167 = por %p165, %p166
      %p168 = scmp.ne.s32.totalorder %s159, %s160
      %p169 = scmp.eq.s32.totalorder %s49, 0
      %p170 = por %p168, %p169
      %p171 = scmp.ne.s32.totalorder %s159, %s160
      %p172 = scmp.eq.s32.totalorder %s50, 1
      %p173 = por %p171, %p172
      %p175 = scmp.ne.s32.totalorder %s160, %s174
      %p176 = scmp.eq.s32.totalorder %s50, 0
      %p177 = por %p175, %p176
      %s179 = sadd.s32 %s178, 1
      %p182 = scmp.eq.s32.totalorder %s44, 1
      %p183 = scmp.ne.s32.totalorder %s178, %s180
      %p184 = scmp.eq.s32.totalorder %s44, 0
      %p185 = por %p183, %p184
      %p186 = scmp.ne.s32.totalorder %s178, %s180
      %p187 = scmp.eq.s32.totalorder %s49, 1
      %p188 = por %p186, %p187
      %p189 = scmp.ne.s32.totalorder %s180, %s181
      %p190 = scmp.eq.s32.totalorder %s49, 0
      %p191 = por %p189, %p190
      %p192 = scmp.ne.s32.totalorder %s180, %s181
      %p193 = scmp.eq.s32.totalorder %s50, 1
      %p194 = por %p192, %p193
      %p196 = scmp.ne.s32.totalorder %s181, %s195
      %p197 = scmp.eq.s32.totalorder %s50, 0
      %p198 = por %p196, %p197
      %s200 = sadd.s32 %s199, 1
      %p203 = scmp.eq.s32.totalorder %s44, 1
      %p204 = scmp.ne.s32.totalorder %s199, %s201
      %p205 = scmp.eq.s32.totalorder %s44, 0
      %p206 = por %p204, %p205
      %p207 = scmp.ne.s32.totalorder %s199, %s201
      %p208 = scmp.eq.s32.totalorder %s49, 1
      %p209 = por %p207, %p208
      %p210 = scmp.ne.s32.totalorder %s201, %s202
      %p211 = scmp.eq.s32.totalorder %s49, 0
      %p212 = por %p210, %p211
      %p213 = scmp.ne.s32.totalorder %s201, %s202
      %p214 = scmp.eq.s32.totalorder %s50, 1
      %p215 = por %p213, %p214
      %p217 = scmp.ne.s32.totalorder %s202, %s216
      %p218 = scmp.eq.s32.totalorder %s50, 0
      %p219 = por %p217, %p218
      %s221 = sadd.s32 %s220, 1
      %p224 = scmp.eq.s32.totalorder %s44, 1
      %p225 = scmp.ne.s32.totalorder %s220, %s222
      %p226 = scmp.eq.s32.totalorder %s44, 0
      %p227 = por %p225, %p226
      %p228 = scmp.ne.s32.totalorder %s220, %s222
      %p229 = scmp.eq.s32.totalorder %s49, 1
      %p230 = por %p228, %p229
      %p231 = scmp.ne.s32.totalorder %s222, %s223
      %p232 = scmp.eq.s32.totalorder %s49, 0
      %p233 = por %p231, %p232
      %p234 = scmp.ne.s32.totalorder %s222, %s223
      %p235 = scmp.eq.s32.totalorder %s50, 1
      %p236 = por %p234, %p235
      %p238 = scmp.ne.s32.totalorder %s223, %s237
      %p239 = scmp.eq.s32.totalorder %s50, 0
      %p240 = por %p238, %p239
      %s242 = sadd.s32 %s241, 1
      %p245 = scmp.eq.s32.totalorder %s44, 1
      %p246 = scmp.ne.s32.totalorder %s241, %s243
      %p247 = scmp.eq.s32.totalorder %s44, 0
      %p248 = por %p246, %p247
      %p249 = scmp.ne.s32.totalorder %s241, %s243
      %p250 = scmp.eq.s32.totalorder %s49, 1
      %p251 = por %p249, %p250
      %p252 = scmp.ne.s32.totalorder %s243, %s244
      %p253 = scmp.eq.s32.totalorder %s49, 0
      %p254 = por %p252, %p253
      %p255 = scmp.ne.s32.totalorder %s243, %s244
      %p256 = scmp.eq.s32.totalorder %s50, 1
      %p257 = por %p255, %p256
      %p259 = scmp.ne.s32.totalorder %s244, %s258
      %p260 = scmp.eq.s32.totalorder %s50, 0
      %p261 = por %p259, %p260
      %s262 = ssub.s32 %s44, %s51
      %p263 = scmp.eq.s32.totalorder %s262, 0
      %s265 = sadd.s32 %s264, 1
      %s266 = scalar_select %p263, %s264, %s265
      %p269 = pneg %p263
      %p270 = scmp.eq.s32.totalorder %s44, 1
      %p271 = por %p269, %p270
      %p272 = scmp.ne.s32.totalorder %s264, %s267
      %p273 = scmp.eq.s32.totalorder %s44, 0
      %p274 = por %p272, %p273
      %p275 = scmp.ne.s32.totalorder %s264, %s267
      %p276 = scmp.eq.s32.totalorder %s49, 1
      %p277 = por %p275, %p276
      %p278 = scmp.ne.s32.totalorder %s267, %s268
      %p279 = scmp.eq.s32.totalorder %s49, 0
      %p280 = por %p278, %p279
      %p281 = scmp.ne.s32.totalorder %s267, %s268
      %p282 = scmp.eq.s32.totalorder %s50, 1
      %p283 = por %p281, %p282
      %p285 = scmp.ne.s32.totalorder %s268, %s284
      %p286 = scmp.eq.s32.totalorder %s50, 0
      %p287 = por %p285, %p286
      %s288 = ssub.s32 %s44, %s51
      %p289 = scmp.eq.s32.totalorder %s288, 0
      %s291 = sadd.s32 %s290, 1
      %s292 = scalar_select %p289, %s290, %s291
      %p295 = pneg %p289
      %p296 = scmp.eq.s32.totalorder %s44, 1
      %p297 = por %p295, %p296
      %p298 = scmp.ne.s32.totalorder %s290, %s293
      %p299 = scmp.eq.s32.totalorder %s44, 0
      %p300 = por %p298, %p299
      %p301 = scmp.ne.s32.totalorder %s290, %s293
      %p302 = scmp.eq.s32.totalorder %s49, 1
      %p303 = por %p301, %p302
      %p304 = scmp.ne.s32.totalorder %s293, %s294
      %p305 = scmp.eq.s32.totalorder %s49, 0
      %p306 = por %p304, %p305
      %p307 = scmp.ne.s32.totalorder %s293, %s294
      %p308 = scmp.eq.s32.totalorder %s50, 1
      %p309 = por %p307, %p308
      %p311 = scmp.ne.s32.totalorder %s294, %s310
      %p312 = scmp.eq.s32.totalorder %s50, 0
      %p313 = por %p311, %p312
      %s314 = ssub.s32 %s44, %s51
      %p315 = scmp.eq.s32.totalorder %s314, 0
      %s317 = sadd.s32 %s316, 1
      %s318 = scalar_select %p315, %s316, %s317
      %p321 = pneg %p315
      %p322 = scmp.eq.s32.totalorder %s44, 1
      %p323 = por %p321, %p322
      %p324 = scmp.ne.s32.totalorder %s316, %s319
      %p325 = scmp.eq.s32.totalorder %s44, 0
      %p326 = por %p324, %p325
      %p327 = scmp.ne.s32.totalorder %s316, %s319
      %p328 = scmp.eq.s32.totalorder %s49, 1
      %p329 = por %p327, %p328
      %p330 = scmp.ne.s32.totalorder %s319, %s320
      %p331 = scmp.eq.s32.totalorder %s49, 0
      %p332 = por %p330, %p331
      %p333 = scmp.ne.s32.totalorder %s319, %s320
      %p334 = scmp.eq.s32.totalorder %s50, 1
      %p335 = por %p333, %p334
      %p337 = scmp.ne.s32.totalorder %s320, %s336
      %p338 = scmp.eq.s32.totalorder %s50, 0
      %p339 = por %p337, %p338
      %s340 = ssub.s32 %s44, %s51
      %p341 = scmp.eq.s32.totalorder %s340, 0
      %s343 = sadd.s32 %s342, 1
      %s344 = scalar_select %p341, %s342, %s343
      %p347 = pneg %p341
      %p348 = scmp.eq.s32.totalorder %s44, 1
      %p349 = por %p347, %p348
      %p350 = scmp.ne.s32.totalorder %s342, %s345
      %p351 = scmp.eq.s32.totalorder %s44, 0
      %p352 = por %p350, %p351
      %p353 = scmp.ne.s32.totalorder %s342, %s345
      %p354 = scmp.eq.s32.totalorder %s49, 1
      %p355 = por %p353, %p354
      %p356 = scmp.ne.s32.totalorder %s345, %s346
      %p357 = scmp.eq.s32.totalorder %s49, 0
      %p358 = por %p356, %p357
      %p359 = scmp.ne.s32.totalorder %s345, %s346
      %p360 = scmp.eq.s32.totalorder %s50, 1
      %p361 = por %p359, %p360
      %p363 = scmp.ne.s32.totalorder %s346, %s362
      %p364 = scmp.eq.s32.totalorder %s50, 0
      %p365 = por %p363, %p364
      %s366 = ssub.s32 %s44, %s51
      %p367 = scmp.eq.s32.totalorder %s366, 0
      %s369 = sadd.s32 %s368, 1
      %s370 = scalar_select %p367, %s368, %s369
      %p373 = pneg %p367
      %p374 = scmp.eq.s32.totalorder %s44, 1
      %p375 = por %p373, %p374
      %p376 = scmp.ne.s32.totalorder %s368, %s371
      %p377 = scmp.eq.s32.totalorder %s44, 0
      %p378 = por %p376, %p377
      %p379 = scmp.ne.s32.totalorder %s368, %s371
      %p380 = scmp.eq.s32.totalorder %s49, 1
      %p381 = por %p379, %p380
      %p382 = scmp.ne.s32.totalorder %s371, %s372
      %p383 = scmp.eq.s32.totalorder %s49, 0
      %p384 = por %p382, %p383
      %p385 = scmp.ne.s32.totalorder %s371, %s372
      %p386 = scmp.eq.s32.totalorder %s50, 1
      %p387 = por %p385, %p386
      %p389 = scmp.ne.s32.totalorder %s372, %s388
      %p390 = scmp.eq.s32.totalorder %s50, 0
      %p391 = por %p389, %p390
      %s392 = ssub.s32 %s44, %s51
      %p393 = scmp.eq.s32.totalorder %s392, 0
      %s395 = sadd.s32 %s394, 1
      %s396 = scalar_select %p393, %s394, %s395
      %p399 = pneg %p393
      %p400 = scmp.eq.s32.totalorder %s44, 1
      %p401 = por %p399, %p400
      %p402 = scmp.ne.s32.totalorder %s394, %s397
      %p403 = scmp.eq.s32.totalorder %s44, 0
      %p404 = por %p402, %p403
      %p405 = scmp.ne.s32.totalorder %s394, %s397
      %p406 = scmp.eq.s32.totalorder %s49, 1
      %p407 = por %p405, %p406
      %p408 = scmp.ne.s32.totalorder %s397, %s398
      %p409 = scmp.eq.s32.totalorder %s49, 0
      %p410 = por %p408, %p409
      %p411 = scmp.ne.s32.totalorder %s397, %s398
      %p412 = scmp.eq.s32.totalorder %s50, 1
      %p413 = por %p411, %p412
      %p415 = scmp.ne.s32.totalorder %s398, %s414
      %p416 = scmp.eq.s32.totalorder %s50, 0
      %p417 = por %p415, %p416
      %s418 = ssub.s32 %s44, %s51
      %p419 = scmp.eq.s32.totalorder %s418, 0
      %s421 = sadd.s32 %s420, 1
      %s422 = scalar_select %p419, %s420, %s421
      %p425 = pneg %p419
      %p426 = scmp.eq.s32.totalorder %s44, 1
      %p427 = por %p425, %p426
      %p428 = scmp.ne.s32.totalorder %s420, %s423
      %p429 = scmp.eq.s32.totalorder %s44, 0
      %p430 = por %p428, %p429
      %p431 = scmp.ne.s32.totalorder %s420, %s423
      %p432 = scmp.eq.s32.totalorder %s49, 1
      %p433 = por %p431, %p432
      %p434 = scmp.ne.s32.totalorder %s423, %s424
      %p435 = scmp.eq.s32.totalorder %s49, 0
      %p436 = por %p434, %p435
      %p437 = scmp.ne.s32.totalorder %s423, %s424
      %p438 = scmp.eq.s32.totalorder %s50, 1
      %p439 = por %p437, %p438
      %p441 = scmp.ne.s32.totalorder %s424, %s440
      %p442 = scmp.eq.s32.totalorder %s50, 0
      %p443 = por %p441, %p442
      %s444 = ssub.s32 %s44, %s51
      %p445 = scmp.eq.s32.totalorder %s444, 0
      %s447 = sadd.s32 %s446, 1
      %s448 = scalar_select %p445, %s446, %s447
      %p451 = pneg %p445
      %p452 = scmp.eq.s32.totalorder %s44, 1
      %p453 = por %p451, %p452
      %p454 = scmp.ne.s32.totalorder %s446, %s449
      %p455 = scmp.eq.s32.totalorder %s44, 0
      %p456 = por %p454, %p455
      %p457 = scmp.ne.s32.totalorder %s446, %s449
      %p458 = scmp.eq.s32.totalorder %s49, 1
      %p459 = por %p457, %p458
      %p460 = scmp.ne.s32.totalorder %s449, %s450
      %p461 = scmp.eq.s32.totalorder %s49, 0
      %p462 = por %p460, %p461
      %p463 = scmp.ne.s32.totalorder %s449, %s450
      %p464 = scmp.eq.s32.totalorder %s50, 1
      %p465 = por %p463, %p464
      %p467 = scmp.ne.s32.totalorder %s450, %s466
      %p468 = scmp.eq.s32.totalorder %s50, 0
      %p469 = por %p467, %p468
      %s470 = ssub.s32 %s44, %s51
      %p471 = scmp.eq.s32.totalorder %s470, 0
      %s473 = sadd.s32 %s472, 1
      %s474 = scalar_select %p471, %s472, %s473
      %p477 = pneg %p471
      %p478 = scmp.eq.s32.totalorder %s44, 1
      %p479 = por %p477, %p478
      %p480 = scmp.ne.s32.totalorder %s472, %s475
      %p481 = scmp.eq.s32.totalorder %s44, 0
      %p482 = por %p480, %p481
      %p483 = scmp.ne.s32.totalorder %s472, %s475
      %p484 = scmp.eq.s32.totalorder %s49, 1
      %p485 = por %p483, %p484
      %p486 = scmp.ne.s32.totalorder %s475, %s476
      %p487 = scmp.eq.s32.totalorder %s49, 0
      %p488 = por %p486, %p487
      %p489 = scmp.ne.s32.totalorder %s475, %s476
      %p490 = scmp.eq.s32.totalorder %s50, 1
      %p491 = por %p489, %p490
      %p493 = scmp.ne.s32.totalorder %s476, %s492
      %p494 = scmp.eq.s32.totalorder %s50, 0
      %p495 = por %p493, %p494
      %s496 = ssub.s32 %s44, %s51
      %p497 = scmp.eq.s32.totalorder %s496, 0
      %s499 = sadd.s32 %s498, 1
      %s500 = scalar_select %p497, %s498, %s499
      %p503 = pneg %p497
      %p504 = scmp.eq.s32.totalorder %s44, 1
      %p505 = por %p503, %p504
      %p506 = scmp.ne.s32.totalorder %s498, %s501
      %p507 = scmp.eq.s32.totalorder %s44, 0
      %p508 = por %p506, %p507
      %p509 = scmp.ne.s32.totalorder %s498, %s501
      %p510 = scmp.eq.s32.totalorder %s49, 1
      %p511 = por %p509, %p510
      %p512 = scmp.ne.s32.totalorder %s501, %s502
      %p513 = scmp.eq.s32.totalorder %s49, 0
      %p514 = por %p512, %p513
      %p515 = scmp.ne.s32.totalorder %s501, %s502
      %p516 = scmp.eq.s32.totalorder %s50, 1
      %p517 = por %p515, %p516
      %p519 = scmp.ne.s32.totalorder %s502, %s518
      %p520 = scmp.eq.s32.totalorder %s50, 0
      %p521 = por %p519, %p520
      %s522 = ssub.s32 %s44, %s51
      %p523 = scmp.eq.s32.totalorder %s522, 0
      %s525 = sadd.s32 %s524, 1
      %s526 = scalar_select %p523, %s524, %s525
      %p529 = pneg %p523
      %p530 = scmp.eq.s32.totalorder %s44, 1
      %p531 = por %p529, %p530
      %p532 = scmp.ne.s32.totalorder %s524, %s527
      %p533 = scmp.eq.s32.totalorder %s44, 0
      %p534 = por %p532, %p533
      %p535 = scmp.ne.s32.totalorder %s524, %s527
      %p536 = scmp.eq.s32.totalorder %s49, 1
      %p537 = por %p535, %p536
      %p538 = scmp.ne.s32.totalorder %s527, %s528
      %p539 = scmp.eq.s32.totalorder %s49, 0
      %p540 = por %p538, %p539
      %p541 = scmp.ne.s32.totalorder %s527, %s528
      %p542 = scmp.eq.s32.totalorder %s50, 1
      %p543 = por %p541, %p542
      %p545 = scmp.ne.s32.totalorder %s528, %s544
      %p546 = scmp.eq.s32.totalorder %s50, 0
      %p547 = por %p545, %p546
      %s548 = ssub.s32 %s44, %s51
      %p549 = scmp.eq.s32.totalorder %s548, 0
      %s551 = sadd.s32 %s550, 1
      %s552 = scalar_select %p549, %s550, %s551
      %p555 = pneg %p549
      %p556 = scmp.eq.s32.totalorder %s44, 1
      %p557 = por %p555, %p556
      %p558 = scmp.ne.s32.totalorder %s550, %s553
      %p559 = scmp.eq.s32.totalorder %s44, 0
      %p560 = por %p558, %p559
      %p561 = scmp.ne.s32.totalorder %s550, %s553
      %p562 = scmp.eq.s32.totalorder %s49, 1
      %p563 = por %p561, %p562
      %p564 = scmp.ne.s32.totalorder %s553, %s554
      %p565 = scmp.eq.s32.totalorder %s49, 0
      %p566 = por %p564, %p565
      %p567 = scmp.ne.s32.totalorder %s553, %s554
      %p568 = scmp.eq.s32.totalorder %s50, 1
      %p569 = por %p567, %p568
      %p571 = scmp.ne.s32.totalorder %s554, %s570
      %p572 = scmp.eq.s32.totalorder %s50, 0
      %p573 = por %p571, %p572
      %s574 = ssub.s32 %s44, %s51
      %p575 = scmp.eq.s32.totalorder %s574, 0
      %s577 = sadd.s32 %s576, 1
      %s578 = scalar_select %p575, %s576, %s577
      %p581 = pneg %p575
      %p582 = scmp.eq.s32.totalorder %s44, 1
      %p583 = por %p581, %p582
      %p584 = scmp.ne.s32.totalorder %s576, %s579
      %p585 = scmp.eq.s32.totalorder %s44, 0
      %p586 = por %p584, %p585
      %p587 = scmp.ne.s32.totalorder %s576, %s579
      %p588 = scmp.eq.s32.totalorder %s49, 1
      %p589 = por %p587, %p588
      %p590 = scmp.ne.s32.totalorder %s579, %s580
      %p591 = scmp.eq.s32.totalorder %s49, 0
      %p592 = por %p590, %p591
      %p593 = scmp.ne.s32.totalorder %s579, %s580
      %p594 = scmp.eq.s32.totalorder %s50, 1
      %p595 = por %p593, %p594
      %p597 = scmp.ne.s32.totalorder %s580, %s596
      %p598 = scmp.eq.s32.totalorder %s50, 0
      %p599 = por %p597, %p598
      %s600 = ssub.s32 %s44, %s51
      %p601 = scmp.eq.s32.totalorder %s600, 0
      %s603 = sadd.s32 %s602, 1
      %s604 = scalar_select %p601, %s602, %s603
      %p607 = pneg %p601
      %p608 = scmp.eq.s32.totalorder %s44, 1
      %p609 = por %p607, %p608
      %p610 = scmp.ne.s32.totalorder %s602, %s605
      %p611 = scmp.eq.s32.totalorder %s44, 0
      %p612 = por %p610, %p611
      %p613 = scmp.ne.s32.totalorder %s602, %s605
      %p614 = scmp.eq.s32.totalorder %s49, 1
      %p615 = por %p613, %p614
      %p616 = scmp.ne.s32.totalorder %s605, %s606
      %p617 = scmp.eq.s32.totalorder %s49, 0
      %p618 = por %p616, %p617
      %p619 = scmp.ne.s32.totalorder %s605, %s606
      %p620 = scmp.eq.s32.totalorder %s50, 1
      %p621 = por %p619, %p620
      %p623 = scmp.ne.s32.totalorder %s606, %s622
      %p624 = scmp.eq.s32.totalorder %s50, 0
      %p625 = por %p623, %p624
      %s626 = ssub.s32 %s44, %s51
      %p627 = scmp.eq.s32.totalorder %s626, 0
      %s629 = sadd.s32 %s628, 1
      %s630 = scalar_select %p627, %s628, %s629
      %p633 = pneg %p627
      %p634 = scmp.eq.s32.totalorder %s44, 1
      %p635 = por %p633, %p634
      %p636 = scmp.ne.s32.totalorder %s628, %s631
      %p637 = scmp.eq.s32.totalorder %s44, 0
      %p638 = por %p636, %p637
      %p639 = scmp.ne.s32.totalorder %s628, %s631
      %p640 = scmp.eq.s32.totalorder %s49, 1
      %p641 = por %p639, %p640
      %p642 = scmp.ne.s32.totalorder %s631, %s632
      %p643 = scmp.eq.s32.totalorder %s49, 0
      %p644 = por %p642, %p643
      %p645 = scmp.ne.s32.totalorder %s631, %s632
      %p646 = scmp.eq.s32.totalorder %s50, 1
      %p647 = por %p645, %p646
      %p649 = scmp.ne.s32.totalorder %s632, %s648
      %p650 = scmp.eq.s32.totalorder %s50, 0
      %p651 = por %p649, %p650
      %s653 = sadd.s32 %s652, 1
      %p656 = scmp.eq.s32.totalorder %s44, 1
      %p657 = scmp.ne.s32.totalorder %s652, %s654
      %p658 = scmp.eq.s32.totalorder %s44, 0
      %p659 = por %p657, %p658
      %p660 = scmp.ne.s32.totalorder %s652, %s654
      %p661 = scmp.eq.s32.totalorder %s49, 1
      %p662 = por %p660, %p661
      %p663 = scmp.ne.s32.totalorder %s654, %s655
      %p664 = scmp.eq.s32.totalorder %s49, 0
      %p665 = por %p663, %p664
      %p666 = scmp.ne.s32.totalorder %s654, %s655
      %p667 = scmp.eq.s32.totalorder %s50, 1
      %p668 = por %p666, %p667
      %p670 = scmp.ne.s32.totalorder %s655, %s669
      %p671 = scmp.eq.s32.totalorder %s50, 0
      %p672 = por %p670, %p671
      %p673 = scmp.le.s32.totalorder 1, %s44
      %p674 = scmp.lt.s32.totalorder %s44, 3
      %p675 = pnand %p673, %p674
      %p676 = pneg %p675
      // Predicated region
      $region9: #{tpu_custom_call.1} parent=5 // pred_check
        _
      $region10: #{tpu_custom_call.1} parent=5 // pred_check_branch
        %678 = sbr.rel (%p675) target = $region12
      $region11: #{tpu_custom_call.1} parent=5 // pred_region
        %s679 = ssub.s32 %s44, 1
        // Predicated region
        $region13: #{tpu_custom_call.1} parent=11 // pred_check
          %p680 = pneg %p65
        $region14: #{tpu_custom_call.1} parent=11 // pred_check_branch
          %682 = sbr.rel (%p680) target = $region16
        $region15: #{tpu_custom_call.1} parent=11 // pred_region
          %s684 = ssub.s32 1024, 1024
          %685 = vsyncadd [#allocation5], %s684
          %s686 = sshll.u32 [#allocation4], 4
          %s687 = int_to_ptr.vmem [resolvable:$true] %s686
          %692 = dma.hbm_to_vmem [thread:$0]  %s0, 1024, %s687, [#allocation5], 64, 64, 4
        $region16: #{tpu_custom_call.1} parent=11 // pred_fallthru
          _
        // Predicated region
        $region17: #{tpu_custom_call.1} parent=11 // pred_check
          %p693 = pneg %p86
        $region18: #{tpu_custom_call.1} parent=11 // pred_check_branch
          %695 = sbr.rel (%p693) target = $region20
        $region19: #{tpu_custom_call.1} parent=11 // pred_region
          _
        $region20: #{tpu_custom_call.1} parent=11 // pred_fallthru
          _
        // Predicated region
        $region21: #{tpu_custom_call.1} parent=11 // pred_check
          %p696 = pneg %p107
        $region22: #{tpu_custom_call.1} parent=11 // pred_check_branch
          %698 = sbr.rel (%p696) target = $region24
        $region23: #{tpu_custom_call.1} parent=11 // pred_region
          %s700 = ssub.s32 128, 128
          %701 = vsyncadd [#allocation8], %s700
          %s702 = sshll.u32 [#allocation7], 4
          %s703 = int_to_ptr.vmem [resolvable:$true] %s702
          %708 = dma.hbm_to_vmem [thread:$0]  %s2, 128, %s703, [#allocation8], 64, 64, 4
        $region24: #{tpu_custom_call.1} parent=11 // pred_fallthru
          _
        // Predicated region
        $region25: #{tpu_custom_call.1} parent=11 // pred_check
          %p709 = pneg %p128
        $region26: #{tpu_custom_call.1} parent=11 // pred_check_branch
          %711 = sbr.rel (%p709) target = $region28
        $region27: #{tpu_custom_call.1} parent=11 // pred_region
          _
        $region28: #{tpu_custom_call.1} parent=11 // pred_fallthru
          _
        // Predicated region
        $region29: #{tpu_custom_call.1} parent=11 // pred_check
          %p712 = pneg %p149
        $region30: #{tpu_custom_call.1} parent=11 // pred_check_branch
          %714 = sbr.rel (%p712) target = $region32
        $region31: #{tpu_custom_call.1} parent=11 // pred_region
          _
        $region32: #{tpu_custom_call.1} parent=11 // pred_fallthru
          _
        // Predicated region
        $region33: #{tpu_custom_call.1} parent=11 // pred_check
          %p715 = pneg %p170
        $region34: #{tpu_custom_call.1} parent=11 // pred_check_branch
          %717 = sbr.rel (%p715) target = $region36
        $region35: #{tpu_custom_call.1} parent=11 // pred_region
          _
        $region36: #{tpu_custom_call.1} parent=11 // pred_fallthru
          _
        // Predicated region
        $region37: #{tpu_custom_call.1} parent=11 // pred_check
          %p718 = pneg %p191
        $region38: #{tpu_custom_call.1} parent=11 // pred_check_branch
          %720 = sbr.rel (%p718) target = $region40
        $region39: #{tpu_custom_call.1} parent=11 // pred_region
          %s722 = ssub.s32 16, 16
          %723 = vsyncadd [#allocation8], %s722
          %s725 = sshll.u32 [#allocation9], 4
          %s726 = int_to_ptr.vmem [resolvable:$true] %s725
          %728 = dma.hbm_to_vmem [thread:$0]  %s6, 16, %s726, [#allocation8]
        $region40: #{tpu_custom_call.1} parent=11 // pred_fallthru
          _
        // Predicated region
        $region41: #{tpu_custom_call.1} parent=11 // pred_check
          %p729 = pneg %p212
        $region42: #{tpu_custom_call.1} parent=11 // pred_check_branch
          %731 = sbr.rel (%p729) target = $region44
        $region43: #{tpu_custom_call.1} parent=11 // pred_region
          %s733 = ssub.s32 16, 16
          %734 = vsyncadd [#allocation11], %s733
          %s736 = sshll.u32 [#allocation10], 4
          %s737 = int_to_ptr.vmem [resolvable:$true] %s736
          %739 = dma.hbm_to_vmem [thread:$0]  %s7, 16, %s737, [#allocation11]
        $region44: #{tpu_custom_call.1} parent=11 // pred_fallthru
          _
        // Predicated region
        $region45: #{tpu_custom_call.1} parent=11 // pred_check
          %p740 = pneg %p233
        $region46: #{tpu_custom_call.1} parent=11 // pred_check_branch
          %742 = sbr.rel (%p740) target = $region48
        $region47: #{tpu_custom_call.1} parent=11 // pred_region
          _
        $region48: #{tpu_custom_call.1} parent=11 // pred_fallthru
          _
        // Predicated region
        $region49: #{tpu_custom_call.1} parent=11 // pred_check
          %p743 = pneg %p254
        $region50: #{tpu_custom_call.1} parent=11 // pred_check_branch
          %745 = sbr.rel (%p743) target = $region52
        $region51: #{tpu_custom_call.1} parent=11 // pred_region
          %s747 = ssub.s32 16, 16
          %748 = vsyncadd [#allocation11], %s747
          %s750 = sshll.u32 [#allocation12], 4
          %s751 = int_to_ptr.vmem [resolvable:$true] %s750
          %753 = dma.hbm_to_vmem [thread:$0]  %s9, 16, %s751, [#allocation11]
        $region52: #{tpu_custom_call.1} parent=11 // pred_fallthru
          _
      $region12: #{tpu_custom_call.1} parent=5 // pred_fallthru
        _
      %p754 = scmp.lt.s32.totalorder %s44, 2
      // Predicated region
      $region53: #{tpu_custom_call.1} parent=5 // pred_check
        %p755 = pneg %p754
      $region54: #{tpu_custom_call.1} parent=5 // pred_check_branch
        %757 = sbr.rel (%p755) target = $region56
      $region55: #{tpu_custom_call.1} parent=5 // pred_region
        // Predicated region
        $region57: #{tpu_custom_call.1} parent=55 // pred_check
          %p758 = pneg %p274
        $region58: #{tpu_custom_call.1} parent=55 // pred_check_branch
          %760 = sbr.rel (%p758) target = $region60
        $region59: #{tpu_custom_call.1} parent=55 // pred_region
          %s761 = sand.u32 %s44, 1
          %s762 = scalar_lea.sflag [#allocation14], %s761
          %s763 = sand.u32 %s264, 1
          %s764 = smul.addr %s763, 64
          %s765 = scalar_lea.vmem [#allocation13], %s764
          %s767 = ssub.s32 1024, 1024
          %768 = vsyncadd %s762, %s767
          %s769 = smul.addr %s44, 16
          %s770 = smul.addr %s769, 64
          %s771 = scalar_lea.hbm %s10, %s770
          %s772 = sshll.u32 %s765, 4
          %s773 = int_to_ptr.vmem [resolvable:$true] %s772
          %778 = dma.hbm_to_vmem [thread:$0]  %s771, 1024, %s773, %s762, 64, 64, 4
        $region60: #{tpu_custom_call.1} parent=55 // pred_fallthru
          _
        // Predicated region
        $region61: #{tpu_custom_call.1} parent=55 // pred_check
          %p779 = pneg %p300
        $region62: #{tpu_custom_call.1} parent=55 // pred_check_branch
          %781 = sbr.rel (%p779) target = $region64
        $region63: #{tpu_custom_call.1} parent=55 // pred_region
          %s782 = sand.u32 %s44, 1
          %s783 = scalar_lea.sflag [#allocation14], %s782
          %s784 = sand.u32 %s290, 1
          %s785 = smul.addr %s784, 64
          %s786 = scalar_lea.vmem [#allocation15], %s785
          %s788 = ssub.s32 1024, 1024
          %789 = vsyncadd %s783, %s788
          %s790 = smul.addr %s44, 16
          %s791 = smul.addr %s790, 64
          %s792 = scalar_lea.hbm %s11, %s791
          %s793 = sshll.u32 %s786, 4
          %s794 = int_to_ptr.vmem [resolvable:$true] %s793
          %799 = dma.hbm_to_vmem [thread:$0]  %s792, 1024, %s794, %s783, 64, 64, 4
        $region64: #{tpu_custom_call.1} parent=55 // pred_fallthru
          _
        // Predicated region
        $region65: #{tpu_custom_call.1} parent=55 // pred_check
          %p800 = pneg %p326
        $region66: #{tpu_custom_call.1} parent=55 // pred_check_branch
          %802 = sbr.rel (%p800) target = $region68
        $region67: #{tpu_custom_call.1} parent=55 // pred_region
          %p803 = scmp.lt.s32.totalorder %s44, 1
          %s804 = scalar_select %p803, %s44, 1
          %s805 = scalar_lea.vmem %s12, %s804
        $region68: #{tpu_custom_call.1} parent=55 // pred_fallthru
          _
        // Predicated region
        $region69: #{tpu_custom_call.1} parent=55 // pred_check
          %p806 = pneg %p352
        $region70: #{tpu_custom_call.1} parent=55 // pred_check_branch
          %808 = sbr.rel (%p806) target = $region72
        $region71: #{tpu_custom_call.1} parent=55 // pred_region
          %s809 = sand.u32 %s44, 1
          %s810 = scalar_lea.sflag [#allocation17], %s809
          %s811 = sand.u32 %s342, 1
          %s812 = smul.addr %s811, 64
          %s813 = scalar_lea.vmem [#allocation16], %s812
          %s815 = ssub.s32 1024, 1024
          %816 = vsyncadd %s810, %s815
          %s817 = smul.addr %s44, 16
          %s818 = smul.addr %s817, 64
          %s819 = scalar_lea.hbm %s13, %s818
          %s820 = sshll.u32 %s813, 4
          %s821 = int_to_ptr.vmem [resolvable:$true] %s820
          %826 = dma.hbm_to_vmem [thread:$0]  %s819, 1024, %s821, %s810, 64, 64, 4
        $region72: #{tpu_custom_call.1} parent=55 // pred_fallthru
          _
        // Predicated region
        $region73: #{tpu_custom_call.1} parent=55 // pred_check
          %p827 = pneg %p378
        $region74: #{tpu_custom_call.1} parent=55 // pred_check_branch
          %829 = sbr.rel (%p827) target = $region76
        $region75: #{tpu_custom_call.1} parent=55 // pred_region
          %p830 = scmp.lt.s32.totalorder %s44, 1
          %s831 = scalar_select %p830, %s44, 1
          %s832 = scalar_lea.vmem %s14, %s831
        $region76: #{tpu_custom_call.1} parent=55 // pred_fallthru
          _
        // Predicated region
        $region77: #{tpu_custom_call.1} parent=55 // pred_check
          %p833 = pneg %p404
        $region78: #{tpu_custom_call.1} parent=55 // pred_check_branch
          %835 = sbr.rel (%p833) target = $region80
        $region79: #{tpu_custom_call.1} parent=55 // pred_region
          %p836 = scmp.lt.s32.totalorder %s44, 1
          %s837 = scalar_select %p836, %s44, 1
          %s838 = scalar_lea.vmem %s15, %s837
        $region80: #{tpu_custom_call.1} parent=55 // pred_fallthru
          _
        // Predicated region
        $region81: #{tpu_custom_call.1} parent=55 // pred_check
          %p839 = pneg %p430
        $region82: #{tpu_custom_call.1} parent=55 // pred_check_branch
          %841 = sbr.rel (%p839) target = $region84
        $region83: #{tpu_custom_call.1} parent=55 // pred_region
          %p842 = scmp.lt.s32.totalorder %s44, 1
          %s843 = scalar_select %p842, %s44, 1
          %s844 = scalar_lea.vmem %s16, %s843
        $region84: #{tpu_custom_call.1} parent=55 // pred_fallthru
          _
        // Predicated region
        $region85: #{tpu_custom_call.1} parent=55 // pred_check
          %p845 = pneg %p456
        $region86: #{tpu_custom_call.1} parent=55 // pred_check_branch
          %847 = sbr.rel (%p845) target = $region88
        $region87: #{tpu_custom_call.1} parent=55 // pred_region
          %s848 = sand.u32 %s44, 1
          %s849 = scalar_lea.sflag [#allocation17], %s848
          %s850 = sand.u32 %s446, 1
          %s851 = smul.addr %s850, 64
          %s852 = scalar_lea.vmem [#allocation18], %s851
          %s854 = ssub.s32 1024, 1024
          %855 = vsyncadd %s849, %s854
          %s856 = smul.addr %s44, 16
          %s857 = smul.addr %s856, 64
          %s858 = scalar_lea.hbm %s17, %s857
          %s859 = sshll.u32 %s852, 4
          %s860 = int_to_ptr.vmem [resolvable:$true] %s859
          %865 = dma.hbm_to_vmem [thread:$0]  %s858, 1024, %s860, %s849, 64, 64, 4
        $region88: #{tpu_custom_call.1} parent=55 // pred_fallthru
          _
        // Predicated region
        $region89: #{tpu_custom_call.1} parent=55 // pred_check
          %p866 = pneg %p482
        $region90: #{tpu_custom_call.1} parent=55 // pred_check_branch
          %868 = sbr.rel (%p866) target = $region92
        $region91: #{tpu_custom_call.1} parent=55 // pred_region
          %p869 = scmp.lt.s32.totalorder %s44, 1
          %s870 = scalar_select %p869, %s44, 1
          %s871 = scalar_lea.vmem %s18, %s870
        $region92: #{tpu_custom_call.1} parent=55 // pred_fallthru
          _
        // Predicated region
        $region93: #{tpu_custom_call.1} parent=55 // pred_check
          %p872 = pneg %p508
        $region94: #{tpu_custom_call.1} parent=55 // pred_check_branch
          %874 = sbr.rel (%p872) target = $region96
        $region95: #{tpu_custom_call.1} parent=55 // pred_region
          %p875 = scmp.lt.s32.totalorder %s44, 1
          %s876 = scalar_select %p875, %s44, 1
          %s877 = scalar_lea.vmem %s19, %s876
        $region96: #{tpu_custom_call.1} parent=55 // pred_fallthru
          _
        // Predicated region
        $region97: #{tpu_custom_call.1} parent=55 // pred_check
          %p878 = pneg %p534
        $region98: #{tpu_custom_call.1} parent=55 // pred_check_branch
          %880 = sbr.rel (%p878) target = $region100
        $region99: #{tpu_custom_call.1} parent=55 // pred_region
          %p881 = scmp.lt.s32.totalorder %s44, 1
          %s882 = scalar_select %p881, %s44, 1
          %s883 = scalar_lea.vmem %s20, %s882
        $region100: #{tpu_custom_call.1} parent=55 // pred_fallthru
          _
        // Predicated region
        $region101: #{tpu_custom_call.1} parent=55 // pred_check
          %p884 = pneg %p560
        $region102: #{tpu_custom_call.1} parent=55 // pred_check_branch
          %886 = sbr.rel (%p884) target = $region104
        $region103: #{tpu_custom_call.1} parent=55 // pred_region
          %s887 = sand.u32 %s550, 1
          %s888 = scalar_lea.sflag [#allocation20], %s887
          %s889 = sand.u32 %s550, 1
          %s890 = smul.addr %s889, 64
          %s891 = scalar_lea.vmem [#allocation19], %s890
          %s893 = ssub.s32 1024, 1024
          %894 = vsyncadd %s888, %s893
          %s895 = smul.addr %s44, 16
          %s896 = smul.addr %s895, 64
          %s897 = scalar_lea.hbm %s21, %s896
          %s898 = sshll.u32 %s891, 4
          %s899 = int_to_ptr.vmem [resolvable:$true] %s898
          %904 = dma.hbm_to_vmem [thread:$0]  %s897, 1024, %s899, %s888, 64, 64, 4
        $region104: #{tpu_custom_call.1} parent=55 // pred_fallthru
          _
        // Predicated region
        $region105: #{tpu_custom_call.1} parent=55 // pred_check
          %p905 = pneg %p586
        $region106: #{tpu_custom_call.1} parent=55 // pred_check_branch
          %907 = sbr.rel (%p905) target = $region108
        $region107: #{tpu_custom_call.1} parent=55 // pred_region
          %p908 = scmp.lt.s32.totalorder %s44, 1
          %s909 = scalar_select %p908, %s44, 1
          %s910 = scalar_lea.vmem %s22, %s909
        $region108: #{tpu_custom_call.1} parent=55 // pred_fallthru
          _
        // Predicated region
        $region109: #{tpu_custom_call.1} parent=55 // pred_check
          %p911 = pneg %p612
        $region110: #{tpu_custom_call.1} parent=55 // pred_check_branch
          %913 = sbr.rel (%p911) target = $region112
        $region111: #{tpu_custom_call.1} parent=55 // pred_region
          %p914 = scmp.lt.s32.totalorder %s44, 1
          %s915 = scalar_select %p914, %s44, 1
          %s916 = scalar_lea.vmem %s23, %s915
        $region112: #{tpu_custom_call.1} parent=55 // pred_fallthru
          _
        // Predicated region
        $region113: #{tpu_custom_call.1} parent=55 // pred_check
          %p917 = pneg %p638
        $region114: #{tpu_custom_call.1} parent=55 // pred_check_branch
          %919 = sbr.rel (%p917) target = $region116
        $region115: #{tpu_custom_call.1} parent=55 // pred_region
          %p920 = scmp.lt.s32.totalorder %s44, 1
          %s921 = scalar_select %p920, %s44, 1
          %s922 = scalar_lea.vmem %s24, %s921
        $region116: #{tpu_custom_call.1} parent=55 // pred_fallthru
          _
      $region56: #{tpu_custom_call.1} parent=5 // pred_fallthru
        _
      %p923 = scmp.le.s32.totalorder 1, %s44
      %p924 = scmp.lt.s32.totalorder %s44, 3
      %p925 = pnand %p923, %p924
      %p926 = pneg %p925
      // Predicated region
      $region117: #{tpu_custom_call.1} parent=5 // pred_check
        _
      $region118: #{tpu_custom_call.1} parent=5 // pred_check_branch
        %928 = sbr.rel (%p925) target = $region120
      $region119: #{tpu_custom_call.1} parent=5 // pred_region
        %s929 = ssub.s32 %s44, 1
        // Predicated region
        $region121: #{tpu_custom_call.1} parent=119 // pred_check
          %p930 = pneg %p65
        $region122: #{tpu_custom_call.1} parent=119 // pred_check_branch
          %932 = sbr.rel (%p930) target = $region124
        $region123: #{tpu_custom_call.1} parent=119 // pred_region
          %933 = dma.done [#allocation5], 1024
        $region124: #{tpu_custom_call.1} parent=119 // pred_fallthru
          _
        // Predicated region
        $region125: #{tpu_custom_call.1} parent=119 // pred_check
          %p934 = pneg %p107
        $region126: #{tpu_custom_call.1} parent=119 // pred_check_branch
          %936 = sbr.rel (%p934) target = $region128
        $region127: #{tpu_custom_call.1} parent=119 // pred_region
          %937 = dma.done [#allocation8], 128
        $region128: #{tpu_custom_call.1} parent=119 // pred_fallthru
          _
        // Predicated region
        $region129: #{tpu_custom_call.1} parent=119 // pred_check
          %p938 = pneg %p191
        $region130: #{tpu_custom_call.1} parent=119 // pred_check_branch
          %940 = sbr.rel (%p938) target = $region132
        $region131: #{tpu_custom_call.1} parent=119 // pred_region
          %941 = dma.done [#allocation8], 16
        $region132: #{tpu_custom_call.1} parent=119 // pred_fallthru
          _
        // Predicated region
        $region133: #{tpu_custom_call.1} parent=119 // pred_check
          %p942 = pneg %p212
        $region134: #{tpu_custom_call.1} parent=119 // pred_check_branch
          %944 = sbr.rel (%p942) target = $region136
        $region135: #{tpu_custom_call.1} parent=119 // pred_region
          %945 = dma.done [#allocation11], 16
        $region136: #{tpu_custom_call.1} parent=119 // pred_fallthru
          _
        // Predicated region
        $region137: #{tpu_custom_call.1} parent=119 // pred_check
          %p946 = pneg %p254
        $region138: #{tpu_custom_call.1} parent=119 // pred_check_branch
          %948 = sbr.rel (%p946) target = $region140
        $region139: #{tpu_custom_call.1} parent=119 // pred_region
          %949 = dma.done [#allocation11], 16
        $region140: #{tpu_custom_call.1} parent=119 // pred_fallthru
          _
        %s950 = sand.u32 %s49, 1
        %s951 = scalar_lea.sflag [#allocation14], %s950
        %s952 = sand.u32 %s267, 1
        %s953 = smul.addr %s952, 64
        %s954 = scalar_lea.vmem [#allocation13], %s953
        // Predicated region
        $region141: #{tpu_custom_call.1} parent=119 // pred_check
          %p955 = pneg %p280
        $region142: #{tpu_custom_call.1} parent=119 // pred_check_branch
          %957 = sbr.rel (%p955) target = $region144
        $region143: #{tpu_custom_call.1} parent=119 // pred_region
          %958 = dma.done %s951, 1024
        $region144: #{tpu_custom_call.1} parent=119 // pred_fallthru
          _
        %s959 = sand.u32 %s49, 1
        %s960 = scalar_lea.sflag [#allocation14], %s959
        %s961 = sand.u32 %s293, 1
        %s962 = smul.addr %s961, 64
        %s963 = scalar_lea.vmem [#allocation15], %s962
        // Predicated region
        $region145: #{tpu_custom_call.1} parent=119 // pred_check
          %p964 = pneg %p306
        $region146: #{tpu_custom_call.1} parent=119 // pred_check_branch
          %966 = sbr.rel (%p964) target = $region148
        $region147: #{tpu_custom_call.1} parent=119 // pred_region
          %967 = dma.done %s960, 1024
        $region148: #{tpu_custom_call.1} parent=119 // pred_fallthru
          _
        %s968 = sand.u32 %s49, 1
        %s969 = scalar_lea.sflag [#allocation17], %s968
        %s970 = sand.u32 %s345, 1
        %s971 = smul.addr %s970, 64
        %s972 = scalar_lea.vmem [#allocation16], %s971
        // Predicated region
        $region149: #{tpu_custom_call.1} parent=119 // pred_check
          %p973 = pneg %p358
        $region150: #{tpu_custom_call.1} parent=119 // pred_check_branch
          %975 = sbr.rel (%p973) target = $region152
        $region151: #{tpu_custom_call.1} parent=119 // pred_region
          %976 = dma.done %s969, 1024
        $region152: #{tpu_custom_call.1} parent=119 // pred_fallthru
          _
        %s977 = sand.u32 %s49, 1
        %s978 = scalar_lea.sflag [#allocation17], %s977
        %s979 = sand.u32 %s449, 1
        %s980 = smul.addr %s979, 64
        %s981 = scalar_lea.vmem [#allocation18], %s980
        // Predicated region
        $region153: #{tpu_custom_call.1} parent=119 // pred_check
          %p982 = pneg %p462
        $region154: #{tpu_custom_call.1} parent=119 // pred_check_branch
          %984 = sbr.rel (%p982) target = $region156
        $region155: #{tpu_custom_call.1} parent=119 // pred_region
          %985 = dma.done %s978, 1024
        $region156: #{tpu_custom_call.1} parent=119 // pred_fallthru
          _
        %s986 = sand.u32 %s553, 1
        %s987 = scalar_lea.sflag [#allocation20], %s986
        %s988 = sand.u32 %s553, 1
        %s989 = smul.addr %s988, 64
        %s990 = scalar_lea.vmem [#allocation19], %s989
        // Predicated region
        $region157: #{tpu_custom_call.1} parent=119 // pred_check
          %p991 = pneg %p566
        $region158: #{tpu_custom_call.1} parent=119 // pred_check_branch
          %993 = sbr.rel (%p991) target = $region160
        $region159: #{tpu_custom_call.1} parent=119 // pred_region
          %994 = dma.done %s987, 1024
        $region160: #{tpu_custom_call.1} parent=119 // pred_fallthru
          _
        %p995 = pneg %p65
        %p996 = pneg %p62
        %p997 = pneg %p86
        %p998 = pneg %p83
        %p999 = pneg %p107
        %p1000 = pneg %p104
        %p1001 = pneg %p128
        %p1002 = pneg %p125
        %p1003 = pneg %p149
        %p1004 = pneg %p146
        %p1005 = pneg %p170
        %p1006 = pneg %p167
        %p1007 = pneg %p191
        %p1008 = pneg %p188
        %p1009 = pneg %p212
        %p1010 = pneg %p209
        %p1011 = pneg %p233
        %p1012 = pneg %p230
        %p1013 = pneg %p254
        %p1014 = pneg %p251
        %s1015 = sand.u32 %s49, 1
        %s1016 = scalar_lea.sflag [#allocation14], %s1015
        %s1017 = sand.u32 %s267, 1
        %s1018 = smul.addr %s1017, 64
        %s1019 = scalar_lea.vmem [#allocation13], %s1018
        %p1020 = pneg %p280
        %p1021 = pneg %p277
        %s1022 = sand.u32 %s49, 1
        %s1023 = scalar_lea.sflag [#allocation14], %s1022
        %s1024 = sand.u32 %s293, 1
        %s1025 = smul.addr %s1024, 64
        %s1026 = scalar_lea.vmem [#allocation15], %s1025
        %p1027 = pneg %p306
        %p1028 = pneg %p303
        %p1029 = scmp.lt.s32.totalorder %s49, 1
        %s1030 = scalar_select %p1029, %s49, 1
        %s1031 = scalar_lea.vmem %s12, %s1030
        %p1032 = pneg %p332
        %p1033 = pneg %p329
        %s1034 = sand.u32 %s49, 1
        %s1035 = scalar_lea.sflag [#allocation17], %s1034
        %s1036 = sand.u32 %s345, 1
        %s1037 = smul.addr %s1036, 64
        %s1038 = scalar_lea.vmem [#allocation16], %s1037
        %p1039 = pneg %p358
        %p1040 = pneg %p355
        %p1041 = scmp.lt.s32.totalorder %s49, 1
        %s1042 = scalar_select %p1041, %s49, 1
        %s1043 = scalar_lea.vmem %s14, %s1042
        %p1044 = pneg %p384
        %p1045 = pneg %p381
        %p1046 = scmp.lt.s32.totalorder %s49, 1
        %s1047 = scalar_select %p1046, %s49, 1
        %s1048 = scalar_lea.vmem %s15, %s1047
        %p1049 = pneg %p410
        %p1050 = pneg %p407
        %p1051 = scmp.lt.s32.totalorder %s49, 1
        %s1052 = scalar_select %p1051, %s49, 1
        %s1053 = scalar_lea.vmem %s16, %s1052
        %p1054 = pneg %p436
        %p1055 = pneg %p433
        %s1056 = sand.u32 %s49, 1
        %s1057 = scalar_lea.sflag [#allocation17], %s1056
        %s1058 = sand.u32 %s449, 1
        %s1059 = smul.addr %s1058, 64
        %s1060 = scalar_lea.vmem [#allocation18], %s1059
        %p1061 = pneg %p462
        %p1062 = pneg %p459
        %p1063 = scmp.lt.s32.totalorder %s49, 1
        %s1064 = scalar_select %p1063, %s49, 1
        %s1065 = scalar_lea.vmem %s18, %s1064
        %p1066 = pneg %p488
        %p1067 = pneg %p485
        %p1068 = scmp.lt.s32.totalorder %s49, 1
        %s1069 = scalar_select %p1068, %s49, 1
        %s1070 = scalar_lea.vmem %s19, %s1069
        %p1071 = pneg %p514
        %p1072 = pneg %p511
        %p1073 = scmp.lt.s32.totalorder %s49, 1
        %s1074 = scalar_select %p1073, %s49, 1
        %s1075 = scalar_lea.vmem %s20, %s1074
        %p1076 = pneg %p540
        %p1077 = pneg %p537
        %s1078 = sand.u32 %s553, 1
        %s1079 = scalar_lea.sflag [#allocation20], %s1078
        %s1080 = sand.u32 %s553, 1
        %s1081 = smul.addr %s1080, 64
        %s1082 = scalar_lea.vmem [#allocation19], %s1081
        %p1083 = pneg %p566
        %p1084 = pneg %p563
        %p1085 = scmp.lt.s32.totalorder %s49, 1
        %s1086 = scalar_select %p1085, %s49, 1
        %s1087 = scalar_lea.vmem %s22, %s1086
        %p1088 = pneg %p592
        %p1089 = pneg %p589
        %p1090 = scmp.lt.s32.totalorder %s49, 1
        %s1091 = scalar_select %p1090, %s49, 1
        %s1092 = scalar_lea.vmem %s23, %s1091
        %p1093 = pneg %p618
        %p1094 = pneg %p615
        %p1095 = scmp.lt.s32.totalorder %s49, 1
        %s1096 = scalar_select %p1095, %s49, 1
        %s1097 = scalar_lea.vmem %s24, %s1096
        %p1098 = pneg %p644
        %p1099 = pneg %p641
        %p1100 = pneg %p665
        %p1101 = pneg %p662
        %p1102 = scmp.lt.s32.totalorder %s49, 1
        %s1103 = scalar_select %p1102, %s49, 1
        %s1104 = scalar_lea.vmem %s12, %s1103
        %p1105 = scmp.lt.s32.totalorder %s49, 1
        %s1106 = scalar_select %p1105, %s49, 1
        %s1107 = scalar_lea.vmem %s14, %s1106
        %p1108 = scmp.lt.s32.totalorder %s49, 1
        %s1109 = scalar_select %p1108, %s49, 1
        %s1110 = scalar_lea.vmem %s15, %s1109
        %p1111 = scmp.lt.s32.totalorder %s49, 1
        %s1112 = scalar_select %p1111, %s49, 1
        %s1113 = scalar_lea.vmem %s16, %s1112
        %p1114 = scmp.lt.s32.totalorder %s49, 1
        %s1115 = scalar_select %p1114, %s49, 1
        %s1116 = scalar_lea.vmem %s18, %s1115
        %p1117 = scmp.lt.s32.totalorder %s49, 1
        %s1118 = scalar_select %p1117, %s49, 1
        %s1119 = scalar_lea.vmem %s19, %s1118
        %p1120 = scmp.lt.s32.totalorder %s49, 1
        %s1121 = scalar_select %p1120, %s49, 1
        %s1122 = scalar_lea.vmem %s20, %s1121
        %p1123 = scmp.lt.s32.totalorder %s49, 1
        %s1124 = scalar_select %p1123, %s49, 1
        %s1125 = scalar_lea.vmem %s22, %s1124
        %p1126 = scmp.lt.s32.totalorder %s49, 1
        %s1127 = scalar_select %p1126, %s49, 1
        %s1128 = scalar_lea.vmem %s23, %s1127
        %p1129 = scmp.lt.s32.totalorder %s49, 1
        %s1130 = scalar_select %p1129, %s49, 1
        %s1131 = scalar_lea.vmem %s24, %s1130
        %v1133 = vld [vmem:[%s4] sm:$0xff]
        %v1134 = vld [vmem:[%s4 + $0x8] sm:$0xff]
        %v1135 = vld [vmem:[%s4 + $0x10] sm:$0xff]
        %v1136 = vld [vmem:[%s4 + $0x18] sm:$0xff]
        %v1137 = vld [vmem:[%s4 + $0x20] sm:$0xff]
        %v1138 = vld [vmem:[%s4 + $0x28] sm:$0xff]
        %v1139 = vld [vmem:[%s4 + $0x30] sm:$0xff]
        %v1140 = vld [vmem:[%s4 + $0x38] sm:$0xff]
        %v1141 = vld [vmem:[%s4 + $0x40] sm:$0xff]
        %v1142 = vld [vmem:[%s4 + $0x48] sm:$0xff]
        %v1143 = vld [vmem:[%s4 + $0x50] sm:$0xff]
        %v1144 = vld [vmem:[%s4 + $0x58] sm:$0xff]
        %v1145 = vld [vmem:[%s4 + $0x60] sm:$0xff]
        %v1146 = vld [vmem:[%s4 + $0x68] sm:$0xff]
        %v1147 = vld [vmem:[%s4 + $0x70] sm:$0xff]
        %v1148 = vld [vmem:[%s4 + $0x78] sm:$0xff]
        %v1149 = vld [vmem:[%s5] sm:$0xff]
        %v1150 = vld [vmem:[%s5 + $0x8] sm:$0xff]
        %v1151 = vld [vmem:[#allocation7] sm:$0xf]
        %v1152 = vld [vmem:[#allocation7 + $0x4] sm:$0xf]
        %p1153 = scmp.eq.s32.totalorder %s49, 0
        // Predicated region
        $region161: #{tpu_custom_call.1} parent=119 // pred_check
          %p1154 = pneg %p1153
        $region162: #{tpu_custom_call.1} parent=119 // pred_check_branch
          %1156 = sbr.rel (%p1154) target = $region164
        $region163: #{tpu_custom_call.1} parent=119 // pred_region
          %v1157 = vld [vmem:[%s1] sm:$0xff]
          %v1158 = vld [vmem:[%s1 + $0x8] sm:$0xff]
          %v1159 = vld [vmem:[%s1 + $0x10] sm:$0xff]
          %v1160 = vld [vmem:[%s1 + $0x18] sm:$0xff]
          %v1161 = vld [vmem:[%s1 + $0x20] sm:$0xff]
          %v1162 = vld [vmem:[%s1 + $0x28] sm:$0xff]
          %v1163 = vld [vmem:[%s1 + $0x30] sm:$0xff]
          %v1164 = vld [vmem:[%s1 + $0x38] sm:$0xff]
          %v1165 = vld [vmem:[%s1 + $0x40] sm:$0xff]
          %v1166 = vld [vmem:[%s1 + $0x48] sm:$0xff]
          %v1167 = vld [vmem:[%s1 + $0x50] sm:$0xff]
          %v1168 = vld [vmem:[%s1 + $0x58] sm:$0xff]
          %v1169 = vld [vmem:[%s1 + $0x60] sm:$0xff]
          %v1170 = vld [vmem:[%s1 + $0x68] sm:$0xff]
          %v1171 = vld [vmem:[%s1 + $0x70] sm:$0xff]
          %v1172 = vld [vmem:[%s1 + $0x78] sm:$0xff]
          %1173 = vst [vmem:[#allocation2] sm:$0xff] %v1157
          %1174 = vst [vmem:[#allocation2 + $0x8] sm:$0xff] %v1158
          %1175 = vst [vmem:[#allocation2 + $0x10] sm:$0xff] %v1159
          %1176 = vst [vmem:[#allocation2 + $0x18] sm:$0xff] %v1160
          %1177 = vst [vmem:[#allocation2 + $0x20] sm:$0xff] %v1161
          %1178 = vst [vmem:[#allocation2 + $0x28] sm:$0xff] %v1162
          %1179 = vst [vmem:[#allocation2 + $0x30] sm:$0xff] %v1163
          %1180 = vst [vmem:[#allocation2 + $0x38] sm:$0xff] %v1164
          %1181 = vst [vmem:[#allocation2 + $0x40] sm:$0xff] %v1165
          %1182 = vst [vmem:[#allocation2 + $0x48] sm:$0xff] %v1166
          %1183 = vst [vmem:[#allocation2 + $0x50] sm:$0xff] %v1167
          %1184 = vst [vmem:[#allocation2 + $0x58] sm:$0xff] %v1168
          %1185 = vst [vmem:[#allocation2 + $0x60] sm:$0xff] %v1169
          %1186 = vst [vmem:[#allocation2 + $0x68] sm:$0xff] %v1170
          %1187 = vst [vmem:[#allocation2 + $0x70] sm:$0xff] %v1171
          %1188 = vst [vmem:[#allocation2 + $0x78] sm:$0xff] %v1172
          %v1189 = vld [vmem:[#allocation9] sm:$0x1]
          %v1191 = vlaneseq
          %v1192 = vshrl.u32 %v1191, 7
          %v1193 = vsub.s32 0, %v1192
          %v1194 = vrot.slane %v1189, %v1193
          %1197 = vset.pattern.permute.xlu0 0
          %1198 = vperm.xlu0 %1197, %v1149
          %v1199 = vpop.permute.xlu0 %1198
          %1202 = vset.pattern.permute.xlu0 0
          %1203 = vperm.xlu0 %1202, %v1150
          %v1204 = vpop.permute.xlu0 %1203
          %v1206 = vmul.f32 %v1194, %v1199
          %v1207 = vmul.f32 %v1194, %v1204
          %1208 = vst [vmem:[#allocation3] sm:$0xff] %v1206
          %1209 = vst [vmem:[#allocation3 + $0x8] sm:$0xff] %v1207
        $region164: #{tpu_custom_call.1} parent=119 // pred_fallthru
          _
        %v1210 = vld [vmem:[#allocation3] sm:$0xff]
        %v1211 = vld [vmem:[#allocation3 + $0x8] sm:$0xff]
        %v1212 = vpack.c.bf16 %v1211, %v1210
        %v1215 = vunpack.c.l.b16 %v1151
        %v1216 = vunpack.c.l.b16 %v1152
        %v1217 = vpack.c.b16 %v1216, %v1215
        %1219 = vxpose.xlu0.c.b16.start [1/8] %v1217, 128
        %1220 = vxpose.xlu0.c.b16.cont [2/8] 0, 128
        %1221 = vxpose.xlu0.c.b16.cont [3/8] 0, 128
        %1222 = vxpose.xlu0.c.b16.cont [4/8] 0, 128
        %1223 = vxpose.xlu0.c.b16.cont [5/8] 0, 128
        %1224 = vxpose.xlu0.c.b16.cont [6/8] 0, 128
        %1225 = vxpose.xlu0.c.b16.cont [7/8] 0, 128
        %1226 = vxpose.xlu0.c.b16.end [8/8] 0, 128
        %v1227 = vpop.trf.xlu0
        %v1228 = vpop.trf.xlu0
        %v1229 = vpop.trf.xlu0
        %v1230 = vpop.trf.xlu0
        %v1231 = vpop.trf.xlu0
        %v1232 = vpop.trf.xlu0
        %v1233 = vpop.trf.xlu0
        %v1234 = vpop.trf.xlu0
        %vm1235 = vcmask 130048
        %v1237 = vsel %vm1235, %v1227, 0
        %v1240 = vsel %vm1235, %v1228, 0
        %v1243 = vsel %vm1235, %v1229, 0
        %v1246 = vsel %vm1235, %v1230, 0
        %v1249 = vsel %vm1235, %v1231, 0
        %v1252 = vsel %vm1235, %v1232, 0
        %v1255 = vsel %vm1235, %v1233, 0
        %v1258 = vsel %vm1235, %v1234, 0
        %1260 = vmatprep.subr.bf16.mxu0 0
        %1261 = vmatpush1.bf16.msra.mxu0 %v1212
        %1262 = vmatprep.subr.bf16.mxu0 0
        %1263 = vmatpush1.bf16.msra.mxu0 0
        %1264 = vmatprep.subr.bf16.mxu0 0
        %1265 = vmatpush1.bf16.msra.mxu0 0
        %1266 = vmatprep.subr.bf16.mxu0 0
        %1267 = vmatpush1.bf16.msra.mxu0 0
        %1268 = vmatprep.subr.bf16.mxu0 0
        %1269 = vmatpush1.bf16.msra.mxu0 0
        %1270 = vmatprep.subr.bf16.mxu0 0
        %1271 = vmatpush1.bf16.msra.mxu0 0
        %1272 = vmatprep.subr.bf16.mxu0 0
        %1273 = vmatpush1.bf16.msra.mxu0 0
        %1274 = vmatprep.subr.bf16.mxu0 0
        %1275 = vmatpush1.bf16.msra.mxu0 0
        %1276 = vmatprep.subr.bf16.mxu0 0
        %1277 = vmatpush1.bf16.msra.mxu0 0
        %1278 = vmatprep.subr.bf16.mxu0 0
        %1279 = vmatpush1.bf16.msra.mxu0 0
        %1280 = vmatprep.subr.bf16.mxu0 0
        %1281 = vmatpush1.bf16.msra.mxu0 0
        %1282 = vmatprep.subr.bf16.mxu0 0
        %1283 = vmatpush1.bf16.msra.mxu0 0
        %1284 = vmatprep.subr.bf16.mxu0 0
        %1285 = vmatpush1.bf16.msra.mxu0 0
        %1286 = vmatprep.subr.bf16.mxu0 0
        %1287 = vmatpush1.bf16.msra.mxu0 0
        %1288 = vmatprep.subr.bf16.mxu0 0
        %1289 = vmatpush1.bf16.msra.mxu0 0
        %1290 = vmatprep.subr.bf16.mxu0 0
        %1291 = vmatpush1.bf16.msra.mxu0 0
        %1292 = vmatprep.mubr.bf16.mxu0 0
        %1293 = vmatmul.mubr.bf16.gmra.mrb[0].mxu0 %v1237
        %v1294 = vpop.f32.mrb[0].mxu0
        %v1295 = vadd.f32 0.0, %v1294
        %v1296 = vpop.f32.mrb[0].mxu0
        %v1297 = vpop.f32.mrb[0].mxu0
        %v1298 = vadd.f32 0.0, %v1297
        %v1299 = vpop.f32.mrb[0].mxu0
        %1300 = vmatprep.mubr.bf16.mxu0 0
        %1301 = vmatmul.mubr.bf16.gmra.mrb[0].mxu0 %v1240
        %v1302 = vpop.f32.mrb[0].mxu0
        %v1303 = vadd.f32 0.0, %v1302
        %v1304 = vpop.f32.mrb[0].mxu0
        %v1305 = vpop.f32.mrb[0].mxu0
        %v1306 = vadd.f32 0.0, %v1305
        %v1307 = vpop.f32.mrb[0].mxu0
        %1308 = vmatprep.mubr.bf16.mxu0 0
        %1309 = vmatmul.mubr.bf16.gmra.mrb[0].mxu0 %v1243
        %v1310 = vpop.f32.mrb[0].mxu0
        %v1311 = vadd.f32 0.0, %v1310
        %v1312 = vpop.f32.mrb[0].mxu0
        %v1313 = vpop.f32.mrb[0].mxu0
        %v1314 = vadd.f32 0.0, %v1313
        %v1315 = vpop.f32.mrb[0].mxu0
        %1316 = vmatprep.mubr.bf16.mxu0 0
        %1317 = vmatmul.mubr.bf16.gmra.mrb[0].mxu0 %v1246
        %v1318 = vpop.f32.mrb[0].mxu0
        %v1319 = vadd.f32 0.0, %v1318
        %v1320 = vpop.f32.mrb[0].mxu0
        %v1321 = vpop.f32.mrb[0].mxu0
        %v1322 = vadd.f32 0.0, %v1321
        %v1323 = vpop.f32.mrb[0].mxu0
        %1324 = vmatprep.mubr.bf16.mxu0 0
        %1325 = vmatmul.mubr.bf16.gmra.mrb[0].mxu0 %v1249
        %v1326 = vpop.f32.mrb[0].mxu0
        %v1327 = vadd.f32 0.0, %v1326
        %v1328 = vpop.f32.mrb[0].mxu0
        %v1329 = vpop.f32.mrb[0].mxu0
        %v1330 = vadd.f32 0.0, %v1329
        %v1331 = vpop.f32.mrb[0].mxu0
        %1332 = vmatprep.mubr.bf16.mxu0 0
        %1333 = vmatmul.mubr.bf16.gmra.mrb[0].mxu0 %v1252
        %v1334 = vpop.f32.mrb[0].mxu0
        %v1335 = vadd.f32 0.0, %v1334
        %v1336 = vpop.f32.mrb[0].mxu0
        %v1337 = vpop.f32.mrb[0].mxu0
        %v1338 = vadd.f32 0.0, %v1337
        %v1339 = vpop.f32.mrb[0].mxu0
        %1340 = vmatprep.mubr.bf16.mxu0 0
        %1341 = vmatmul.mubr.bf16.gmra.mrb[0].mxu0 %v1255
        %v1342 = vpop.f32.mrb[0].mxu0
        %v1343 = vadd.f32 0.0, %v1342
        %v1344 = vpop.f32.mrb[0].mxu0
        %v1345 = vpop.f32.mrb[0].mxu0
        %v1346 = vadd.f32 0.0, %v1345
        %v1347 = vpop.f32.mrb[0].mxu0
        %1348 = vmatprep.mubr.bf16.mxu0 0
        %1349 = vmatmul.mubr.bf16.gmra.mrb[0].mxu0 %v1258
        %v1350 = vpop.f32.mrb[0].mxu0
        %v1351 = vadd.f32 0.0, %v1350
        %v1352 = vpop.f32.mrb[0].mxu0
        %v1353 = vpop.f32.mrb[0].mxu0
        %v1354 = vadd.f32 0.0, %v1353
        %v1355 = vpop.f32.mrb[0].mxu0
        %1356 = vdwg.mxu0
        %v1357 = vld [vmem:[#allocation2] sm:$0xff]
        %v1358 = vld [vmem:[#allocation2 + $0x8] sm:$0xff]
        %v1359 = vld [vmem:[#allocation2 + $0x10] sm:$0xff]
        %v1360 = vld [vmem:[#allocation2 + $0x18] sm:$0xff]
        %v1361 = vld [vmem:[#allocation2 + $0x20] sm:$0xff]
        %v1362 = vld [vmem:[#allocation2 + $0x28] sm:$0xff]
        %v1363 = vld [vmem:[#allocation2 + $0x30] sm:$0xff]
        %v1364 = vld [vmem:[#allocation2 + $0x38] sm:$0xff]
        %v1365 = vld [vmem:[#allocation2 + $0x40] sm:$0xff]
        %v1366 = vld [vmem:[#allocation2 + $0x48] sm:$0xff]
        %v1367 = vld [vmem:[#allocation2 + $0x50] sm:$0xff]
        %v1368 = vld [vmem:[#allocation2 + $0x58] sm:$0xff]
        %v1369 = vld [vmem:[#allocation2 + $0x60] sm:$0xff]
        %v1370 = vld [vmem:[#allocation2 + $0x68] sm:$0xff]
        %v1371 = vld [vmem:[#allocation2 + $0x70] sm:$0xff]
        %v1372 = vld [vmem:[#allocation2 + $0x78] sm:$0xff]
        %v1373 = vadd.f32 %v1357, %v1295
        %v1374 = vadd.f32 %v1358, %v1298
        %v1375 = vadd.f32 %v1359, %v1303
        %v1376 = vadd.f32 %v1360, %v1306
        %v1377 = vadd.f32 %v1361, %v1311
        %v1378 = vadd.f32 %v1362, %v1314
        %v1379 = vadd.f32 %v1363, %v1319
        %v1380 = vadd.f32 %v1364, %v1322
        %v1381 = vadd.f32 %v1365, %v1327
        %v1382 = vadd.f32 %v1366, %v1330
        %v1383 = vadd.f32 %v1367, %v1335
        %v1384 = vadd.f32 %v1368, %v1338
        %v1385 = vadd.f32 %v1369, %v1343
        %v1386 = vadd.f32 %v1370, %v1346
        %v1387 = vadd.f32 %v1371, %v1351
        %v1388 = vadd.f32 %v1372, %v1354
        %v1389 = vpack.c.bf16 %v1374, %v1373
        %v1390 = vpack.c.bf16 %v1376, %v1375
        %v1391 = vpack.c.bf16 %v1378, %v1377
        %v1392 = vpack.c.bf16 %v1380, %v1379
        %v1393 = vpack.c.bf16 %v1382, %v1381
        %v1394 = vpack.c.bf16 %v1384, %v1383
        %v1395 = vpack.c.bf16 %v1386, %v1385
        %v1396 = vpack.c.bf16 %v1388, %v1387
        %v1397 = vld [vmem:[#allocation4] sm:$0xf]
        %v1398 = vld [vmem:[#allocation4 + $0x4] sm:$0xf]
        %v1399 = vld [vmem:[#allocation4 + $0x8] sm:$0xf]
        %v1400 = vld [vmem:[#allocation4 + $0xc] sm:$0xf]
        %v1401 = vld [vmem:[#allocation4 + $0x10] sm:$0xf]
        %v1402 = vld [vmem:[#allocation4 + $0x14] sm:$0xf]
        %v1403 = vld [vmem:[#allocation4 + $0x18] sm:$0xf]
        %v1404 = vld [vmem:[#allocation4 + $0x1c] sm:$0xf]
        %v1405 = vld [vmem:[#allocation4 + $0x20] sm:$0xf]
        %v1406 = vld [vmem:[#allocation4 + $0x24] sm:$0xf]
        %v1407 = vld [vmem:[#allocation4 + $0x28] sm:$0xf]
        %v1408 = vld [vmem:[#allocation4 + $0x2c] sm:$0xf]
        %v1409 = vld [vmem:[#allocation4 + $0x30] sm:$0xf]
        %v1410 = vld [vmem:[#allocation4 + $0x34] sm:$0xf]
        %v1411 = vld [vmem:[#allocation4 + $0x38] sm:$0xf]
        %v1412 = vld [vmem:[#allocation4 + $0x3c] sm:$0xf]
        %v1413 = vld [vmem:[%s954] sm:$0xf]
        %v1414 = vld [vmem:[%s954 + $0x4] sm:$0xf]
        %v1415 = vld [vmem:[%s954 + $0x8] sm:$0xf]
        %v1416 = vld [vmem:[%s954 + $0xc] sm:$0xf]
        %v1417 = vld [vmem:[%s954 + $0x10] sm:$0xf]
        %v1418 = vld [vmem:[%s954 + $0x14] sm:$0xf]
        %v1419 = vld [vmem:[%s954 + $0x18] sm:$0xf]
        %v1420 = vld [vmem:[%s954 + $0x1c] sm:$0xf]
        %v1421 = vld [vmem:[%s954 + $0x20] sm:$0xf]
        %v1422 = vld [vmem:[%s954 + $0x24] sm:$0xf]
        %v1423 = vld [vmem:[%s954 + $0x28] sm:$0xf]
        %v1424 = vld [vmem:[%s954 + $0x2c] sm:$0xf]
        %v1425 = vld [vmem:[%s954 + $0x30] sm:$0xf]
        %v1426 = vld [vmem:[%s954 + $0x34] sm:$0xf]
        %v1427 = vld [vmem:[%s954 + $0x38] sm:$0xf]
        %v1428 = vld [vmem:[%s954 + $0x3c] sm:$0xf]
        %v1429 = vunpack.c.l.bf16 %v1413
        %v1430 = vunpack.c.l.bf16 %v1414
        %v1431 = vunpack.c.l.bf16 %v1415
        %v1432 = vunpack.c.l.bf16 %v1416
        %v1433 = vunpack.c.l.bf16 %v1417
        %v1434 = vunpack.c.l.bf16 %v1418
        %v1435 = vunpack.c.l.bf16 %v1419
        %v1436 = vunpack.c.l.bf16 %v1420
        %v1437 = vunpack.c.l.bf16 %v1421
        %v1438 = vunpack.c.l.bf16 %v1422
        %v1439 = vunpack.c.l.bf16 %v1423
        %v1440 = vunpack.c.l.bf16 %v1424
        %v1441 = vunpack.c.l.bf16 %v1425
        %v1442 = vunpack.c.l.bf16 %v1426
        %v1443 = vunpack.c.l.bf16 %v1427
        %v1444 = vunpack.c.l.bf16 %v1428
        %v1461 = vunpack.c.l.b16 %v1397
        %v1462 = vunpack.c.l.b16 %v1398
        %v1463 = vunpack.c.l.b16 %v1399
        %v1464 = vunpack.c.l.b16 %v1400
        %v1465 = vunpack.c.l.b16 %v1401
        %v1466 = vunpack.c.l.b16 %v1402
        %v1467 = vunpack.c.l.b16 %v1403
        %v1468 = vunpack.c.l.b16 %v1404
        %v1469 = vunpack.c.l.b16 %v1405
        %v1470 = vunpack.c.l.b16 %v1406
        %v1471 = vunpack.c.l.b16 %v1407
        %v1472 = vunpack.c.l.b16 %v1408
        %v1473 = vunpack.c.l.b16 %v1409
        %v1474 = vunpack.c.l.b16 %v1410
        %v1475 = vunpack.c.l.b16 %v1411
        %v1476 = vunpack.c.l.b16 %v1412
        %v1477 = vpack.c.b16 %v1462, %v1461
        %v1478 = vpack.c.b16 %v1464, %v1463
        %v1479 = vpack.c.b16 %v1466, %v1465
        %v1480 = vpack.c.b16 %v1468, %v1467
        %v1481 = vpack.c.b16 %v1470, %v1469
        %v1482 = vpack.c.b16 %v1472, %v1471
        %v1483 = vpack.c.b16 %v1474, %v1473
        %v1484 = vpack.c.b16 %v1476, %v1475
        %1493 = vmatprep.subr.bf16.mxu0 0
        %1494 = vmatpush1.bf16.msra.mxu0 %v1389
        %1495 = vmatprep.subr.bf16.mxu0 0
        %1496 = vmatpush1.bf16.msra.mxu0 %v1390
        %1497 = vmatprep.subr.bf16.mxu0 0
        %1498 = vmatpush1.bf16.msra.mxu0 %v1391
        %1499 = vmatprep.subr.bf16.mxu0 0
        %1500 = vmatpush1.bf16.msra.mxu0 %v1392
        %1501 = vmatprep.subr.bf16.mxu0 0
        %1502 = vmatpush1.bf16.msra.mxu0 %v1393
        %1503 = vmatprep.subr.bf16.mxu0 0
        %1504 = vmatpush1.bf16.msra.mxu0 %v1394
        %1505 = vmatprep.subr.bf16.mxu0 0
        %1506 = vmatpush1.bf16.msra.mxu0 %v1395
        %1507 = vmatprep.subr.bf16.mxu0 0
        %1508 = vmatpush1.bf16.msra.mxu0 %v1396
        %1509 = vmatprep.subr.bf16.mxu0 0
        %1510 = vmatpush1.bf16.msra.mxu0 0
        %1511 = vmatprep.subr.bf16.mxu0 0
        %1512 = vmatpush1.bf16.msra.mxu0 0
        %1513 = vmatprep.subr.bf16.mxu0 0
        %1514 = vmatpush1.bf16.msra.mxu0 0
        %1515 = vmatprep.subr.bf16.mxu0 0
        %1516 = vmatpush1.bf16.msra.mxu0 0
        %1517 = vmatprep.subr.bf16.mxu0 0
        %1518 = vmatpush1.bf16.msra.mxu0 0
        %1519 = vmatprep.subr.bf16.mxu0 0
        %1520 = vmatpush1.bf16.msra.mxu0 0
        %1521 = vmatprep.subr.bf16.mxu0 0
        %1522 = vmatpush1.bf16.msra.mxu0 0
        %1523 = vmatprep.subr.bf16.mxu0 0
        %1524 = vmatpush1.bf16.msra.mxu0 0
        %1525 = vmatprep.mubr.bf16.mxu0 0
        %1526 = vmatmul.mubr.bf16.gmra.mrb[0].mxu0 %v1477
        %v1527 = vpop.f32.mrb[0].mxu0
        %v1528 = vadd.f32 %v1429, %v1527
        %v1529 = vpop.f32.mrb[0].mxu0
        %v1530 = vpop.f32.mrb[0].mxu0
        %v1531 = vadd.f32 %v1430, %v1530
        %v1532 = vpop.f32.mrb[0].mxu0
        %1533 = vmatprep.mubr.bf16.mxu0 0
        %1534 = vmatmul.mubr.bf16.gmra.mrb[0].mxu0 %v1478
        %v1535 = vpop.f32.mrb[0].mxu0
        %v1536 = vadd.f32 %v1431, %v1535
        %v1537 = vpop.f32.mrb[0].mxu0
        %v1538 = vpop.f32.mrb[0].mxu0
        %v1539 = vadd.f32 %v1432, %v1538
        %v1540 = vpop.f32.mrb[0].mxu0
        %1541 = vmatprep.mubr.bf16.mxu0 0
        %1542 = vmatmul.mubr.bf16.gmra.mrb[0].mxu0 %v1479
        %v1543 = vpop.f32.mrb[0].mxu0
        %v1544 = vadd.f32 %v1433, %v1543
        %v1545 = vpop.f32.mrb[0].mxu0
        %v1546 = vpop.f32.mrb[0].mxu0
        %v1547 = vadd.f32 %v1434, %v1546
        %v1548 = vpop.f32.mrb[0].mxu0
        %1549 = vmatprep.mubr.bf16.mxu0 0
        %1550 = vmatmul.mubr.bf16.gmra.mrb[0].mxu0 %v1480
        %v1551 = vpop.f32.mrb[0].mxu0
        %v1552 = vadd.f32 %v1435, %v1551
        %v1553 = vpop.f32.mrb[0].mxu0
        %v1554 = vpop.f32.mrb[0].mxu0
        %v1555 = vadd.f32 %v1436, %v1554
        %v1556 = vpop.f32.mrb[0].mxu0
        %1557 = vmatprep.mubr.bf16.mxu0 0
        %1558 = vmatmul.mubr.bf16.gmra.mrb[0].mxu0 %v1481
        %v1559 = vpop.f32.mrb[0].mxu0
        %v1560 = vadd.f32 %v1437, %v1559
        %v1561 = vpop.f32.mrb[0].mxu0
        %v1562 = vpop.f32.mrb[0].mxu0
        %v1563 = vadd.f32 %v1438, %v1562
        %v1564 = vpop.f32.mrb[0].mxu0
        %1565 = vmatprep.mubr.bf16.mxu0 0
        %1566 = vmatmul.mubr.bf16.gmra.mrb[0].mxu0 %v1482
        %v1567 = vpop.f32.mrb[0].mxu0
        %v1568 = vadd.f32 %v1439, %v1567
        %v1569 = vpop.f32.mrb[0].mxu0
        %v1570 = vpop.f32.mrb[0].mxu0
        %v1571 = vadd.f32 %v1440, %v1570
        %v1572 = vpop.f32.mrb[0].mxu0
        %1573 = vmatprep.mubr.bf16.mxu0 0
        %1574 = vmatmul.mubr.bf16.gmra.mrb[0].mxu0 %v1483
        %v1575 = vpop.f32.mrb[0].mxu0
        %v1576 = vadd.f32 %v1441, %v1575
        %v1577 = vpop.f32.mrb[0].mxu0
        %v1578 = vpop.f32.mrb[0].mxu0
        %v1579 = vadd.f32 %v1442, %v1578
        %v1580 = vpop.f32.mrb[0].mxu0
        %1581 = vmatprep.mubr.bf16.mxu0 0
        %1582 = vmatmul.mubr.bf16.gmra.mrb[0].mxu0 %v1484
        %v1583 = vpop.f32.mrb[0].mxu0
        %v1584 = vadd.f32 %v1443, %v1583
        %v1585 = vpop.f32.mrb[0].mxu0
        %v1586 = vpop.f32.mrb[0].mxu0
        %v1587 = vadd.f32 %v1444, %v1586
        %v1588 = vpop.f32.mrb[0].mxu0
        %1589 = vdwg.mxu0
        %v1590 = vpack.c.bf16 %v1531, %v1528
        %v1591 = vpack.c.bf16 %v1539, %v1536
        %v1592 = vpack.c.bf16 %v1547, %v1544
        %v1593 = vpack.c.bf16 %v1555, %v1552
        %v1594 = vpack.c.bf16 %v1563, %v1560
        %v1595 = vpack.c.bf16 %v1571, %v1568
        %v1596 = vpack.c.bf16 %v1579, %v1576
        %v1597 = vpack.c.bf16 %v1587, %v1584
        %v1598 = vld [vmem:[%s963] sm:$0xf]
        %v1599 = vld [vmem:[%s963 + $0x4] sm:$0xf]
        %v1600 = vld [vmem:[%s963 + $0x8] sm:$0xf]
        %v1601 = vld [vmem:[%s963 + $0xc] sm:$0xf]
        %v1602 = vld [vmem:[%s963 + $0x10] sm:$0xf]
        %v1603 = vld [vmem:[%s963 + $0x14] sm:$0xf]
        %v1604 = vld [vmem:[%s963 + $0x18] sm:$0xf]
        %v1605 = vld [vmem:[%s963 + $0x1c] sm:$0xf]
        %v1606 = vld [vmem:[%s963 + $0x20] sm:$0xf]
        %v1607 = vld [vmem:[%s963 + $0x24] sm:$0xf]
        %v1608 = vld [vmem:[%s963 + $0x28] sm:$0xf]
        %v1609 = vld [vmem:[%s963 + $0x2c] sm:$0xf]
        %v1610 = vld [vmem:[%s963 + $0x30] sm:$0xf]
        %v1611 = vld [vmem:[%s963 + $0x34] sm:$0xf]
        %v1612 = vld [vmem:[%s963 + $0x38] sm:$0xf]
        %v1613 = vld [vmem:[%s963 + $0x3c] sm:$0xf]
        %v1614 = vld [vmem:[%s1104] sm:$0x1]
        %v1616 = vlaneseq
        %v1617 = vshrl.u32 %v1616, 7
        %v1618 = vsub.s32 0, %v1617
        %v1619 = vrot.slane %v1614, %v1618
        %v1637 = vunpack.c.l.b16 %v1598
        %v1638 = vunpack.c.l.b16 %v1599
        %v1639 = vunpack.c.l.b16 %v1600
        %v1640 = vunpack.c.l.b16 %v1601
        %v1641 = vunpack.c.l.b16 %v1602
        %v1642 = vunpack.c.l.b16 %v1603
        %v1643 = vunpack.c.l.b16 %v1604
        %v1644 = vunpack.c.l.b16 %v1605
        %v1645 = vunpack.c.l.b16 %v1606
        %v1646 = vunpack.c.l.b16 %v1607
        %v1647 = vunpack.c.l.b16 %v1608
        %v1648 = vunpack.c.l.b16 %v1609
        %v1649 = vunpack.c.l.b16 %v1610
        %v1650 = vunpack.c.l.b16 %v1611
        %v1651 = vunpack.c.l.b16 %v1612
        %v1652 = vunpack.c.l.b16 %v1613
        %v1653 = vpack.c.b16 %v1638, %v1637
        %v1654 = vpack.c.b16 %v1640, %v1639
        %v1655 = vpack.c.b16 %v1642, %v1641
        %v1656 = vpack.c.b16 %v1644, %v1643
        %v1657 = vpack.c.b16 %v1646, %v1645
        %v1658 = vpack.c.b16 %v1648, %v1647
        %v1659 = vpack.c.b16 %v1650, %v1649
        %v1660 = vpack.c.b16 %v1652, %v1651
        %1669 = vmatprep.subr.bf16.mxu0 0
        %1670 = vmatpush1.bf16.msra.mxu0 %v1653
        %1671 = vmatprep.subr.bf16.mxu0 0
        %1672 = vmatpush1.bf16.msra.mxu0 %v1654
        %1673 = vmatprep.subr.bf16.mxu0 0
        %1674 = vmatpush1.bf16.msra.mxu0 %v1655
        %1675 = vmatprep.subr.bf16.mxu0 0
        %1676 = vmatpush1.bf16.msra.mxu0 %v1656
        %1677 = vmatprep.subr.bf16.mxu0 0
        %1678 = vmatpush1.bf16.msra.mxu0 %v1657
        %1679 = vmatprep.subr.bf16.mxu0 0
        %1680 = vmatpush1.bf16.msra.mxu0 %v1658
        %1681 = vmatprep.subr.bf16.mxu0 0
        %1682 = vmatpush1.bf16.msra.mxu0 %v1659
        %1683 = vmatprep.subr.bf16.mxu0 0
        %1684 = vmatpush1.bf16.msra.mxu0 %v1660
        %1685 = vmatprep.subr.bf16.mxu0 0
        %1686 = vmatpush1.bf16.msra.mxu0 0
        %1687 = vmatprep.subr.bf16.mxu0 0
        %1688 = vmatpush1.bf16.msra.mxu0 0
        %1689 = vmatprep.subr.bf16.mxu0 0
        %1690 = vmatpush1.bf16.msra.mxu0 0
        %1691 = vmatprep.subr.bf16.mxu0 0
        %1692 = vmatpush1.bf16.msra.mxu0 0
        %1693 = vmatprep.subr.bf16.mxu0 0
        %1694 = vmatpush1.bf16.msra.mxu0 0
        %1695 = vmatprep.subr.bf16.mxu0 0
        %1696 = vmatpush1.bf16.msra.mxu0 0
        %1697 = vmatprep.subr.bf16.mxu0 0
        %1698 = vmatpush1.bf16.msra.mxu0 0
        %1699 = vmatprep.subr.bf16.mxu0 0
        %1700 = vmatpush1.bf16.msra.mxu0 0
        %1701 = vmatprep.mubr.bf16.mxu0 0
        %1702 = vmatmul.mubr.bf16.gmra.mrb[0].mxu0 %v1590
        %v1703 = vpop.f32.mrb[0].mxu0
        %v1704 = vadd.f32 %v1619, %v1703
        %v1705 = vpop.f32.mrb[0].mxu0
        %v1706 = vpop.f32.mrb[0].mxu0
        %v1707 = vadd.f32 %v1619, %v1706
        %v1708 = vpop.f32.mrb[0].mxu0
        %1709 = vmatprep.mubr.bf16.mxu0 0
        %1710 = vmatmul.mubr.bf16.gmra.mrb[0].mxu0 %v1591
        %v1711 = vpop.f32.mrb[0].mxu0
        %v1712 = vadd.f32 %v1619, %v1711
        %v1713 = vpop.f32.mrb[0].mxu0
        %v1714 = vpop.f32.mrb[0].mxu0
        %v1715 = vadd.f32 %v1619, %v1714
        %v1716 = vpop.f32.mrb[0].mxu0
        %1717 = vmatprep.mubr.bf16.mxu0 0
        %1718 = vmatmul.mubr.bf16.gmra.mrb[0].mxu0 %v1592
        %v1719 = vpop.f32.mrb[0].mxu0
        %v1720 = vadd.f32 %v1619, %v1719
        %v1721 = vpop.f32.mrb[0].mxu0
        %v1722 = vpop.f32.mrb[0].mxu0
        %v1723 = vadd.f32 %v1619, %v1722
        %v1724 = vpop.f32.mrb[0].mxu0
        %1725 = vmatprep.mubr.bf16.mxu0 0
        %1726 = vmatmul.mubr.bf16.gmra.mrb[0].mxu0 %v1593
        %v1727 = vpop.f32.mrb[0].mxu0
        %v1728 = vadd.f32 %v1619, %v1727
        %v1729 = vpop.f32.mrb[0].mxu0
        %v1730 = vpop.f32.mrb[0].mxu0
        %v1731 = vadd.f32 %v1619, %v1730
        %v1732 = vpop.f32.mrb[0].mxu0
        %1733 = vmatprep.mubr.bf16.mxu0 0
        %1734 = vmatmul.mubr.bf16.gmra.mrb[0].mxu0 %v1594
        %v1735 = vpop.f32.mrb[0].mxu0
        %v1736 = vadd.f32 %v1619, %v1735
        %v1737 = vpop.f32.mrb[0].mxu0
        %v1738 = vpop.f32.mrb[0].mxu0
        %v1739 = vadd.f32 %v1619, %v1738
        %v1740 = vpop.f32.mrb[0].mxu0
        %1741 = vmatprep.mubr.bf16.mxu0 0
        %1742 = vmatmul.mubr.bf16.gmra.mrb[0].mxu0 %v1595
        %v1743 = vpop.f32.mrb[0].mxu0
        %v1744 = vadd.f32 %v1619, %v1743
        %v1745 = vpop.f32.mrb[0].mxu0
        %v1746 = vpop.f32.mrb[0].mxu0
        %v1747 = vadd.f32 %v1619, %v1746
        %v1748 = vpop.f32.mrb[0].mxu0
        %1749 = vmatprep.mubr.bf16.mxu0 0
        %1750 = vmatmul.mubr.bf16.gmra.mrb[0].mxu0 %v1596
        %v1751 = vpop.f32.mrb[0].mxu0
        %v1752 = vadd.f32 %v1619, %v1751
        %v1753 = vpop.f32.mrb[0].mxu0
        %v1754 = vpop.f32.mrb[0].mxu0
        %v1755 = vadd.f32 %v1619, %v1754
        %v1756 = vpop.f32.mrb[0].mxu0
        %1757 = vmatprep.mubr.bf16.mxu0 0
        %1758 = vmatmul.mubr.bf16.gmra.mrb[0].mxu0 %v1597
        %v1759 = vpop.f32.mrb[0].mxu0
        %v1760 = vadd.f32 %v1619, %v1759
        %v1761 = vpop.f32.mrb[0].mxu0
        %v1762 = vpop.f32.mrb[0].mxu0
        %v1763 = vadd.f32 %v1619, %v1762
        %v1764 = vpop.f32.mrb[0].mxu0
        %1765 = vdwg.mxu0
        %v1766 = vmax.f32 %v1704, 0.0
        %v1767 = vmax.f32 %v1707, 0.0
        %v1768 = vmax.f32 %v1712, 0.0
        %v1769 = vmax.f32 %v1715, 0.0
        %v1770 = vmax.f32 %v1720, 0.0
        %v1771 = vmax.f32 %v1723, 0.0
        %v1772 = vmax.f32 %v1728, 0.0
        %v1773 = vmax.f32 %v1731, 0.0
        %v1774 = vmax.f32 %v1736, 0.0
        %v1775 = vmax.f32 %v1739, 0.0
        %v1776 = vmax.f32 %v1744, 0.0
        %v1777 = vmax.f32 %v1747, 0.0
        %v1778 = vmax.f32 %v1752, 0.0
        %v1779 = vmax.f32 %v1755, 0.0
        %v1780 = vmax.f32 %v1760, 0.0
        %v1781 = vmax.f32 %v1763, 0.0
        %v1782 = vpack.c.bf16 %v1767, %v1766
        %v1783 = vpack.c.bf16 %v1769, %v1768
        %v1784 = vpack.c.bf16 %v1771, %v1770
        %v1785 = vpack.c.bf16 %v1773, %v1772
        %v1786 = vpack.c.bf16 %v1775, %v1774
        %v1787 = vpack.c.bf16 %v1777, %v1776
        %v1788 = vpack.c.bf16 %v1779, %v1778
        %v1789 = vpack.c.bf16 %v1781, %v1780
        %v1790 = vld [vmem:[%s972] sm:$0xf]
        %v1791 = vld [vmem:[%s972 + $0x4] sm:$0xf]
        %v1792 = vld [vmem:[%s972 + $0x8] sm:$0xf]
        %v1793 = vld [vmem:[%s972 + $0xc] sm:$0xf]
        %v1794 = vld [vmem:[%s972 + $0x10] sm:$0xf]
        %v1795 = vld [vmem:[%s972 + $0x14] sm:$0xf]
        %v1796 = vld [vmem:[%s972 + $0x18] sm:$0xf]
        %v1797 = vld [vmem:[%s972 + $0x1c] sm:$0xf]
        %v1798 = vld [vmem:[%s972 + $0x20] sm:$0xf]
        %v1799 = vld [vmem:[%s972 + $0x24] sm:$0xf]
        %v1800 = vld [vmem:[%s972 + $0x28] sm:$0xf]
        %v1801 = vld [vmem:[%s972 + $0x2c] sm:$0xf]
        %v1802 = vld [vmem:[%s972 + $0x30] sm:$0xf]
        %v1803 = vld [vmem:[%s972 + $0x34] sm:$0xf]
        %v1804 = vld [vmem:[%s972 + $0x38] sm:$0xf]
        %v1805 = vld [vmem:[%s972 + $0x3c] sm:$0xf]
        %v1806 = vld [vmem:[%s1107] sm:$0x1]
        %v1808 = vlaneseq
        %v1809 = vshrl.u32 %v1808, 7
        %v1810 = vsub.s32 0, %v1809
        %v1811 = vrot.slane %v1806, %v1810
        %v1829 = vunpack.c.l.b16 %v1790
        %v1830 = vunpack.c.l.b16 %v1791
        %v1831 = vunpack.c.l.b16 %v1792
        %v1832 = vunpack.c.l.b16 %v1793
        %v1833 = vunpack.c.l.b16 %v1794
        %v1834 = vunpack.c.l.b16 %v1795
        %v1835 = vunpack.c.l.b16 %v1796
        %v1836 = vunpack.c.l.b16 %v1797
        %v1837 = vunpack.c.l.b16 %v1798
        %v1838 = vunpack.c.l.b16 %v1799
        %v1839 = vunpack.c.l.b16 %v1800
        %v1840 = vunpack.c.l.b16 %v1801
        %v1841 = vunpack.c.l.b16 %v1802
        %v1842 = vunpack.c.l.b16 %v1803
        %v1843 = vunpack.c.l.b16 %v1804
        %v1844 = vunpack.c.l.b16 %v1805
        %v1845 = vpack.c.b16 %v1830, %v1829
        %v1846 = vpack.c.b16 %v1832, %v1831
        %v1847 = vpack.c.b16 %v1834, %v1833
        %v1848 = vpack.c.b16 %v1836, %v1835
        %v1849 = vpack.c.b16 %v1838, %v1837
        %v1850 = vpack.c.b16 %v1840, %v1839
        %v1851 = vpack.c.b16 %v1842, %v1841
        %v1852 = vpack.c.b16 %v1844, %v1843
        %1861 = vmatprep.subr.bf16.mxu0 0
        %1862 = vmatpush1.bf16.msra.mxu0 %v1845
        %1863 = vmatprep.subr.bf16.mxu0 0
        %1864 = vmatpush1.bf16.msra.mxu0 %v1846
        %1865 = vmatprep.subr.bf16.mxu0 0
        %1866 = vmatpush1.bf16.msra.mxu0 %v1847
        %1867 = vmatprep.subr.bf16.mxu0 0
        %1868 = vmatpush1.bf16.msra.mxu0 %v1848
        %1869 = vmatprep.subr.bf16.mxu0 0
        %1870 = vmatpush1.bf16.msra.mxu0 %v1849
        %1871 = vmatprep.subr.bf16.mxu0 0
        %1872 = vmatpush1.bf16.msra.mxu0 %v1850
        %1873 = vmatprep.subr.bf16.mxu0 0
        %1874 = vmatpush1.bf16.msra.mxu0 %v1851
        %1875 = vmatprep.subr.bf16.mxu0 0
        %1876 = vmatpush1.bf16.msra.mxu0 %v1852
        %1877 = vmatprep.subr.bf16.mxu0 0
        %1878 = vmatpush1.bf16.msra.mxu0 0
        %1879 = vmatprep.subr.bf16.mxu0 0
        %1880 = vmatpush1.bf16.msra.mxu0 0
        %1881 = vmatprep.subr.bf16.mxu0 0
        %1882 = vmatpush1.bf16.msra.mxu0 0
        %1883 = vmatprep.subr.bf16.mxu0 0
        %1884 = vmatpush1.bf16.msra.mxu0 0
        %1885 = vmatprep.subr.bf16.mxu0 0
        %1886 = vmatpush1.bf16.msra.mxu0 0
        %1887 = vmatprep.subr.bf16.mxu0 0
        %1888 = vmatpush1.bf16.msra.mxu0 0
        %1889 = vmatprep.subr.bf16.mxu0 0
        %1890 = vmatpush1.bf16.msra.mxu0 0
        %1891 = vmatprep.subr.bf16.mxu0 0
        %1892 = vmatpush1.bf16.msra.mxu0 0
        %1893 = vmatprep.mubr.bf16.mxu0 0
        %1894 = vmatmul.mubr.bf16.gmra.mrb[0].mxu0 %v1782
        %v1895 = vpop.f32.mrb[0].mxu0
        %v1896 = vadd.f32 %v1811, %v1895
        %v1897 = vpop.f32.mrb[0].mxu0
        %v1898 = vpop.f32.mrb[0].mxu0
        %v1899 = vadd.f32 %v1811, %v1898
        %v1900 = vpop.f32.mrb[0].mxu0
        %1901 = vmatprep.mubr.bf16.mxu0 0
        %1902 = vmatmul.mubr.bf16.gmra.mrb[0].mxu0 %v1783
        %v1903 = vpop.f32.mrb[0].mxu0
        %v1904 = vadd.f32 %v1811, %v1903
        %v1905 = vpop.f32.mrb[0].mxu0
        %v1906 = vpop.f32.mrb[0].mxu0
        %v1907 = vadd.f32 %v1811, %v1906
        %v1908 = vpop.f32.mrb[0].mxu0
        %1909 = vmatprep.mubr.bf16.mxu0 0
        %1910 = vmatmul.mubr.bf16.gmra.mrb[0].mxu0 %v1784
        %v1911 = vpop.f32.mrb[0].mxu0
        %v1912 = vadd.f32 %v1811, %v1911
        %v1913 = vpop.f32.mrb[0].mxu0
        %v1914 = vpop.f32.mrb[0].mxu0
        %v1915 = vadd.f32 %v1811, %v1914
        %v1916 = vpop.f32.mrb[0].mxu0
        %1917 = vmatprep.mubr.bf16.mxu0 0
        %1918 = vmatmul.mubr.bf16.gmra.mrb[0].mxu0 %v1785
        %v1919 = vpop.f32.mrb[0].mxu0
        %v1920 = vadd.f32 %v1811, %v1919
        %v1921 = vpop.f32.mrb[0].mxu0
        %v1922 = vpop.f32.mrb[0].mxu0
        %v1923 = vadd.f32 %v1811, %v1922
        %v1924 = vpop.f32.mrb[0].mxu0
        %1925 = vmatprep.mubr.bf16.mxu0 0
        %1926 = vmatmul.mubr.bf16.gmra.mrb[0].mxu0 %v1786
        %v1927 = vpop.f32.mrb[0].mxu0
        %v1928 = vadd.f32 %v1811, %v1927
        %v1929 = vpop.f32.mrb[0].mxu0
        %v1930 = vpop.f32.mrb[0].mxu0
        %v1931 = vadd.f32 %v1811, %v1930
        %v1932 = vpop.f32.mrb[0].mxu0
        %1933 = vmatprep.mubr.bf16.mxu0 0
        %1934 = vmatmul.mubr.bf16.gmra.mrb[0].mxu0 %v1787
        %v1935 = vpop.f32.mrb[0].mxu0
        %v1936 = vadd.f32 %v1811, %v1935
        %v1937 = vpop.f32.mrb[0].mxu0
        %v1938 = vpop.f32.mrb[0].mxu0
        %v1939 = vadd.f32 %v1811, %v1938
        %v1940 = vpop.f32.mrb[0].mxu0
        %1941 = vmatprep.mubr.bf16.mxu0 0
        %1942 = vmatmul.mubr.bf16.gmra.mrb[0].mxu0 %v1788
        %v1943 = vpop.f32.mrb[0].mxu0
        %v1944 = vadd.f32 %v1811, %v1943
        %v1945 = vpop.f32.mrb[0].mxu0
        %v1946 = vpop.f32.mrb[0].mxu0
        %v1947 = vadd.f32 %v1811, %v1946
        %v1948 = vpop.f32.mrb[0].mxu0
        %1949 = vmatprep.mubr.bf16.mxu0 0
        %1950 = vmatmul.mubr.bf16.gmra.mrb[0].mxu0 %v1789
        %v1951 = vpop.f32.mrb[0].mxu0
        %v1952 = vadd.f32 %v1811, %v1951
        %v1953 = vpop.f32.mrb[0].mxu0
        %v1954 = vpop.f32.mrb[0].mxu0
        %v1955 = vadd.f32 %v1811, %v1954
        %v1956 = vpop.f32.mrb[0].mxu0
        %1957 = vdwg.mxu0
        %1959 = vset.pattern.permute.xlu0 0
        %1960 = vperm.xlu0 %1959, %v1133
        %v1961 = vpop.permute.xlu0 %1960
        %1964 = vset.pattern.permute.xlu0 0
        %1965 = vperm.xlu0 %1964, %v1134
        %v1966 = vpop.permute.xlu0 %1965
        %1969 = vset.pattern.permute.xlu0 0
        %1970 = vperm.xlu0 %1969, %v1135
        %v1971 = vpop.permute.xlu0 %1970
        %1974 = vset.pattern.permute.xlu0 0
        %1975 = vperm.xlu0 %1974, %v1136
        %v1976 = vpop.permute.xlu0 %1975
        %1979 = vset.pattern.permute.xlu0 0
        %1980 = vperm.xlu0 %1979, %v1137
        %v1981 = vpop.permute.xlu0 %1980
        %1984 = vset.pattern.permute.xlu0 0
        %1985 = vperm.xlu0 %1984, %v1138
        %v1986 = vpop.permute.xlu0 %1985
        %1989 = vset.pattern.permute.xlu0 0
        %1990 = vperm.xlu0 %1989, %v1139
        %v1991 = vpop.permute.xlu0 %1990
        %1994 = vset.pattern.permute.xlu0 0
        %1995 = vperm.xlu0 %1994, %v1140
        %v1996 = vpop.permute.xlu0 %1995
        %1999 = vset.pattern.permute.xlu0 0
        %2000 = vperm.xlu0 %1999, %v1141
        %v2001 = vpop.permute.xlu0 %2000
        %2004 = vset.pattern.permute.xlu0 0
        %2005 = vperm.xlu0 %2004, %v1142
        %v2006 = vpop.permute.xlu0 %2005
        %2009 = vset.pattern.permute.xlu0 0
        %2010 = vperm.xlu0 %2009, %v1143
        %v2011 = vpop.permute.xlu0 %2010
        %2014 = vset.pattern.permute.xlu0 0
        %2015 = vperm.xlu0 %2014, %v1144
        %v2016 = vpop.permute.xlu0 %2015
        %2019 = vset.pattern.permute.xlu0 0
        %2020 = vperm.xlu0 %2019, %v1145
        %v2021 = vpop.permute.xlu0 %2020
        %2024 = vset.pattern.permute.xlu0 0
        %2025 = vperm.xlu0 %2024, %v1146
        %v2026 = vpop.permute.xlu0 %2025
        %2029 = vset.pattern.permute.xlu0 0
        %2030 = vperm.xlu0 %2029, %v1147
        %v2031 = vpop.permute.xlu0 %2030
        %2034 = vset.pattern.permute.xlu0 0
        %2035 = vperm.xlu0 %2034, %v1148
        %v2036 = vpop.permute.xlu0 %2035
        %v2038 = vmul.f32 %v1896, %v1961
        %v2039 = vmul.f32 %v1899, %v1966
        %v2040 = vmul.f32 %v1904, %v1971
        %v2041 = vmul.f32 %v1907, %v1976
        %v2042 = vmul.f32 %v1912, %v1981
        %v2043 = vmul.f32 %v1915, %v1986
        %v2044 = vmul.f32 %v1920, %v1991
        %v2045 = vmul.f32 %v1923, %v1996
        %v2046 = vmul.f32 %v1928, %v2001
        %v2047 = vmul.f32 %v1931, %v2006
        %v2048 = vmul.f32 %v1936, %v2011
        %v2049 = vmul.f32 %v1939, %v2016
        %v2050 = vmul.f32 %v1944, %v2021
        %v2051 = vmul.f32 %v1947, %v2026
        %v2052 = vmul.f32 %v1952, %v2031
        %v2053 = vmul.f32 %v1955, %v2036
        %v2054 = vadd.f32 %v2038, %v2039
        %v2055 = vadd.f32 %v2054, %v2040
        %v2056 = vadd.f32 %v2055, %v2041
        %v2057 = vadd.f32 %v2056, %v2042
        %v2058 = vadd.f32 %v2057, %v2043
        %v2059 = vadd.f32 %v2058, %v2044
        %v2060 = vadd.f32 %v2059, %v2045
        %v2061 = vadd.f32 %v2060, %v2046
        %v2062 = vadd.f32 %v2061, %v2047
        %v2063 = vadd.f32 %v2062, %v2048
        %v2064 = vadd.f32 %v2063, %v2049
        %v2065 = vadd.f32 %v2064, %v2050
        %v2066 = vadd.f32 %v2065, %v2051
        %v2067 = vadd.f32 %v2066, %v2052
        %v2068 = vadd.f32 %v2067, %v2053
        %v2069 = vrot.slane %v2068, 4
        %v2070 = vadd.f32 %v2068, %v2069
        %v2071 = vrot.slane %v2070, 2
        %v2072 = vadd.f32 %v2070, %v2071
        %v2073 = vrot.slane %v2072, 1
        %v2074 = vadd.f32 %v2072, %v2073
        %v2075 = vmul.f32 %v2074, 0.0625
        %v2076 = vsub.f32 %v1896, %v2075
        %v2077 = vsub.f32 %v1899, %v2075
        %v2078 = vsub.f32 %v1904, %v2075
        %v2079 = vsub.f32 %v1907, %v2075
        %v2080 = vsub.f32 %v1912, %v2075
        %v2081 = vsub.f32 %v1915, %v2075
        %v2082 = vsub.f32 %v1920, %v2075
        %v2083 = vsub.f32 %v1923, %v2075
        %v2084 = vsub.f32 %v1928, %v2075
        %v2085 = vsub.f32 %v1931, %v2075
        %v2086 = vsub.f32 %v1936, %v2075
        %v2087 = vsub.f32 %v1939, %v2075
        %v2088 = vsub.f32 %v1944, %v2075
        %v2089 = vsub.f32 %v1947, %v2075
        %v2090 = vsub.f32 %v1952, %v2075
        %v2091 = vsub.f32 %v1955, %v2075
        %v2092 = vmul.f32 %v2076, %v1961
        %v2093 = vmul.f32 %v2077, %v1966
        %v2094 = vmul.f32 %v2078, %v1971
        %v2095 = vmul.f32 %v2079, %v1976
        %v2096 = vmul.f32 %v2080, %v1981
        %v2097 = vmul.f32 %v2081, %v1986
        %v2098 = vmul.f32 %v2082, %v1991
        %v2099 = vmul.f32 %v2083, %v1996
        %v2100 = vmul.f32 %v2084, %v2001
        %v2101 = vmul.f32 %v2085, %v2006
        %v2102 = vmul.f32 %v2086, %v2011
        %v2103 = vmul.f32 %v2087, %v2016
        %v2104 = vmul.f32 %v2088, %v2021
        %v2105 = vmul.f32 %v2089, %v2026
        %v2106 = vmul.f32 %v2090, %v2031
        %v2107 = vmul.f32 %v2091, %v2036
        %v2108 = vmul.f32 %v2092, %v2092
        %v2109 = vmul.f32 %v2093, %v2093
        %v2110 = vmul.f32 %v2094, %v2094
        %v2111 = vmul.f32 %v2095, %v2095
        %v2112 = vmul.f32 %v2096, %v2096
        %v2113 = vmul.f32 %v2097, %v2097
        %v2114 = vmul.f32 %v2098, %v2098
        %v2115 = vmul.f32 %v2099, %v2099
        %v2116 = vmul.f32 %v2100, %v2100
        %v2117 = vmul.f32 %v2101, %v2101
        %v2118 = vmul.f32 %v2102, %v2102
        %v2119 = vmul.f32 %v2103, %v2103
        %v2120 = vmul.f32 %v2104, %v2104
        %v2121 = vmul.f32 %v2105, %v2105
        %v2122 = vmul.f32 %v2106, %v2106
        %v2123 = vmul.f32 %v2107, %v2107
        %v2124 = vadd.f32 %v2108, %v2109
        %v2125 = vadd.f32 %v2124, %v2110
        %v2126 = vadd.f32 %v2125, %v2111
        %v2127 = vadd.f32 %v2126, %v2112
        %v2128 = vadd.f32 %v2127, %v2113
        %v2129 = vadd.f32 %v2128, %v2114
        %v2130 = vadd.f32 %v2129, %v2115
        %v2131 = vadd.f32 %v2130, %v2116
        %v2132 = vadd.f32 %v2131, %v2117
        %v2133 = vadd.f32 %v2132, %v2118
        %v2134 = vadd.f32 %v2133, %v2119
        %v2135 = vadd.f32 %v2134, %v2120
        %v2136 = vadd.f32 %v2135, %v2121
        %v2137 = vadd.f32 %v2136, %v2122
        %v2138 = vadd.f32 %v2137, %v2123
        %v2139 = vrot.slane %v2138, 4
        %v2140 = vadd.f32 %v2138, %v2139
        %v2141 = vrot.slane %v2140, 2
        %v2142 = vadd.f32 %v2140, %v2141
        %v2143 = vrot.slane %v2142, 1
        %v2144 = vadd.f32 %v2142, %v2143
        %v2145 = vmul.f32 %v2144, 0.0625
        %v2146 = vld [vmem:[%s1110] sm:$0x1]
        %v2147 = vadd.f32 %v2145, 1e-05
        %v2148 = vrsqrt.pop %v2147
        %v2149 = vmul.f32 %v2092, %v2148
        %v2150 = vmul.f32 %v2093, %v2148
        %v2151 = vmul.f32 %v2094, %v2148
        %v2152 = vmul.f32 %v2095, %v2148
        %v2153 = vmul.f32 %v2096, %v2148
        %v2154 = vmul.f32 %v2097, %v2148
        %v2155 = vmul.f32 %v2098, %v2148
        %v2156 = vmul.f32 %v2099, %v2148
        %v2157 = vmul.f32 %v2100, %v2148
        %v2158 = vmul.f32 %v2101, %v2148
        %v2159 = vmul.f32 %v2102, %v2148
        %v2160 = vmul.f32 %v2103, %v2148
        %v2161 = vmul.f32 %v2104, %v2148
        %v2162 = vmul.f32 %v2105, %v2148
        %v2163 = vmul.f32 %v2106, %v2148
        %v2164 = vmul.f32 %v2107, %v2148
        %v2166 = vlaneseq
        %v2167 = vshrl.u32 %v2166, 7
        %v2168 = vsub.s32 0, %v2167
        %v2169 = vrot.slane %v2146, %v2168
        %v2171 = vmul.f32 %v2169, %v2149
        %v2172 = vmul.f32 %v2169, %v2150
        %v2173 = vmul.f32 %v2169, %v2151
        %v2174 = vmul.f32 %v2169, %v2152
        %v2175 = vmul.f32 %v2169, %v2153
        %v2176 = vmul.f32 %v2169, %v2154
        %v2177 = vmul.f32 %v2169, %v2155
        %v2178 = vmul.f32 %v2169, %v2156
        %v2179 = vmul.f32 %v2169, %v2157
        %v2180 = vmul.f32 %v2169, %v2158
        %v2181 = vmul.f32 %v2169, %v2159
        %v2182 = vmul.f32 %v2169, %v2160
        %v2183 = vmul.f32 %v2169, %v2161
        %v2184 = vmul.f32 %v2169, %v2162
        %v2185 = vmul.f32 %v2169, %v2163
        %v2186 = vmul.f32 %v2169, %v2164
        %v2187 = vld [vmem:[%s1113] sm:$0x1]
        %v2189 = vlaneseq
        %v2190 = vshrl.u32 %v2189, 7
        %v2191 = vsub.s32 0, %v2190
        %v2192 = vrot.slane %v2187, %v2191
        %v2194 = vadd.f32 %v2171, %v2192
        %v2195 = vadd.f32 %v2172, %v2192
        %v2196 = vadd.f32 %v2173, %v2192
        %v2197 = vadd.f32 %v2174, %v2192
        %v2198 = vadd.f32 %v2175, %v2192
        %v2199 = vadd.f32 %v2176, %v2192
        %v2200 = vadd.f32 %v2177, %v2192
        %v2201 = vadd.f32 %v2178, %v2192
        %v2202 = vadd.f32 %v2179, %v2192
        %v2203 = vadd.f32 %v2180, %v2192
        %v2204 = vadd.f32 %v2181, %v2192
        %v2205 = vadd.f32 %v2182, %v2192
        %v2206 = vadd.f32 %v2183, %v2192
        %v2207 = vadd.f32 %v2184, %v2192
        %v2208 = vadd.f32 %v2185, %v2192
        %v2209 = vadd.f32 %v2186, %v2192
        %p2210 = scmp.lt.s32.totalorder %s49, 1
        // Predicated region
        $region165: #{tpu_custom_call.1} parent=119 // pred_check
          %p2211 = pneg %p2210
        $region166: #{tpu_custom_call.1} parent=119 // pred_check_branch
          %2213 = sbr.rel (%p2211) target = $region168
        $region167: #{tpu_custom_call.1} parent=119 // pred_region
          %v2214 = vmax.f32 %v2194, 0.0
          %v2215 = vmax.f32 %v2195, 0.0
          %v2216 = vmax.f32 %v2196, 0.0
          %v2217 = vmax.f32 %v2197, 0.0
          %v2218 = vmax.f32 %v2198, 0.0
          %v2219 = vmax.f32 %v2199, 0.0
          %v2220 = vmax.f32 %v2200, 0.0
          %v2221 = vmax.f32 %v2201, 0.0
          %v2222 = vmax.f32 %v2202, 0.0
          %v2223 = vmax.f32 %v2203, 0.0
          %v2224 = vmax.f32 %v2204, 0.0
          %v2225 = vmax.f32 %v2205, 0.0
          %v2226 = vmax.f32 %v2206, 0.0
          %v2227 = vmax.f32 %v2207, 0.0
          %v2228 = vmax.f32 %v2208, 0.0
          %v2229 = vmax.f32 %v2209, 0.0
          %v2230 = vmul.f32 %v2214, %v1961
          %v2231 = vmul.f32 %v2215, %v1966
          %v2232 = vmul.f32 %v2216, %v1971
          %v2233 = vmul.f32 %v2217, %v1976
          %v2234 = vmul.f32 %v2218, %v1981
          %v2235 = vmul.f32 %v2219, %v1986
          %v2236 = vmul.f32 %v2220, %v1991
          %v2237 = vmul.f32 %v2221, %v1996
          %v2238 = vmul.f32 %v2222, %v2001
          %v2239 = vmul.f32 %v2223, %v2006
          %v2240 = vmul.f32 %v2224, %v2011
          %v2241 = vmul.f32 %v2225, %v2016
          %v2242 = vmul.f32 %v2226, %v2021
          %v2243 = vmul.f32 %v2227, %v2026
          %v2244 = vmul.f32 %v2228, %v2031
          %v2245 = vmul.f32 %v2229, %v2036
          %2246 = vst [vmem:[#allocation2] sm:$0xff] %v2230
          %2247 = vst [vmem:[#allocation2 + $0x8] sm:$0xff] %v2231
          %2248 = vst [vmem:[#allocation2 + $0x10] sm:$0xff] %v2232
          %2249 = vst [vmem:[#allocation2 + $0x18] sm:$0xff] %v2233
          %2250 = vst [vmem:[#allocation2 + $0x20] sm:$0xff] %v2234
          %2251 = vst [vmem:[#allocation2 + $0x28] sm:$0xff] %v2235
          %2252 = vst [vmem:[#allocation2 + $0x30] sm:$0xff] %v2236
          %2253 = vst [vmem:[#allocation2 + $0x38] sm:$0xff] %v2237
          %2254 = vst [vmem:[#allocation2 + $0x40] sm:$0xff] %v2238
          %2255 = vst [vmem:[#allocation2 + $0x48] sm:$0xff] %v2239
          %2256 = vst [vmem:[#allocation2 + $0x50] sm:$0xff] %v2240
          %2257 = vst [vmem:[#allocation2 + $0x58] sm:$0xff] %v2241
          %2258 = vst [vmem:[#allocation2 + $0x60] sm:$0xff] %v2242
          %2259 = vst [vmem:[#allocation2 + $0x68] sm:$0xff] %v2243
          %2260 = vst [vmem:[#allocation2 + $0x70] sm:$0xff] %v2244
          %2261 = vst [vmem:[#allocation2 + $0x78] sm:$0xff] %v2245
          %2262 = vmatprep.subr.bf16.mxu0 0
          %2263 = vmatpush1.bf16.msra.mxu0 %v1389
          %2264 = vmatprep.subr.bf16.mxu0 0
          %2265 = vmatpush1.bf16.msra.mxu0 %v1390
          %2266 = vmatprep.subr.bf16.mxu0 0
          %2267 = vmatpush1.bf16.msra.mxu0 %v1391
          %2268 = vmatprep.subr.bf16.mxu0 0
          %2269 = vmatpush1.bf16.msra.mxu0 %v1392
          %2270 = vmatprep.subr.bf16.mxu0 0
          %2271 = vmatpush1.bf16.msra.mxu0 %v1393
          %2272 = vmatprep.subr.bf16.mxu0 0
          %2273 = vmatpush1.bf16.msra.mxu0 %v1394
          %2274 = vmatprep.subr.bf16.mxu0 0
          %2275 = vmatpush1.bf16.msra.mxu0 %v1395
          %2276 = vmatprep.subr.bf16.mxu0 0
          %2277 = vmatpush1.bf16.msra.mxu0 %v1396
          %2278 = vmatprep.subr.bf16.mxu0 0
          %2279 = vmatpush1.bf16.msra.mxu0 0
          %2280 = vmatprep.subr.bf16.mxu0 0
          %2281 = vmatpush1.bf16.msra.mxu0 0
          %2282 = vmatprep.subr.bf16.mxu0 0
          %2283 = vmatpush1.bf16.msra.mxu0 0
          %2284 = vmatprep.subr.bf16.mxu0 0
          %2285 = vmatpush1.bf16.msra.mxu0 0
          %2286 = vmatprep.subr.bf16.mxu0 0
          %2287 = vmatpush1.bf16.msra.mxu0 0
          %2288 = vmatprep.subr.bf16.mxu0 0
          %2289 = vmatpush1.bf16.msra.mxu0 0
          %2290 = vmatprep.subr.bf16.mxu0 0
          %2291 = vmatpush1.bf16.msra.mxu0 0
          %2292 = vmatprep.subr.bf16.mxu0 0
          %2293 = vmatpush1.bf16.msra.mxu0 0
          %2294 = vmatprep.mubr.bf16.mxu0 0
          %2295 = vmatmul.mubr.bf16.gmra.mrb[0].mxu0 %v1217
          %v2296 = vpop.f32.mrb[0].mxu0
          %v2297 = vadd.f32 %v1210, %v2296
          %v2298 = vpop.f32.mrb[0].mxu0
          %v2299 = vpop.f32.mrb[0].mxu0
          %v2300 = vadd.f32 %v1211, %v2299
          %v2301 = vpop.f32.mrb[0].mxu0
          %2302 = vdwg.mxu0
          %v2303 = vpack.c.bf16 %v2300, %v2297
          %v2304 = vld [vmem:[%s981] sm:$0xf]
          %v2305 = vld [vmem:[%s981 + $0x4] sm:$0xf]
          %v2306 = vld [vmem:[%s981 + $0x8] sm:$0xf]
          %v2307 = vld [vmem:[%s981 + $0xc] sm:$0xf]
          %v2308 = vld [vmem:[%s981 + $0x10] sm:$0xf]
          %v2309 = vld [vmem:[%s981 + $0x14] sm:$0xf]
          %v2310 = vld [vmem:[%s981 + $0x18] sm:$0xf]
          %v2311 = vld [vmem:[%s981 + $0x1c] sm:$0xf]
          %v2312 = vld [vmem:[%s981 + $0x20] sm:$0xf]
          %v2313 = vld [vmem:[%s981 + $0x24] sm:$0xf]
          %v2314 = vld [vmem:[%s981 + $0x28] sm:$0xf]
          %v2315 = vld [vmem:[%s981 + $0x2c] sm:$0xf]
          %v2316 = vld [vmem:[%s981 + $0x30] sm:$0xf]
          %v2317 = vld [vmem:[%s981 + $0x34] sm:$0xf]
          %v2318 = vld [vmem:[%s981 + $0x38] sm:$0xf]
          %v2319 = vld [vmem:[%s981 + $0x3c] sm:$0xf]
          %v2320 = vld [vmem:[%s1116] sm:$0x1]
          %v2322 = vlaneseq
          %v2323 = vshrl.u32 %v2322, 7
          %v2324 = vsub.s32 0, %v2323
          %v2325 = vrot.slane %v2320, %v2324
          %v2343 = vunpack.c.l.b16 %v2304
          %v2344 = vunpack.c.l.b16 %v2305
          %v2345 = vunpack.c.l.b16 %v2306
          %v2346 = vunpack.c.l.b16 %v2307
          %v2347 = vunpack.c.l.b16 %v2308
          %v2348 = vunpack.c.l.b16 %v2309
          %v2349 = vunpack.c.l.b16 %v2310
          %v2350 = vunpack.c.l.b16 %v2311
          %v2351 = vunpack.c.l.b16 %v2312
          %v2352 = vunpack.c.l.b16 %v2313
          %v2353 = vunpack.c.l.b16 %v2314
          %v2354 = vunpack.c.l.b16 %v2315
          %v2355 = vunpack.c.l.b16 %v2316
          %v2356 = vunpack.c.l.b16 %v2317
          %v2357 = vunpack.c.l.b16 %v2318
          %v2358 = vunpack.c.l.b16 %v2319
          %v2359 = vpack.c.b16 %v2344, %v2343
          %v2360 = vpack.c.b16 %v2346, %v2345
          %v2361 = vpack.c.b16 %v2348, %v2347
          %v2362 = vpack.c.b16 %v2350, %v2349
          %v2363 = vpack.c.b16 %v2352, %v2351
          %v2364 = vpack.c.b16 %v2354, %v2353
          %v2365 = vpack.c.b16 %v2356, %v2355
          %v2366 = vpack.c.b16 %v2358, %v2357
          %2375 = vmatprep.subr.bf16.mxu0 0
          %2376 = vmatpush1.bf16.msra.mxu0 %v2359
          %2377 = vmatprep.subr.bf16.mxu0 0
          %2378 = vmatpush1.bf16.msra.mxu0 %v2360
          %2379 = vmatprep.subr.bf16.mxu0 0
          %2380 = vmatpush1.bf16.msra.mxu0 %v2361
          %2381 = vmatprep.subr.bf16.mxu0 0
          %2382 = vmatpush1.bf16.msra.mxu0 %v2362
          %2383 = vmatprep.subr.bf16.mxu0 0
          %2384 = vmatpush1.bf16.msra.mxu0 %v2363
          %2385 = vmatprep.subr.bf16.mxu0 0
          %2386 = vmatpush1.bf16.msra.mxu0 %v2364
          %2387 = vmatprep.subr.bf16.mxu0 0
          %2388 = vmatpush1.bf16.msra.mxu0 %v2365
          %2389 = vmatprep.subr.bf16.mxu0 0
          %2390 = vmatpush1.bf16.msra.mxu0 %v2366
          %2391 = vmatprep.subr.bf16.mxu0 0
          %2392 = vmatpush1.bf16.msra.mxu0 0
          %2393 = vmatprep.subr.bf16.mxu0 0
          %2394 = vmatpush1.bf16.msra.mxu0 0
          %2395 = vmatprep.subr.bf16.mxu0 0
          %2396 = vmatpush1.bf16.msra.mxu0 0
          %2397 = vmatprep.subr.bf16.mxu0 0
          %2398 = vmatpush1.bf16.msra.mxu0 0
          %2399 = vmatprep.subr.bf16.mxu0 0
          %2400 = vmatpush1.bf16.msra.mxu0 0
          %2401 = vmatprep.subr.bf16.mxu0 0
          %2402 = vmatpush1.bf16.msra.mxu0 0
          %2403 = vmatprep.subr.bf16.mxu0 0
          %2404 = vmatpush1.bf16.msra.mxu0 0
          %2405 = vmatprep.subr.bf16.mxu0 0
          %2406 = vmatpush1.bf16.msra.mxu0 0
          %2407 = vmatprep.mubr.bf16.mxu0 0
          %2408 = vmatmul.mubr.bf16.gmra.mrb[0].mxu0 %v2303
          %v2409 = vpop.f32.mrb[0].mxu0
          %v2410 = vadd.f32 %v2325, %v2409
          %v2411 = vpop.f32.mrb[0].mxu0
          %v2412 = vpop.f32.mrb[0].mxu0
          %v2413 = vadd.f32 %v2325, %v2412
          %v2414 = vpop.f32.mrb[0].mxu0
          %2415 = vdwg.mxu0
          %2417 = vset.pattern.permute.xlu0 0
          %2418 = vperm.xlu0 %2417, %v1149
          %v2419 = vpop.permute.xlu0 %2418
          %2422 = vset.pattern.permute.xlu0 0
          %2423 = vperm.xlu0 %2422, %v1150
          %v2424 = vpop.permute.xlu0 %2423
          %v2426 = vmul.f32 %v2410, %v2419
          %v2427 = vmul.f32 %v2413, %v2424
          %v2428 = vadd.f32 %v2426, %v2427
          %v2429 = vrot.slane %v2428, 4
          %v2430 = vadd.f32 %v2428, %v2429
          %v2431 = vrot.slane %v2430, 2
          %v2432 = vadd.f32 %v2430, %v2431
          %v2433 = vrot.slane %v2432, 1
          %v2434 = vadd.f32 %v2432, %v2433
          %v2435 = vmul.f32 %v2434, 0.5
          %v2436 = vsub.f32 %v2410, %v2435
          %v2437 = vsub.f32 %v2413, %v2435
          %v2438 = vmul.f32 %v2436, %v2419
          %v2439 = vmul.f32 %v2437, %v2424
          %v2440 = vmul.f32 %v2438, %v2438
          %v2441 = vmul.f32 %v2439, %v2439
          %v2442 = vadd.f32 %v2440, %v2441
          %v2443 = vrot.slane %v2442, 4
          %v2444 = vadd.f32 %v2442, %v2443
          %v2445 = vrot.slane %v2444, 2
          %v2446 = vadd.f32 %v2444, %v2445
          %v2447 = vrot.slane %v2446, 1
          %v2448 = vadd.f32 %v2446, %v2447
          %v2449 = vmul.f32 %v2448, 0.5
          %v2450 = vld [vmem:[%s1119] sm:$0x1]
          %v2451 = vadd.f32 %v2449, 1e-05
          %v2452 = vrsqrt.pop %v2451
          %v2453 = vmul.f32 %v2438, %v2452
          %v2454 = vmul.f32 %v2439, %v2452
          %v2456 = vlaneseq
          %v2457 = vshrl.u32 %v2456, 7
          %v2458 = vsub.s32 0, %v2457
          %v2459 = vrot.slane %v2450, %v2458
          %v2461 = vmul.f32 %v2459, %v2453
          %v2462 = vmul.f32 %v2459, %v2454
          %v2463 = vld [vmem:[%s1122] sm:$0x1]
          %v2465 = vlaneseq
          %v2466 = vshrl.u32 %v2465, 7
          %v2467 = vsub.s32 0, %v2466
          %v2468 = vrot.slane %v2463, %v2467
          %v2470 = vadd.f32 %v2461, %v2468
          %v2471 = vadd.f32 %v2462, %v2468
          %v2472 = vmax.f32 %v2470, 0.0
          %v2473 = vmax.f32 %v2471, 0.0
          %v2474 = vpack.c.bf16 %v2473, %v2472
          %v2475 = vld [vmem:[%s990] sm:$0xf]
          %v2476 = vld [vmem:[%s990 + $0x4] sm:$0xf]
          %v2477 = vld [vmem:[%s990 + $0x8] sm:$0xf]
          %v2478 = vld [vmem:[%s990 + $0xc] sm:$0xf]
          %v2479 = vld [vmem:[%s990 + $0x10] sm:$0xf]
          %v2480 = vld [vmem:[%s990 + $0x14] sm:$0xf]
          %v2481 = vld [vmem:[%s990 + $0x18] sm:$0xf]
          %v2482 = vld [vmem:[%s990 + $0x1c] sm:$0xf]
          %v2483 = vld [vmem:[%s990 + $0x20] sm:$0xf]
          %v2484 = vld [vmem:[%s990 + $0x24] sm:$0xf]
          %v2485 = vld [vmem:[%s990 + $0x28] sm:$0xf]
          %v2486 = vld [vmem:[%s990 + $0x2c] sm:$0xf]
          %v2487 = vld [vmem:[%s990 + $0x30] sm:$0xf]
          %v2488 = vld [vmem:[%s990 + $0x34] sm:$0xf]
          %v2489 = vld [vmem:[%s990 + $0x38] sm:$0xf]
          %v2490 = vld [vmem:[%s990 + $0x3c] sm:$0xf]
          %v2491 = vld [vmem:[%s1125] sm:$0x1]
          %v2493 = vlaneseq
          %v2494 = vshrl.u32 %v2493, 7
          %v2495 = vsub.s32 0, %v2494
          %v2496 = vrot.slane %v2491, %v2495
          %v2514 = vunpack.c.l.b16 %v2475
          %v2515 = vunpack.c.l.b16 %v2476
          %v2516 = vunpack.c.l.b16 %v2477
          %v2517 = vunpack.c.l.b16 %v2478
          %v2518 = vunpack.c.l.b16 %v2479
          %v2519 = vunpack.c.l.b16 %v2480
          %v2520 = vunpack.c.l.b16 %v2481
          %v2521 = vunpack.c.l.b16 %v2482
          %v2522 = vunpack.c.l.b16 %v2483
          %v2523 = vunpack.c.l.b16 %v2484
          %v2524 = vunpack.c.l.b16 %v2485
          %v2525 = vunpack.c.l.b16 %v2486
          %v2526 = vunpack.c.l.b16 %v2487
          %v2527 = vunpack.c.l.b16 %v2488
          %v2528 = vunpack.c.l.b16 %v2489
          %v2529 = vunpack.c.l.b16 %v2490
          %v2530 = vpack.c.b16 %v2515, %v2514
          %v2531 = vpack.c.b16 %v2517, %v2516
          %v2532 = vpack.c.b16 %v2519, %v2518
          %v2533 = vpack.c.b16 %v2521, %v2520
          %v2534 = vpack.c.b16 %v2523, %v2522
          %v2535 = vpack.c.b16 %v2525, %v2524
          %v2536 = vpack.c.b16 %v2527, %v2526
          %v2537 = vpack.c.b16 %v2529, %v2528
          %2546 = vmatprep.subr.bf16.mxu0 0
          %2547 = vmatpush1.bf16.msra.mxu0 %v2530
          %2548 = vmatprep.subr.bf16.mxu0 0
          %2549 = vmatpush1.bf16.msra.mxu0 %v2531
          %2550 = vmatprep.subr.bf16.mxu0 0
          %2551 = vmatpush1.bf16.msra.mxu0 %v2532
          %2552 = vmatprep.subr.bf16.mxu0 0
          %2553 = vmatpush1.bf16.msra.mxu0 %v2533
          %2554 = vmatprep.subr.bf16.mxu0 0
          %2555 = vmatpush1.bf16.msra.mxu0 %v2534
          %2556 = vmatprep.subr.bf16.mxu0 0
          %2557 = vmatpush1.bf16.msra.mxu0 %v2535
          %2558 = vmatprep.subr.bf16.mxu0 0
          %2559 = vmatpush1.bf16.msra.mxu0 %v2536
          %2560 = vmatprep.subr.bf16.mxu0 0
          %2561 = vmatpush1.bf16.msra.mxu0 %v2537
          %2562 = vmatprep.subr.bf16.mxu0 0
          %2563 = vmatpush1.bf16.msra.mxu0 0
          %2564 = vmatprep.subr.bf16.mxu0 0
          %2565 = vmatpush1.bf16.msra.mxu0 0
          %2566 = vmatprep.subr.bf16.mxu0 0
          %2567 = vmatpush1.bf16.msra.mxu0 0
          %2568 = vmatprep.subr.bf16.mxu0 0
          %2569 = vmatpush1.bf16.msra.mxu0 0
          %2570 = vmatprep.subr.bf16.mxu0 0
          %2571 = vmatpush1.bf16.msra.mxu0 0
          %2572 = vmatprep.subr.bf16.mxu0 0
          %2573 = vmatpush1.bf16.msra.mxu0 0
          %2574 = vmatprep.subr.bf16.mxu0 0
          %2575 = vmatpush1.bf16.msra.mxu0 0
          %2576 = vmatprep.subr.bf16.mxu0 0
          %2577 = vmatpush1.bf16.msra.mxu0 0
          %2578 = vmatprep.mubr.bf16.mxu0 0
          %2579 = vmatmul.mubr.bf16.gmra.mrb[0].mxu0 %v2474
          %v2580 = vpop.f32.mrb[0].mxu0
          %v2581 = vadd.f32 %v2496, %v2580
          %v2582 = vpop.f32.mrb[0].mxu0
          %v2583 = vpop.f32.mrb[0].mxu0
          %v2584 = vadd.f32 %v2496, %v2583
          %v2585 = vpop.f32.mrb[0].mxu0
          %2586 = vdwg.mxu0
          %v2587 = vmul.f32 %v2581, %v2419
          %v2588 = vmul.f32 %v2584, %v2424
          %v2589 = vadd.f32 %v2587, %v2588
          %v2590 = vrot.slane %v2589, 4
          %v2591 = vadd.f32 %v2589, %v2590
          %v2592 = vrot.slane %v2591, 2
          %v2593 = vadd.f32 %v2591, %v2592
          %v2594 = vrot.slane %v2593, 1
          %v2595 = vadd.f32 %v2593, %v2594
          %v2596 = vmul.f32 %v2595, 0.5
          %v2597 = vsub.f32 %v2581, %v2596
          %v2598 = vsub.f32 %v2584, %v2596
          %v2599 = vmul.f32 %v2597, %v2419
          %v2600 = vmul.f32 %v2598, %v2424
          %v2601 = vmul.f32 %v2599, %v2599
          %v2602 = vmul.f32 %v2600, %v2600
          %v2603 = vadd.f32 %v2601, %v2602
          %v2604 = vrot.slane %v2603, 4
          %v2605 = vadd.f32 %v2603, %v2604
          %v2606 = vrot.slane %v2605, 2
          %v2607 = vadd.f32 %v2605, %v2606
          %v2608 = vrot.slane %v2607, 1
          %v2609 = vadd.f32 %v2607, %v2608
          %v2610 = vmul.f32 %v2609, 0.5
          %v2611 = vld [vmem:[%s1128] sm:$0x1]
          %v2612 = vadd.f32 %v2610, 1e-05
          %v2613 = vrsqrt.pop %v2612
          %v2614 = vmul.f32 %v2599, %v2613
          %v2615 = vmul.f32 %v2600, %v2613
          %v2617 = vlaneseq
          %v2618 = vshrl.u32 %v2617, 7
          %v2619 = vsub.s32 0, %v2618
          %v2620 = vrot.slane %v2611, %v2619
          %v2622 = vmul.f32 %v2620, %v2614
          %v2623 = vmul.f32 %v2620, %v2615
          %v2624 = vld [vmem:[%s1131] sm:$0x1]
          %v2626 = vlaneseq
          %v2627 = vshrl.u32 %v2626, 7
          %v2628 = vsub.s32 0, %v2627
          %v2629 = vrot.slane %v2624, %v2628
          %v2631 = vadd.f32 %v2622, %v2629
          %v2632 = vadd.f32 %v2623, %v2629
          %v2633 = vmax.f32 %v2631, 0.0
          %v2634 = vmax.f32 %v2632, 0.0
          %v2635 = vmul.f32 %v2633, %v2419
          %v2636 = vmul.f32 %v2634, %v2424
          %2637 = vst [vmem:[#allocation3] sm:$0xff] %v2635
          %2638 = vst [vmem:[#allocation3 + $0x8] sm:$0xff] %v2636
        $region168: #{tpu_custom_call.1} parent=119 // pred_fallthru
          _
        %p2639 = scmp.eq.s32.totalorder %s49, 1
        // Predicated region
        $region169: #{tpu_custom_call.1} parent=119 // pred_check
          %p2640 = pneg %p2639
        $region170: #{tpu_custom_call.1} parent=119 // pred_check_branch
          %2642 = sbr.rel (%p2640) target = $region172
        $region171: #{tpu_custom_call.1} parent=119 // pred_region
          %v2643 = vmul.f32 %v2194, %v1961
          %v2644 = vmul.f32 %v2195, %v1966
          %v2645 = vmul.f32 %v2196, %v1971
          %v2646 = vmul.f32 %v2197, %v1976
          %v2647 = vmul.f32 %v2198, %v1981
          %v2648 = vmul.f32 %v2199, %v1986
          %v2649 = vmul.f32 %v2200, %v1991
          %v2650 = vmul.f32 %v2201, %v1996
          %v2651 = vmul.f32 %v2202, %v2001
          %v2652 = vmul.f32 %v2203, %v2006
          %v2653 = vmul.f32 %v2204, %v2011
          %v2654 = vmul.f32 %v2205, %v2016
          %v2655 = vmul.f32 %v2206, %v2021
          %v2656 = vmul.f32 %v2207, %v2026
          %v2657 = vmul.f32 %v2208, %v2031
          %v2658 = vmul.f32 %v2209, %v2036
          %v2659 = vpack.c.bf16 %v2644, %v2643
          %v2660 = vpack.c.bf16 %v2646, %v2645
          %v2661 = vpack.c.bf16 %v2648, %v2647
          %v2662 = vpack.c.bf16 %v2650, %v2649
          %v2663 = vpack.c.bf16 %v2652, %v2651
          %v2664 = vpack.c.bf16 %v2654, %v2653
          %v2665 = vpack.c.bf16 %v2656, %v2655
          %v2666 = vpack.c.bf16 %v2658, %v2657
          %2667 = vmatprep.subr.bf16.mxu0 0
          %2668 = vmatpush1.bf16.msra.mxu0 %v2659
          %2669 = vmatprep.subr.bf16.mxu0 0
          %2670 = vmatpush1.bf16.msra.mxu0 %v2660
          %2671 = vmatprep.subr.bf16.mxu0 0
          %2672 = vmatpush1.bf16.msra.mxu0 %v2661
          %2673 = vmatprep.subr.bf16.mxu0 0
          %2674 = vmatpush1.bf16.msra.mxu0 %v2662
          %2675 = vmatprep.subr.bf16.mxu0 0
          %2676 = vmatpush1.bf16.msra.mxu0 %v2663
          %2677 = vmatprep.subr.bf16.mxu0 0
          %2678 = vmatpush1.bf16.msra.mxu0 %v2664
          %2679 = vmatprep.subr.bf16.mxu0 0
          %2680 = vmatpush1.bf16.msra.mxu0 %v2665
          %2681 = vmatprep.subr.bf16.mxu0 0
          %2682 = vmatpush1.bf16.msra.mxu0 %v2666
          %2683 = vmatprep.subr.bf16.mxu0 0
          %2684 = vmatpush1.bf16.msra.mxu0 0
          %2685 = vmatprep.subr.bf16.mxu0 0
          %2686 = vmatpush1.bf16.msra.mxu0 0
          %2687 = vmatprep.subr.bf16.mxu0 0
          %2688 = vmatpush1.bf16.msra.mxu0 0
          %2689 = vmatprep.subr.bf16.mxu0 0
          %2690 = vmatpush1.bf16.msra.mxu0 0
          %2691 = vmatprep.subr.bf16.mxu0 0
          %2692 = vmatpush1.bf16.msra.mxu0 0
          %2693 = vmatprep.subr.bf16.mxu0 0
          %2694 = vmatpush1.bf16.msra.mxu0 0
          %2695 = vmatprep.subr.bf16.mxu0 0
          %2696 = vmatpush1.bf16.msra.mxu0 0
          %2697 = vmatprep.subr.bf16.mxu0 0
          %2698 = vmatpush1.bf16.msra.mxu0 0
          %2699 = vmatprep.mubr.bf16.mxu0 0
          %2700 = vmatmul.mubr.bf16.gmra.mrb[0].mxu0 %v1217
          %v2701 = vpop.f32.mrb[0].mxu0
          %v2702 = vadd.f32 0.0, %v2701
          %v2703 = vpop.f32.mrb[0].mxu0
          %v2704 = vpop.f32.mrb[0].mxu0
          %v2705 = vadd.f32 0.0, %v2704
          %v2706 = vpop.f32.mrb[0].mxu0
          %2707 = vdwg.mxu0
          %v2708 = vld [vmem:[%s3] sm:$0xff]
          %v2709 = vld [vmem:[%s3 + $0x8] sm:$0xff]
          %2711 = vset.pattern.permute.xlu0 0
          %2712 = vperm.xlu0 %2711, %v2708
          %v2713 = vpop.permute.xlu0 %2712
          %2716 = vset.pattern.permute.xlu0 0
          %2717 = vperm.xlu0 %2716, %v2709
          %v2718 = vpop.permute.xlu0 %2717
          %v2720 = vmul.f32 %v2702, %v2713
          %v2721 = vmul.f32 %v2705, %v2718
          %v2722 = vld [vmem:[#allocation10] sm:$0x1]
          %v2724 = vlaneseq
          %v2725 = vshrl.u32 %v2724, 7
          %v2726 = vsub.s32 0, %v2725
          %v2727 = vrot.slane %v2722, %v2726
          %v2729 = vadd.f32 %v2720, %v2727
          %v2730 = vadd.f32 %v2721, %v2727
          %v2731 = vpack.c.bf16 %v2730, %v2729
          %v2732 = vld [vmem:[%s8] sm:$0xf]
          %v2733 = vld [vmem:[%s8 + $0x4] sm:$0xf]
          %v2734 = vld [vmem:[%s8 + $0x8] sm:$0xf]
          %v2735 = vld [vmem:[%s8 + $0xc] sm:$0xf]
          %v2736 = vld [vmem:[%s8 + $0x10] sm:$0xf]
          %v2737 = vld [vmem:[%s8 + $0x14] sm:$0xf]
          %v2738 = vld [vmem:[%s8 + $0x18] sm:$0xf]
          %v2739 = vld [vmem:[%s8 + $0x1c] sm:$0xf]
          %v2740 = vld [vmem:[%s8 + $0x20] sm:$0xf]
          %v2741 = vld [vmem:[%s8 + $0x24] sm:$0xf]
          %v2742 = vld [vmem:[%s8 + $0x28] sm:$0xf]
          %v2743 = vld [vmem:[%s8 + $0x2c] sm:$0xf]
          %v2744 = vld [vmem:[%s8 + $0x30] sm:$0xf]
          %v2745 = vld [vmem:[%s8 + $0x34] sm:$0xf]
          %v2746 = vld [vmem:[%s8 + $0x38] sm:$0xf]
          %v2747 = vld [vmem:[%s8 + $0x3c] sm:$0xf]
          %v2748 = vld [vmem:[#allocation12] sm:$0x1]
          %v2750 = vlaneseq
          %v2751 = vshrl.u32 %v2750, 7
          %v2752 = vsub.s32 0, %v2751
          %v2753 = vrot.slane %v2748, %v2752
          %v2771 = vunpack.c.l.b16 %v2732
          %v2772 = vunpack.c.l.b16 %v2733
          %v2773 = vunpack.c.l.b16 %v2734
          %v2774 = vunpack.c.l.b16 %v2735
          %v2775 = vunpack.c.l.b16 %v2736
          %v2776 = vunpack.c.l.b16 %v2737
          %v2777 = vunpack.c.l.b16 %v2738
          %v2778 = vunpack.c.l.b16 %v2739
          %v2779 = vunpack.c.l.b16 %v2740
          %v2780 = vunpack.c.l.b16 %v2741
          %v2781 = vunpack.c.l.b16 %v2742
          %v2782 = vunpack.c.l.b16 %v2743
          %v2783 = vunpack.c.l.b16 %v2744
          %v2784 = vunpack.c.l.b16 %v2745
          %v2785 = vunpack.c.l.b16 %v2746
          %v2786 = vunpack.c.l.b16 %v2747
          %v2787 = vpack.c.b16 %v2772, %v2771
          %v2788 = vpack.c.b16 %v2774, %v2773
          %v2789 = vpack.c.b16 %v2776, %v2775
          %v2790 = vpack.c.b16 %v2778, %v2777
          %v2791 = vpack.c.b16 %v2780, %v2779
          %v2792 = vpack.c.b16 %v2782, %v2781
          %v2793 = vpack.c.b16 %v2784, %v2783
          %v2794 = vpack.c.b16 %v2786, %v2785
          %2803 = vmatprep.subr.bf16.mxu0 0
          %2804 = vmatpush1.bf16.msra.mxu0 %v2787
          %2805 = vmatprep.subr.bf16.mxu0 0
          %2806 = vmatpush1.bf16.msra.mxu0 %v2788
          %2807 = vmatprep.subr.bf16.mxu0 0
          %2808 = vmatpush1.bf16.msra.mxu0 %v2789
          %2809 = vmatprep.subr.bf16.mxu0 0
          %2810 = vmatpush1.bf16.msra.mxu0 %v2790
          %2811 = vmatprep.subr.bf16.mxu0 0
          %2812 = vmatpush1.bf16.msra.mxu0 %v2791
          %2813 = vmatprep.subr.bf16.mxu0 0
          %2814 = vmatpush1.bf16.msra.mxu0 %v2792
          %2815 = vmatprep.subr.bf16.mxu0 0
          %2816 = vmatpush1.bf16.msra.mxu0 %v2793
          %2817 = vmatprep.subr.bf16.mxu0 0
          %2818 = vmatpush1.bf16.msra.mxu0 %v2794
          %2819 = vmatprep.subr.bf16.mxu0 0
          %2820 = vmatpush1.bf16.msra.mxu0 0
          %2821 = vmatprep.subr.bf16.mxu0 0
          %2822 = vmatpush1.bf16.msra.mxu0 0
          %2823 = vmatprep.subr.bf16.mxu0 0
          %2824 = vmatpush1.bf16.msra.mxu0 0
          %2825 = vmatprep.subr.bf16.mxu0 0
          %2826 = vmatpush1.bf16.msra.mxu0 0
          %2827 = vmatprep.subr.bf16.mxu0 0
          %2828 = vmatpush1.bf16.msra.mxu0 0
          %2829 = vmatprep.subr.bf16.mxu0 0
          %2830 = vmatpush1.bf16.msra.mxu0 0
          %2831 = vmatprep.subr.bf16.mxu0 0
          %2832 = vmatpush1.bf16.msra.mxu0 0
          %2833 = vmatprep.subr.bf16.mxu0 0
          %2834 = vmatpush1.bf16.msra.mxu0 0
          %2835 = vmatprep.mubr.bf16.mxu0 0
          %2836 = vmatmul.mubr.bf16.gmra.mrb[0].mxu0 %v2731
          %v2837 = vpop.f32.mrb[0].mxu0
          %v2838 = vadd.f32 %v2753, %v2837
          %v2839 = vpop.f32.mrb[0].mxu0
          %v2840 = vpop.f32.mrb[0].mxu0
          %v2841 = vadd.f32 %v2753, %v2840
          %v2842 = vpop.f32.mrb[0].mxu0
          %2843 = vdwg.mxu0
          %2844 = vst [vmem:[#allocation21] sm:$0xff] %v2838
          %2845 = vst [vmem:[#allocation21 + $0x8] sm:$0xff] %v2841
        $region172: #{tpu_custom_call.1} parent=119 // pred_fallthru
          _
        // Predicated region
        $region173: #{tpu_custom_call.1} parent=119 // pred_check
          %p2846 = pneg %p662
        $region174: #{tpu_custom_call.1} parent=119 // pred_check_branch
          %2848 = sbr.rel (%p2846) target = $region176
        $region175: #{tpu_custom_call.1} parent=119 // pred_region
          %s2850 = ssub.s32 256, 256
          %2851 = vsyncadd [#allocation6], %s2850
          %s2852 = sshll.u32 [#allocation21], 4
          %s2853 = int_to_ptr.vmem [resolvable:$true] %s2852
          %2858 = dma.vmem_to_hbm [thread:$0]  %s2853, 256, %s25, [#allocation6], 128, 128, 8
        $region176: #{tpu_custom_call.1} parent=119 // pred_fallthru
          _
        // Predicated region
        $region177: #{tpu_custom_call.1} parent=119 // pred_check
          %p2859 = pneg %p662
        $region178: #{tpu_custom_call.1} parent=119 // pred_check_branch
          %2861 = sbr.rel (%p2859) target = $region180
        $region179: #{tpu_custom_call.1} parent=119 // pred_region
          %2862 = dma.done [#allocation6], 256
        $region180: #{tpu_custom_call.1} parent=119 // pred_fallthru
          _
      $region120: #{tpu_custom_call.1} parent=5 // pred_fallthru
        _
      %p2863 = scmp.le.s32.totalorder 2, %s44
      // Predicated region
      $region181: #{tpu_custom_call.1} parent=5 // pred_check
        %p2864 = pneg %p2863
      $region182: #{tpu_custom_call.1} parent=5 // pred_check_branch
        %2866 = sbr.rel (%p2864) target = $region184
      $region183: #{tpu_custom_call.1} parent=5 // pred_region
        %s2867 = ssub.s32 %s44, 2
      $region184: #{tpu_custom_call.1} parent=5 // pred_fallthru
        _
    $region6: #{tpu_custom_call.1} parent=1 // loop_footer
      %s48 = sadd.s32 1, %s44
    $region7: #{tpu_custom_call.1} parent=1 // loop_footer_branch
      %43 = sbr.rel target = $region3
    $region8: #{tpu_custom_call.1} parent=1 // loop_exit
      _
    %2868 = vsyncpa [#allocation5], 1
    %s2869 = scalar_lea.sflag [#allocation5], 1
    %2870 = vsyncpa %s2869, 1
    %2871 = vsyncpa [#allocation8], 1
    %2872 = vsyncpa [#allocation11], 1
    %2873 = vsyncpa [#allocation14], 1
    %s2874 = scalar_lea.sflag [#allocation14], 1
    %2875 = vsyncpa %s2874, 1
    %2876 = vsyncpa [#allocation17], 1
    %s2877 = scalar_lea.sflag [#allocation17], 1
    %2878 = vsyncpa %s2877, 1
    %2879 = vsyncpa [#allocation20], 1
    %s2880 = scalar_lea.sflag [#allocation20], 1
    %2881 = vsyncpa %s2880, 1
    %2882 = vsyncpa [#allocation6], 1
    %s2883 = scalar_lea.sflag [#allocation6], 1
    %2884 = vsyncpa %s2883, 1

</llo_original>
